<compile_context>
chip_gen: v7x
topology: tpu7x:2x2x1
jax: 0.10.0
libtpu: 0.0.40
codegen_flags: <defaults>
</compile_context>

<pallas_src>
import jax
import jax.numpy as jnp
from jax import lax
from jax.experimental import pallas as pl
from jax.experimental.pallas import tpu as pltpu


def _round_up(n: int, m: int) -> int:
    return ((n + m - 1) // m) * m


def _make_lstm_kernel(num_layers: int, seq_len: int, b_pad: int, h_pad: int):
    G = 4 * h_pad
    n_in = 1 + 3 * num_layers + 2  # x, (w_ih, w_hh, b) per layer, fc_w, fc_b

    def _sigmoid(z):
        # One EUP push (tanh) instead of exp + reciprocal.
        return 0.5 * jnp.tanh(0.5 * z) + 0.5

    def kernel(*args):
        x_ref = args[0]                                   # (T*Bp, Dp)   bf16
        layer_refs = [args[1 + 3 * l: 4 + 3 * l] for l in range(num_layers)]
        wfc_ref = args[n_in - 2]                          # (Hp, Op)     bf16
        bfc_ref = args[n_in - 1]                          # (1, Op)      f32
        out_ref = args[n_in]                              # (Bp, Op)     f32
        seq_ref, gin_ref, h_ref, c_ref = args[n_in + 1:]  # scratch

        for l in range(num_layers):
            wih_ref, whh_ref, b_ref = layer_refs[l]
            last_layer = (l == num_layers - 1)

            # ---- (1) whole-sequence input projection: one big bf16 MXU matmul
            #      (T*Bp, D) @ (D, 4Hp) -> f32 accum, + bias once, stored bf16.
            inp2d = x_ref[...] if l == 0 else seq_ref[...]
            gin_ref[...] = (
                jnp.dot(inp2d, wih_ref[...], preferred_element_type=jnp.float32)
                + b_ref[...]
            ).astype(jnp.bfloat16)

            # ---- (2) serial recurrence: one small matmul + gates per step.
            h_ref[...] = jnp.zeros_like(h_ref)            # bf16
            c_ref[...] = jnp.zeros_like(c_ref)            # f32

            def step(t, carry=0):
                if isinstance(t, int):                    # unrolled static loop
                    r0 = t * b_pad
                else:                                     # fori_loop index
                    r0 = pl.multiple_of(t * b_pad, b_pad)
                # w_hh read stays inside the step (no long live range / spills).
                gates = jnp.dot(h_ref[...], whh_ref[...],
                                preferred_element_type=jnp.float32) \
                    + gin_ref[pl.ds(r0, b_pad), :].astype(jnp.float32)
                i_g = _sigmoid(gates[:, 0 * h_pad:1 * h_pad])
                f_g = _sigmoid(gates[:, 1 * h_pad:2 * h_pad])
                g_g = jnp.tanh(gates[:, 2 * h_pad:3 * h_pad])
                o_g = _sigmoid(gates[:, 3 * h_pad:4 * h_pad])
                c_new = f_g * c_ref[...] + i_g * g_g
                h_new = (o_g * jnp.tanh(c_new)).astype(jnp.bfloat16)
                c_ref[...] = c_new
                h_ref[...] = h_new
                if not last_layer:                        # dead store on top layer
                    seq_ref[pl.ds(r0, b_pad), :] = h_new
                return carry

            if seq_len <= 32:
                for t in range(seq_len):                  # short known T: unroll
                    step(t)
            else:
                lax.fori_loop(0, seq_len, step, 0, unroll=8)

        # ---- fc on the top layer's last-timestep hidden state (lane-dense out)
        out = jnp.dot(h_ref[...], wfc_ref[...],
                      preferred_element_type=jnp.float32) + bfc_ref[...]
        out_ref[...] = out.astype(out_ref.dtype)

    return kernel


def lstm_model_forward(x, params):
    """x: (B, T, D_in) float32, batch_first like the PyTorch module. Returns (B, O) f32."""
    B, T, D = x.shape
    num_layers = len(params["lstm"])
    H = params["lstm"][0]["w_hh"].shape[1]
    O = params["fc"]["w"].shape[0]

    b_pad = _round_up(max(B, 16), 16)   # sublane / bf16 packing tile
    h_pad = _round_up(H, 128)           # lane-aligned gate blocks
    d_pad = _round_up(D, 128)
    o_pad = _round_up(O, 128)           # lane-dense output store
    G = 4 * h_pad

    # ---- input: batch-first -> time-major, zero-padded, bf16, flattened to 2D.
    x_tm = jnp.transpose(x.astype(jnp.float32), (1, 0, 2))          # (T, B, D)
    x_p = jnp.zeros((T, b_pad, d_pad), jnp.float32).at[:, :B, :D].set(x_tm)
    x_p = x_p.reshape(T * b_pad, d_pad).astype(jnp.bfloat16)

    def pack_w(w, rows, row_pad):
        # torch layout (4H, rows) -> (row_pad, 4*h_pad), gates lane-aligned at
        # multiples of h_pad, padded rows/cols zero.
        wt = jnp.transpose(w.astype(jnp.float32))                   # (rows, 4H)
        out = jnp.zeros((row_pad, G), jnp.float32)
        for g in range(4):
            out = out.at[:rows, g * h_pad:g * h_pad + H].set(
                wt[:, g * H:(g + 1) * H])
        return out.astype(jnp.bfloat16)

    def pack_b(b_ih, b_hh):
        b = (b_ih + b_hh).astype(jnp.float32)                       # (4H,)
        out = jnp.zeros((1, G), jnp.float32)
        for g in range(4):
            out = out.at[0, g * h_pad:g * h_pad + H].set(b[g * H:(g + 1) * H])
        return out

    flat_inputs = [x_p]
    for l, lp in enumerate(params["lstm"]):
        rows, row_pad = (D, d_pad) if l == 0 else (H, h_pad)
        flat_inputs.append(pack_w(lp["w_ih"], rows, row_pad))       # (rowp, 4Hp) bf16
        flat_inputs.append(pack_w(lp["w_hh"], H, h_pad))            # (Hp, 4Hp)   bf16
        flat_inputs.append(pack_b(lp["b_ih"], lp["b_hh"]))          # (1, 4Hp)    f32

    wfc = jnp.zeros((h_pad, o_pad), jnp.float32)
    wfc = wfc.at[:H, :O].set(jnp.transpose(params["fc"]["w"].astype(jnp.float32)))
    flat_inputs.append(wfc.astype(jnp.bfloat16))                    # (Hp, Op) bf16
    bfc = jnp.zeros((1, o_pad), jnp.float32).at[0, :O].set(
        params["fc"]["b"].astype(jnp.float32))
    flat_inputs.append(bfc)                                         # (1, Op) f32

    # ---- VMEM budget: derive from actual buffer sizes and chip capacity.
    needed = sum(int(a.size) * a.dtype.itemsize for a in flat_inputs)
    needed += b_pad * o_pad * 4                                     # output (f32)
    needed += T * b_pad * h_pad * 2                                 # seq scratch (bf16)
    needed += T * b_pad * G * 2                                     # gin scratch (bf16)
    needed += b_pad * h_pad * (2 + 4)                               # h (bf16) + c (f32)
    try:
        cap = int(pltpu.get_tpu_info().vmem_capacity_bytes)
    except Exception:
        cap = 64 * 1024 * 1024                                      # conservative (v7x)
    # 2x margin for tile-padding / compiler internals; if needed > cap the fix
    # is the time/layer chunking in the TODO above, not a bigger limit.
    vmem_limit = min(cap, max(2 * needed + (4 << 20), 16 << 20))

    kernel = _make_lstm_kernel(num_layers, T, b_pad, h_pad)
    vmem = pl.BlockSpec(memory_space=pltpu.MemorySpace.VMEM)

    out = pl.pallas_call(
        kernel,
        out_shape=jax.ShapeDtypeStruct((b_pad, o_pad), jnp.float32),
        in_specs=[vmem] * len(flat_inputs),
        out_specs=vmem,
        scratch_shapes=[
            pltpu.VMEM((T * b_pad, h_pad), jnp.bfloat16),   # layer h-sequence
            pltpu.VMEM((T * b_pad, G), jnp.bfloat16),       # input projections
            pltpu.VMEM((b_pad, h_pad), jnp.bfloat16),       # h state (bf16)
            pltpu.VMEM((b_pad, h_pad), jnp.float32),        # c state (f32)
        ],
        compiler_params=pltpu.CompilerParams(vmem_limit_bytes=vmem_limit),
    )(*flat_inputs)
    return out[:B, :O]


def init_params(key, input_size, hidden_size, num_layers, output_size):
    """Deterministic init matching torch.nn.LSTM / Linear shapes (U(-k, k))."""
    k_lstm = 1.0 / jnp.sqrt(hidden_size)
    params = {"lstm": [], "fc": {}}
    for l in range(num_layers):
        d_in = input_size if l == 0 else hidden_size
        key, k1, k2, k3, k4 = jax.random.split(key, 5)
        params["lstm"].append({
            "w_ih": jax.random.uniform(k1, (4 * hidden_size, d_in),
                                       jnp.float32, -k_lstm, k_lstm),
            "w_hh": jax.random.uniform(k2, (4 * hidden_size, hidden_size),
                                       jnp.float32, -k_lstm, k_lstm),
            "b_ih": jax.random.uniform(k3, (4 * hidden_size,),
                                       jnp.float32, -k_lstm, k_lstm),
            "b_hh": jax.random.uniform(k4, (4 * hidden_size,),
                                       jnp.float32, -k_lstm, k_lstm),
        })
    k_fc = 1.0 / jnp.sqrt(hidden_size)
    key, k1, k2 = jax.random.split(key, 3)
    params["fc"]["w"] = jax.random.uniform(k1, (output_size, hidden_size),
                                           jnp.float32, -k_fc, k_fc)
    params["fc"]["b"] = jax.random.uniform(k2, (output_size,),
                                           jnp.float32, -k_fc, k_fc)
    return params


def lstm_model_ref(x, params, emulate_kernel=False):
    """Pure-JAX reference.

    emulate_kernel=False: exact PyTorch f32 semantics.
    emulate_kernel=True : mimics the kernel's bf16 matmuls, bf16 gin storage
                          and tanh-based sigmoid (f32 gate math / c state).
    """
    B, T, _ = x.shape
    H = params["lstm"][0]["w_hh"].shape[1]
    mdt = jnp.bfloat16 if emulate_kernel else jnp.float32

    def mm(a, b):
        return jnp.dot(a.astype(mdt), b.astype(mdt),
                       preferred_element_type=jnp.float32)

    def sig(z):
        return 0.5 * jnp.tanh(0.5 * z) + 0.5 if emulate_kernel else jax.nn.sigmoid(z)

    inp = x.astype(jnp.float32)
    for lp in params["lstm"]:
        d_in = inp.shape[-1]
        proj = mm(inp.reshape(B * T, d_in), lp["w_ih"].T).reshape(B, T, 4 * H)
        proj = proj + lp["b_ih"] + lp["b_hh"]
        if emulate_kernel:
            proj = proj.astype(jnp.bfloat16).astype(jnp.float32)
        h = jnp.zeros((B, H), jnp.float32)
        c = jnp.zeros((B, H), jnp.float32)
        outs = []
        for t in range(T):
            gates = proj[:, t, :] + mm(h, lp["w_hh"].T)
            i = sig(gates[:, 0 * H:1 * H])
            f = sig(gates[:, 1 * H:2 * H])
            g = jnp.tanh(gates[:, 2 * H:3 * H])
            o = sig(gates[:, 3 * H:4 * H])
            c = f * c + i * g
            h = o * jnp.tanh(c)
            outs.append(h)
        inp = jnp.stack(outs, axis=1)
    return mm(inp[:, -1, :], params["fc"]["w"].T) + params["fc"]["b"]


if __name__ == "__main__":
    # Small shapes consistent with the module's forward pass.
    batch, seq, input_size, hidden_size, num_layers, output_size = 2, 8, 16, 32, 2, 4

    key = jax.random.PRNGKey(0)
    key, kx, kp = jax.random.split(key, 3)
    x = jax.random.normal(kx, (batch, seq, input_size), jnp.float32)
    params = init_params(kp, input_size, hidden_size, num_layers, output_size)

    out = jax.block_until_ready(lstm_model_forward(x, params))
    assert out.shape == (batch, output_size)

    # Tight check vs a reference that emulates the kernel's bf16/tanh-sigmoid math.
    ref_emu = lstm_model_ref(x, params, emulate_kernel=True)
    assert jnp.allclose(out, ref_emu, rtol=5e-3, atol=5e-3), \
        "mismatch vs kernel-emulating JAX reference"

    # Loose check vs the pure-f32 reference (exact PyTorch semantics).
    ref_f32 = lstm_model_ref(x, params, emulate_kernel=False)
    assert jnp.allclose(out, ref_f32, rtol=5e-2, atol=5e-2), \
        "mismatch vs f32 JAX reference"

    print("KERNEL_OK")
</pallas_src>

<mosaic_0001>
module attributes {stable_mosaic.version = 11 : i64} {
  func.func @kernel(%arg0: memref<128x128xbf16, #tpu.memory_space<vmem>>, %arg1: memref<128x512xbf16, #tpu.memory_space<vmem>>, %arg2: memref<128x512xbf16, #tpu.memory_space<vmem>>, %arg3: memref<1x512xf32, #tpu.memory_space<vmem>>, %arg4: memref<128x512xbf16, #tpu.memory_space<vmem>>, %arg5: memref<128x512xbf16, #tpu.memory_space<vmem>>, %arg6: memref<1x512xf32, #tpu.memory_space<vmem>>, %arg7: memref<128x128xbf16, #tpu.memory_space<vmem>>, %arg8: memref<1x128xf32, #tpu.memory_space<vmem>>, %arg9: memref<16x128xf32, #tpu.memory_space<vmem>>, %arg10: memref<128x128xbf16, #tpu.memory_space<vmem>>, %arg11: memref<128x512xbf16, #tpu.memory_space<vmem>>, %arg12: memref<16x128xbf16, #tpu.memory_space<vmem>>, %arg13: memref<16x128xf32, #tpu.memory_space<vmem>>) attributes {dimension_semantics = [], scalar_prefetch = 0 : i64, scratch_operands = 4 : i64, tpu.core_type = #tpu.core_type<tc>} {
    %c0 = arith.constant 0 : index
    %c0_0 = arith.constant 0 : index
    %0 = vector.load %arg0[%c0, %c0_0] : memref<128x128xbf16, #tpu.memory_space<vmem>>, vector<128x128xbf16>
    %c0_1 = arith.constant 0 : index
    %c0_2 = arith.constant 0 : index
    %1 = vector.load %arg1[%c0_1, %c0_2] : memref<128x512xbf16, #tpu.memory_space<vmem>>, vector<128x512xbf16>
    %cst = arith.constant dense<0.000000e+00> : vector<128x512xf32>
    %2 = tpu.matmul %0, %1, %cst {dimension_numbers = #tpu.dot_dimension_numbers<[1], [0], [0], [1], [0, 0, 1, 1], [], []>} : vector<128x128xbf16>, vector<128x512xbf16>, vector<128x512xf32> -> vector<128x512xf32>
    %c0_3 = arith.constant 0 : index
    %c0_4 = arith.constant 0 : index
    %3 = vector.load %arg3[%c0_3, %c0_4] : memref<1x512xf32, #tpu.memory_space<vmem>>, vector<1x512xf32>
    %4 = vector.broadcast %3 : vector<1x512xf32> to vector<128x512xf32>
    %5 = arith.addf %2, %4 : vector<128x512xf32>
    %6 = arith.truncf %5 : vector<128x512xf32> to vector<128x512xbf16>
    %c0_5 = arith.constant 0 : index
    %c0_6 = arith.constant 0 : index
    %7 = vector.load %arg11[%c0_5, %c0_6] : memref<128x512xbf16, #tpu.memory_space<vmem>>, vector<128x512xbf16>
    tpu.vector_store %arg11[%c0_5, %c0_6], %6 {strides = array<i32>} : memref<128x512xbf16, #tpu.memory_space<vmem>>, vector<128x512xbf16>,
    %cst_7 = arith.constant 0.000000e+00 : bf16
    %8 = vector.broadcast %cst_7 : bf16 to vector<16x128xbf16>
    %c0_8 = arith.constant 0 : index
    %c0_9 = arith.constant 0 : index
    %9 = vector.load %arg12[%c0_8, %c0_9] : memref<16x128xbf16, #tpu.memory_space<vmem>>, vector<16x128xbf16>
    tpu.vector_store %arg12[%c0_8, %c0_9], %8 {strides = array<i32>} : memref<16x128xbf16, #tpu.memory_space<vmem>>, vector<16x128xbf16>,
    %cst_10 = arith.constant 0.000000e+00 : f32
    %10 = vector.broadcast %cst_10 : f32 to vector<16x128xf32>
    %c0_11 = arith.constant 0 : index
    %c0_12 = arith.constant 0 : index
    %11 = vector.load %arg13[%c0_11, %c0_12] : memref<16x128xf32, #tpu.memory_space<vmem>>, vector<16x128xf32>
    tpu.vector_store %arg13[%c0_11, %c0_12], %10 {strides = array<i32>} : memref<16x128xf32, #tpu.memory_space<vmem>>, vector<16x128xf32>,
    %c0_13 = arith.constant 0 : index
    %c0_14 = arith.constant 0 : index
    %12 = vector.load %arg12[%c0_13, %c0_14] : memref<16x128xbf16, #tpu.memory_space<vmem>>, vector<16x128xbf16>
    %c0_15 = arith.constant 0 : index
    %c0_16 = arith.constant 0 : index
    %13 = vector.load %arg2[%c0_15, %c0_16] : memref<128x512xbf16, #tpu.memory_space<vmem>>, vector<128x512xbf16>
    %cst_17 = arith.constant dense<0.000000e+00> : vector<16x512xf32>
    %14 = tpu.matmul %12, %13, %cst_17 {dimension_numbers = #tpu.dot_dimension_numbers<[1], [0], [0], [1], [0, 0, 1, 1], [], []>} : vector<16x128xbf16>, vector<128x512xbf16>, vector<16x512xf32> -> vector<16x512xf32>
    %c0_18 = arith.constant 0 : index
    %c0_19 = arith.constant 0 : index
    %15 = vector.load %arg11[%c0_18, %c0_19] : memref<128x512xbf16, #tpu.memory_space<vmem>>, vector<16x512xbf16>
    %16 = arith.extf %15 : vector<16x512xbf16> to vector<16x512xf32>
    %17 = arith.addf %14, %16 : vector<16x512xf32>
    %18 = vector.extract_strided_slice %17 {offsets = [0, 0], sizes = [16, 128], strides = [1, 1]} : vector<16x512xf32> to vector<16x128xf32>
    %cst_20 = arith.constant 5.000000e-01 : f32
    %19 = vector.broadcast %cst_20 : f32 to vector<16x128xf32>
    %20 = arith.mulf %19, %18 : vector<16x128xf32>
    %21 = math.tanh %20 : vector<16x128xf32>
    %cst_21 = arith.constant 5.000000e-01 : f32
    %22 = vector.broadcast %cst_21 : f32 to vector<16x128xf32>
    %23 = arith.mulf %22, %21 : vector<16x128xf32>
    %cst_22 = arith.constant 5.000000e-01 : f32
    %24 = vector.broadcast %cst_22 : f32 to vector<16x128xf32>
    %25 = arith.addf %23, %24 : vector<16x128xf32>
    %26 = vector.extract_strided_slice %17 {offsets = [0, 128], sizes = [16, 128], strides = [1, 1]} : vector<16x512xf32> to vector<16x128xf32>
    %cst_23 = arith.constant 5.000000e-01 : f32
    %27 = vector.broadcast %cst_23 : f32 to vector<16x128xf32>
    %28 = arith.mulf %27, %26 : vector<16x128xf32>
    %29 = math.tanh %28 : vector<16x128xf32>
    %cst_24 = arith.constant 5.000000e-01 : f32
    %30 = vector.broadcast %cst_24 : f32 to vector<16x128xf32>
    %31 = arith.mulf %30, %29 : vector<16x128xf32>
    %cst_25 = arith.constant 5.000000e-01 : f32
    %32 = vector.broadcast %cst_25 : f32 to vector<16x128xf32>
    %33 = arith.addf %31, %32 : vector<16x128xf32>
    %34 = vector.extract_strided_slice %17 {offsets = [0, 256], sizes = [16, 128], strides = [1, 1]} : vector<16x512xf32> to vector<16x128xf32>
    %35 = math.tanh %34 : vector<16x128xf32>
    %36 = vector.extract_strided_slice %17 {offsets = [0, 384], sizes = [16, 128], strides = [1, 1]} : vector<16x512xf32> to vector<16x128xf32>
    %cst_26 = arith.constant 5.000000e-01 : f32
    %37 = vector.broadcast %cst_26 : f32 to vector<16x128xf32>
    %38 = arith.mulf %37, %36 : vector<16x128xf32>
    %39 = math.tanh %38 : vector<16x128xf32>
    %cst_27 = arith.constant 5.000000e-01 : f32
    %40 = vector.broadcast %cst_27 : f32 to vector<16x128xf32>
    %41 = arith.mulf %40, %39 : vector<16x128xf32>
    %cst_28 = arith.constant 5.000000e-01 : f32
    %42 = vector.broadcast %cst_28 : f32 to vector<16x128xf32>
    %43 = arith.addf %41, %42 : vector<16x128xf32>
    %c0_29 = arith.constant 0 : index
    %c0_30 = arith.constant 0 : index
    %44 = vector.load %arg13[%c0_29, %c0_30] : memref<16x128xf32, #tpu.memory_space<vmem>>, vector<16x128xf32>
    %45 = arith.mulf %33, %44 : vector<16x128xf32>
    %46 = arith.mulf %25, %35 : vector<16x128xf32>
    %47 = arith.addf %45, %46 : vector<16x128xf32>
    %48 = math.tanh %47 : vector<16x128xf32>
    %49 = arith.mulf %43, %48 : vector<16x128xf32>
    %50 = arith.truncf %49 : vector<16x128xf32> to vector<16x128xbf16>
    %c0_31 = arith.constant 0 : index
    %c0_32 = arith.constant 0 : index
    %51 = vector.load %arg13[%c0_31, %c0_32] : memref<16x128xf32, #tpu.memory_space<vmem>>, vector<16x128xf32>
    tpu.vector_store %arg13[%c0_31, %c0_32], %47 {strides = array<i32>} : memref<16x128xf32, #tpu.memory_space<vmem>>, vector<16x128xf32>,
    %c0_33 = arith.constant 0 : index
    %c0_34 = arith.constant 0 : index
    %52 = vector.load %arg12[%c0_33, %c0_34] : memref<16x128xbf16, #tpu.memory_space<vmem>>, vector<16x128xbf16>
    tpu.vector_store %arg12[%c0_33, %c0_34], %50 {strides = array<i32>} : memref<16x128xbf16, #tpu.memory_space<vmem>>, vector<16x128xbf16>,
    %c0_35 = arith.constant 0 : index
    %c0_36 = arith.constant 0 : index
    %53 = vector.load %arg10[%c0_35, %c0_36] : memref<128x128xbf16, #tpu.memory_space<vmem>>, vector<16x128xbf16>
    tpu.vector_store %arg10[%c0_35, %c0_36], %50 {strides = array<i32>} : memref<128x128xbf16, #tpu.memory_space<vmem>>, vector<16x128xbf16>,
    %c0_37 = arith.constant 0 : index
    %c0_38 = arith.constant 0 : index
    %54 = vector.load %arg12[%c0_37, %c0_38] : memref<16x128xbf16, #tpu.memory_space<vmem>>, vector<16x128xbf16>
    %c0_39 = arith.constant 0 : index
    %c0_40 = arith.constant 0 : index
    %55 = vector.load %arg2[%c0_39, %c0_40] : memref<128x512xbf16, #tpu.memory_space<vmem>>, vector<128x512xbf16>
    %cst_41 = arith.constant dense<0.000000e+00> : vector<16x512xf32>
    %56 = tpu.matmul %54, %55, %cst_41 {dimension_numbers = #tpu.dot_dimension_numbers<[1], [0], [0], [1], [0, 0, 1, 1], [], []>} : vector<16x128xbf16>, vector<128x512xbf16>, vector<16x512xf32> -> vector<16x512xf32>
    %c16 = arith.constant 16 : index
    %c0_42 = arith.constant 0 : index
    %57 = vector.load %arg11[%c16, %c0_42] : memref<128x512xbf16, #tpu.memory_space<vmem>>, vector<16x512xbf16>
    %58 = arith.extf %57 : vector<16x512xbf16> to vector<16x512xf32>
    %59 = arith.addf %56, %58 : vector<16x512xf32>
    %60 = vector.extract_strided_slice %59 {offsets = [0, 0], sizes = [16, 128], strides = [1, 1]} : vector<16x512xf32> to vector<16x128xf32>
    %cst_43 = arith.constant 5.000000e-01 : f32
    %61 = vector.broadcast %cst_43 : f32 to vector<16x128xf32>
    %62 = arith.mulf %61, %60 : vector<16x128xf32>
    %63 = math.tanh %62 : vector<16x128xf32>
    %cst_44 = arith.constant 5.000000e-01 : f32
    %64 = vector.broadcast %cst_44 : f32 to vector<16x128xf32>
    %65 = arith.mulf %64, %63 : vector<16x128xf32>
    %cst_45 = arith.constant 5.000000e-01 : f32
    %66 = vector.broadcast %cst_45 : f32 to vector<16x128xf32>
    %67 = arith.addf %65, %66 : vector<16x128xf32>
    %68 = vector.extract_strided_slice %59 {offsets = [0, 128], sizes = [16, 128], strides = [1, 1]} : vector<16x512xf32> to vector<16x128xf32>
    %cst_46 = arith.constant 5.000000e-01 : f32
    %69 = vector.broadcast %cst_46 : f32 to vector<16x128xf32>
    %70 = arith.mulf %69, %68 : vector<16x128xf32>
    %71 = math.tanh %70 : vector<16x128xf32>
    %cst_47 = arith.constant 5.000000e-01 : f32
    %72 = vector.broadcast %cst_47 : f32 to vector<16x128xf32>
    %73 = arith.mulf %72, %71 : vector<16x128xf32>
    %cst_48 = arith.constant 5.000000e-01 : f32
    %74 = vector.broadcast %cst_48 : f32 to vector<16x128xf32>
    %75 = arith.addf %73, %74 : vector<16x128xf32>
    %76 = vector.extract_strided_slice %59 {offsets = [0, 256], sizes = [16, 128], strides = [1, 1]} : vector<16x512xf32> to vector<16x128xf32>
    %77 = math.tanh %76 : vector<16x128xf32>
    %78 = vector.extract_strided_slice %59 {offsets = [0, 384], sizes = [16, 128], strides = [1, 1]} : vector<16x512xf32> to vector<16x128xf32>
    %cst_49 = arith.constant 5.000000e-01 : f32
    %79 = vector.broadcast %cst_49 : f32 to vector<16x128xf32>
    %80 = arith.mulf %79, %78 : vector<16x128xf32>
    %81 = math.tanh %80 : vector<16x128xf32>
    %cst_50 = arith.constant 5.000000e-01 : f32
    %82 = vector.broadcast %cst_50 : f32 to vector<16x128xf32>
    %83 = arith.mulf %82, %81 : vector<16x128xf32>
    %cst_51 = arith.constant 5.000000e-01 : f32
    %84 = vector.broadcast %cst_51 : f32 to vector<16x128xf32>
    %85 = arith.addf %83, %84 : vector<16x128xf32>
    %c0_52 = arith.constant 0 : index
    %c0_53 = arith.constant 0 : index
    %86 = vector.load %arg13[%c0_52, %c0_53] : memref<16x128xf32, #tpu.memory_space<vmem>>, vector<16x128xf32>
    %87 = arith.mulf %75, %86 : vector<16x128xf32>
    %88 = arith.mulf %67, %77 : vector<16x128xf32>
    %89 = arith.addf %87, %88 : vector<16x128xf32>
    %90 = math.tanh %89 : vector<16x128xf32>
    %91 = arith.mulf %85, %90 : vector<16x128xf32>
    %92 = arith.truncf %91 : vector<16x128xf32> to vector<16x128xbf16>
    %c0_54 = arith.constant 0 : index
    %c0_55 = arith.constant 0 : index
    %93 = vector.load %arg13[%c0_54, %c0_55] : memref<16x128xf32, #tpu.memory_space<vmem>>, vector<16x128xf32>
    tpu.vector_store %arg13[%c0_54, %c0_55], %89 {strides = array<i32>} : memref<16x128xf32, #tpu.memory_space<vmem>>, vector<16x128xf32>,
    %c0_56 = arith.constant 0 : index
    %c0_57 = arith.constant 0 : index
    %94 = vector.load %arg12[%c0_56, %c0_57] : memref<16x128xbf16, #tpu.memory_space<vmem>>, vector<16x128xbf16>
    tpu.vector_store %arg12[%c0_56, %c0_57], %92 {strides = array<i32>} : memref<16x128xbf16, #tpu.memory_space<vmem>>, vector<16x128xbf16>,
    %c16_58 = arith.constant 16 : index
    %c0_59 = arith.constant 0 : index
    %95 = vector.load %arg10[%c16_58, %c0_59] : memref<128x128xbf16, #tpu.memory_space<vmem>>, vector<16x128xbf16>
    tpu.vector_store %arg10[%c16_58, %c0_59], %92 {strides = array<i32>} : memref<128x128xbf16, #tpu.memory_space<vmem>>, vector<16x128xbf16>,
    %c0_60 = arith.constant 0 : index
    %c0_61 = arith.constant 0 : index
    %96 = vector.load %arg12[%c0_60, %c0_61] : memref<16x128xbf16, #tpu.memory_space<vmem>>, vector<16x128xbf16>
    %c0_62 = arith.constant 0 : index
    %c0_63 = arith.constant 0 : index
    %97 = vector.load %arg2[%c0_62, %c0_63] : memref<128x512xbf16, #tpu.memory_space<vmem>>, vector<128x512xbf16>
    %cst_64 = arith.constant dense<0.000000e+00> : vector<16x512xf32>
    %98 = tpu.matmul %96, %97, %cst_64 {dimension_numbers = #tpu.dot_dimension_numbers<[1], [0], [0], [1], [0, 0, 1, 1], [], []>} : vector<16x128xbf16>, vector<128x512xbf16>, vector<16x512xf32> -> vector<16x512xf32>
    %c32 = arith.constant 32 : index
    %c0_65 = arith.constant 0 : index
    %99 = vector.load %arg11[%c32, %c0_65] : memref<128x512xbf16, #tpu.memory_space<vmem>>, vector<16x512xbf16>
    %100 = arith.extf %99 : vector<16x512xbf16> to vector<16x512xf32>
    %101 = arith.addf %98, %100 : vector<16x512xf32>
    %102 = vector.extract_strided_slice %101 {offsets = [0, 0], sizes = [16, 128], strides = [1, 1]} : vector<16x512xf32> to vector<16x128xf32>
    %cst_66 = arith.constant 5.000000e-01 : f32
    %103 = vector.broadcast %cst_66 : f32 to vector<16x128xf32>
    %104 = arith.mulf %103, %102 : vector<16x128xf32>
    %105 = math.tanh %104 : vector<16x128xf32>
    %cst_67 = arith.constant 5.000000e-01 : f32
    %106 = vector.broadcast %cst_67 : f32 to vector<16x128xf32>
    %107 = arith.mulf %106, %105 : vector<16x128xf32>
    %cst_68 = arith.constant 5.000000e-01 : f32
    %108 = vector.broadcast %cst_68 : f32 to vector<16x128xf32>
    %109 = arith.addf %107, %108 : vector<16x128xf32>
    %110 = vector.extract_strided_slice %101 {offsets = [0, 128], sizes = [16, 128], strides = [1, 1]} : vector<16x512xf32> to vector<16x128xf32>
    %cst_69 = arith.constant 5.000000e-01 : f32
    %111 = vector.broadcast %cst_69 : f32 to vector<16x128xf32>
    %112 = arith.mulf %111, %110 : vector<16x128xf32>
    %113 = math.tanh %112 : vector<16x128xf32>
    %cst_70 = arith.constant 5.000000e-01 : f32
    %114 = vector.broadcast %cst_70 : f32 to vector<16x128xf32>
    %115 = arith.mulf %114, %113 : vector<16x128xf32>
    %cst_71 = arith.constant 5.000000e-01 : f32
    %116 = vector.broadcast %cst_71 : f32 to vector<16x128xf32>
    %117 = arith.addf %115, %116 : vector<16x128xf32>
    %118 = vector.extract_strided_slice %101 {offsets = [0, 256], sizes = [16, 128], strides = [1, 1]} : vector<16x512xf32> to vector<16x128xf32>
    %119 = math.tanh %118 : vector<16x128xf32>
    %120 = vector.extract_strided_slice %101 {offsets = [0, 384], sizes = [16, 128], strides = [1, 1]} : vector<16x512xf32> to vector<16x128xf32>
    %cst_72 = arith.constant 5.000000e-01 : f32
    %121 = vector.broadcast %cst_72 : f32 to vector<16x128xf32>
    %122 = arith.mulf %121, %120 : vector<16x128xf32>
    %123 = math.tanh %122 : vector<16x128xf32>
    %cst_73 = arith.constant 5.000000e-01 : f32
    %124 = vector.broadcast %cst_73 : f32 to vector<16x128xf32>
    %125 = arith.mulf %124, %123 : vector<16x128xf32>
    %cst_74 = arith.constant 5.000000e-01 : f32
    %126 = vector.broadcast %cst_74 : f32 to vector<16x128xf32>
    %127 = arith.addf %125, %126 : vector<16x128xf32>
    %c0_75 = arith.constant 0 : index
    %c0_76 = arith.constant 0 : index
    %128 = vector.load %arg13[%c0_75, %c0_76] : memref<16x128xf32, #tpu.memory_space<vmem>>, vector<16x128xf32>
    %129 = arith.mulf %117, %128 : vector<16x128xf32>
    %130 = arith.mulf %109, %119 : vector<16x128xf32>
    %131 = arith.addf %129, %130 : vector<16x128xf32>
    %132 = math.tanh %131 : vector<16x128xf32>
    %133 = arith.mulf %127, %132 : vector<16x128xf32>
    %134 = arith.truncf %133 : vector<16x128xf32> to vector<16x128xbf16>
    %c0_77 = arith.constant 0 : index
    %c0_78 = arith.constant 0 : index
    %135 = vector.load %arg13[%c0_77, %c0_78] : memref<16x128xf32, #tpu.memory_space<vmem>>, vector<16x128xf32>
    tpu.vector_store %arg13[%c0_77, %c0_78], %131 {strides = array<i32>} : memref<16x128xf32, #tpu.memory_space<vmem>>, vector<16x128xf32>,
    %c0_79 = arith.constant 0 : index
    %c0_80 = arith.constant 0 : index
    %136 = vector.load %arg12[%c0_79, %c0_80] : memref<16x128xbf16, #tpu.memory_space<vmem>>, vector<16x128xbf16>
    tpu.vector_store %arg12[%c0_79, %c0_80], %134 {strides = array<i32>} : memref<16x128xbf16, #tpu.memory_space<vmem>>, vector<16x128xbf16>,
    %c32_81 = arith.constant 32 : index
    %c0_82 = arith.constant 0 : index
    %137 = vector.load %arg10[%c32_81, %c0_82] : memref<128x128xbf16, #tpu.memory_space<vmem>>, vector<16x128xbf16>
    tpu.vector_store %arg10[%c32_81, %c0_82], %134 {strides = array<i32>} : memref<128x128xbf16, #tpu.memory_space<vmem>>, vector<16x128xbf16>,
    %c0_83 = arith.constant 0 : index
    %c0_84 = arith.constant 0 : index
    %138 = vector.load %arg12[%c0_83, %c0_84] : memref<16x128xbf16, #tpu.memory_space<vmem>>, vector<16x128xbf16>
    %c0_85 = arith.constant 0 : index
    %c0_86 = arith.constant 0 : index
    %139 = vector.load %arg2[%c0_85, %c0_86] : memref<128x512xbf16, #tpu.memory_space<vmem>>, vector<128x512xbf16>
    %cst_87 = arith.constant dense<0.000000e+00> : vector<16x512xf32>
    %140 = tpu.matmul %138, %139, %cst_87 {dimension_numbers = #tpu.dot_dimension_numbers<[1], [0], [0], [1], [0, 0, 1, 1], [], []>} : vector<16x128xbf16>, vector<128x512xbf16>, vector<16x512xf32> -> vector<16x512xf32>
    %c48 = arith.constant 48 : index
    %c0_88 = arith.constant 0 : index
    %141 = vector.load %arg11[%c48, %c0_88] : memref<128x512xbf16, #tpu.memory_space<vmem>>, vector<16x512xbf16>
    %142 = arith.extf %141 : vector<16x512xbf16> to vector<16x512xf32>
    %143 = arith.addf %140, %142 : vector<16x512xf32>
    %144 = vector.extract_strided_slice %143 {offsets = [0, 0], sizes = [16, 128], strides = [1, 1]} : vector<16x512xf32> to vector<16x128xf32>
    %cst_89 = arith.constant 5.000000e-01 : f32
    %145 = vector.broadcast %cst_89 : f32 to vector<16x128xf32>
    %146 = arith.mulf %145, %144 : vector<16x128xf32>
    %147 = math.tanh %146 : vector<16x128xf32>
    %cst_90 = arith.constant 5.000000e-01 : f32
    %148 = vector.broadcast %cst_90 : f32 to vector<16x128xf32>
    %149 = arith.mulf %148, %147 : vector<16x128xf32>
    %cst_91 = arith.constant 5.000000e-01 : f32
    %150 = vector.broadcast %cst_91 : f32 to vector<16x128xf32>
    %151 = arith.addf %149, %150 : vector<16x128xf32>
    %152 = vector.extract_strided_slice %143 {offsets = [0, 128], sizes = [16, 128], strides = [1, 1]} : vector<16x512xf32> to vector<16x128xf32>
    %cst_92 = arith.constant 5.000000e-01 : f32
    %153 = vector.broadcast %cst_92 : f32 to vector<16x128xf32>
    %154 = arith.mulf %153, %152 : vector<16x128xf32>
    %155 = math.tanh %154 : vector<16x128xf32>
    %cst_93 = arith.constant 5.000000e-01 : f32
    %156 = vector.broadcast %cst_93 : f32 to vector<16x128xf32>
    %157 = arith.mulf %156, %155 : vector<16x128xf32>
    %cst_94 = arith.constant 5.000000e-01 : f32
    %158 = vector.broadcast %cst_94 : f32 to vector<16x128xf32>
    %159 = arith.addf %157, %158 : vector<16x128xf32>
    %160 = vector.extract_strided_slice %143 {offsets = [0, 256], sizes = [16, 128], strides = [1, 1]} : vector<16x512xf32> to vector<16x128xf32>
    %161 = math.tanh %160 : vector<16x128xf32>
    %162 = vector.extract_strided_slice %143 {offsets = [0, 384], sizes = [16, 128], strides = [1, 1]} : vector<16x512xf32> to vector<16x128xf32>
    %cst_95 = arith.constant 5.000000e-01 : f32
    %163 = vector.broadcast %cst_95 : f32 to vector<16x128xf32>
    %164 = arith.mulf %163, %162 : vector<16x128xf32>
    %165 = math.tanh %164 : vector<16x128xf32>
    %cst_96 = arith.constant 5.000000e-01 : f32
    %166 = vector.broadcast %cst_96 : f32 to vector<16x128xf32>
    %167 = arith.mulf %166, %165 : vector<16x128xf32>
    %cst_97 = arith.constant 5.000000e-01 : f32
    %168 = vector.broadcast %cst_97 : f32 to vector<16x128xf32>
    %169 = arith.addf %167, %168 : vector<16x128xf32>
    %c0_98 = arith.constant 0 : index
    %c0_99 = arith.constant 0 : index
    %170 = vector.load %arg13[%c0_98, %c0_99] : memref<16x128xf32, #tpu.memory_space<vmem>>, vector<16x128xf32>
    %171 = arith.mulf %159, %170 : vector<16x128xf32>
    %172 = arith.mulf %151, %161 : vector<16x128xf32>
    %173 = arith.addf %171, %172 : vector<16x128xf32>
    %174 = math.tanh %173 : vector<16x128xf32>
    %175 = arith.mulf %169, %174 : vector<16x128xf32>
    %176 = arith.truncf %175 : vector<16x128xf32> to vector<16x128xbf16>
    %c0_100 = arith.constant 0 : index
    %c0_101 = arith.constant 0 : index
    %177 = vector.load %arg13[%c0_100, %c0_101] : memref<16x128xf32, #tpu.memory_space<vmem>>, vector<16x128xf32>
    tpu.vector_store %arg13[%c0_100, %c0_101], %173 {strides = array<i32>} : memref<16x128xf32, #tpu.memory_space<vmem>>, vector<16x128xf32>,
    %c0_102 = arith.constant 0 : index
    %c0_103 = arith.constant 0 : index
    %178 = vector.load %arg12[%c0_102, %c0_103] : memref<16x128xbf16, #tpu.memory_space<vmem>>, vector<16x128xbf16>
    tpu.vector_store %arg12[%c0_102, %c0_103], %176 {strides = array<i32>} : memref<16x128xbf16, #tpu.memory_space<vmem>>, vector<16x128xbf16>,
    %c48_104 = arith.constant 48 : index
    %c0_105 = arith.constant 0 : index
    %179 = vector.load %arg10[%c48_104, %c0_105] : memref<128x128xbf16, #tpu.memory_space<vmem>>, vector<16x128xbf16>
    tpu.vector_store %arg10[%c48_104, %c0_105], %176 {strides = array<i32>} : memref<128x128xbf16, #tpu.memory_space<vmem>>, vector<16x128xbf16>,
    %c0_106 = arith.constant 0 : index
    %c0_107 = arith.constant 0 : index
    %180 = vector.load %arg12[%c0_106, %c0_107] : memref<16x128xbf16, #tpu.memory_space<vmem>>, vector<16x128xbf16>
    %c0_108 = arith.constant 0 : index
    %c0_109 = arith.constant 0 : index
    %181 = vector.load %arg2[%c0_108, %c0_109] : memref<128x512xbf16, #tpu.memory_space<vmem>>, vector<128x512xbf16>
    %cst_110 = arith.constant dense<0.000000e+00> : vector<16x512xf32>
    %182 = tpu.matmul %180, %181, %cst_110 {dimension_numbers = #tpu.dot_dimension_numbers<[1], [0], [0], [1], [0, 0, 1, 1], [], []>} : vector<16x128xbf16>, vector<128x512xbf16>, vector<16x512xf32> -> vector<16x512xf32>
    %c64 = arith.constant 64 : index
    %c0_111 = arith.constant 0 : index
    %183 = vector.load %arg11[%c64, %c0_111] : memref<128x512xbf16, #tpu.memory_space<vmem>>, vector<16x512xbf16>
    %184 = arith.extf %183 : vector<16x512xbf16> to vector<16x512xf32>
    %185 = arith.addf %182, %184 : vector<16x512xf32>
    %186 = vector.extract_strided_slice %185 {offsets = [0, 0], sizes = [16, 128], strides = [1, 1]} : vector<16x512xf32> to vector<16x128xf32>
    %cst_112 = arith.constant 5.000000e-01 : f32
    %187 = vector.broadcast %cst_112 : f32 to vector<16x128xf32>
    %188 = arith.mulf %187, %186 : vector<16x128xf32>
    %189 = math.tanh %188 : vector<16x128xf32>
    %cst_113 = arith.constant 5.000000e-01 : f32
    %190 = vector.broadcast %cst_113 : f32 to vector<16x128xf32>
    %191 = arith.mulf %190, %189 : vector<16x128xf32>
    %cst_114 = arith.constant 5.000000e-01 : f32
    %192 = vector.broadcast %cst_114 : f32 to vector<16x128xf32>
    %193 = arith.addf %191, %192 : vector<16x128xf32>
    %194 = vector.extract_strided_slice %185 {offsets = [0, 128], sizes = [16, 128], strides = [1, 1]} : vector<16x512xf32> to vector<16x128xf32>
    %cst_115 = arith.constant 5.000000e-01 : f32
    %195 = vector.broadcast %cst_115 : f32 to vector<16x128xf32>
    %196 = arith.mulf %195, %194 : vector<16x128xf32>
    %197 = math.tanh %196 : vector<16x128xf32>
    %cst_116 = arith.constant 5.000000e-01 : f32
    %198 = vector.broadcast %cst_116 : f32 to vector<16x128xf32>
    %199 = arith.mulf %198, %197 : vector<16x128xf32>
    %cst_117 = arith.constant 5.000000e-01 : f32
    %200 = vector.broadcast %cst_117 : f32 to vector<16x128xf32>
    %201 = arith.addf %199, %200 : vector<16x128xf32>
    %202 = vector.extract_strided_slice %185 {offsets = [0, 256], sizes = [16, 128], strides = [1, 1]} : vector<16x512xf32> to vector<16x128xf32>
    %203 = math.tanh %202 : vector<16x128xf32>
    %204 = vector.extract_strided_slice %185 {offsets = [0, 384], sizes = [16, 128], strides = [1, 1]} : vector<16x512xf32> to vector<16x128xf32>
    %cst_118 = arith.constant 5.000000e-01 : f32
    %205 = vector.broadcast %cst_118 : f32 to vector<16x128xf32>
    %206 = arith.mulf %205, %204 : vector<16x128xf32>
    %207 = math.tanh %206 : vector<16x128xf32>
    %cst_119 = arith.constant 5.000000e-01 : f32
    %208 = vector.broadcast %cst_119 : f32 to vector<16x128xf32>
    %209 = arith.mulf %208, %207 : vector<16x128xf32>
    %cst_120 = arith.constant 5.000000e-01 : f32
    %210 = vector.broadcast %cst_120 : f32 to vector<16x128xf32>
    %211 = arith.addf %209, %210 : vector<16x128xf32>
    %c0_121 = arith.constant 0 : index
    %c0_122 = arith.constant 0 : index
    %212 = vector.load %arg13[%c0_121, %c0_122] : memref<16x128xf32, #tpu.memory_space<vmem>>, vector<16x128xf32>
    %213 = arith.mulf %201, %212 : vector<16x128xf32>
    %214 = arith.mulf %193, %203 : vector<16x128xf32>
    %215 = arith.addf %213, %214 : vector<16x128xf32>
    %216 = math.tanh %215 : vector<16x128xf32>
    %217 = arith.mulf %211, %216 : vector<16x128xf32>
    %218 = arith.truncf %217 : vector<16x128xf32> to vector<16x128xbf16>
    %c0_123 = arith.constant 0 : index
    %c0_124 = arith.constant 0 : index
    %219 = vector.load %arg13[%c0_123, %c0_124] : memref<16x128xf32, #tpu.memory_space<vmem>>, vector<16x128xf32>
    tpu.vector_store %arg13[%c0_123, %c0_124], %215 {strides = array<i32>} : memref<16x128xf32, #tpu.memory_space<vmem>>, vector<16x128xf32>,
    %c0_125 = arith.constant 0 : index
    %c0_126 = arith.constant 0 : index
    %220 = vector.load %arg12[%c0_125, %c0_126] : memref<16x128xbf16, #tpu.memory_space<vmem>>, vector<16x128xbf16>
    tpu.vector_store %arg12[%c0_125, %c0_126], %218 {strides = array<i32>} : memref<16x128xbf16, #tpu.memory_space<vmem>>, vector<16x128xbf16>,
    %c64_127 = arith.constant 64 : index
    %c0_128 = arith.constant 0 : index
    %221 = vector.load %arg10[%c64_127, %c0_128] : memref<128x128xbf16, #tpu.memory_space<vmem>>, vector<16x128xbf16>
    tpu.vector_store %arg10[%c64_127, %c0_128], %218 {strides = array<i32>} : memref<128x128xbf16, #tpu.memory_space<vmem>>, vector<16x128xbf16>,
    %c0_129 = arith.constant 0 : index
    %c0_130 = arith.constant 0 : index
    %222 = vector.load %arg12[%c0_129, %c0_130] : memref<16x128xbf16, #tpu.memory_space<vmem>>, vector<16x128xbf16>
    %c0_131 = arith.constant 0 : index
    %c0_132 = arith.constant 0 : index
    %223 = vector.load %arg2[%c0_131, %c0_132] : memref<128x512xbf16, #tpu.memory_space<vmem>>, vector<128x512xbf16>
    %cst_133 = arith.constant dense<0.000000e+00> : vector<16x512xf32>
    %224 = tpu.matmul %222, %223, %cst_133 {dimension_numbers = #tpu.dot_dimension_numbers<[1], [0], [0], [1], [0, 0, 1, 1], [], []>} : vector<16x128xbf16>, vector<128x512xbf16>, vector<16x512xf32> -> vector<16x512xf32>
    %c80 = arith.constant 80 : index
    %c0_134 = arith.constant 0 : index
    %225 = vector.load %arg11[%c80, %c0_134] : memref<128x512xbf16, #tpu.memory_space<vmem>>, vector<16x512xbf16>
    %226 = arith.extf %225 : vector<16x512xbf16> to vector<16x512xf32>
    %227 = arith.addf %224, %226 : vector<16x512xf32>
    %228 = vector.extract_strided_slice %227 {offsets = [0, 0], sizes = [16, 128], strides = [1, 1]} : vector<16x512xf32> to vector<16x128xf32>
    %cst_135 = arith.constant 5.000000e-01 : f32
    %229 = vector.broadcast %cst_135 : f32 to vector<16x128xf32>
    %230 = arith.mulf %229, %228 : vector<16x128xf32>
    %231 = math.tanh %230 : vector<16x128xf32>
    %cst_136 = arith.constant 5.000000e-01 : f32
    %232 = vector.broadcast %cst_136 : f32 to vector<16x128xf32>
    %233 = arith.mulf %232, %231 : vector<16x128xf32>
    %cst_137 = arith.constant 5.000000e-01 : f32
    %234 = vector.broadcast %cst_137 : f32 to vector<16x128xf32>
    %235 = arith.addf %233, %234 : vector<16x128xf32>
    %236 = vector.extract_strided_slice %227 {offsets = [0, 128], sizes = [16, 128], strides = [1, 1]} : vector<16x512xf32> to vector<16x128xf32>
    %cst_138 = arith.constant 5.000000e-01 : f32
    %237 = vector.broadcast %cst_138 : f32 to vector<16x128xf32>
    %238 = arith.mulf %237, %236 : vector<16x128xf32>
    %239 = math.tanh %238 : vector<16x128xf32>
    %cst_139 = arith.constant 5.000000e-01 : f32
    %240 = vector.broadcast %cst_139 : f32 to vector<16x128xf32>
    %241 = arith.mulf %240, %239 : vector<16x128xf32>
    %cst_140 = arith.constant 5.000000e-01 : f32
    %242 = vector.broadcast %cst_140 : f32 to vector<16x128xf32>
    %243 = arith.addf %241, %242 : vector<16x128xf32>
    %244 = vector.extract_strided_slice %227 {offsets = [0, 256], sizes = [16, 128], strides = [1, 1]} : vector<16x512xf32> to vector<16x128xf32>
    %245 = math.tanh %244 : vector<16x128xf32>
    %246 = vector.extract_strided_slice %227 {offsets = [0, 384], sizes = [16, 128], strides = [1, 1]} : vector<16x512xf32> to vector<16x128xf32>
    %cst_141 = arith.constant 5.000000e-01 : f32
    %247 = vector.broadcast %cst_141 : f32 to vector<16x128xf32>
    %248 = arith.mulf %247, %246 : vector<16x128xf32>
    %249 = math.tanh %248 : vector<16x128xf32>
    %cst_142 = arith.constant 5.000000e-01 : f32
    %250 = vector.broadcast %cst_142 : f32 to vector<16x128xf32>
    %251 = arith.mulf %250, %249 : vector<16x128xf32>
    %cst_143 = arith.constant 5.000000e-01 : f32
    %252 = vector.broadcast %cst_143 : f32 to vector<16x128xf32>
    %253 = arith.addf %251, %252 : vector<16x128xf32>
    %c0_144 = arith.constant 0 : index
    %c0_145 = arith.constant 0 : index
    %254 = vector.load %arg13[%c0_144, %c0_145] : memref<16x128xf32, #tpu.memory_space<vmem>>, vector<16x128xf32>
    %255 = arith.mulf %243, %254 : vector<16x128xf32>
    %256 = arith.mulf %235, %245 : vector<16x128xf32>
    %257 = arith.addf %255, %256 : vector<16x128xf32>
    %258 = math.tanh %257 : vector<16x128xf32>
    %259 = arith.mulf %253, %258 : vector<16x128xf32>
    %260 = arith.truncf %259 : vector<16x128xf32> to vector<16x128xbf16>
    %c0_146 = arith.constant 0 : index
    %c0_147 = arith.constant 0 : index
    %261 = vector.load %arg13[%c0_146, %c0_147] : memref<16x128xf32, #tpu.memory_space<vmem>>, vector<16x128xf32>
    tpu.vector_store %arg13[%c0_146, %c0_147], %257 {strides = array<i32>} : memref<16x128xf32, #tpu.memory_space<vmem>>, vector<16x128xf32>,
    %c0_148 = arith.constant 0 : index
    %c0_149 = arith.constant 0 : index
    %262 = vector.load %arg12[%c0_148, %c0_149] : memref<16x128xbf16, #tpu.memory_space<vmem>>, vector<16x128xbf16>
    tpu.vector_store %arg12[%c0_148, %c0_149], %260 {strides = array<i32>} : memref<16x128xbf16, #tpu.memory_space<vmem>>, vector<16x128xbf16>,
    %c80_150 = arith.constant 80 : index
    %c0_151 = arith.constant 0 : index
    %263 = vector.load %arg10[%c80_150, %c0_151] : memref<128x128xbf16, #tpu.memory_space<vmem>>, vector<16x128xbf16>
    tpu.vector_store %arg10[%c80_150, %c0_151], %260 {strides = array<i32>} : memref<128x128xbf16, #tpu.memory_space<vmem>>, vector<16x128xbf16>,
    %c0_152 = arith.constant 0 : index
    %c0_153 = arith.constant 0 : index
    %264 = vector.load %arg12[%c0_152, %c0_153] : memref<16x128xbf16, #tpu.memory_space<vmem>>, vector<16x128xbf16>
    %c0_154 = arith.constant 0 : index
    %c0_155 = arith.constant 0 : index
    %265 = vector.load %arg2[%c0_154, %c0_155] : memref<128x512xbf16, #tpu.memory_space<vmem>>, vector<128x512xbf16>
    %cst_156 = arith.constant dense<0.000000e+00> : vector<16x512xf32>
    %266 = tpu.matmul %264, %265, %cst_156 {dimension_numbers = #tpu.dot_dimension_numbers<[1], [0], [0], [1], [0, 0, 1, 1], [], []>} : vector<16x128xbf16>, vector<128x512xbf16>, vector<16x512xf32> -> vector<16x512xf32>
    %c96 = arith.constant 96 : index
    %c0_157 = arith.constant 0 : index
    %267 = vector.load %arg11[%c96, %c0_157] : memref<128x512xbf16, #tpu.memory_space<vmem>>, vector<16x512xbf16>
    %268 = arith.extf %267 : vector<16x512xbf16> to vector<16x512xf32>
    %269 = arith.addf %266, %268 : vector<16x512xf32>
    %270 = vector.extract_strided_slice %269 {offsets = [0, 0], sizes = [16, 128], strides = [1, 1]} : vector<16x512xf32> to vector<16x128xf32>
    %cst_158 = arith.constant 5.000000e-01 : f32
    %271 = vector.broadcast %cst_158 : f32 to vector<16x128xf32>
    %272 = arith.mulf %271, %270 : vector<16x128xf32>
    %273 = math.tanh %272 : vector<16x128xf32>
    %cst_159 = arith.constant 5.000000e-01 : f32
    %274 = vector.broadcast %cst_159 : f32 to vector<16x128xf32>
    %275 = arith.mulf %274, %273 : vector<16x128xf32>
    %cst_160 = arith.constant 5.000000e-01 : f32
    %276 = vector.broadcast %cst_160 : f32 to vector<16x128xf32>
    %277 = arith.addf %275, %276 : vector<16x128xf32>
    %278 = vector.extract_strided_slice %269 {offsets = [0, 128], sizes = [16, 128], strides = [1, 1]} : vector<16x512xf32> to vector<16x128xf32>
    %cst_161 = arith.constant 5.000000e-01 : f32
    %279 = vector.broadcast %cst_161 : f32 to vector<16x128xf32>
    %280 = arith.mulf %279, %278 : vector<16x128xf32>
    %281 = math.tanh %280 : vector<16x128xf32>
    %cst_162 = arith.constant 5.000000e-01 : f32
    %282 = vector.broadcast %cst_162 : f32 to vector<16x128xf32>
    %283 = arith.mulf %282, %281 : vector<16x128xf32>
    %cst_163 = arith.constant 5.000000e-01 : f32
    %284 = vector.broadcast %cst_163 : f32 to vector<16x128xf32>
    %285 = arith.addf %283, %284 : vector<16x128xf32>
    %286 = vector.extract_strided_slice %269 {offsets = [0, 256], sizes = [16, 128], strides = [1, 1]} : vector<16x512xf32> to vector<16x128xf32>
    %287 = math.tanh %286 : vector<16x128xf32>
    %288 = vector.extract_strided_slice %269 {offsets = [0, 384], sizes = [16, 128], strides = [1, 1]} : vector<16x512xf32> to vector<16x128xf32>
    %cst_164 = arith.constant 5.000000e-01 : f32
    %289 = vector.broadcast %cst_164 : f32 to vector<16x128xf32>
    %290 = arith.mulf %289, %288 : vector<16x128xf32>
    %291 = math.tanh %290 : vector<16x128xf32>
    %cst_165 = arith.constant 5.000000e-01 : f32
    %292 = vector.broadcast %cst_165 : f32 to vector<16x128xf32>
    %293 = arith.mulf %292, %291 : vector<16x128xf32>
    %cst_166 = arith.constant 5.000000e-01 : f32
    %294 = vector.broadcast %cst_166 : f32 to vector<16x128xf32>
    %295 = arith.addf %293, %294 : vector<16x128xf32>
    %c0_167 = arith.constant 0 : index
    %c0_168 = arith.constant 0 : index
    %296 = vector.load %arg13[%c0_167, %c0_168] : memref<16x128xf32, #tpu.memory_space<vmem>>, vector<16x128xf32>
    %297 = arith.mulf %285, %296 : vector<16x128xf32>
    %298 = arith.mulf %277, %287 : vector<16x128xf32>
    %299 = arith.addf %297, %298 : vector<16x128xf32>
    %300 = math.tanh %299 : vector<16x128xf32>
    %301 = arith.mulf %295, %300 : vector<16x128xf32>
    %302 = arith.truncf %301 : vector<16x128xf32> to vector<16x128xbf16>
    %c0_169 = arith.constant 0 : index
    %c0_170 = arith.constant 0 : index
    %303 = vector.load %arg13[%c0_169, %c0_170] : memref<16x128xf32, #tpu.memory_space<vmem>>, vector<16x128xf32>
    tpu.vector_store %arg13[%c0_169, %c0_170], %299 {strides = array<i32>} : memref<16x128xf32, #tpu.memory_space<vmem>>, vector<16x128xf32>,
    %c0_171 = arith.constant 0 : index
    %c0_172 = arith.constant 0 : index
    %304 = vector.load %arg12[%c0_171, %c0_172] : memref<16x128xbf16, #tpu.memory_space<vmem>>, vector<16x128xbf16>
    tpu.vector_store %arg12[%c0_171, %c0_172], %302 {strides = array<i32>} : memref<16x128xbf16, #tpu.memory_space<vmem>>, vector<16x128xbf16>,
    %c96_173 = arith.constant 96 : index
    %c0_174 = arith.constant 0 : index
    %305 = vector.load %arg10[%c96_173, %c0_174] : memref<128x128xbf16, #tpu.memory_space<vmem>>, vector<16x128xbf16>
    tpu.vector_store %arg10[%c96_173, %c0_174], %302 {strides = array<i32>} : memref<128x128xbf16, #tpu.memory_space<vmem>>, vector<16x128xbf16>,
    %c0_175 = arith.constant 0 : index
    %c0_176 = arith.constant 0 : index
    %306 = vector.load %arg12[%c0_175, %c0_176] : memref<16x128xbf16, #tpu.memory_space<vmem>>, vector<16x128xbf16>
    %c0_177 = arith.constant 0 : index
    %c0_178 = arith.constant 0 : index
    %307 = vector.load %arg2[%c0_177, %c0_178] : memref<128x512xbf16, #tpu.memory_space<vmem>>, vector<128x512xbf16>
    %cst_179 = arith.constant dense<0.000000e+00> : vector<16x512xf32>
    %308 = tpu.matmul %306, %307, %cst_179 {dimension_numbers = #tpu.dot_dimension_numbers<[1], [0], [0], [1], [0, 0, 1, 1], [], []>} : vector<16x128xbf16>, vector<128x512xbf16>, vector<16x512xf32> -> vector<16x512xf32>
    %c112 = arith.constant 112 : index
    %c0_180 = arith.constant 0 : index
    %309 = vector.load %arg11[%c112, %c0_180] : memref<128x512xbf16, #tpu.memory_space<vmem>>, vector<16x512xbf16>
    %310 = arith.extf %309 : vector<16x512xbf16> to vector<16x512xf32>
    %311 = arith.addf %308, %310 : vector<16x512xf32>
    %312 = vector.extract_strided_slice %311 {offsets = [0, 0], sizes = [16, 128], strides = [1, 1]} : vector<16x512xf32> to vector<16x128xf32>
    %cst_181 = arith.constant 5.000000e-01 : f32
    %313 = vector.broadcast %cst_181 : f32 to vector<16x128xf32>
    %314 = arith.mulf %313, %312 : vector<16x128xf32>
    %315 = math.tanh %314 : vector<16x128xf32>
    %cst_182 = arith.constant 5.000000e-01 : f32
    %316 = vector.broadcast %cst_182 : f32 to vector<16x128xf32>
    %317 = arith.mulf %316, %315 : vector<16x128xf32>
    %cst_183 = arith.constant 5.000000e-01 : f32
    %318 = vector.broadcast %cst_183 : f32 to vector<16x128xf32>
    %319 = arith.addf %317, %318 : vector<16x128xf32>
    %320 = vector.extract_strided_slice %311 {offsets = [0, 128], sizes = [16, 128], strides = [1, 1]} : vector<16x512xf32> to vector<16x128xf32>
    %cst_184 = arith.constant 5.000000e-01 : f32
    %321 = vector.broadcast %cst_184 : f32 to vector<16x128xf32>
    %322 = arith.mulf %321, %320 : vector<16x128xf32>
    %323 = math.tanh %322 : vector<16x128xf32>
    %cst_185 = arith.constant 5.000000e-01 : f32
    %324 = vector.broadcast %cst_185 : f32 to vector<16x128xf32>
    %325 = arith.mulf %324, %323 : vector<16x128xf32>
    %cst_186 = arith.constant 5.000000e-01 : f32
    %326 = vector.broadcast %cst_186 : f32 to vector<16x128xf32>
    %327 = arith.addf %325, %326 : vector<16x128xf32>
    %328 = vector.extract_strided_slice %311 {offsets = [0, 256], sizes = [16, 128], strides = [1, 1]} : vector<16x512xf32> to vector<16x128xf32>
    %329 = math.tanh %328 : vector<16x128xf32>
    %330 = vector.extract_strided_slice %311 {offsets = [0, 384], sizes = [16, 128], strides = [1, 1]} : vector<16x512xf32> to vector<16x128xf32>
    %cst_187 = arith.constant 5.000000e-01 : f32
    %331 = vector.broadcast %cst_187 : f32 to vector<16x128xf32>
    %332 = arith.mulf %331, %330 : vector<16x128xf32>
    %333 = math.tanh %332 : vector<16x128xf32>
    %cst_188 = arith.constant 5.000000e-01 : f32
    %334 = vector.broadcast %cst_188 : f32 to vector<16x128xf32>
    %335 = arith.mulf %334, %333 : vector<16x128xf32>
    %cst_189 = arith.constant 5.000000e-01 : f32
    %336 = vector.broadcast %cst_189 : f32 to vector<16x128xf32>
    %337 = arith.addf %335, %336 : vector<16x128xf32>
    %c0_190 = arith.constant 0 : index
    %c0_191 = arith.constant 0 : index
    %338 = vector.load %arg13[%c0_190, %c0_191] : memref<16x128xf32, #tpu.memory_space<vmem>>, vector<16x128xf32>
    %339 = arith.mulf %327, %338 : vector<16x128xf32>
    %340 = arith.mulf %319, %329 : vector<16x128xf32>
    %341 = arith.addf %339, %340 : vector<16x128xf32>
    %342 = math.tanh %341 : vector<16x128xf32>
    %343 = arith.mulf %337, %342 : vector<16x128xf32>
    %344 = arith.truncf %343 : vector<16x128xf32> to vector<16x128xbf16>
    %c0_192 = arith.constant 0 : index
    %c0_193 = arith.constant 0 : index
    %345 = vector.load %arg13[%c0_192, %c0_193] : memref<16x128xf32, #tpu.memory_space<vmem>>, vector<16x128xf32>
    tpu.vector_store %arg13[%c0_192, %c0_193], %341 {strides = array<i32>} : memref<16x128xf32, #tpu.memory_space<vmem>>, vector<16x128xf32>,
    %c0_194 = arith.constant 0 : index
    %c0_195 = arith.constant 0 : index
    %346 = vector.load %arg12[%c0_194, %c0_195] : memref<16x128xbf16, #tpu.memory_space<vmem>>, vector<16x128xbf16>
    tpu.vector_store %arg12[%c0_194, %c0_195], %344 {strides = array<i32>} : memref<16x128xbf16, #tpu.memory_space<vmem>>, vector<16x128xbf16>,
    %c112_196 = arith.constant 112 : index
    %c0_197 = arith.constant 0 : index
    %347 = vector.load %arg10[%c112_196, %c0_197] : memref<128x128xbf16, #tpu.memory_space<vmem>>, vector<16x128xbf16>
    tpu.vector_store %arg10[%c112_196, %c0_197], %344 {strides = array<i32>} : memref<128x128xbf16, #tpu.memory_space<vmem>>, vector<16x128xbf16>,
    %c0_198 = arith.constant 0 : index
    %c0_199 = arith.constant 0 : index
    %348 = vector.load %arg10[%c0_198, %c0_199] : memref<128x128xbf16, #tpu.memory_space<vmem>>, vector<128x128xbf16>
    %c0_200 = arith.constant 0 : index
    %c0_201 = arith.constant 0 : index
    %349 = vector.load %arg4[%c0_200, %c0_201] : memref<128x512xbf16, #tpu.memory_space<vmem>>, vector<128x512xbf16>
    %cst_202 = arith.constant dense<0.000000e+00> : vector<128x512xf32>
    %350 = tpu.matmul %348, %349, %cst_202 {dimension_numbers = #tpu.dot_dimension_numbers<[1], [0], [0], [1], [0, 0, 1, 1], [], []>} : vector<128x128xbf16>, vector<128x512xbf16>, vector<128x512xf32> -> vector<128x512xf32>
    %c0_203 = arith.constant 0 : index
    %c0_204 = arith.constant 0 : index
    %351 = vector.load %arg6[%c0_203, %c0_204] : memref<1x512xf32, #tpu.memory_space<vmem>>, vector<1x512xf32>
    %352 = vector.broadcast %351 : vector<1x512xf32> to vector<128x512xf32>
    %353 = arith.addf %350, %352 : vector<128x512xf32>
    %354 = arith.truncf %353 : vector<128x512xf32> to vector<128x512xbf16>
    %c0_205 = arith.constant 0 : index
    %c0_206 = arith.constant 0 : index
    %355 = vector.load %arg11[%c0_205, %c0_206] : memref<128x512xbf16, #tpu.memory_space<vmem>>, vector<128x512xbf16>
    tpu.vector_store %arg11[%c0_205, %c0_206], %354 {strides = array<i32>} : memref<128x512xbf16, #tpu.memory_space<vmem>>, vector<128x512xbf16>,
    %cst_207 = arith.constant 0.000000e+00 : bf16
    %356 = vector.broadcast %cst_207 : bf16 to vector<16x128xbf16>
    %c0_208 = arith.constant 0 : index
    %c0_209 = arith.constant 0 : index
    %357 = vector.load %arg12[%c0_208, %c0_209] : memref<16x128xbf16, #tpu.memory_space<vmem>>, vector<16x128xbf16>
    tpu.vector_store %arg12[%c0_208, %c0_209], %356 {strides = array<i32>} : memref<16x128xbf16, #tpu.memory_space<vmem>>, vector<16x128xbf16>,
    %cst_210 = arith.constant 0.000000e+00 : f32
    %358 = vector.broadcast %cst_210 : f32 to vector<16x128xf32>
    %c0_211 = arith.constant 0 : index
    %c0_212 = arith.constant 0 : index
    %359 = vector.load %arg13[%c0_211, %c0_212] : memref<16x128xf32, #tpu.memory_space<vmem>>, vector<16x128xf32>
    tpu.vector_store %arg13[%c0_211, %c0_212], %358 {strides = array<i32>} : memref<16x128xf32, #tpu.memory_space<vmem>>, vector<16x128xf32>,
    %c0_213 = arith.constant 0 : index
    %c0_214 = arith.constant 0 : index
    %360 = vector.load %arg12[%c0_213, %c0_214] : memref<16x128xbf16, #tpu.memory_space<vmem>>, vector<16x128xbf16>
    %c0_215 = arith.constant 0 : index
    %c0_216 = arith.constant 0 : index
    %361 = vector.load %arg5[%c0_215, %c0_216] : memref<128x512xbf16, #tpu.memory_space<vmem>>, vector<128x512xbf16>
    %cst_217 = arith.constant dense<0.000000e+00> : vector<16x512xf32>
    %362 = tpu.matmul %360, %361, %cst_217 {dimension_numbers = #tpu.dot_dimension_numbers<[1], [0], [0], [1], [0, 0, 1, 1], [], []>} : vector<16x128xbf16>, vector<128x512xbf16>, vector<16x512xf32> -> vector<16x512xf32>
    %c0_218 = arith.constant 0 : index
    %c0_219 = arith.constant 0 : index
    %363 = vector.load %arg11[%c0_218, %c0_219] : memref<128x512xbf16, #tpu.memory_space<vmem>>, vector<16x512xbf16>
    %364 = arith.extf %363 : vector<16x512xbf16> to vector<16x512xf32>
    %365 = arith.addf %362, %364 : vector<16x512xf32>
    %366 = vector.extract_strided_slice %365 {offsets = [0, 0], sizes = [16, 128], strides = [1, 1]} : vector<16x512xf32> to vector<16x128xf32>
    %cst_220 = arith.constant 5.000000e-01 : f32
    %367 = vector.broadcast %cst_220 : f32 to vector<16x128xf32>
    %368 = arith.mulf %367, %366 : vector<16x128xf32>
    %369 = math.tanh %368 : vector<16x128xf32>
    %cst_221 = arith.constant 5.000000e-01 : f32
    %370 = vector.broadcast %cst_221 : f32 to vector<16x128xf32>
    %371 = arith.mulf %370, %369 : vector<16x128xf32>
    %cst_222 = arith.constant 5.000000e-01 : f32
    %372 = vector.broadcast %cst_222 : f32 to vector<16x128xf32>
    %373 = arith.addf %371, %372 : vector<16x128xf32>
    %374 = vector.extract_strided_slice %365 {offsets = [0, 128], sizes = [16, 128], strides = [1, 1]} : vector<16x512xf32> to vector<16x128xf32>
    %cst_223 = arith.constant 5.000000e-01 : f32
    %375 = vector.broadcast %cst_223 : f32 to vector<16x128xf32>
    %376 = arith.mulf %375, %374 : vector<16x128xf32>
    %377 = math.tanh %376 : vector<16x128xf32>
    %cst_224 = arith.constant 5.000000e-01 : f32
    %378 = vector.broadcast %cst_224 : f32 to vector<16x128xf32>
    %379 = arith.mulf %378, %377 : vector<16x128xf32>
    %cst_225 = arith.constant 5.000000e-01 : f32
    %380 = vector.broadcast %cst_225 : f32 to vector<16x128xf32>
    %381 = arith.addf %379, %380 : vector<16x128xf32>
    %382 = vector.extract_strided_slice %365 {offsets = [0, 256], sizes = [16, 128], strides = [1, 1]} : vector<16x512xf32> to vector<16x128xf32>
    %383 = math.tanh %382 : vector<16x128xf32>
    %384 = vector.extract_strided_slice %365 {offsets = [0, 384], sizes = [16, 128], strides = [1, 1]} : vector<16x512xf32> to vector<16x128xf32>
    %cst_226 = arith.constant 5.000000e-01 : f32
    %385 = vector.broadcast %cst_226 : f32 to vector<16x128xf32>
    %386 = arith.mulf %385, %384 : vector<16x128xf32>
    %387 = math.tanh %386 : vector<16x128xf32>
    %cst_227 = arith.constant 5.000000e-01 : f32
    %388 = vector.broadcast %cst_227 : f32 to vector<16x128xf32>
    %389 = arith.mulf %388, %387 : vector<16x128xf32>
    %cst_228 = arith.constant 5.000000e-01 : f32
    %390 = vector.broadcast %cst_228 : f32 to vector<16x128xf32>
    %391 = arith.addf %389, %390 : vector<16x128xf32>
    %c0_229 = arith.constant 0 : index
    %c0_230 = arith.constant 0 : index
    %392 = vector.load %arg13[%c0_229, %c0_230] : memref<16x128xf32, #tpu.memory_space<vmem>>, vector<16x128xf32>
    %393 = arith.mulf %381, %392 : vector<16x128xf32>
    %394 = arith.mulf %373, %383 : vector<16x128xf32>
    %395 = arith.addf %393, %394 : vector<16x128xf32>
    %396 = math.tanh %395 : vector<16x128xf32>
    %397 = arith.mulf %391, %396 : vector<16x128xf32>
    %398 = arith.truncf %397 : vector<16x128xf32> to vector<16x128xbf16>
    %c0_231 = arith.constant 0 : index
    %c0_232 = arith.constant 0 : index
    %399 = vector.load %arg13[%c0_231, %c0_232] : memref<16x128xf32, #tpu.memory_space<vmem>>, vector<16x128xf32>
    tpu.vector_store %arg13[%c0_231, %c0_232], %395 {strides = array<i32>} : memref<16x128xf32, #tpu.memory_space<vmem>>, vector<16x128xf32>,
    %c0_233 = arith.constant 0 : index
    %c0_234 = arith.constant 0 : index
    %400 = vector.load %arg12[%c0_233, %c0_234] : memref<16x128xbf16, #tpu.memory_space<vmem>>, vector<16x128xbf16>
    tpu.vector_store %arg12[%c0_233, %c0_234], %398 {strides = array<i32>} : memref<16x128xbf16, #tpu.memory_space<vmem>>, vector<16x128xbf16>,
    %c0_235 = arith.constant 0 : index
    %c0_236 = arith.constant 0 : index
    %401 = vector.load %arg12[%c0_235, %c0_236] : memref<16x128xbf16, #tpu.memory_space<vmem>>, vector<16x128xbf16>
    %c0_237 = arith.constant 0 : index
    %c0_238 = arith.constant 0 : index
    %402 = vector.load %arg5[%c0_237, %c0_238] : memref<128x512xbf16, #tpu.memory_space<vmem>>, vector<128x512xbf16>
    %cst_239 = arith.constant dense<0.000000e+00> : vector<16x512xf32>
    %403 = tpu.matmul %401, %402, %cst_239 {dimension_numbers = #tpu.dot_dimension_numbers<[1], [0], [0], [1], [0, 0, 1, 1], [], []>} : vector<16x128xbf16>, vector<128x512xbf16>, vector<16x512xf32> -> vector<16x512xf32>
    %c16_240 = arith.constant 16 : index
    %c0_241 = arith.constant 0 : index
    %404 = vector.load %arg11[%c16_240, %c0_241] : memref<128x512xbf16, #tpu.memory_space<vmem>>, vector<16x512xbf16>
    %405 = arith.extf %404 : vector<16x512xbf16> to vector<16x512xf32>
    %406 = arith.addf %403, %405 : vector<16x512xf32>
    %407 = vector.extract_strided_slice %406 {offsets = [0, 0], sizes = [16, 128], strides = [1, 1]} : vector<16x512xf32> to vector<16x128xf32>
    %cst_242 = arith.constant 5.000000e-01 : f32
    %408 = vector.broadcast %cst_242 : f32 to vector<16x128xf32>
    %409 = arith.mulf %408, %407 : vector<16x128xf32>
    %410 = math.tanh %409 : vector<16x128xf32>
    %cst_243 = arith.constant 5.000000e-01 : f32
    %411 = vector.broadcast %cst_243 : f32 to vector<16x128xf32>
    %412 = arith.mulf %411, %410 : vector<16x128xf32>
    %cst_244 = arith.constant 5.000000e-01 : f32
    %413 = vector.broadcast %cst_244 : f32 to vector<16x128xf32>
    %414 = arith.addf %412, %413 : vector<16x128xf32>
    %415 = vector.extract_strided_slice %406 {offsets = [0, 128], sizes = [16, 128], strides = [1, 1]} : vector<16x512xf32> to vector<16x128xf32>
    %cst_245 = arith.constant 5.000000e-01 : f32
    %416 = vector.broadcast %cst_245 : f32 to vector<16x128xf32>
    %417 = arith.mulf %416, %415 : vector<16x128xf32>
    %418 = math.tanh %417 : vector<16x128xf32>
    %cst_246 = arith.constant 5.000000e-01 : f32
    %419 = vector.broadcast %cst_246 : f32 to vector<16x128xf32>
    %420 = arith.mulf %419, %418 : vector<16x128xf32>
    %cst_247 = arith.constant 5.000000e-01 : f32
    %421 = vector.broadcast %cst_247 : f32 to vector<16x128xf32>
    %422 = arith.addf %420, %421 : vector<16x128xf32>
    %423 = vector.extract_strided_slice %406 {offsets = [0, 256], sizes = [16, 128], strides = [1, 1]} : vector<16x512xf32> to vector<16x128xf32>
    %424 = math.tanh %423 : vector<16x128xf32>
    %425 = vector.extract_strided_slice %406 {offsets = [0, 384], sizes = [16, 128], strides = [1, 1]} : vector<16x512xf32> to vector<16x128xf32>
    %cst_248 = arith.constant 5.000000e-01 : f32
    %426 = vector.broadcast %cst_248 : f32 to vector<16x128xf32>
    %427 = arith.mulf %426, %425 : vector<16x128xf32>
    %428 = math.tanh %427 : vector<16x128xf32>
    %cst_249 = arith.constant 5.000000e-01 : f32
    %429 = vector.broadcast %cst_249 : f32 to vector<16x128xf32>
    %430 = arith.mulf %429, %428 : vector<16x128xf32>
    %cst_250 = arith.constant 5.000000e-01 : f32
    %431 = vector.broadcast %cst_250 : f32 to vector<16x128xf32>
    %432 = arith.addf %430, %431 : vector<16x128xf32>
    %c0_251 = arith.constant 0 : index
    %c0_252 = arith.constant 0 : index
    %433 = vector.load %arg13[%c0_251, %c0_252] : memref<16x128xf32, #tpu.memory_space<vmem>>, vector<16x128xf32>
    %434 = arith.mulf %422, %433 : vector<16x128xf32>
    %435 = arith.mulf %414, %424 : vector<16x128xf32>
    %436 = arith.addf %434, %435 : vector<16x128xf32>
    %437 = math.tanh %436 : vector<16x128xf32>
    %438 = arith.mulf %432, %437 : vector<16x128xf32>
    %439 = arith.truncf %438 : vector<16x128xf32> to vector<16x128xbf16>
    %c0_253 = arith.constant 0 : index
    %c0_254 = arith.constant 0 : index
    %440 = vector.load %arg13[%c0_253, %c0_254] : memref<16x128xf32, #tpu.memory_space<vmem>>, vector<16x128xf32>
    tpu.vector_store %arg13[%c0_253, %c0_254], %436 {strides = array<i32>} : memref<16x128xf32, #tpu.memory_space<vmem>>, vector<16x128xf32>,
    %c0_255 = arith.constant 0 : index
    %c0_256 = arith.constant 0 : index
    %441 = vector.load %arg12[%c0_255, %c0_256] : memref<16x128xbf16, #tpu.memory_space<vmem>>, vector<16x128xbf16>
    tpu.vector_store %arg12[%c0_255, %c0_256], %439 {strides = array<i32>} : memref<16x128xbf16, #tpu.memory_space<vmem>>, vector<16x128xbf16>,
    %c0_257 = arith.constant 0 : index
    %c0_258 = arith.constant 0 : index
    %442 = vector.load %arg12[%c0_257, %c0_258] : memref<16x128xbf16, #tpu.memory_space<vmem>>, vector<16x128xbf16>
    %c0_259 = arith.constant 0 : index
    %c0_260 = arith.constant 0 : index
    %443 = vector.load %arg5[%c0_259, %c0_260] : memref<128x512xbf16, #tpu.memory_space<vmem>>, vector<128x512xbf16>
    %cst_261 = arith.constant dense<0.000000e+00> : vector<16x512xf32>
    %444 = tpu.matmul %442, %443, %cst_261 {dimension_numbers = #tpu.dot_dimension_numbers<[1], [0], [0], [1], [0, 0, 1, 1], [], []>} : vector<16x128xbf16>, vector<128x512xbf16>, vector<16x512xf32> -> vector<16x512xf32>
    %c32_262 = arith.constant 32 : index
    %c0_263 = arith.constant 0 : index
    %445 = vector.load %arg11[%c32_262, %c0_263] : memref<128x512xbf16, #tpu.memory_space<vmem>>, vector<16x512xbf16>
    %446 = arith.extf %445 : vector<16x512xbf16> to vector<16x512xf32>
    %447 = arith.addf %444, %446 : vector<16x512xf32>
    %448 = vector.extract_strided_slice %447 {offsets = [0, 0], sizes = [16, 128], strides = [1, 1]} : vector<16x512xf32> to vector<16x128xf32>
    %cst_264 = arith.constant 5.000000e-01 : f32
    %449 = vector.broadcast %cst_264 : f32 to vector<16x128xf32>
    %450 = arith.mulf %449, %448 : vector<16x128xf32>
    %451 = math.tanh %450 : vector<16x128xf32>
    %cst_265 = arith.constant 5.000000e-01 : f32
    %452 = vector.broadcast %cst_265 : f32 to vector<16x128xf32>
    %453 = arith.mulf %452, %451 : vector<16x128xf32>
    %cst_266 = arith.constant 5.000000e-01 : f32
    %454 = vector.broadcast %cst_266 : f32 to vector<16x128xf32>
    %455 = arith.addf %453, %454 : vector<16x128xf32>
    %456 = vector.extract_strided_slice %447 {offsets = [0, 128], sizes = [16, 128], strides = [1, 1]} : vector<16x512xf32> to vector<16x128xf32>
    %cst_267 = arith.constant 5.000000e-01 : f32
    %457 = vector.broadcast %cst_267 : f32 to vector<16x128xf32>
    %458 = arith.mulf %457, %456 : vector<16x128xf32>
    %459 = math.tanh %458 : vector<16x128xf32>
    %cst_268 = arith.constant 5.000000e-01 : f32
    %460 = vector.broadcast %cst_268 : f32 to vector<16x128xf32>
    %461 = arith.mulf %460, %459 : vector<16x128xf32>
    %cst_269 = arith.constant 5.000000e-01 : f32
    %462 = vector.broadcast %cst_269 : f32 to vector<16x128xf32>
    %463 = arith.addf %461, %462 : vector<16x128xf32>
    %464 = vector.extract_strided_slice %447 {offsets = [0, 256], sizes = [16, 128], strides = [1, 1]} : vector<16x512xf32> to vector<16x128xf32>
    %465 = math.tanh %464 : vector<16x128xf32>
    %466 = vector.extract_strided_slice %447 {offsets = [0, 384], sizes = [16, 128], strides = [1, 1]} : vector<16x512xf32> to vector<16x128xf32>
    %cst_270 = arith.constant 5.000000e-01 : f32
    %467 = vector.broadcast %cst_270 : f32 to vector<16x128xf32>
    %468 = arith.mulf %467, %466 : vector<16x128xf32>
    %469 = math.tanh %468 : vector<16x128xf32>
    %cst_271 = arith.constant 5.000000e-01 : f32
    %470 = vector.broadcast %cst_271 : f32 to vector<16x128xf32>
    %471 = arith.mulf %470, %469 : vector<16x128xf32>
    %cst_272 = arith.constant 5.000000e-01 : f32
    %472 = vector.broadcast %cst_272 : f32 to vector<16x128xf32>
    %473 = arith.addf %471, %472 : vector<16x128xf32>
    %c0_273 = arith.constant 0 : index
    %c0_274 = arith.constant 0 : index
    %474 = vector.load %arg13[%c0_273, %c0_274] : memref<16x128xf32, #tpu.memory_space<vmem>>, vector<16x128xf32>
    %475 = arith.mulf %463, %474 : vector<16x128xf32>
    %476 = arith.mulf %455, %465 : vector<16x128xf32>
    %477 = arith.addf %475, %476 : vector<16x128xf32>
    %478 = math.tanh %477 : vector<16x128xf32>
    %479 = arith.mulf %473, %478 : vector<16x128xf32>
    %480 = arith.truncf %479 : vector<16x128xf32> to vector<16x128xbf16>
    %c0_275 = arith.constant 0 : index
    %c0_276 = arith.constant 0 : index
    %481 = vector.load %arg13[%c0_275, %c0_276] : memref<16x128xf32, #tpu.memory_space<vmem>>, vector<16x128xf32>
    tpu.vector_store %arg13[%c0_275, %c0_276], %477 {strides = array<i32>} : memref<16x128xf32, #tpu.memory_space<vmem>>, vector<16x128xf32>,
    %c0_277 = arith.constant 0 : index
    %c0_278 = arith.constant 0 : index
    %482 = vector.load %arg12[%c0_277, %c0_278] : memref<16x128xbf16, #tpu.memory_space<vmem>>, vector<16x128xbf16>
    tpu.vector_store %arg12[%c0_277, %c0_278], %480 {strides = array<i32>} : memref<16x128xbf16, #tpu.memory_space<vmem>>, vector<16x128xbf16>,
    %c0_279 = arith.constant 0 : index
    %c0_280 = arith.constant 0 : index
    %483 = vector.load %arg12[%c0_279, %c0_280] : memref<16x128xbf16, #tpu.memory_space<vmem>>, vector<16x128xbf16>
    %c0_281 = arith.constant 0 : index
    %c0_282 = arith.constant 0 : index
    %484 = vector.load %arg5[%c0_281, %c0_282] : memref<128x512xbf16, #tpu.memory_space<vmem>>, vector<128x512xbf16>
    %cst_283 = arith.constant dense<0.000000e+00> : vector<16x512xf32>
    %485 = tpu.matmul %483, %484, %cst_283 {dimension_numbers = #tpu.dot_dimension_numbers<[1], [0], [0], [1], [0, 0, 1, 1], [], []>} : vector<16x128xbf16>, vector<128x512xbf16>, vector<16x512xf32> -> vector<16x512xf32>
    %c48_284 = arith.constant 48 : index
    %c0_285 = arith.constant 0 : index
    %486 = vector.load %arg11[%c48_284, %c0_285] : memref<128x512xbf16, #tpu.memory_space<vmem>>, vector<16x512xbf16>
    %487 = arith.extf %486 : vector<16x512xbf16> to vector<16x512xf32>
    %488 = arith.addf %485, %487 : vector<16x512xf32>
    %489 = vector.extract_strided_slice %488 {offsets = [0, 0], sizes = [16, 128], strides = [1, 1]} : vector<16x512xf32> to vector<16x128xf32>
    %cst_286 = arith.constant 5.000000e-01 : f32
    %490 = vector.broadcast %cst_286 : f32 to vector<16x128xf32>
    %491 = arith.mulf %490, %489 : vector<16x128xf32>
    %492 = math.tanh %491 : vector<16x128xf32>
    %cst_287 = arith.constant 5.000000e-01 : f32
    %493 = vector.broadcast %cst_287 : f32 to vector<16x128xf32>
    %494 = arith.mulf %493, %492 : vector<16x128xf32>
    %cst_288 = arith.constant 5.000000e-01 : f32
    %495 = vector.broadcast %cst_288 : f32 to vector<16x128xf32>
    %496 = arith.addf %494, %495 : vector<16x128xf32>
    %497 = vector.extract_strided_slice %488 {offsets = [0, 128], sizes = [16, 128], strides = [1, 1]} : vector<16x512xf32> to vector<16x128xf32>
    %cst_289 = arith.constant 5.000000e-01 : f32
    %498 = vector.broadcast %cst_289 : f32 to vector<16x128xf32>
    %499 = arith.mulf %498, %497 : vector<16x128xf32>
    %500 = math.tanh %499 : vector<16x128xf32>
    %cst_290 = arith.constant 5.000000e-01 : f32
    %501 = vector.broadcast %cst_290 : f32 to vector<16x128xf32>
    %502 = arith.mulf %501, %500 : vector<16x128xf32>
    %cst_291 = arith.constant 5.000000e-01 : f32
    %503 = vector.broadcast %cst_291 : f32 to vector<16x128xf32>
    %504 = arith.addf %502, %503 : vector<16x128xf32>
    %505 = vector.extract_strided_slice %488 {offsets = [0, 256], sizes = [16, 128], strides = [1, 1]} : vector<16x512xf32> to vector<16x128xf32>
    %506 = math.tanh %505 : vector<16x128xf32>
    %507 = vector.extract_strided_slice %488 {offsets = [0, 384], sizes = [16, 128], strides = [1, 1]} : vector<16x512xf32> to vector<16x128xf32>
    %cst_292 = arith.constant 5.000000e-01 : f32
    %508 = vector.broadcast %cst_292 : f32 to vector<16x128xf32>
    %509 = arith.mulf %508, %507 : vector<16x128xf32>
    %510 = math.tanh %509 : vector<16x128xf32>
    %cst_293 = arith.constant 5.000000e-01 : f32
    %511 = vector.broadcast %cst_293 : f32 to vector<16x128xf32>
    %512 = arith.mulf %511, %510 : vector<16x128xf32>
    %cst_294 = arith.constant 5.000000e-01 : f32
    %513 = vector.broadcast %cst_294 : f32 to vector<16x128xf32>
    %514 = arith.addf %512, %513 : vector<16x128xf32>
    %c0_295 = arith.constant 0 : index
    %c0_296 = arith.constant 0 : index
    %515 = vector.load %arg13[%c0_295, %c0_296] : memref<16x128xf32, #tpu.memory_space<vmem>>, vector<16x128xf32>
    %516 = arith.mulf %504, %515 : vector<16x128xf32>
    %517 = arith.mulf %496, %506 : vector<16x128xf32>
    %518 = arith.addf %516, %517 : vector<16x128xf32>
    %519 = math.tanh %518 : vector<16x128xf32>
    %520 = arith.mulf %514, %519 : vector<16x128xf32>
    %521 = arith.truncf %520 : vector<16x128xf32> to vector<16x128xbf16>
    %c0_297 = arith.constant 0 : index
    %c0_298 = arith.constant 0 : index
    %522 = vector.load %arg13[%c0_297, %c0_298] : memref<16x128xf32, #tpu.memory_space<vmem>>, vector<16x128xf32>
    tpu.vector_store %arg13[%c0_297, %c0_298], %518 {strides = array<i32>} : memref<16x128xf32, #tpu.memory_space<vmem>>, vector<16x128xf32>,
    %c0_299 = arith.constant 0 : index
    %c0_300 = arith.constant 0 : index
    %523 = vector.load %arg12[%c0_299, %c0_300] : memref<16x128xbf16, #tpu.memory_space<vmem>>, vector<16x128xbf16>
    tpu.vector_store %arg12[%c0_299, %c0_300], %521 {strides = array<i32>} : memref<16x128xbf16, #tpu.memory_space<vmem>>, vector<16x128xbf16>,
    %c0_301 = arith.constant 0 : index
    %c0_302 = arith.constant 0 : index
    %524 = vector.load %arg12[%c0_301, %c0_302] : memref<16x128xbf16, #tpu.memory_space<vmem>>, vector<16x128xbf16>
    %c0_303 = arith.constant 0 : index
    %c0_304 = arith.constant 0 : index
    %525 = vector.load %arg5[%c0_303, %c0_304] : memref<128x512xbf16, #tpu.memory_space<vmem>>, vector<128x512xbf16>
    %cst_305 = arith.constant dense<0.000000e+00> : vector<16x512xf32>
    %526 = tpu.matmul %524, %525, %cst_305 {dimension_numbers = #tpu.dot_dimension_numbers<[1], [0], [0], [1], [0, 0, 1, 1], [], []>} : vector<16x128xbf16>, vector<128x512xbf16>, vector<16x512xf32> -> vector<16x512xf32>
    %c64_306 = arith.constant 64 : index
    %c0_307 = arith.constant 0 : index
    %527 = vector.load %arg11[%c64_306, %c0_307] : memref<128x512xbf16, #tpu.memory_space<vmem>>, vector<16x512xbf16>
    %528 = arith.extf %527 : vector<16x512xbf16> to vector<16x512xf32>
    %529 = arith.addf %526, %528 : vector<16x512xf32>
    %530 = vector.extract_strided_slice %529 {offsets = [0, 0], sizes = [16, 128], strides = [1, 1]} : vector<16x512xf32> to vector<16x128xf32>
    %cst_308 = arith.constant 5.000000e-01 : f32
    %531 = vector.broadcast %cst_308 : f32 to vector<16x128xf32>
    %532 = arith.mulf %531, %530 : vector<16x128xf32>
    %533 = math.tanh %532 : vector<16x128xf32>
    %cst_309 = arith.constant 5.000000e-01 : f32
    %534 = vector.broadcast %cst_309 : f32 to vector<16x128xf32>
    %535 = arith.mulf %534, %533 : vector<16x128xf32>
    %cst_310 = arith.constant 5.000000e-01 : f32
    %536 = vector.broadcast %cst_310 : f32 to vector<16x128xf32>
    %537 = arith.addf %535, %536 : vector<16x128xf32>
    %538 = vector.extract_strided_slice %529 {offsets = [0, 128], sizes = [16, 128], strides = [1, 1]} : vector<16x512xf32> to vector<16x128xf32>
    %cst_311 = arith.constant 5.000000e-01 : f32
    %539 = vector.broadcast %cst_311 : f32 to vector<16x128xf32>
    %540 = arith.mulf %539, %538 : vector<16x128xf32>
    %541 = math.tanh %540 : vector<16x128xf32>
    %cst_312 = arith.constant 5.000000e-01 : f32
    %542 = vector.broadcast %cst_312 : f32 to vector<16x128xf32>
    %543 = arith.mulf %542, %541 : vector<16x128xf32>
    %cst_313 = arith.constant 5.000000e-01 : f32
    %544 = vector.broadcast %cst_313 : f32 to vector<16x128xf32>
    %545 = arith.addf %543, %544 : vector<16x128xf32>
    %546 = vector.extract_strided_slice %529 {offsets = [0, 256], sizes = [16, 128], strides = [1, 1]} : vector<16x512xf32> to vector<16x128xf32>
    %547 = math.tanh %546 : vector<16x128xf32>
    %548 = vector.extract_strided_slice %529 {offsets = [0, 384], sizes = [16, 128], strides = [1, 1]} : vector<16x512xf32> to vector<16x128xf32>
    %cst_314 = arith.constant 5.000000e-01 : f32
    %549 = vector.broadcast %cst_314 : f32 to vector<16x128xf32>
    %550 = arith.mulf %549, %548 : vector<16x128xf32>
    %551 = math.tanh %550 : vector<16x128xf32>
    %cst_315 = arith.constant 5.000000e-01 : f32
    %552 = vector.broadcast %cst_315 : f32 to vector<16x128xf32>
    %553 = arith.mulf %552, %551 : vector<16x128xf32>
    %cst_316 = arith.constant 5.000000e-01 : f32
    %554 = vector.broadcast %cst_316 : f32 to vector<16x128xf32>
    %555 = arith.addf %553, %554 : vector<16x128xf32>
    %c0_317 = arith.constant 0 : index
    %c0_318 = arith.constant 0 : index
    %556 = vector.load %arg13[%c0_317, %c0_318] : memref<16x128xf32, #tpu.memory_space<vmem>>, vector<16x128xf32>
    %557 = arith.mulf %545, %556 : vector<16x128xf32>
    %558 = arith.mulf %537, %547 : vector<16x128xf32>
    %559 = arith.addf %557, %558 : vector<16x128xf32>
    %560 = math.tanh %559 : vector<16x128xf32>
    %561 = arith.mulf %555, %560 : vector<16x128xf32>
    %562 = arith.truncf %561 : vector<16x128xf32> to vector<16x128xbf16>
    %c0_319 = arith.constant 0 : index
    %c0_320 = arith.constant 0 : index
    %563 = vector.load %arg13[%c0_319, %c0_320] : memref<16x128xf32, #tpu.memory_space<vmem>>, vector<16x128xf32>
    tpu.vector_store %arg13[%c0_319, %c0_320], %559 {strides = array<i32>} : memref<16x128xf32, #tpu.memory_space<vmem>>, vector<16x128xf32>,
    %c0_321 = arith.constant 0 : index
    %c0_322 = arith.constant 0 : index
    %564 = vector.load %arg12[%c0_321, %c0_322] : memref<16x128xbf16, #tpu.memory_space<vmem>>, vector<16x128xbf16>
    tpu.vector_store %arg12[%c0_321, %c0_322], %562 {strides = array<i32>} : memref<16x128xbf16, #tpu.memory_space<vmem>>, vector<16x128xbf16>,
    %c0_323 = arith.constant 0 : index
    %c0_324 = arith.constant 0 : index
    %565 = vector.load %arg12[%c0_323, %c0_324] : memref<16x128xbf16, #tpu.memory_space<vmem>>, vector<16x128xbf16>
    %c0_325 = arith.constant 0 : index
    %c0_326 = arith.constant 0 : index
    %566 = vector.load %arg5[%c0_325, %c0_326] : memref<128x512xbf16, #tpu.memory_space<vmem>>, vector<128x512xbf16>
    %cst_327 = arith.constant dense<0.000000e+00> : vector<16x512xf32>
    %567 = tpu.matmul %565, %566, %cst_327 {dimension_numbers = #tpu.dot_dimension_numbers<[1], [0], [0], [1], [0, 0, 1, 1], [], []>} : vector<16x128xbf16>, vector<128x512xbf16>, vector<16x512xf32> -> vector<16x512xf32>
    %c80_328 = arith.constant 80 : index
    %c0_329 = arith.constant 0 : index
    %568 = vector.load %arg11[%c80_328, %c0_329] : memref<128x512xbf16, #tpu.memory_space<vmem>>, vector<16x512xbf16>
    %569 = arith.extf %568 : vector<16x512xbf16> to vector<16x512xf32>
    %570 = arith.addf %567, %569 : vector<16x512xf32>
    %571 = vector.extract_strided_slice %570 {offsets = [0, 0], sizes = [16, 128], strides = [1, 1]} : vector<16x512xf32> to vector<16x128xf32>
    %cst_330 = arith.constant 5.000000e-01 : f32
    %572 = vector.broadcast %cst_330 : f32 to vector<16x128xf32>
    %573 = arith.mulf %572, %571 : vector<16x128xf32>
    %574 = math.tanh %573 : vector<16x128xf32>
    %cst_331 = arith.constant 5.000000e-01 : f32
    %575 = vector.broadcast %cst_331 : f32 to vector<16x128xf32>
    %576 = arith.mulf %575, %574 : vector<16x128xf32>
    %cst_332 = arith.constant 5.000000e-01 : f32
    %577 = vector.broadcast %cst_332 : f32 to vector<16x128xf32>
    %578 = arith.addf %576, %577 : vector<16x128xf32>
    %579 = vector.extract_strided_slice %570 {offsets = [0, 128], sizes = [16, 128], strides = [1, 1]} : vector<16x512xf32> to vector<16x128xf32>
    %cst_333 = arith.constant 5.000000e-01 : f32
    %580 = vector.broadcast %cst_333 : f32 to vector<16x128xf32>
    %581 = arith.mulf %580, %579 : vector<16x128xf32>
    %582 = math.tanh %581 : vector<16x128xf32>
    %cst_334 = arith.constant 5.000000e-01 : f32
    %583 = vector.broadcast %cst_334 : f32 to vector<16x128xf32>
    %584 = arith.mulf %583, %582 : vector<16x128xf32>
    %cst_335 = arith.constant 5.000000e-01 : f32
    %585 = vector.broadcast %cst_335 : f32 to vector<16x128xf32>
    %586 = arith.addf %584, %585 : vector<16x128xf32>
    %587 = vector.extract_strided_slice %570 {offsets = [0, 256], sizes = [16, 128], strides = [1, 1]} : vector<16x512xf32> to vector<16x128xf32>
    %588 = math.tanh %587 : vector<16x128xf32>
    %589 = vector.extract_strided_slice %570 {offsets = [0, 384], sizes = [16, 128], strides = [1, 1]} : vector<16x512xf32> to vector<16x128xf32>
    %cst_336 = arith.constant 5.000000e-01 : f32
    %590 = vector.broadcast %cst_336 : f32 to vector<16x128xf32>
    %591 = arith.mulf %590, %589 : vector<16x128xf32>
    %592 = math.tanh %591 : vector<16x128xf32>
    %cst_337 = arith.constant 5.000000e-01 : f32
    %593 = vector.broadcast %cst_337 : f32 to vector<16x128xf32>
    %594 = arith.mulf %593, %592 : vector<16x128xf32>
    %cst_338 = arith.constant 5.000000e-01 : f32
    %595 = vector.broadcast %cst_338 : f32 to vector<16x128xf32>
    %596 = arith.addf %594, %595 : vector<16x128xf32>
    %c0_339 = arith.constant 0 : index
    %c0_340 = arith.constant 0 : index
    %597 = vector.load %arg13[%c0_339, %c0_340] : memref<16x128xf32, #tpu.memory_space<vmem>>, vector<16x128xf32>
    %598 = arith.mulf %586, %597 : vector<16x128xf32>
    %599 = arith.mulf %578, %588 : vector<16x128xf32>
    %600 = arith.addf %598, %599 : vector<16x128xf32>
    %601 = math.tanh %600 : vector<16x128xf32>
    %602 = arith.mulf %596, %601 : vector<16x128xf32>
    %603 = arith.truncf %602 : vector<16x128xf32> to vector<16x128xbf16>
    %c0_341 = arith.constant 0 : index
    %c0_342 = arith.constant 0 : index
    %604 = vector.load %arg13[%c0_341, %c0_342] : memref<16x128xf32, #tpu.memory_space<vmem>>, vector<16x128xf32>
    tpu.vector_store %arg13[%c0_341, %c0_342], %600 {strides = array<i32>} : memref<16x128xf32, #tpu.memory_space<vmem>>, vector<16x128xf32>,
    %c0_343 = arith.constant 0 : index
    %c0_344 = arith.constant 0 : index
    %605 = vector.load %arg12[%c0_343, %c0_344] : memref<16x128xbf16, #tpu.memory_space<vmem>>, vector<16x128xbf16>
    tpu.vector_store %arg12[%c0_343, %c0_344], %603 {strides = array<i32>} : memref<16x128xbf16, #tpu.memory_space<vmem>>, vector<16x128xbf16>,
    %c0_345 = arith.constant 0 : index
    %c0_346 = arith.constant 0 : index
    %606 = vector.load %arg12[%c0_345, %c0_346] : memref<16x128xbf16, #tpu.memory_space<vmem>>, vector<16x128xbf16>
    %c0_347 = arith.constant 0 : index
    %c0_348 = arith.constant 0 : index
    %607 = vector.load %arg5[%c0_347, %c0_348] : memref<128x512xbf16, #tpu.memory_space<vmem>>, vector<128x512xbf16>
    %cst_349 = arith.constant dense<0.000000e+00> : vector<16x512xf32>
    %608 = tpu.matmul %606, %607, %cst_349 {dimension_numbers = #tpu.dot_dimension_numbers<[1], [0], [0], [1], [0, 0, 1, 1], [], []>} : vector<16x128xbf16>, vector<128x512xbf16>, vector<16x512xf32> -> vector<16x512xf32>
    %c96_350 = arith.constant 96 : index
    %c0_351 = arith.constant 0 : index
    %609 = vector.load %arg11[%c96_350, %c0_351] : memref<128x512xbf16, #tpu.memory_space<vmem>>, vector<16x512xbf16>
    %610 = arith.extf %609 : vector<16x512xbf16> to vector<16x512xf32>
    %611 = arith.addf %608, %610 : vector<16x512xf32>
    %612 = vector.extract_strided_slice %611 {offsets = [0, 0], sizes = [16, 128], strides = [1, 1]} : vector<16x512xf32> to vector<16x128xf32>
    %cst_352 = arith.constant 5.000000e-01 : f32
    %613 = vector.broadcast %cst_352 : f32 to vector<16x128xf32>
    %614 = arith.mulf %613, %612 : vector<16x128xf32>
    %615 = math.tanh %614 : vector<16x128xf32>
    %cst_353 = arith.constant 5.000000e-01 : f32
    %616 = vector.broadcast %cst_353 : f32 to vector<16x128xf32>
    %617 = arith.mulf %616, %615 : vector<16x128xf32>
    %cst_354 = arith.constant 5.000000e-01 : f32
    %618 = vector.broadcast %cst_354 : f32 to vector<16x128xf32>
    %619 = arith.addf %617, %618 : vector<16x128xf32>
    %620 = vector.extract_strided_slice %611 {offsets = [0, 128], sizes = [16, 128], strides = [1, 1]} : vector<16x512xf32> to vector<16x128xf32>
    %cst_355 = arith.constant 5.000000e-01 : f32
    %621 = vector.broadcast %cst_355 : f32 to vector<16x128xf32>
    %622 = arith.mulf %621, %620 : vector<16x128xf32>
    %623 = math.tanh %622 : vector<16x128xf32>
    %cst_356 = arith.constant 5.000000e-01 : f32
    %624 = vector.broadcast %cst_356 : f32 to vector<16x128xf32>
    %625 = arith.mulf %624, %623 : vector<16x128xf32>
    %cst_357 = arith.constant 5.000000e-01 : f32
    %626 = vector.broadcast %cst_357 : f32 to vector<16x128xf32>
    %627 = arith.addf %625, %626 : vector<16x128xf32>
    %628 = vector.extract_strided_slice %611 {offsets = [0, 256], sizes = [16, 128], strides = [1, 1]} : vector<16x512xf32> to vector<16x128xf32>
    %629 = math.tanh %628 : vector<16x128xf32>
    %630 = vector.extract_strided_slice %611 {offsets = [0, 384], sizes = [16, 128], strides = [1, 1]} : vector<16x512xf32> to vector<16x128xf32>
    %cst_358 = arith.constant 5.000000e-01 : f32
    %631 = vector.broadcast %cst_358 : f32 to vector<16x128xf32>
    %632 = arith.mulf %631, %630 : vector<16x128xf32>
    %633 = math.tanh %632 : vector<16x128xf32>
    %cst_359 = arith.constant 5.000000e-01 : f32
    %634 = vector.broadcast %cst_359 : f32 to vector<16x128xf32>
    %635 = arith.mulf %634, %633 : vector<16x128xf32>
    %cst_360 = arith.constant 5.000000e-01 : f32
    %636 = vector.broadcast %cst_360 : f32 to vector<16x128xf32>
    %637 = arith.addf %635, %636 : vector<16x128xf32>
    %c0_361 = arith.constant 0 : index
    %c0_362 = arith.constant 0 : index
    %638 = vector.load %arg13[%c0_361, %c0_362] : memref<16x128xf32, #tpu.memory_space<vmem>>, vector<16x128xf32>
    %639 = arith.mulf %627, %638 : vector<16x128xf32>
    %640 = arith.mulf %619, %629 : vector<16x128xf32>
    %641 = arith.addf %639, %640 : vector<16x128xf32>
    %642 = math.tanh %641 : vector<16x128xf32>
    %643 = arith.mulf %637, %642 : vector<16x128xf32>
    %644 = arith.truncf %643 : vector<16x128xf32> to vector<16x128xbf16>
    %c0_363 = arith.constant 0 : index
    %c0_364 = arith.constant 0 : index
    %645 = vector.load %arg13[%c0_363, %c0_364] : memref<16x128xf32, #tpu.memory_space<vmem>>, vector<16x128xf32>
    tpu.vector_store %arg13[%c0_363, %c0_364], %641 {strides = array<i32>} : memref<16x128xf32, #tpu.memory_space<vmem>>, vector<16x128xf32>,
    %c0_365 = arith.constant 0 : index
    %c0_366 = arith.constant 0 : index
    %646 = vector.load %arg12[%c0_365, %c0_366] : memref<16x128xbf16, #tpu.memory_space<vmem>>, vector<16x128xbf16>
    tpu.vector_store %arg12[%c0_365, %c0_366], %644 {strides = array<i32>} : memref<16x128xbf16, #tpu.memory_space<vmem>>, vector<16x128xbf16>,
    %c0_367 = arith.constant 0 : index
    %c0_368 = arith.constant 0 : index
    %647 = vector.load %arg12[%c0_367, %c0_368] : memref<16x128xbf16, #tpu.memory_space<vmem>>, vector<16x128xbf16>
    %c0_369 = arith.constant 0 : index
    %c0_370 = arith.constant 0 : index
    %648 = vector.load %arg5[%c0_369, %c0_370] : memref<128x512xbf16, #tpu.memory_space<vmem>>, vector<128x512xbf16>
    %cst_371 = arith.constant dense<0.000000e+00> : vector<16x512xf32>
    %649 = tpu.matmul %647, %648, %cst_371 {dimension_numbers = #tpu.dot_dimension_numbers<[1], [0], [0], [1], [0, 0, 1, 1], [], []>} : vector<16x128xbf16>, vector<128x512xbf16>, vector<16x512xf32> -> vector<16x512xf32>
    %c112_372 = arith.constant 112 : index
    %c0_373 = arith.constant 0 : index
    %650 = vector.load %arg11[%c112_372, %c0_373] : memref<128x512xbf16, #tpu.memory_space<vmem>>, vector<16x512xbf16>
    %651 = arith.extf %650 : vector<16x512xbf16> to vector<16x512xf32>
    %652 = arith.addf %649, %651 : vector<16x512xf32>
    %653 = vector.extract_strided_slice %652 {offsets = [0, 0], sizes = [16, 128], strides = [1, 1]} : vector<16x512xf32> to vector<16x128xf32>
    %cst_374 = arith.constant 5.000000e-01 : f32
    %654 = vector.broadcast %cst_374 : f32 to vector<16x128xf32>
    %655 = arith.mulf %654, %653 : vector<16x128xf32>
    %656 = math.tanh %655 : vector<16x128xf32>
    %cst_375 = arith.constant 5.000000e-01 : f32
    %657 = vector.broadcast %cst_375 : f32 to vector<16x128xf32>
    %658 = arith.mulf %657, %656 : vector<16x128xf32>
    %cst_376 = arith.constant 5.000000e-01 : f32
    %659 = vector.broadcast %cst_376 : f32 to vector<16x128xf32>
    %660 = arith.addf %658, %659 : vector<16x128xf32>
    %661 = vector.extract_strided_slice %652 {offsets = [0, 128], sizes = [16, 128], strides = [1, 1]} : vector<16x512xf32> to vector<16x128xf32>
    %cst_377 = arith.constant 5.000000e-01 : f32
    %662 = vector.broadcast %cst_377 : f32 to vector<16x128xf32>
    %663 = arith.mulf %662, %661 : vector<16x128xf32>
    %664 = math.tanh %663 : vector<16x128xf32>
    %cst_378 = arith.constant 5.000000e-01 : f32
    %665 = vector.broadcast %cst_378 : f32 to vector<16x128xf32>
    %666 = arith.mulf %665, %664 : vector<16x128xf32>
    %cst_379 = arith.constant 5.000000e-01 : f32
    %667 = vector.broadcast %cst_379 : f32 to vector<16x128xf32>
    %668 = arith.addf %666, %667 : vector<16x128xf32>
    %669 = vector.extract_strided_slice %652 {offsets = [0, 256], sizes = [16, 128], strides = [1, 1]} : vector<16x512xf32> to vector<16x128xf32>
    %670 = math.tanh %669 : vector<16x128xf32>
    %671 = vector.extract_strided_slice %652 {offsets = [0, 384], sizes = [16, 128], strides = [1, 1]} : vector<16x512xf32> to vector<16x128xf32>
    %cst_380 = arith.constant 5.000000e-01 : f32
    %672 = vector.broadcast %cst_380 : f32 to vector<16x128xf32>
    %673 = arith.mulf %672, %671 : vector<16x128xf32>
    %674 = math.tanh %673 : vector<16x128xf32>
    %cst_381 = arith.constant 5.000000e-01 : f32
    %675 = vector.broadcast %cst_381 : f32 to vector<16x128xf32>
    %676 = arith.mulf %675, %674 : vector<16x128xf32>
    %cst_382 = arith.constant 5.000000e-01 : f32
    %677 = vector.broadcast %cst_382 : f32 to vector<16x128xf32>
    %678 = arith.addf %676, %677 : vector<16x128xf32>
    %c0_383 = arith.constant 0 : index
    %c0_384 = arith.constant 0 : index
    %679 = vector.load %arg13[%c0_383, %c0_384] : memref<16x128xf32, #tpu.memory_space<vmem>>, vector<16x128xf32>
    %680 = arith.mulf %668, %679 : vector<16x128xf32>
    %681 = arith.mulf %660, %670 : vector<16x128xf32>
    %682 = arith.addf %680, %681 : vector<16x128xf32>
    %683 = math.tanh %682 : vector<16x128xf32>
    %684 = arith.mulf %678, %683 : vector<16x128xf32>
    %685 = arith.truncf %684 : vector<16x128xf32> to vector<16x128xbf16>
    %c0_385 = arith.constant 0 : index
    %c0_386 = arith.constant 0 : index
    %686 = vector.load %arg13[%c0_385, %c0_386] : memref<16x128xf32, #tpu.memory_space<vmem>>, vector<16x128xf32>
    tpu.vector_store %arg13[%c0_385, %c0_386], %682 {strides = array<i32>} : memref<16x128xf32, #tpu.memory_space<vmem>>, vector<16x128xf32>,
    %c0_387 = arith.constant 0 : index
    %c0_388 = arith.constant 0 : index
    %687 = vector.load %arg12[%c0_387, %c0_388] : memref<16x128xbf16, #tpu.memory_space<vmem>>, vector<16x128xbf16>
    tpu.vector_store %arg12[%c0_387, %c0_388], %685 {strides = array<i32>} : memref<16x128xbf16, #tpu.memory_space<vmem>>, vector<16x128xbf16>,
    %c0_389 = arith.constant 0 : index
    %c0_390 = arith.constant 0 : index
    %688 = vector.load %arg12[%c0_389, %c0_390] : memref<16x128xbf16, #tpu.memory_space<vmem>>, vector<16x128xbf16>
    %c0_391 = arith.constant 0 : index
    %c0_392 = arith.constant 0 : index
    %689 = vector.load %arg7[%c0_391, %c0_392] : memref<128x128xbf16, #tpu.memory_space<vmem>>, vector<128x128xbf16>
    %cst_393 = arith.constant dense<0.000000e+00> : vector<16x128xf32>
    %690 = tpu.matmul %688, %689, %cst_393 {dimension_numbers = #tpu.dot_dimension_numbers<[1], [0], [0], [1], [0, 0, 1, 1], [], []>} : vector<16x128xbf16>, vector<128x128xbf16>, vector<16x128xf32> -> vector<16x128xf32>
    %c0_394 = arith.constant 0 : index
    %c0_395 = arith.constant 0 : index
    %691 = vector.load %arg8[%c0_394, %c0_395] : memref<1x128xf32, #tpu.memory_space<vmem>>, vector<1x128xf32>
    %692 = vector.broadcast %691 : vector<1x128xf32> to vector<16x128xf32>
    %693 = arith.addf %690, %692 : vector<16x128xf32>
    %c0_396 = arith.constant 0 : index
    %c0_397 = arith.constant 0 : index
    %694 = vector.load %arg9[%c0_396, %c0_397] : memref<16x128xf32, #tpu.memory_space<vmem>>, vector<16x128xf32>
    tpu.vector_store %arg9[%c0_396, %c0_397], %693 {strides = array<i32>} : memref<16x128xf32, #tpu.memory_space<vmem>>, vector<16x128xf32>,
    return
  }
}

</mosaic_0001>

<llo_original>
// kernel: tpu_custom_call.1
$region0: #{tpu_custom_call.1}
  #allocation0 [shape = 'u32[]', space=smem, size = 0x4, offset = 0x4, fixed_abs, tag = 'smem constant byte address 0x4 - core index']
  #allocation1 [shape = 'u32[144,128]{1,0:T(1,128)}', space=vmem, size = 0x12000, scoped, tag = 'internal scratch']
  #allocation2 [shape = 'bf16[128,128]{1,0:T(16,128)(2,1)}', space=vmem, size = 0x8000, scoped, tag = 'scratch operand']
  #allocation3 [shape = 'bf16[128,512]{1,0:T(16,128)(2,1)}', space=vmem, size = 0x20000, scoped, tag = 'scratch operand']
  #allocation4 [shape = 'bf16[16,128]{1,0:T(16,128)(2,1)}', space=vmem, size = 0x1000, scoped, tag = 'scratch operand']
  #allocation5 [shape = 'f32[16,128]{1,0:T(8,128)}', space=vmem, size = 0x2000, scoped, tag = 'scratch operand']
  %s0 = inlined_call_operand.hbm [shape: bf16[128,128], index: 0, kind: input, shape index: {}]
  %s1 = inlined_call_operand.hbm [shape: bf16[128,512], index: 1, kind: input, shape index: {}]
  %s2 = inlined_call_operand.hbm [shape: bf16[128,512], index: 2, kind: input, shape index: {}]
  %s3 = inlined_call_operand.vmem [shape: f32[1,512], index: 3, kind: input, shape index: {}]
  %s4 = inlined_call_operand.hbm [shape: bf16[128,512], index: 4, kind: input, shape index: {}]
  %s5 = inlined_call_operand.hbm [shape: bf16[128,512], index: 5, kind: input, shape index: {}]
  %s6 = inlined_call_operand.vmem [shape: f32[1,512], index: 6, kind: input, shape index: {}]
  %s7 = inlined_call_operand.hbm [shape: bf16[128,128], index: 7, kind: input, shape index: {}]
  %s8 = inlined_call_operand.vmem [shape: f32[1,128], index: 8, kind: input, shape index: {}]
  %s9 = inlined_call_operand.hbm [shape: f32[16,128], index: 9, kind: output, shape index: {}]
  %s10 = sld [smem:[#allocation0]]
  $region70: #{tpu_custom_call.1} parent=0
    _
  %s12 = ssub.s32 1, %s10
  %s13 = scalar_select 0, %s12, %s10
  $region1: #{tpu_custom_call.1} parent=0
    #allocation6 [shape = 'u8[32768]{0}', space=vmem, size = 0x8000, scoped, tag = 'input window, operand 0, single buffered']
    #allocation7 [shape = 's32[1]{0}', space=sflag, size = 0x4, scoped, tag = 'scoped memory for tpu_custom_call.1']
    #allocation8 [shape = 's32[1]{0}', space=sflag, size = 0x4, scoped, tag = 'scoped memory for tpu_custom_call.1']
    #allocation9 [shape = 'u8[131072]{0}', space=vmem, size = 0x20000, scoped, tag = 'input window, operand 1, single buffered']
    #allocation10 [shape = 's32[1]{0}', space=sflag, size = 0x4, scoped, tag = 'scoped memory for tpu_custom_call.1']
    #allocation11 [shape = 'u8[131072]{0}', space=vmem, size = 0x20000, scoped, tag = 'input window, operand 2, single buffered']
    #allocation12 [shape = 'u8[131072]{0}', space=vmem, size = 0x20000, scoped, tag = 'input window, operand 4, single buffered']
    #allocation13 [shape = 's32[1]{0}', space=sflag, size = 0x4, scoped, tag = 'scoped memory for tpu_custom_call.1']
    #allocation14 [shape = 'u8[131072]{0}', space=vmem, size = 0x20000, scoped, tag = 'input window, operand 5, single buffered']
    #allocation15 [shape = 'u8[32768]{0}', space=vmem, size = 0x8000, scoped, tag = 'input window, operand 7, single buffered']
    #allocation16 [shape = 's32[1]{0}', space=sflag, size = 0x4, scoped, tag = 'scoped memory for tpu_custom_call.1']
    #allocation17 [shape = 'u8[8192]{0}', space=vmem, size = 0x2000, scoped, tag = 'output window, operand 0, single buffered']
    %14 = vsyncpa [#allocation7], 0
    %15 = vsyncpa [#allocation10], 0
    %16 = vsyncpa [#allocation13], 0
    %17 = vsyncpa [#allocation16], 0
    %18 = vsyncpa [#allocation8], 0
    // Predicated region
    $region2: #{tpu_custom_call.1} parent=1 // pred_check
      _
    $region3: #{tpu_custom_call.1} parent=1 // pred_check_branch
      %20 = sbr.rel (0) target = $region5
    $region4: #{tpu_custom_call.1} parent=1 // pred_region
      %s22 = ssub.s32 1024, 1024
      %23 = vsyncadd [#allocation7], %s22
      %s24 = sshll.u32 [#allocation6], 4
      %s25 = int_to_ptr.vmem [resolvable:$true] %s24
      %30 = dma.hbm_to_vmem [thread:$0]  %s0, 1024, %s25, [#allocation7], 64, 64, 4
    $region5: #{tpu_custom_call.1} parent=1 // pred_fallthru
      _
    // Predicated region
    $region6: #{tpu_custom_call.1} parent=1 // pred_check
      _
    $region7: #{tpu_custom_call.1} parent=1 // pred_check_branch
      %32 = sbr.rel (0) target = $region9
    $region8: #{tpu_custom_call.1} parent=1 // pred_region
      %s34 = ssub.s32 4096, 4096
      %35 = vsyncadd [#allocation10], %s34
      %s36 = sshll.u32 [#allocation9], 4
      %s37 = int_to_ptr.vmem [resolvable:$true] %s36
      %42 = dma.hbm_to_vmem [thread:$0]  %s1, 4096, %s37, [#allocation10], 256, 256, 16
    $region9: #{tpu_custom_call.1} parent=1 // pred_fallthru
      _
    // Predicated region
    $region10: #{tpu_custom_call.1} parent=1 // pred_check
      _
    $region11: #{tpu_custom_call.1} parent=1 // pred_check_branch
      %44 = sbr.rel (0) target = $region13
    $region12: #{tpu_custom_call.1} parent=1 // pred_region
      %s46 = ssub.s32 4096, 4096
      %47 = vsyncadd [#allocation10], %s46
      %s48 = sshll.u32 [#allocation11], 4
      %s49 = int_to_ptr.vmem [resolvable:$true] %s48
      %54 = dma.hbm_to_vmem [thread:$0]  %s2, 4096, %s49, [#allocation10], 256, 256, 16
    $region13: #{tpu_custom_call.1} parent=1 // pred_fallthru
      _
    // Predicated region
    $region14: #{tpu_custom_call.1} parent=1 // pred_check
      _
    $region15: #{tpu_custom_call.1} parent=1 // pred_check_branch
      %56 = sbr.rel (0) target = $region17
    $region16: #{tpu_custom_call.1} parent=1 // pred_region
      _
    $region17: #{tpu_custom_call.1} parent=1 // pred_fallthru
      _
    // Predicated region
    $region18: #{tpu_custom_call.1} parent=1 // pred_check
      _
    $region19: #{tpu_custom_call.1} parent=1 // pred_check_branch
      %58 = sbr.rel (0) target = $region21
    $region20: #{tpu_custom_call.1} parent=1 // pred_region
      %s60 = ssub.s32 4096, 4096
      %61 = vsyncadd [#allocation13], %s60
      %s62 = sshll.u32 [#allocation12], 4
      %s63 = int_to_ptr.vmem [resolvable:$true] %s62
      %68 = dma.hbm_to_vmem [thread:$0]  %s4, 4096, %s63, [#allocation13], 256, 256, 16
    $region21: #{tpu_custom_call.1} parent=1 // pred_fallthru
      _
    // Predicated region
    $region22: #{tpu_custom_call.1} parent=1 // pred_check
      _
    $region23: #{tpu_custom_call.1} parent=1 // pred_check_branch
      %70 = sbr.rel (0) target = $region25
    $region24: #{tpu_custom_call.1} parent=1 // pred_region
      %s72 = ssub.s32 4096, 4096
      %73 = vsyncadd [#allocation13], %s72
      %s74 = sshll.u32 [#allocation14], 4
      %s75 = int_to_ptr.vmem [resolvable:$true] %s74
      %80 = dma.hbm_to_vmem [thread:$0]  %s5, 4096, %s75, [#allocation13], 256, 256, 16
    $region25: #{tpu_custom_call.1} parent=1 // pred_fallthru
      _
    // Predicated region
    $region26: #{tpu_custom_call.1} parent=1 // pred_check
      _
    $region27: #{tpu_custom_call.1} parent=1 // pred_check_branch
      %82 = sbr.rel (0) target = $region29
    $region28: #{tpu_custom_call.1} parent=1 // pred_region
      _
    $region29: #{tpu_custom_call.1} parent=1 // pred_fallthru
      _
    // Predicated region
    $region30: #{tpu_custom_call.1} parent=1 // pred_check
      _
    $region31: #{tpu_custom_call.1} parent=1 // pred_check_branch
      %84 = sbr.rel (0) target = $region33
    $region32: #{tpu_custom_call.1} parent=1 // pred_region
      %s86 = ssub.s32 1024, 1024
      %87 = vsyncadd [#allocation16], %s86
      %s88 = sshll.u32 [#allocation15], 4
      %s89 = int_to_ptr.vmem [resolvable:$true] %s88
      %94 = dma.hbm_to_vmem [thread:$0]  %s7, 1024, %s89, [#allocation16], 64, 64, 4
    $region33: #{tpu_custom_call.1} parent=1 // pred_fallthru
      _
    // Predicated region
    $region34: #{tpu_custom_call.1} parent=1 // pred_check
      _
    $region35: #{tpu_custom_call.1} parent=1 // pred_check_branch
      %96 = sbr.rel (0) target = $region37
    $region36: #{tpu_custom_call.1} parent=1 // pred_region
      _
    $region37: #{tpu_custom_call.1} parent=1 // pred_fallthru
      _
    // Predicated region
    $region38: #{tpu_custom_call.1} parent=1 // pred_check
      _
    $region39: #{tpu_custom_call.1} parent=1 // pred_check_branch
      %98 = sbr.rel (0) target = $region41
    $region40: #{tpu_custom_call.1} parent=1 // pred_region
      %99 = dma.done [#allocation7], 1024
    $region41: #{tpu_custom_call.1} parent=1 // pred_fallthru
      _
    // Predicated region
    $region42: #{tpu_custom_call.1} parent=1 // pred_check
      _
    $region43: #{tpu_custom_call.1} parent=1 // pred_check_branch
      %101 = sbr.rel (0) target = $region45
    $region44: #{tpu_custom_call.1} parent=1 // pred_region
      %102 = dma.done [#allocation10], 4096
    $region45: #{tpu_custom_call.1} parent=1 // pred_fallthru
      _
    // Predicated region
    $region46: #{tpu_custom_call.1} parent=1 // pred_check
      _
    $region47: #{tpu_custom_call.1} parent=1 // pred_check_branch
      %104 = sbr.rel (0) target = $region49
    $region48: #{tpu_custom_call.1} parent=1 // pred_region
      %105 = dma.done [#allocation10], 4096
    $region49: #{tpu_custom_call.1} parent=1 // pred_fallthru
      _
    // Predicated region
    $region50: #{tpu_custom_call.1} parent=1 // pred_check
      _
    $region51: #{tpu_custom_call.1} parent=1 // pred_check_branch
      %107 = sbr.rel (0) target = $region53
    $region52: #{tpu_custom_call.1} parent=1 // pred_region
      %108 = dma.done [#allocation13], 4096
    $region53: #{tpu_custom_call.1} parent=1 // pred_fallthru
      _
    // Predicated region
    $region54: #{tpu_custom_call.1} parent=1 // pred_check
      _
    $region55: #{tpu_custom_call.1} parent=1 // pred_check_branch
      %110 = sbr.rel (0) target = $region57
    $region56: #{tpu_custom_call.1} parent=1 // pred_region
      %111 = dma.done [#allocation13], 4096
    $region57: #{tpu_custom_call.1} parent=1 // pred_fallthru
      _
    // Predicated region
    $region58: #{tpu_custom_call.1} parent=1 // pred_check
      _
    $region59: #{tpu_custom_call.1} parent=1 // pred_check_branch
      %113 = sbr.rel (0) target = $region61
    $region60: #{tpu_custom_call.1} parent=1 // pred_region
      %114 = dma.done [#allocation16], 1024
    $region61: #{tpu_custom_call.1} parent=1 // pred_fallthru
      _
    %v116 = vld [vmem:[#allocation6] sm:$0xf]
    %v117 = vld [vmem:[#allocation6 + $0x4] sm:$0xf]
    %v118 = vld [vmem:[#allocation6 + $0x8] sm:$0xf]
    %v119 = vld [vmem:[#allocation6 + $0xc] sm:$0xf]
    %v120 = vld [vmem:[#allocation6 + $0x10] sm:$0xf]
    %v121 = vld [vmem:[#allocation6 + $0x14] sm:$0xf]
    %v122 = vld [vmem:[#allocation6 + $0x18] sm:$0xf]
    %v123 = vld [vmem:[#allocation6 + $0x1c] sm:$0xf]
    %v124 = vld [vmem:[#allocation6 + $0x20] sm:$0xf]
    %v125 = vld [vmem:[#allocation6 + $0x24] sm:$0xf]
    %v126 = vld [vmem:[#allocation6 + $0x28] sm:$0xf]
    %v127 = vld [vmem:[#allocation6 + $0x2c] sm:$0xf]
    %v128 = vld [vmem:[#allocation6 + $0x30] sm:$0xf]
    %v129 = vld [vmem:[#allocation6 + $0x34] sm:$0xf]
    %v130 = vld [vmem:[#allocation6 + $0x38] sm:$0xf]
    %v131 = vld [vmem:[#allocation6 + $0x3c] sm:$0xf]
    %v132 = vld [vmem:[#allocation9] sm:$0xff]
    %v133 = vld [vmem:[#allocation9 + $0x8] sm:$0xff]
    %v134 = vld [vmem:[#allocation9 + $0x10] sm:$0xff]
    %v135 = vld [vmem:[#allocation9 + $0x18] sm:$0xff]
    %v136 = vld [vmem:[#allocation9 + $0x20] sm:$0xff]
    %v137 = vld [vmem:[#allocation9 + $0x28] sm:$0xff]
    %v138 = vld [vmem:[#allocation9 + $0x30] sm:$0xff]
    %v139 = vld [vmem:[#allocation9 + $0x38] sm:$0xff]
    %v140 = vld [vmem:[#allocation9 + $0x40] sm:$0xff]
    %v141 = vld [vmem:[#allocation9 + $0x48] sm:$0xff]
    %v142 = vld [vmem:[#allocation9 + $0x50] sm:$0xff]
    %v143 = vld [vmem:[#allocation9 + $0x58] sm:$0xff]
    %v144 = vld [vmem:[#allocation9 + $0x60] sm:$0xff]
    %v145 = vld [vmem:[#allocation9 + $0x68] sm:$0xff]
    %v146 = vld [vmem:[#allocation9 + $0x70] sm:$0xff]
    %v147 = vld [vmem:[#allocation9 + $0x78] sm:$0xff]
    %v148 = vld [vmem:[#allocation9 + $0x80] sm:$0xff]
    %v149 = vld [vmem:[#allocation9 + $0x88] sm:$0xff]
    %v150 = vld [vmem:[#allocation9 + $0x90] sm:$0xff]
    %v151 = vld [vmem:[#allocation9 + $0x98] sm:$0xff]
    %v152 = vld [vmem:[#allocation9 + $0xa0] sm:$0xff]
    %v153 = vld [vmem:[#allocation9 + $0xa8] sm:$0xff]
    %v154 = vld [vmem:[#allocation9 + $0xb0] sm:$0xff]
    %v155 = vld [vmem:[#allocation9 + $0xb8] sm:$0xff]
    %v156 = vld [vmem:[#allocation9 + $0xc0] sm:$0xff]
    %v157 = vld [vmem:[#allocation9 + $0xc8] sm:$0xff]
    %v158 = vld [vmem:[#allocation9 + $0xd0] sm:$0xff]
    %v159 = vld [vmem:[#allocation9 + $0xd8] sm:$0xff]
    %v160 = vld [vmem:[#allocation9 + $0xe0] sm:$0xff]
    %v161 = vld [vmem:[#allocation9 + $0xe8] sm:$0xff]
    %v162 = vld [vmem:[#allocation9 + $0xf0] sm:$0xff]
    %v163 = vld [vmem:[#allocation9 + $0xf8] sm:$0xff]
    %v164 = vld [vmem:[%s3] sm:$0xf]
    %v166 = vlaneseq
    %v167 = vshrl.u32 %v166, 7
    %v168 = vsub.s32 0, %v167
    %v169 = vrot.slane %v164, %v168
    %v170 = vlaneseq
    %v171 = vshrl.u32 %v170, 7
    %v172 = vsub.s32 1, %v171
    %v173 = vrot.slane %v164, %v172
    %v174 = vlaneseq
    %v175 = vshrl.u32 %v174, 7
    %v176 = vsub.s32 2, %v175
    %v177 = vrot.slane %v164, %v176
    %v178 = vlaneseq
    %v179 = vshrl.u32 %v178, 7
    %v180 = vsub.s32 3, %v179
    %v181 = vrot.slane %v164, %v180
    %v202 = vunpack.c.l.b16 %v116
    %v203 = vunpack.c.l.b16 %v117
    %v204 = vunpack.c.l.b16 %v118
    %v205 = vunpack.c.l.b16 %v119
    %v206 = vunpack.c.l.b16 %v120
    %v207 = vunpack.c.l.b16 %v121
    %v208 = vunpack.c.l.b16 %v122
    %v209 = vunpack.c.l.b16 %v123
    %v210 = vunpack.c.l.b16 %v124
    %v211 = vunpack.c.l.b16 %v125
    %v212 = vunpack.c.l.b16 %v126
    %v213 = vunpack.c.l.b16 %v127
    %v214 = vunpack.c.l.b16 %v128
    %v215 = vunpack.c.l.b16 %v129
    %v216 = vunpack.c.l.b16 %v130
    %v217 = vunpack.c.l.b16 %v131
    %v218 = vpack.c.b16 %v203, %v202
    %v219 = vpack.c.b16 %v205, %v204
    %v220 = vpack.c.b16 %v207, %v206
    %v221 = vpack.c.b16 %v209, %v208
    %v222 = vpack.c.b16 %v211, %v210
    %v223 = vpack.c.b16 %v213, %v212
    %v224 = vpack.c.b16 %v215, %v214
    %v225 = vpack.c.b16 %v217, %v216
    %v266 = vunpack.c.l.b16 %v132
    %v267 = vunpack.c.h.b16 %v132
    %v268 = vunpack.c.l.b16 %v133
    %v269 = vunpack.c.h.b16 %v133
    %v270 = vunpack.c.l.b16 %v134
    %v271 = vunpack.c.h.b16 %v134
    %v272 = vunpack.c.l.b16 %v135
    %v273 = vunpack.c.h.b16 %v135
    %v274 = vunpack.c.l.b16 %v136
    %v275 = vunpack.c.h.b16 %v136
    %v276 = vunpack.c.l.b16 %v137
    %v277 = vunpack.c.h.b16 %v137
    %v278 = vunpack.c.l.b16 %v138
    %v279 = vunpack.c.h.b16 %v138
    %v280 = vunpack.c.l.b16 %v139
    %v281 = vunpack.c.h.b16 %v139
    %v282 = vunpack.c.l.b16 %v140
    %v283 = vunpack.c.h.b16 %v140
    %v284 = vunpack.c.l.b16 %v141
    %v285 = vunpack.c.h.b16 %v141
    %v286 = vunpack.c.l.b16 %v142
    %v287 = vunpack.c.h.b16 %v142
    %v288 = vunpack.c.l.b16 %v143
    %v289 = vunpack.c.h.b16 %v143
    %v290 = vunpack.c.l.b16 %v144
    %v291 = vunpack.c.h.b16 %v144
    %v292 = vunpack.c.l.b16 %v145
    %v293 = vunpack.c.h.b16 %v145
    %v294 = vunpack.c.l.b16 %v146
    %v295 = vunpack.c.h.b16 %v146
    %v296 = vunpack.c.l.b16 %v147
    %v297 = vunpack.c.h.b16 %v147
    %v298 = vunpack.c.l.b16 %v148
    %v299 = vunpack.c.h.b16 %v148
    %v300 = vunpack.c.l.b16 %v149
    %v301 = vunpack.c.h.b16 %v149
    %v302 = vunpack.c.l.b16 %v150
    %v303 = vunpack.c.h.b16 %v150
    %v304 = vunpack.c.l.b16 %v151
    %v305 = vunpack.c.h.b16 %v151
    %v306 = vunpack.c.l.b16 %v152
    %v307 = vunpack.c.h.b16 %v152
    %v308 = vunpack.c.l.b16 %v153
    %v309 = vunpack.c.h.b16 %v153
    %v310 = vunpack.c.l.b16 %v154
    %v311 = vunpack.c.h.b16 %v154
    %v312 = vunpack.c.l.b16 %v155
    %v313 = vunpack.c.h.b16 %v155
    %v314 = vunpack.c.l.b16 %v156
    %v315 = vunpack.c.h.b16 %v156
    %v316 = vunpack.c.l.b16 %v157
    %v317 = vunpack.c.h.b16 %v157
    %v318 = vunpack.c.l.b16 %v158
    %v319 = vunpack.c.h.b16 %v158
    %v320 = vunpack.c.l.b16 %v159
    %v321 = vunpack.c.h.b16 %v159
    %v322 = vunpack.c.l.b16 %v160
    %v323 = vunpack.c.h.b16 %v160
    %v324 = vunpack.c.l.b16 %v161
    %v325 = vunpack.c.h.b16 %v161
    %v326 = vunpack.c.l.b16 %v162
    %v327 = vunpack.c.h.b16 %v162
    %v328 = vunpack.c.l.b16 %v163
    %v329 = vunpack.c.h.b16 %v163
    %v330 = vpack.c.b16 %v270, %v266
    %v331 = vpack.c.b16 %v271, %v267
    %v332 = vpack.c.b16 %v272, %v268
    %v333 = vpack.c.b16 %v273, %v269
    %v334 = vpack.c.b16 %v278, %v274
    %v335 = vpack.c.b16 %v279, %v275
    %v336 = vpack.c.b16 %v280, %v276
    %v337 = vpack.c.b16 %v281, %v277
    %v338 = vpack.c.b16 %v286, %v282
    %v339 = vpack.c.b16 %v287, %v283
    %v340 = vpack.c.b16 %v288, %v284
    %v341 = vpack.c.b16 %v289, %v285
    %v342 = vpack.c.b16 %v294, %v290
    %v343 = vpack.c.b16 %v295, %v291
    %v344 = vpack.c.b16 %v296, %v292
    %v345 = vpack.c.b16 %v297, %v293
    %v346 = vpack.c.b16 %v302, %v298
    %v347 = vpack.c.b16 %v303, %v299
    %v348 = vpack.c.b16 %v304, %v300
    %v349 = vpack.c.b16 %v305, %v301
    %v350 = vpack.c.b16 %v310, %v306
    %v351 = vpack.c.b16 %v311, %v307
    %v352 = vpack.c.b16 %v312, %v308
    %v353 = vpack.c.b16 %v313, %v309
    %v354 = vpack.c.b16 %v318, %v314
    %v355 = vpack.c.b16 %v319, %v315
    %v356 = vpack.c.b16 %v320, %v316
    %v357 = vpack.c.b16 %v321, %v317
    %v358 = vpack.c.b16 %v326, %v322
    %v359 = vpack.c.b16 %v327, %v323
    %v360 = vpack.c.b16 %v328, %v324
    %v361 = vpack.c.b16 %v329, %v325
    %394 = vmatprep.subr.bf16.mxu0 %v331
    %395 = vmatpush1.bf16.msra.mxu0 %v330
    %396 = vmatprep.subr.bf16.mxu0 %v335
    %397 = vmatpush1.bf16.msra.mxu0 %v334
    %398 = vmatprep.subr.bf16.mxu0 %v339
    %399 = vmatpush1.bf16.msra.mxu0 %v338
    %400 = vmatprep.subr.bf16.mxu0 %v343
    %401 = vmatpush1.bf16.msra.mxu0 %v342
    %402 = vmatprep.subr.bf16.mxu0 %v347
    %403 = vmatpush1.bf16.msra.mxu0 %v346
    %404 = vmatprep.subr.bf16.mxu0 %v351
    %405 = vmatpush1.bf16.msra.mxu0 %v350
    %406 = vmatprep.subr.bf16.mxu0 %v355
    %407 = vmatpush1.bf16.msra.mxu0 %v354
    %408 = vmatprep.subr.bf16.mxu0 %v359
    %409 = vmatpush1.bf16.msra.mxu0 %v358
    %410 = vmatprep.subr.bf16.mxu0 0
    %411 = vmatpush1.bf16.msra.mxu0 0
    %412 = vmatprep.subr.bf16.mxu0 0
    %413 = vmatpush1.bf16.msra.mxu0 0
    %414 = vmatprep.subr.bf16.mxu0 0
    %415 = vmatpush1.bf16.msra.mxu0 0
    %416 = vmatprep.subr.bf16.mxu0 0
    %417 = vmatpush1.bf16.msra.mxu0 0
    %418 = vmatprep.subr.bf16.mxu0 0
    %419 = vmatpush1.bf16.msra.mxu0 0
    %420 = vmatprep.subr.bf16.mxu0 0
    %421 = vmatpush1.bf16.msra.mxu0 0
    %422 = vmatprep.subr.bf16.mxu0 0
    %423 = vmatpush1.bf16.msra.mxu0 0
    %424 = vmatprep.subr.bf16.mxu0 0
    %425 = vmatpush1.bf16.msra.mxu0 0
    %426 = vmatprep.mubr.bf16.mxu0 0
    %427 = vmatmul.mubr.bf16.gmra.mrb[0].mxu0 %v218
    %v428 = vpop.f32.mrb[0].mxu0
    %v429 = vadd.f32 %v169, %v428
    %v430 = vpop.f32.mrb[0].mxu0
    %v431 = vadd.f32 %v173, %v430
    %v432 = vpop.f32.mrb[0].mxu0
    %v433 = vadd.f32 %v169, %v432
    %v434 = vpop.f32.mrb[0].mxu0
    %v435 = vadd.f32 %v173, %v434
    %436 = vmatprep.mubr.bf16.mxu0 0
    %437 = vmatmul.mubr.bf16.gmra.mrb[0].mxu0 %v219
    %v438 = vpop.f32.mrb[0].mxu0
    %v439 = vadd.f32 %v169, %v438
    %v440 = vpop.f32.mrb[0].mxu0
    %v441 = vadd.f32 %v173, %v440
    %v442 = vpop.f32.mrb[0].mxu0
    %v443 = vadd.f32 %v169, %v442
    %v444 = vpop.f32.mrb[0].mxu0
    %v445 = vadd.f32 %v173, %v444
    %446 = vmatprep.mubr.bf16.mxu0 0
    %447 = vmatmul.mubr.bf16.gmra.mrb[0].mxu0 %v220
    %v448 = vpop.f32.mrb[0].mxu0
    %v449 = vadd.f32 %v169, %v448
    %v450 = vpop.f32.mrb[0].mxu0
    %v451 = vadd.f32 %v173, %v450
    %v452 = vpop.f32.mrb[0].mxu0
    %v453 = vadd.f32 %v169, %v452
    %v454 = vpop.f32.mrb[0].mxu0
    %v455 = vadd.f32 %v173, %v454
    %456 = vmatprep.mubr.bf16.mxu0 0
    %457 = vmatmul.mubr.bf16.gmra.mrb[0].mxu0 %v221
    %v458 = vpop.f32.mrb[0].mxu0
    %v459 = vadd.f32 %v169, %v458
    %v460 = vpop.f32.mrb[0].mxu0
    %v461 = vadd.f32 %v173, %v460
    %v462 = vpop.f32.mrb[0].mxu0
    %v463 = vadd.f32 %v169, %v462
    %v464 = vpop.f32.mrb[0].mxu0
    %v465 = vadd.f32 %v173, %v464
    %466 = vmatprep.mubr.bf16.mxu0 0
    %467 = vmatmul.mubr.bf16.gmra.mrb[0].mxu0 %v222
    %v468 = vpop.f32.mrb[0].mxu0
    %v469 = vadd.f32 %v169, %v468
    %v470 = vpop.f32.mrb[0].mxu0
    %v471 = vadd.f32 %v173, %v470
    %v472 = vpop.f32.mrb[0].mxu0
    %v473 = vadd.f32 %v169, %v472
    %v474 = vpop.f32.mrb[0].mxu0
    %v475 = vadd.f32 %v173, %v474
    %476 = vmatprep.mubr.bf16.mxu0 0
    %477 = vmatmul.mubr.bf16.gmra.mrb[0].mxu0 %v223
    %v478 = vpop.f32.mrb[0].mxu0
    %v479 = vadd.f32 %v169, %v478
    %v480 = vpop.f32.mrb[0].mxu0
    %v481 = vadd.f32 %v173, %v480
    %v482 = vpop.f32.mrb[0].mxu0
    %v483 = vadd.f32 %v169, %v482
    %v484 = vpop.f32.mrb[0].mxu0
    %v485 = vadd.f32 %v173, %v484
    %486 = vmatprep.mubr.bf16.mxu0 0
    %487 = vmatmul.mubr.bf16.gmra.mrb[0].mxu0 %v224
    %v488 = vpop.f32.mrb[0].mxu0
    %v489 = vadd.f32 %v169, %v488
    %v490 = vpop.f32.mrb[0].mxu0
    %v491 = vadd.f32 %v173, %v490
    %v492 = vpop.f32.mrb[0].mxu0
    %v493 = vadd.f32 %v169, %v492
    %v494 = vpop.f32.mrb[0].mxu0
    %v495 = vadd.f32 %v173, %v494
    %496 = vmatprep.mubr.bf16.mxu0 0
    %497 = vmatmul.mubr.bf16.gmra.mrb[0].mxu0 %v225
    %v498 = vpop.f32.mrb[0].mxu0
    %v499 = vadd.f32 %v169, %v498
    %v500 = vpop.f32.mrb[0].mxu0
    %v501 = vadd.f32 %v173, %v500
    %v502 = vpop.f32.mrb[0].mxu0
    %v503 = vadd.f32 %v169, %v502
    %v504 = vpop.f32.mrb[0].mxu0
    %v505 = vadd.f32 %v173, %v504
    %506 = vdwg.mxu0
    %507 = vmatprep.subr.bf16.mxu0 %v333
    %508 = vmatpush1.bf16.msra.mxu0 %v332
    %509 = vmatprep.subr.bf16.mxu0 %v337
    %510 = vmatpush1.bf16.msra.mxu0 %v336
    %511 = vmatprep.subr.bf16.mxu0 %v341
    %512 = vmatpush1.bf16.msra.mxu0 %v340
    %513 = vmatprep.subr.bf16.mxu0 %v345
    %514 = vmatpush1.bf16.msra.mxu0 %v344
    %515 = vmatprep.subr.bf16.mxu0 %v349
    %516 = vmatpush1.bf16.msra.mxu0 %v348
    %517 = vmatprep.subr.bf16.mxu0 %v353
    %518 = vmatpush1.bf16.msra.mxu0 %v352
    %519 = vmatprep.subr.bf16.mxu0 %v357
    %520 = vmatpush1.bf16.msra.mxu0 %v356
    %521 = vmatprep.subr.bf16.mxu0 %v361
    %522 = vmatpush1.bf16.msra.mxu0 %v360
    %523 = vmatprep.subr.bf16.mxu0 0
    %524 = vmatpush1.bf16.msra.mxu0 0
    %525 = vmatprep.subr.bf16.mxu0 0
    %526 = vmatpush1.bf16.msra.mxu0 0
    %527 = vmatprep.subr.bf16.mxu0 0
    %528 = vmatpush1.bf16.msra.mxu0 0
    %529 = vmatprep.subr.bf16.mxu0 0
    %530 = vmatpush1.bf16.msra.mxu0 0
    %531 = vmatprep.subr.bf16.mxu0 0
    %532 = vmatpush1.bf16.msra.mxu0 0
    %533 = vmatprep.subr.bf16.mxu0 0
    %534 = vmatpush1.bf16.msra.mxu0 0
    %535 = vmatprep.subr.bf16.mxu0 0
    %536 = vmatpush1.bf16.msra.mxu0 0
    %537 = vmatprep.subr.bf16.mxu0 0
    %538 = vmatpush1.bf16.msra.mxu0 0
    %539 = vmatprep.mubr.bf16.mxu0 0
    %540 = vmatmul.mubr.bf16.gmra.mrb[0].mxu0 %v218
    %v541 = vpop.f32.mrb[0].mxu0
    %v542 = vadd.f32 %v177, %v541
    %v543 = vpop.f32.mrb[0].mxu0
    %v544 = vadd.f32 %v181, %v543
    %v545 = vpop.f32.mrb[0].mxu0
    %v546 = vadd.f32 %v177, %v545
    %v547 = vpop.f32.mrb[0].mxu0
    %v548 = vadd.f32 %v181, %v547
    %549 = vmatprep.mubr.bf16.mxu0 0
    %550 = vmatmul.mubr.bf16.gmra.mrb[0].mxu0 %v219
    %v551 = vpop.f32.mrb[0].mxu0
    %v552 = vadd.f32 %v177, %v551
    %v553 = vpop.f32.mrb[0].mxu0
    %v554 = vadd.f32 %v181, %v553
    %v555 = vpop.f32.mrb[0].mxu0
    %v556 = vadd.f32 %v177, %v555
    %v557 = vpop.f32.mrb[0].mxu0
    %v558 = vadd.f32 %v181, %v557
    %559 = vmatprep.mubr.bf16.mxu0 0
    %560 = vmatmul.mubr.bf16.gmra.mrb[0].mxu0 %v220
    %v561 = vpop.f32.mrb[0].mxu0
    %v562 = vadd.f32 %v177, %v561
    %v563 = vpop.f32.mrb[0].mxu0
    %v564 = vadd.f32 %v181, %v563
    %v565 = vpop.f32.mrb[0].mxu0
    %v566 = vadd.f32 %v177, %v565
    %v567 = vpop.f32.mrb[0].mxu0
    %v568 = vadd.f32 %v181, %v567
    %569 = vmatprep.mubr.bf16.mxu0 0
    %570 = vmatmul.mubr.bf16.gmra.mrb[0].mxu0 %v221
    %v571 = vpop.f32.mrb[0].mxu0
    %v572 = vadd.f32 %v177, %v571
    %v573 = vpop.f32.mrb[0].mxu0
    %v574 = vadd.f32 %v181, %v573
    %v575 = vpop.f32.mrb[0].mxu0
    %v576 = vadd.f32 %v177, %v575
    %v577 = vpop.f32.mrb[0].mxu0
    %v578 = vadd.f32 %v181, %v577
    %579 = vmatprep.mubr.bf16.mxu0 0
    %580 = vmatmul.mubr.bf16.gmra.mrb[0].mxu0 %v222
    %v581 = vpop.f32.mrb[0].mxu0
    %v582 = vadd.f32 %v177, %v581
    %v583 = vpop.f32.mrb[0].mxu0
    %v584 = vadd.f32 %v181, %v583
    %v585 = vpop.f32.mrb[0].mxu0
    %v586 = vadd.f32 %v177, %v585
    %v587 = vpop.f32.mrb[0].mxu0
    %v588 = vadd.f32 %v181, %v587
    %589 = vmatprep.mubr.bf16.mxu0 0
    %590 = vmatmul.mubr.bf16.gmra.mrb[0].mxu0 %v223
    %v591 = vpop.f32.mrb[0].mxu0
    %v592 = vadd.f32 %v177, %v591
    %v593 = vpop.f32.mrb[0].mxu0
    %v594 = vadd.f32 %v181, %v593
    %v595 = vpop.f32.mrb[0].mxu0
    %v596 = vadd.f32 %v177, %v595
    %v597 = vpop.f32.mrb[0].mxu0
    %v598 = vadd.f32 %v181, %v597
    %599 = vmatprep.mubr.bf16.mxu0 0
    %600 = vmatmul.mubr.bf16.gmra.mrb[0].mxu0 %v224
    %v601 = vpop.f32.mrb[0].mxu0
    %v602 = vadd.f32 %v177, %v601
    %v603 = vpop.f32.mrb[0].mxu0
    %v604 = vadd.f32 %v181, %v603
    %v605 = vpop.f32.mrb[0].mxu0
    %v606 = vadd.f32 %v177, %v605
    %v607 = vpop.f32.mrb[0].mxu0
    %v608 = vadd.f32 %v181, %v607
    %609 = vmatprep.mubr.bf16.mxu0 0
    %610 = vmatmul.mubr.bf16.gmra.mrb[0].mxu0 %v225
    %v611 = vpop.f32.mrb[0].mxu0
    %v612 = vadd.f32 %v177, %v611
    %v613 = vpop.f32.mrb[0].mxu0
    %v614 = vadd.f32 %v181, %v613
    %v615 = vpop.f32.mrb[0].mxu0
    %v616 = vadd.f32 %v177, %v615
    %v617 = vpop.f32.mrb[0].mxu0
    %v618 = vadd.f32 %v181, %v617
    %619 = vdwg.mxu0
    %v620 = vpack.c.bf16 %v433, %v429
    %v621 = vpack.c.bf16 %v435, %v431
    %v622 = vpack.c.bf16 %v546, %v542
    %v623 = vpack.c.bf16 %v548, %v544
    %v624 = vpack.c.bf16 %v443, %v439
    %v625 = vpack.c.bf16 %v445, %v441
    %v626 = vpack.c.bf16 %v556, %v552
    %v627 = vpack.c.bf16 %v558, %v554
    %v628 = vpack.c.bf16 %v453, %v449
    %v629 = vpack.c.bf16 %v455, %v451
    %v630 = vpack.c.bf16 %v566, %v562
    %v631 = vpack.c.bf16 %v568, %v564
    %v632 = vpack.c.bf16 %v463, %v459
    %v633 = vpack.c.bf16 %v465, %v461
    %v634 = vpack.c.bf16 %v576, %v572
    %v635 = vpack.c.bf16 %v578, %v574
    %v636 = vpack.c.bf16 %v473, %v469
    %v637 = vpack.c.bf16 %v475, %v471
    %v638 = vpack.c.bf16 %v586, %v582
    %v639 = vpack.c.bf16 %v588, %v584
    %v640 = vpack.c.bf16 %v483, %v479
    %v641 = vpack.c.bf16 %v485, %v481
    %v642 = vpack.c.bf16 %v596, %v592
    %v643 = vpack.c.bf16 %v598, %v594
    %v644 = vpack.c.bf16 %v493, %v489
    %v645 = vpack.c.bf16 %v495, %v491
    %v646 = vpack.c.bf16 %v606, %v602
    %v647 = vpack.c.bf16 %v608, %v604
    %v648 = vpack.c.bf16 %v503, %v499
    %v649 = vpack.c.bf16 %v505, %v501
    %v650 = vpack.c.bf16 %v616, %v612
    %v651 = vpack.c.bf16 %v618, %v614
    %652 = vst [vmem:[#allocation3] sm:$0xff] %v620
    %653 = vst [vmem:[#allocation3 + $0x8] sm:$0xff] %v621
    %654 = vst [vmem:[#allocation3 + $0x10] sm:$0xff] %v622
    %655 = vst [vmem:[#allocation3 + $0x18] sm:$0xff] %v623
    %656 = vst [vmem:[#allocation3 + $0x20] sm:$0xff] %v624
    %657 = vst [vmem:[#allocation3 + $0x28] sm:$0xff] %v625
    %658 = vst [vmem:[#allocation3 + $0x30] sm:$0xff] %v626
    %659 = vst [vmem:[#allocation3 + $0x38] sm:$0xff] %v627
    %660 = vst [vmem:[#allocation3 + $0x40] sm:$0xff] %v628
    %661 = vst [vmem:[#allocation3 + $0x48] sm:$0xff] %v629
    %662 = vst [vmem:[#allocation3 + $0x50] sm:$0xff] %v630
    %663 = vst [vmem:[#allocation3 + $0x58] sm:$0xff] %v631
    %664 = vst [vmem:[#allocation3 + $0x60] sm:$0xff] %v632
    %665 = vst [vmem:[#allocation3 + $0x68] sm:$0xff] %v633
    %666 = vst [vmem:[#allocation3 + $0x70] sm:$0xff] %v634
    %667 = vst [vmem:[#allocation3 + $0x78] sm:$0xff] %v635
    %668 = vst [vmem:[#allocation3 + $0x80] sm:$0xff] %v636
    %669 = vst [vmem:[#allocation3 + $0x88] sm:$0xff] %v637
    %670 = vst [vmem:[#allocation3 + $0x90] sm:$0xff] %v638
    %671 = vst [vmem:[#allocation3 + $0x98] sm:$0xff] %v639
    %672 = vst [vmem:[#allocation3 + $0xa0] sm:$0xff] %v640
    %673 = vst [vmem:[#allocation3 + $0xa8] sm:$0xff] %v641
    %674 = vst [vmem:[#allocation3 + $0xb0] sm:$0xff] %v642
    %675 = vst [vmem:[#allocation3 + $0xb8] sm:$0xff] %v643
    %676 = vst [vmem:[#allocation3 + $0xc0] sm:$0xff] %v644
    %677 = vst [vmem:[#allocation3 + $0xc8] sm:$0xff] %v645
    %678 = vst [vmem:[#allocation3 + $0xd0] sm:$0xff] %v646
    %679 = vst [vmem:[#allocation3 + $0xd8] sm:$0xff] %v647
    %680 = vst [vmem:[#allocation3 + $0xe0] sm:$0xff] %v648
    %681 = vst [vmem:[#allocation3 + $0xe8] sm:$0xff] %v649
    %682 = vst [vmem:[#allocation3 + $0xf0] sm:$0xff] %v650
    %683 = vst [vmem:[#allocation3 + $0xf8] sm:$0xff] %v651
    %684 = vst [vmem:[#allocation4] sm:$0xff] 0
    %685 = vst [vmem:[#allocation5] sm:$0xff] 0.0
    %686 = vst [vmem:[#allocation5 + $0x8] sm:$0xff] 0.0
    %v687 = vld [vmem:[#allocation4] sm:$0xff]
    %v688 = vld [vmem:[#allocation11] sm:$0xff]
    %v689 = vld [vmem:[#allocation11 + $0x8] sm:$0xff]
    %v690 = vld [vmem:[#allocation11 + $0x10] sm:$0xff]
    %v691 = vld [vmem:[#allocation11 + $0x18] sm:$0xff]
    %v692 = vld [vmem:[#allocation11 + $0x20] sm:$0xff]
    %v693 = vld [vmem:[#allocation11 + $0x28] sm:$0xff]
    %v694 = vld [vmem:[#allocation11 + $0x30] sm:$0xff]
    %v695 = vld [vmem:[#allocation11 + $0x38] sm:$0xff]
    %v696 = vld [vmem:[#allocation11 + $0x40] sm:$0xff]
    %v697 = vld [vmem:[#allocation11 + $0x48] sm:$0xff]
    %v698 = vld [vmem:[#allocation11 + $0x50] sm:$0xff]
    %v699 = vld [vmem:[#allocation11 + $0x58] sm:$0xff]
    %v700 = vld [vmem:[#allocation11 + $0x60] sm:$0xff]
    %v701 = vld [vmem:[#allocation11 + $0x68] sm:$0xff]
    %v702 = vld [vmem:[#allocation11 + $0x70] sm:$0xff]
    %v703 = vld [vmem:[#allocation11 + $0x78] sm:$0xff]
    %v704 = vld [vmem:[#allocation11 + $0x80] sm:$0xff]
    %v705 = vld [vmem:[#allocation11 + $0x88] sm:$0xff]
    %v706 = vld [vmem:[#allocation11 + $0x90] sm:$0xff]
    %v707 = vld [vmem:[#allocation11 + $0x98] sm:$0xff]
    %v708 = vld [vmem:[#allocation11 + $0xa0] sm:$0xff]
    %v709 = vld [vmem:[#allocation11 + $0xa8] sm:$0xff]
    %v710 = vld [vmem:[#allocation11 + $0xb0] sm:$0xff]
    %v711 = vld [vmem:[#allocation11 + $0xb8] sm:$0xff]
    %v712 = vld [vmem:[#allocation11 + $0xc0] sm:$0xff]
    %v713 = vld [vmem:[#allocation11 + $0xc8] sm:$0xff]
    %v714 = vld [vmem:[#allocation11 + $0xd0] sm:$0xff]
    %v715 = vld [vmem:[#allocation11 + $0xd8] sm:$0xff]
    %v716 = vld [vmem:[#allocation11 + $0xe0] sm:$0xff]
    %v717 = vld [vmem:[#allocation11 + $0xe8] sm:$0xff]
    %v718 = vld [vmem:[#allocation11 + $0xf0] sm:$0xff]
    %v719 = vld [vmem:[#allocation11 + $0xf8] sm:$0xff]
    %v720 = vld [vmem:[#allocation3] sm:$0xff]
    %v721 = vld [vmem:[#allocation3 + $0x8] sm:$0xff]
    %v722 = vld [vmem:[#allocation3 + $0x10] sm:$0xff]
    %v723 = vld [vmem:[#allocation3 + $0x18] sm:$0xff]
    %v724 = vunpack.c.l.bf16 %v720
    %v725 = vunpack.c.l.bf16 %v721
    %v726 = vunpack.c.l.bf16 %v722
    %v727 = vunpack.c.l.bf16 %v723
    %v728 = vunpack.c.h.bf16 %v720
    %v729 = vunpack.c.h.bf16 %v721
    %v730 = vunpack.c.h.bf16 %v722
    %v731 = vunpack.c.h.bf16 %v723
    %v764 = vunpack.c.l.b16 %v688
    %v765 = vunpack.c.h.b16 %v688
    %v766 = vunpack.c.l.b16 %v689
    %v767 = vunpack.c.h.b16 %v689
    %v768 = vunpack.c.l.b16 %v690
    %v769 = vunpack.c.h.b16 %v690
    %v770 = vunpack.c.l.b16 %v691
    %v771 = vunpack.c.h.b16 %v691
    %v772 = vunpack.c.l.b16 %v692
    %v773 = vunpack.c.h.b16 %v692
    %v774 = vunpack.c.l.b16 %v693
    %v775 = vunpack.c.h.b16 %v693
    %v776 = vunpack.c.l.b16 %v694
    %v777 = vunpack.c.h.b16 %v694
    %v778 = vunpack.c.l.b16 %v695
    %v779 = vunpack.c.h.b16 %v695
    %v780 = vunpack.c.l.b16 %v696
    %v781 = vunpack.c.h.b16 %v696
    %v782 = vunpack.c.l.b16 %v697
    %v783 = vunpack.c.h.b16 %v697
    %v784 = vunpack.c.l.b16 %v698
    %v785 = vunpack.c.h.b16 %v698
    %v786 = vunpack.c.l.b16 %v699
    %v787 = vunpack.c.h.b16 %v699
    %v788 = vunpack.c.l.b16 %v700
    %v789 = vunpack.c.h.b16 %v700
    %v790 = vunpack.c.l.b16 %v701
    %v791 = vunpack.c.h.b16 %v701
    %v792 = vunpack.c.l.b16 %v702
    %v793 = vunpack.c.h.b16 %v702
    %v794 = vunpack.c.l.b16 %v703
    %v795 = vunpack.c.h.b16 %v703
    %v796 = vunpack.c.l.b16 %v704
    %v797 = vunpack.c.h.b16 %v704
    %v798 = vunpack.c.l.b16 %v705
    %v799 = vunpack.c.h.b16 %v705
    %v800 = vunpack.c.l.b16 %v706
    %v801 = vunpack.c.h.b16 %v706
    %v802 = vunpack.c.l.b16 %v707
    %v803 = vunpack.c.h.b16 %v707
    %v804 = vunpack.c.l.b16 %v708
    %v805 = vunpack.c.h.b16 %v708
    %v806 = vunpack.c.l.b16 %v709
    %v807 = vunpack.c.h.b16 %v709
    %v808 = vunpack.c.l.b16 %v710
    %v809 = vunpack.c.h.b16 %v710
    %v810 = vunpack.c.l.b16 %v711
    %v811 = vunpack.c.h.b16 %v711
    %v812 = vunpack.c.l.b16 %v712
    %v813 = vunpack.c.h.b16 %v712
    %v814 = vunpack.c.l.b16 %v713
    %v815 = vunpack.c.h.b16 %v713
    %v816 = vunpack.c.l.b16 %v714
    %v817 = vunpack.c.h.b16 %v714
    %v818 = vunpack.c.l.b16 %v715
    %v819 = vunpack.c.h.b16 %v715
    %v820 = vunpack.c.l.b16 %v716
    %v821 = vunpack.c.h.b16 %v716
    %v822 = vunpack.c.l.b16 %v717
    %v823 = vunpack.c.h.b16 %v717
    %v824 = vunpack.c.l.b16 %v718
    %v825 = vunpack.c.h.b16 %v718
    %v826 = vunpack.c.l.b16 %v719
    %v827 = vunpack.c.h.b16 %v719
    %v828 = vpack.c.b16 %v768, %v764
    %v829 = vpack.c.b16 %v769, %v765
    %v830 = vpack.c.b16 %v770, %v766
    %v831 = vpack.c.b16 %v771, %v767
    %v832 = vpack.c.b16 %v776, %v772
    %v833 = vpack.c.b16 %v777, %v773
    %v834 = vpack.c.b16 %v778, %v774
    %v835 = vpack.c.b16 %v779, %v775
    %v836 = vpack.c.b16 %v784, %v780
    %v837 = vpack.c.b16 %v785, %v781
    %v838 = vpack.c.b16 %v786, %v782
    %v839 = vpack.c.b16 %v787, %v783
    %v840 = vpack.c.b16 %v792, %v788
    %v841 = vpack.c.b16 %v793, %v789
    %v842 = vpack.c.b16 %v794, %v790
    %v843 = vpack.c.b16 %v795, %v791
    %v844 = vpack.c.b16 %v800, %v796
    %v845 = vpack.c.b16 %v801, %v797
    %v846 = vpack.c.b16 %v802, %v798
    %v847 = vpack.c.b16 %v803, %v799
    %v848 = vpack.c.b16 %v808, %v804
    %v849 = vpack.c.b16 %v809, %v805
    %v850 = vpack.c.b16 %v810, %v806
    %v851 = vpack.c.b16 %v811, %v807
    %v852 = vpack.c.b16 %v816, %v812
    %v853 = vpack.c.b16 %v817, %v813
    %v854 = vpack.c.b16 %v818, %v814
    %v855 = vpack.c.b16 %v819, %v815
    %v856 = vpack.c.b16 %v824, %v820
    %v857 = vpack.c.b16 %v825, %v821
    %v858 = vpack.c.b16 %v826, %v822
    %v859 = vpack.c.b16 %v827, %v823
    %892 = vmatprep.subr.bf16.mxu0 %v829
    %893 = vmatpush1.bf16.msra.mxu0 %v828
    %894 = vmatprep.subr.bf16.mxu0 %v833
    %895 = vmatpush1.bf16.msra.mxu0 %v832
    %896 = vmatprep.subr.bf16.mxu0 %v837
    %897 = vmatpush1.bf16.msra.mxu0 %v836
    %898 = vmatprep.subr.bf16.mxu0 %v841
    %899 = vmatpush1.bf16.msra.mxu0 %v840
    %900 = vmatprep.subr.bf16.mxu0 %v845
    %901 = vmatpush1.bf16.msra.mxu0 %v844
    %902 = vmatprep.subr.bf16.mxu0 %v849
    %903 = vmatpush1.bf16.msra.mxu0 %v848
    %904 = vmatprep.subr.bf16.mxu0 %v853
    %905 = vmatpush1.bf16.msra.mxu0 %v852
    %906 = vmatprep.subr.bf16.mxu0 %v857
    %907 = vmatpush1.bf16.msra.mxu0 %v856
    %908 = vmatprep.subr.bf16.mxu0 0
    %909 = vmatpush1.bf16.msra.mxu0 0
    %910 = vmatprep.subr.bf16.mxu0 0
    %911 = vmatpush1.bf16.msra.mxu0 0
    %912 = vmatprep.subr.bf16.mxu0 0
    %913 = vmatpush1.bf16.msra.mxu0 0
    %914 = vmatprep.subr.bf16.mxu0 0
    %915 = vmatpush1.bf16.msra.mxu0 0
    %916 = vmatprep.subr.bf16.mxu0 0
    %917 = vmatpush1.bf16.msra.mxu0 0
    %918 = vmatprep.subr.bf16.mxu0 0
    %919 = vmatpush1.bf16.msra.mxu0 0
    %920 = vmatprep.subr.bf16.mxu0 0
    %921 = vmatpush1.bf16.msra.mxu0 0
    %922 = vmatprep.subr.bf16.mxu0 0
    %923 = vmatpush1.bf16.msra.mxu0 0
    %924 = vmatprep.mubr.bf16.mxu0 0
    %925 = vmatmul.mubr.bf16.gmra.mrb[0].mxu0 %v687
    %v926 = vpop.f32.mrb[0].mxu0
    %v927 = vadd.f32 %v724, %v926
    %v928 = vpop.f32.mrb[0].mxu0
    %v929 = vadd.f32 %v725, %v928
    %v930 = vpop.f32.mrb[0].mxu0
    %v931 = vadd.f32 %v728, %v930
    %v932 = vpop.f32.mrb[0].mxu0
    %v933 = vadd.f32 %v729, %v932
    %934 = vdwg.mxu0
    %935 = vmatprep.subr.bf16.mxu0 %v831
    %936 = vmatpush1.bf16.msra.mxu0 %v830
    %937 = vmatprep.subr.bf16.mxu0 %v835
    %938 = vmatpush1.bf16.msra.mxu0 %v834
    %939 = vmatprep.subr.bf16.mxu0 %v839
    %940 = vmatpush1.bf16.msra.mxu0 %v838
    %941 = vmatprep.subr.bf16.mxu0 %v843
    %942 = vmatpush1.bf16.msra.mxu0 %v842
    %943 = vmatprep.subr.bf16.mxu0 %v847
    %944 = vmatpush1.bf16.msra.mxu0 %v846
    %945 = vmatprep.subr.bf16.mxu0 %v851
    %946 = vmatpush1.bf16.msra.mxu0 %v850
    %947 = vmatprep.subr.bf16.mxu0 %v855
    %948 = vmatpush1.bf16.msra.mxu0 %v854
    %949 = vmatprep.subr.bf16.mxu0 %v859
    %950 = vmatpush1.bf16.msra.mxu0 %v858
    %951 = vmatprep.subr.bf16.mxu0 0
    %952 = vmatpush1.bf16.msra.mxu0 0
    %953 = vmatprep.subr.bf16.mxu0 0
    %954 = vmatpush1.bf16.msra.mxu0 0
    %955 = vmatprep.subr.bf16.mxu0 0
    %956 = vmatpush1.bf16.msra.mxu0 0
    %957 = vmatprep.subr.bf16.mxu0 0
    %958 = vmatpush1.bf16.msra.mxu0 0
    %959 = vmatprep.subr.bf16.mxu0 0
    %960 = vmatpush1.bf16.msra.mxu0 0
    %961 = vmatprep.subr.bf16.mxu0 0
    %962 = vmatpush1.bf16.msra.mxu0 0
    %963 = vmatprep.subr.bf16.mxu0 0
    %964 = vmatpush1.bf16.msra.mxu0 0
    %965 = vmatprep.subr.bf16.mxu0 0
    %966 = vmatpush1.bf16.msra.mxu0 0
    %967 = vmatprep.mubr.bf16.mxu0 0
    %968 = vmatmul.mubr.bf16.gmra.mrb[0].mxu0 %v687
    %v969 = vpop.f32.mrb[0].mxu0
    %v970 = vadd.f32 %v726, %v969
    %v971 = vpop.f32.mrb[0].mxu0
    %v972 = vadd.f32 %v727, %v971
    %v973 = vpop.f32.mrb[0].mxu0
    %v974 = vadd.f32 %v730, %v973
    %v975 = vpop.f32.mrb[0].mxu0
    %v976 = vadd.f32 %v731, %v975
    %977 = vdwg.mxu0
    %v978 = vmul.f32 %v927, 0.5
    %v979 = vmul.f32 %v931, 0.5
    %v980 = vtanh.pop %v978
    %v981 = vtanh.pop %v979
    %v982 = vmul.f32 %v980, 0.5
    %v983 = vmul.f32 %v981, 0.5
    %v984 = vadd.f32 %v982, 0.5
    %v985 = vadd.f32 %v983, 0.5
    %v986 = vmul.f32 %v929, 0.5
    %v987 = vmul.f32 %v933, 0.5
    %v988 = vtanh.pop %v986
    %v989 = vtanh.pop %v987
    %v990 = vmul.f32 %v988, 0.5
    %v991 = vmul.f32 %v989, 0.5
    %v992 = vadd.f32 %v990, 0.5
    %v993 = vadd.f32 %v991, 0.5
    %v994 = vtanh.pop %v970
    %v995 = vtanh.pop %v974
    %v996 = vmul.f32 %v972, 0.5
    %v997 = vmul.f32 %v976, 0.5
    %v998 = vtanh.pop %v996
    %v999 = vtanh.pop %v997
    %v1000 = vmul.f32 %v998, 0.5
    %v1001 = vmul.f32 %v999, 0.5
    %v1002 = vadd.f32 %v1000, 0.5
    %v1003 = vadd.f32 %v1001, 0.5
    %v1004 = vld [vmem:[#allocation5] sm:$0xff]
    %v1005 = vld [vmem:[#allocation5 + $0x8] sm:$0xff]
    %v1006 = vmul.f32 %v992, %v1004
    %v1007 = vmul.f32 %v993, %v1005
    %v1008 = vmul.f32 %v984, %v994
    %v1009 = vmul.f32 %v985, %v995
    %v1010 = vadd.f32 %v1006, %v1008
    %v1011 = vadd.f32 %v1007, %v1009
    %v1012 = vtanh.pop %v1010
    %v1013 = vtanh.pop %v1011
    %v1014 = vmul.f32 %v1002, %v1012
    %v1015 = vmul.f32 %v1003, %v1013
    %v1016 = vpack.c.bf16 %v1015, %v1014
    %1017 = vst [vmem:[#allocation5] sm:$0xff] %v1010
    %1018 = vst [vmem:[#allocation5 + $0x8] sm:$0xff] %v1011
    %1019 = vst [vmem:[#allocation4] sm:$0xff] %v1016
    %1020 = vst [vmem:[#allocation2] sm:$0xff] %v1016
    %v1021 = vld [vmem:[#allocation4] sm:$0xff]
    %v1022 = vld [vmem:[#allocation11] sm:$0xff]
    %v1023 = vld [vmem:[#allocation11 + $0x8] sm:$0xff]
    %v1024 = vld [vmem:[#allocation11 + $0x10] sm:$0xff]
    %v1025 = vld [vmem:[#allocation11 + $0x18] sm:$0xff]
    %v1026 = vld [vmem:[#allocation11 + $0x20] sm:$0xff]
    %v1027 = vld [vmem:[#allocation11 + $0x28] sm:$0xff]
    %v1028 = vld [vmem:[#allocation11 + $0x30] sm:$0xff]
    %v1029 = vld [vmem:[#allocation11 + $0x38] sm:$0xff]
    %v1030 = vld [vmem:[#allocation11 + $0x40] sm:$0xff]
    %v1031 = vld [vmem:[#allocation11 + $0x48] sm:$0xff]
    %v1032 = vld [vmem:[#allocation11 + $0x50] sm:$0xff]
    %v1033 = vld [vmem:[#allocation11 + $0x58] sm:$0xff]
    %v1034 = vld [vmem:[#allocation11 + $0x60] sm:$0xff]
    %v1035 = vld [vmem:[#allocation11 + $0x68] sm:$0xff]
    %v1036 = vld [vmem:[#allocation11 + $0x70] sm:$0xff]
    %v1037 = vld [vmem:[#allocation11 + $0x78] sm:$0xff]
    %v1038 = vld [vmem:[#allocation11 + $0x80] sm:$0xff]
    %v1039 = vld [vmem:[#allocation11 + $0x88] sm:$0xff]
    %v1040 = vld [vmem:[#allocation11 + $0x90] sm:$0xff]
    %v1041 = vld [vmem:[#allocation11 + $0x98] sm:$0xff]
    %v1042 = vld [vmem:[#allocation11 + $0xa0] sm:$0xff]
    %v1043 = vld [vmem:[#allocation11 + $0xa8] sm:$0xff]
    %v1044 = vld [vmem:[#allocation11 + $0xb0] sm:$0xff]
    %v1045 = vld [vmem:[#allocation11 + $0xb8] sm:$0xff]
    %v1046 = vld [vmem:[#allocation11 + $0xc0] sm:$0xff]
    %v1047 = vld [vmem:[#allocation11 + $0xc8] sm:$0xff]
    %v1048 = vld [vmem:[#allocation11 + $0xd0] sm:$0xff]
    %v1049 = vld [vmem:[#allocation11 + $0xd8] sm:$0xff]
    %v1050 = vld [vmem:[#allocation11 + $0xe0] sm:$0xff]
    %v1051 = vld [vmem:[#allocation11 + $0xe8] sm:$0xff]
    %v1052 = vld [vmem:[#allocation11 + $0xf0] sm:$0xff]
    %v1053 = vld [vmem:[#allocation11 + $0xf8] sm:$0xff]
    %v1054 = vld [vmem:[#allocation3 + $0x20] sm:$0xff]
    %v1055 = vld [vmem:[#allocation3 + $0x28] sm:$0xff]
    %v1056 = vld [vmem:[#allocation3 + $0x30] sm:$0xff]
    %v1057 = vld [vmem:[#allocation3 + $0x38] sm:$0xff]
    %v1058 = vunpack.c.l.bf16 %v1054
    %v1059 = vunpack.c.l.bf16 %v1055
    %v1060 = vunpack.c.l.bf16 %v1056
    %v1061 = vunpack.c.l.bf16 %v1057
    %v1062 = vunpack.c.h.bf16 %v1054
    %v1063 = vunpack.c.h.bf16 %v1055
    %v1064 = vunpack.c.h.bf16 %v1056
    %v1065 = vunpack.c.h.bf16 %v1057
    %v1098 = vunpack.c.l.b16 %v1022
    %v1099 = vunpack.c.h.b16 %v1022
    %v1100 = vunpack.c.l.b16 %v1023
    %v1101 = vunpack.c.h.b16 %v1023
    %v1102 = vunpack.c.l.b16 %v1024
    %v1103 = vunpack.c.h.b16 %v1024
    %v1104 = vunpack.c.l.b16 %v1025
    %v1105 = vunpack.c.h.b16 %v1025
    %v1106 = vunpack.c.l.b16 %v1026
    %v1107 = vunpack.c.h.b16 %v1026
    %v1108 = vunpack.c.l.b16 %v1027
    %v1109 = vunpack.c.h.b16 %v1027
    %v1110 = vunpack.c.l.b16 %v1028
    %v1111 = vunpack.c.h.b16 %v1028
    %v1112 = vunpack.c.l.b16 %v1029
    %v1113 = vunpack.c.h.b16 %v1029
    %v1114 = vunpack.c.l.b16 %v1030
    %v1115 = vunpack.c.h.b16 %v1030
    %v1116 = vunpack.c.l.b16 %v1031
    %v1117 = vunpack.c.h.b16 %v1031
    %v1118 = vunpack.c.l.b16 %v1032
    %v1119 = vunpack.c.h.b16 %v1032
    %v1120 = vunpack.c.l.b16 %v1033
    %v1121 = vunpack.c.h.b16 %v1033
    %v1122 = vunpack.c.l.b16 %v1034
    %v1123 = vunpack.c.h.b16 %v1034
    %v1124 = vunpack.c.l.b16 %v1035
    %v1125 = vunpack.c.h.b16 %v1035
    %v1126 = vunpack.c.l.b16 %v1036
    %v1127 = vunpack.c.h.b16 %v1036
    %v1128 = vunpack.c.l.b16 %v1037
    %v1129 = vunpack.c.h.b16 %v1037
    %v1130 = vunpack.c.l.b16 %v1038
    %v1131 = vunpack.c.h.b16 %v1038
    %v1132 = vunpack.c.l.b16 %v1039
    %v1133 = vunpack.c.h.b16 %v1039
    %v1134 = vunpack.c.l.b16 %v1040
    %v1135 = vunpack.c.h.b16 %v1040
    %v1136 = vunpack.c.l.b16 %v1041
    %v1137 = vunpack.c.h.b16 %v1041
    %v1138 = vunpack.c.l.b16 %v1042
    %v1139 = vunpack.c.h.b16 %v1042
    %v1140 = vunpack.c.l.b16 %v1043
    %v1141 = vunpack.c.h.b16 %v1043
    %v1142 = vunpack.c.l.b16 %v1044
    %v1143 = vunpack.c.h.b16 %v1044
    %v1144 = vunpack.c.l.b16 %v1045
    %v1145 = vunpack.c.h.b16 %v1045
    %v1146 = vunpack.c.l.b16 %v1046
    %v1147 = vunpack.c.h.b16 %v1046
    %v1148 = vunpack.c.l.b16 %v1047
    %v1149 = vunpack.c.h.b16 %v1047
    %v1150 = vunpack.c.l.b16 %v1048
    %v1151 = vunpack.c.h.b16 %v1048
    %v1152 = vunpack.c.l.b16 %v1049
    %v1153 = vunpack.c.h.b16 %v1049
    %v1154 = vunpack.c.l.b16 %v1050
    %v1155 = vunpack.c.h.b16 %v1050
    %v1156 = vunpack.c.l.b16 %v1051
    %v1157 = vunpack.c.h.b16 %v1051
    %v1158 = vunpack.c.l.b16 %v1052
    %v1159 = vunpack.c.h.b16 %v1052
    %v1160 = vunpack.c.l.b16 %v1053
    %v1161 = vunpack.c.h.b16 %v1053
    %v1162 = vpack.c.b16 %v1102, %v1098
    %v1163 = vpack.c.b16 %v1103, %v1099
    %v1164 = vpack.c.b16 %v1104, %v1100
    %v1165 = vpack.c.b16 %v1105, %v1101
    %v1166 = vpack.c.b16 %v1110, %v1106
    %v1167 = vpack.c.b16 %v1111, %v1107
    %v1168 = vpack.c.b16 %v1112, %v1108
    %v1169 = vpack.c.b16 %v1113, %v1109
    %v1170 = vpack.c.b16 %v1118, %v1114
    %v1171 = vpack.c.b16 %v1119, %v1115
    %v1172 = vpack.c.b16 %v1120, %v1116
    %v1173 = vpack.c.b16 %v1121, %v1117
    %v1174 = vpack.c.b16 %v1126, %v1122
    %v1175 = vpack.c.b16 %v1127, %v1123
    %v1176 = vpack.c.b16 %v1128, %v1124
    %v1177 = vpack.c.b16 %v1129, %v1125
    %v1178 = vpack.c.b16 %v1134, %v1130
    %v1179 = vpack.c.b16 %v1135, %v1131
    %v1180 = vpack.c.b16 %v1136, %v1132
    %v1181 = vpack.c.b16 %v1137, %v1133
    %v1182 = vpack.c.b16 %v1142, %v1138
    %v1183 = vpack.c.b16 %v1143, %v1139
    %v1184 = vpack.c.b16 %v1144, %v1140
    %v1185 = vpack.c.b16 %v1145, %v1141
    %v1186 = vpack.c.b16 %v1150, %v1146
    %v1187 = vpack.c.b16 %v1151, %v1147
    %v1188 = vpack.c.b16 %v1152, %v1148
    %v1189 = vpack.c.b16 %v1153, %v1149
    %v1190 = vpack.c.b16 %v1158, %v1154
    %v1191 = vpack.c.b16 %v1159, %v1155
    %v1192 = vpack.c.b16 %v1160, %v1156
    %v1193 = vpack.c.b16 %v1161, %v1157
    %1226 = vmatprep.subr.bf16.mxu0 %v1163
    %1227 = vmatpush1.bf16.msra.mxu0 %v1162
    %1228 = vmatprep.subr.bf16.mxu0 %v1167
    %1229 = vmatpush1.bf16.msra.mxu0 %v1166
    %1230 = vmatprep.subr.bf16.mxu0 %v1171
    %1231 = vmatpush1.bf16.msra.mxu0 %v1170
    %1232 = vmatprep.subr.bf16.mxu0 %v1175
    %1233 = vmatpush1.bf16.msra.mxu0 %v1174
    %1234 = vmatprep.subr.bf16.mxu0 %v1179
    %1235 = vmatpush1.bf16.msra.mxu0 %v1178
    %1236 = vmatprep.subr.bf16.mxu0 %v1183
    %1237 = vmatpush1.bf16.msra.mxu0 %v1182
    %1238 = vmatprep.subr.bf16.mxu0 %v1187
    %1239 = vmatpush1.bf16.msra.mxu0 %v1186
    %1240 = vmatprep.subr.bf16.mxu0 %v1191
    %1241 = vmatpush1.bf16.msra.mxu0 %v1190
    %1242 = vmatprep.subr.bf16.mxu0 0
    %1243 = vmatpush1.bf16.msra.mxu0 0
    %1244 = vmatprep.subr.bf16.mxu0 0
    %1245 = vmatpush1.bf16.msra.mxu0 0
    %1246 = vmatprep.subr.bf16.mxu0 0
    %1247 = vmatpush1.bf16.msra.mxu0 0
    %1248 = vmatprep.subr.bf16.mxu0 0
    %1249 = vmatpush1.bf16.msra.mxu0 0
    %1250 = vmatprep.subr.bf16.mxu0 0
    %1251 = vmatpush1.bf16.msra.mxu0 0
    %1252 = vmatprep.subr.bf16.mxu0 0
    %1253 = vmatpush1.bf16.msra.mxu0 0
    %1254 = vmatprep.subr.bf16.mxu0 0
    %1255 = vmatpush1.bf16.msra.mxu0 0
    %1256 = vmatprep.subr.bf16.mxu0 0
    %1257 = vmatpush1.bf16.msra.mxu0 0
    %1258 = vmatprep.mubr.bf16.mxu0 0
    %1259 = vmatmul.mubr.bf16.gmra.mrb[0].mxu0 %v1021
    %v1260 = vpop.f32.mrb[0].mxu0
    %v1261 = vadd.f32 %v1058, %v1260
    %v1262 = vpop.f32.mrb[0].mxu0
    %v1263 = vadd.f32 %v1059, %v1262
    %v1264 = vpop.f32.mrb[0].mxu0
    %v1265 = vadd.f32 %v1062, %v1264
    %v1266 = vpop.f32.mrb[0].mxu0
    %v1267 = vadd.f32 %v1063, %v1266
    %1268 = vdwg.mxu0
    %1269 = vmatprep.subr.bf16.mxu0 %v1165
    %1270 = vmatpush1.bf16.msra.mxu0 %v1164
    %1271 = vmatprep.subr.bf16.mxu0 %v1169
    %1272 = vmatpush1.bf16.msra.mxu0 %v1168
    %1273 = vmatprep.subr.bf16.mxu0 %v1173
    %1274 = vmatpush1.bf16.msra.mxu0 %v1172
    %1275 = vmatprep.subr.bf16.mxu0 %v1177
    %1276 = vmatpush1.bf16.msra.mxu0 %v1176
    %1277 = vmatprep.subr.bf16.mxu0 %v1181
    %1278 = vmatpush1.bf16.msra.mxu0 %v1180
    %1279 = vmatprep.subr.bf16.mxu0 %v1185
    %1280 = vmatpush1.bf16.msra.mxu0 %v1184
    %1281 = vmatprep.subr.bf16.mxu0 %v1189
    %1282 = vmatpush1.bf16.msra.mxu0 %v1188
    %1283 = vmatprep.subr.bf16.mxu0 %v1193
    %1284 = vmatpush1.bf16.msra.mxu0 %v1192
    %1285 = vmatprep.subr.bf16.mxu0 0
    %1286 = vmatpush1.bf16.msra.mxu0 0
    %1287 = vmatprep.subr.bf16.mxu0 0
    %1288 = vmatpush1.bf16.msra.mxu0 0
    %1289 = vmatprep.subr.bf16.mxu0 0
    %1290 = vmatpush1.bf16.msra.mxu0 0
    %1291 = vmatprep.subr.bf16.mxu0 0
    %1292 = vmatpush1.bf16.msra.mxu0 0
    %1293 = vmatprep.subr.bf16.mxu0 0
    %1294 = vmatpush1.bf16.msra.mxu0 0
    %1295 = vmatprep.subr.bf16.mxu0 0
    %1296 = vmatpush1.bf16.msra.mxu0 0
    %1297 = vmatprep.subr.bf16.mxu0 0
    %1298 = vmatpush1.bf16.msra.mxu0 0
    %1299 = vmatprep.subr.bf16.mxu0 0
    %1300 = vmatpush1.bf16.msra.mxu0 0
    %1301 = vmatprep.mubr.bf16.mxu0 0
    %1302 = vmatmul.mubr.bf16.gmra.mrb[0].mxu0 %v1021
    %v1303 = vpop.f32.mrb[0].mxu0
    %v1304 = vadd.f32 %v1060, %v1303
    %v1305 = vpop.f32.mrb[0].mxu0
    %v1306 = vadd.f32 %v1061, %v1305
    %v1307 = vpop.f32.mrb[0].mxu0
    %v1308 = vadd.f32 %v1064, %v1307
    %v1309 = vpop.f32.mrb[0].mxu0
    %v1310 = vadd.f32 %v1065, %v1309
    %1311 = vdwg.mxu0
    %v1312 = vmul.f32 %v1261, 0.5
    %v1313 = vmul.f32 %v1265, 0.5
    %v1314 = vtanh.pop %v1312
    %v1315 = vtanh.pop %v1313
    %v1316 = vmul.f32 %v1314, 0.5
    %v1317 = vmul.f32 %v1315, 0.5
    %v1318 = vadd.f32 %v1316, 0.5
    %v1319 = vadd.f32 %v1317, 0.5
    %v1320 = vmul.f32 %v1263, 0.5
    %v1321 = vmul.f32 %v1267, 0.5
    %v1322 = vtanh.pop %v1320
    %v1323 = vtanh.pop %v1321
    %v1324 = vmul.f32 %v1322, 0.5
    %v1325 = vmul.f32 %v1323, 0.5
    %v1326 = vadd.f32 %v1324, 0.5
    %v1327 = vadd.f32 %v1325, 0.5
    %v1328 = vtanh.pop %v1304
    %v1329 = vtanh.pop %v1308
    %v1330 = vmul.f32 %v1306, 0.5
    %v1331 = vmul.f32 %v1310, 0.5
    %v1332 = vtanh.pop %v1330
    %v1333 = vtanh.pop %v1331
    %v1334 = vmul.f32 %v1332, 0.5
    %v1335 = vmul.f32 %v1333, 0.5
    %v1336 = vadd.f32 %v1334, 0.5
    %v1337 = vadd.f32 %v1335, 0.5
    %v1338 = vld [vmem:[#allocation5] sm:$0xff]
    %v1339 = vld [vmem:[#allocation5 + $0x8] sm:$0xff]
    %v1340 = vmul.f32 %v1326, %v1338
    %v1341 = vmul.f32 %v1327, %v1339
    %v1342 = vmul.f32 %v1318, %v1328
    %v1343 = vmul.f32 %v1319, %v1329
    %v1344 = vadd.f32 %v1340, %v1342
    %v1345 = vadd.f32 %v1341, %v1343
    %v1346 = vtanh.pop %v1344
    %v1347 = vtanh.pop %v1345
    %v1348 = vmul.f32 %v1336, %v1346
    %v1349 = vmul.f32 %v1337, %v1347
    %v1350 = vpack.c.bf16 %v1349, %v1348
    %1351 = vst [vmem:[#allocation5] sm:$0xff] %v1344
    %1352 = vst [vmem:[#allocation5 + $0x8] sm:$0xff] %v1345
    %1353 = vst [vmem:[#allocation4] sm:$0xff] %v1350
    %1354 = vst [vmem:[#allocation2 + $0x8] sm:$0xff] %v1350
    %v1355 = vld [vmem:[#allocation4] sm:$0xff]
    %v1356 = vld [vmem:[#allocation11] sm:$0xff]
    %v1357 = vld [vmem:[#allocation11 + $0x8] sm:$0xff]
    %v1358 = vld [vmem:[#allocation11 + $0x10] sm:$0xff]
    %v1359 = vld [vmem:[#allocation11 + $0x18] sm:$0xff]
    %v1360 = vld [vmem:[#allocation11 + $0x20] sm:$0xff]
    %v1361 = vld [vmem:[#allocation11 + $0x28] sm:$0xff]
    %v1362 = vld [vmem:[#allocation11 + $0x30] sm:$0xff]
    %v1363 = vld [vmem:[#allocation11 + $0x38] sm:$0xff]
    %v1364 = vld [vmem:[#allocation11 + $0x40] sm:$0xff]
    %v1365 = vld [vmem:[#allocation11 + $0x48] sm:$0xff]
    %v1366 = vld [vmem:[#allocation11 + $0x50] sm:$0xff]
    %v1367 = vld [vmem:[#allocation11 + $0x58] sm:$0xff]
    %v1368 = vld [vmem:[#allocation11 + $0x60] sm:$0xff]
    %v1369 = vld [vmem:[#allocation11 + $0x68] sm:$0xff]
    %v1370 = vld [vmem:[#allocation11 + $0x70] sm:$0xff]
    %v1371 = vld [vmem:[#allocation11 + $0x78] sm:$0xff]
    %v1372 = vld [vmem:[#allocation11 + $0x80] sm:$0xff]
    %v1373 = vld [vmem:[#allocation11 + $0x88] sm:$0xff]
    %v1374 = vld [vmem:[#allocation11 + $0x90] sm:$0xff]
    %v1375 = vld [vmem:[#allocation11 + $0x98] sm:$0xff]
    %v1376 = vld [vmem:[#allocation11 + $0xa0] sm:$0xff]
    %v1377 = vld [vmem:[#allocation11 + $0xa8] sm:$0xff]
    %v1378 = vld [vmem:[#allocation11 + $0xb0] sm:$0xff]
    %v1379 = vld [vmem:[#allocation11 + $0xb8] sm:$0xff]
    %v1380 = vld [vmem:[#allocation11 + $0xc0] sm:$0xff]
    %v1381 = vld [vmem:[#allocation11 + $0xc8] sm:$0xff]
    %v1382 = vld [vmem:[#allocation11 + $0xd0] sm:$0xff]
    %v1383 = vld [vmem:[#allocation11 + $0xd8] sm:$0xff]
    %v1384 = vld [vmem:[#allocation11 + $0xe0] sm:$0xff]
    %v1385 = vld [vmem:[#allocation11 + $0xe8] sm:$0xff]
    %v1386 = vld [vmem:[#allocation11 + $0xf0] sm:$0xff]
    %v1387 = vld [vmem:[#allocation11 + $0xf8] sm:$0xff]
    %v1388 = vld [vmem:[#allocation3 + $0x40] sm:$0xff]
    %v1389 = vld [vmem:[#allocation3 + $0x48] sm:$0xff]
    %v1390 = vld [vmem:[#allocation3 + $0x50] sm:$0xff]
    %v1391 = vld [vmem:[#allocation3 + $0x58] sm:$0xff]
    %v1392 = vunpack.c.l.bf16 %v1388
    %v1393 = vunpack.c.l.bf16 %v1389
    %v1394 = vunpack.c.l.bf16 %v1390
    %v1395 = vunpack.c.l.bf16 %v1391
    %v1396 = vunpack.c.h.bf16 %v1388
    %v1397 = vunpack.c.h.bf16 %v1389
    %v1398 = vunpack.c.h.bf16 %v1390
    %v1399 = vunpack.c.h.bf16 %v1391
    %v1432 = vunpack.c.l.b16 %v1356
    %v1433 = vunpack.c.h.b16 %v1356
    %v1434 = vunpack.c.l.b16 %v1357
    %v1435 = vunpack.c.h.b16 %v1357
    %v1436 = vunpack.c.l.b16 %v1358
    %v1437 = vunpack.c.h.b16 %v1358
    %v1438 = vunpack.c.l.b16 %v1359
    %v1439 = vunpack.c.h.b16 %v1359
    %v1440 = vunpack.c.l.b16 %v1360
    %v1441 = vunpack.c.h.b16 %v1360
    %v1442 = vunpack.c.l.b16 %v1361
    %v1443 = vunpack.c.h.b16 %v1361
    %v1444 = vunpack.c.l.b16 %v1362
    %v1445 = vunpack.c.h.b16 %v1362
    %v1446 = vunpack.c.l.b16 %v1363
    %v1447 = vunpack.c.h.b16 %v1363
    %v1448 = vunpack.c.l.b16 %v1364
    %v1449 = vunpack.c.h.b16 %v1364
    %v1450 = vunpack.c.l.b16 %v1365
    %v1451 = vunpack.c.h.b16 %v1365
    %v1452 = vunpack.c.l.b16 %v1366
    %v1453 = vunpack.c.h.b16 %v1366
    %v1454 = vunpack.c.l.b16 %v1367
    %v1455 = vunpack.c.h.b16 %v1367
    %v1456 = vunpack.c.l.b16 %v1368
    %v1457 = vunpack.c.h.b16 %v1368
    %v1458 = vunpack.c.l.b16 %v1369
    %v1459 = vunpack.c.h.b16 %v1369
    %v1460 = vunpack.c.l.b16 %v1370
    %v1461 = vunpack.c.h.b16 %v1370
    %v1462 = vunpack.c.l.b16 %v1371
    %v1463 = vunpack.c.h.b16 %v1371
    %v1464 = vunpack.c.l.b16 %v1372
    %v1465 = vunpack.c.h.b16 %v1372
    %v1466 = vunpack.c.l.b16 %v1373
    %v1467 = vunpack.c.h.b16 %v1373
    %v1468 = vunpack.c.l.b16 %v1374
    %v1469 = vunpack.c.h.b16 %v1374
    %v1470 = vunpack.c.l.b16 %v1375
    %v1471 = vunpack.c.h.b16 %v1375
    %v1472 = vunpack.c.l.b16 %v1376
    %v1473 = vunpack.c.h.b16 %v1376
    %v1474 = vunpack.c.l.b16 %v1377
    %v1475 = vunpack.c.h.b16 %v1377
    %v1476 = vunpack.c.l.b16 %v1378
    %v1477 = vunpack.c.h.b16 %v1378
    %v1478 = vunpack.c.l.b16 %v1379
    %v1479 = vunpack.c.h.b16 %v1379
    %v1480 = vunpack.c.l.b16 %v1380
    %v1481 = vunpack.c.h.b16 %v1380
    %v1482 = vunpack.c.l.b16 %v1381
    %v1483 = vunpack.c.h.b16 %v1381
    %v1484 = vunpack.c.l.b16 %v1382
    %v1485 = vunpack.c.h.b16 %v1382
    %v1486 = vunpack.c.l.b16 %v1383
    %v1487 = vunpack.c.h.b16 %v1383
    %v1488 = vunpack.c.l.b16 %v1384
    %v1489 = vunpack.c.h.b16 %v1384
    %v1490 = vunpack.c.l.b16 %v1385
    %v1491 = vunpack.c.h.b16 %v1385
    %v1492 = vunpack.c.l.b16 %v1386
    %v1493 = vunpack.c.h.b16 %v1386
    %v1494 = vunpack.c.l.b16 %v1387
    %v1495 = vunpack.c.h.b16 %v1387
    %v1496 = vpack.c.b16 %v1436, %v1432
    %v1497 = vpack.c.b16 %v1437, %v1433
    %v1498 = vpack.c.b16 %v1438, %v1434
    %v1499 = vpack.c.b16 %v1439, %v1435
    %v1500 = vpack.c.b16 %v1444, %v1440
    %v1501 = vpack.c.b16 %v1445, %v1441
    %v1502 = vpack.c.b16 %v1446, %v1442
    %v1503 = vpack.c.b16 %v1447, %v1443
    %v1504 = vpack.c.b16 %v1452, %v1448
    %v1505 = vpack.c.b16 %v1453, %v1449
    %v1506 = vpack.c.b16 %v1454, %v1450
    %v1507 = vpack.c.b16 %v1455, %v1451
    %v1508 = vpack.c.b16 %v1460, %v1456
    %v1509 = vpack.c.b16 %v1461, %v1457
    %v1510 = vpack.c.b16 %v1462, %v1458
    %v1511 = vpack.c.b16 %v1463, %v1459
    %v1512 = vpack.c.b16 %v1468, %v1464
    %v1513 = vpack.c.b16 %v1469, %v1465
    %v1514 = vpack.c.b16 %v1470, %v1466
    %v1515 = vpack.c.b16 %v1471, %v1467
    %v1516 = vpack.c.b16 %v1476, %v1472
    %v1517 = vpack.c.b16 %v1477, %v1473
    %v1518 = vpack.c.b16 %v1478, %v1474
    %v1519 = vpack.c.b16 %v1479, %v1475
    %v1520 = vpack.c.b16 %v1484, %v1480
    %v1521 = vpack.c.b16 %v1485, %v1481
    %v1522 = vpack.c.b16 %v1486, %v1482
    %v1523 = vpack.c.b16 %v1487, %v1483
    %v1524 = vpack.c.b16 %v1492, %v1488
    %v1525 = vpack.c.b16 %v1493, %v1489
    %v1526 = vpack.c.b16 %v1494, %v1490
    %v1527 = vpack.c.b16 %v1495, %v1491
    %1560 = vmatprep.subr.bf16.mxu0 %v1497
    %1561 = vmatpush1.bf16.msra.mxu0 %v1496
    %1562 = vmatprep.subr.bf16.mxu0 %v1501
    %1563 = vmatpush1.bf16.msra.mxu0 %v1500
    %1564 = vmatprep.subr.bf16.mxu0 %v1505
    %1565 = vmatpush1.bf16.msra.mxu0 %v1504
    %1566 = vmatprep.subr.bf16.mxu0 %v1509
    %1567 = vmatpush1.bf16.msra.mxu0 %v1508
    %1568 = vmatprep.subr.bf16.mxu0 %v1513
    %1569 = vmatpush1.bf16.msra.mxu0 %v1512
    %1570 = vmatprep.subr.bf16.mxu0 %v1517
    %1571 = vmatpush1.bf16.msra.mxu0 %v1516
    %1572 = vmatprep.subr.bf16.mxu0 %v1521
    %1573 = vmatpush1.bf16.msra.mxu0 %v1520
    %1574 = vmatprep.subr.bf16.mxu0 %v1525
    %1575 = vmatpush1.bf16.msra.mxu0 %v1524
    %1576 = vmatprep.subr.bf16.mxu0 0
    %1577 = vmatpush1.bf16.msra.mxu0 0
    %1578 = vmatprep.subr.bf16.mxu0 0
    %1579 = vmatpush1.bf16.msra.mxu0 0
    %1580 = vmatprep.subr.bf16.mxu0 0
    %1581 = vmatpush1.bf16.msra.mxu0 0
    %1582 = vmatprep.subr.bf16.mxu0 0
    %1583 = vmatpush1.bf16.msra.mxu0 0
    %1584 = vmatprep.subr.bf16.mxu0 0
    %1585 = vmatpush1.bf16.msra.mxu0 0
    %1586 = vmatprep.subr.bf16.mxu0 0
    %1587 = vmatpush1.bf16.msra.mxu0 0
    %1588 = vmatprep.subr.bf16.mxu0 0
    %1589 = vmatpush1.bf16.msra.mxu0 0
    %1590 = vmatprep.subr.bf16.mxu0 0
    %1591 = vmatpush1.bf16.msra.mxu0 0
    %1592 = vmatprep.mubr.bf16.mxu0 0
    %1593 = vmatmul.mubr.bf16.gmra.mrb[0].mxu0 %v1355
    %v1594 = vpop.f32.mrb[0].mxu0
    %v1595 = vadd.f32 %v1392, %v1594
    %v1596 = vpop.f32.mrb[0].mxu0
    %v1597 = vadd.f32 %v1393, %v1596
    %v1598 = vpop.f32.mrb[0].mxu0
    %v1599 = vadd.f32 %v1396, %v1598
    %v1600 = vpop.f32.mrb[0].mxu0
    %v1601 = vadd.f32 %v1397, %v1600
    %1602 = vdwg.mxu0
    %1603 = vmatprep.subr.bf16.mxu0 %v1499
    %1604 = vmatpush1.bf16.msra.mxu0 %v1498
    %1605 = vmatprep.subr.bf16.mxu0 %v1503
    %1606 = vmatpush1.bf16.msra.mxu0 %v1502
    %1607 = vmatprep.subr.bf16.mxu0 %v1507
    %1608 = vmatpush1.bf16.msra.mxu0 %v1506
    %1609 = vmatprep.subr.bf16.mxu0 %v1511
    %1610 = vmatpush1.bf16.msra.mxu0 %v1510
    %1611 = vmatprep.subr.bf16.mxu0 %v1515
    %1612 = vmatpush1.bf16.msra.mxu0 %v1514
    %1613 = vmatprep.subr.bf16.mxu0 %v1519
    %1614 = vmatpush1.bf16.msra.mxu0 %v1518
    %1615 = vmatprep.subr.bf16.mxu0 %v1523
    %1616 = vmatpush1.bf16.msra.mxu0 %v1522
    %1617 = vmatprep.subr.bf16.mxu0 %v1527
    %1618 = vmatpush1.bf16.msra.mxu0 %v1526
    %1619 = vmatprep.subr.bf16.mxu0 0
    %1620 = vmatpush1.bf16.msra.mxu0 0
    %1621 = vmatprep.subr.bf16.mxu0 0
    %1622 = vmatpush1.bf16.msra.mxu0 0
    %1623 = vmatprep.subr.bf16.mxu0 0
    %1624 = vmatpush1.bf16.msra.mxu0 0
    %1625 = vmatprep.subr.bf16.mxu0 0
    %1626 = vmatpush1.bf16.msra.mxu0 0
    %1627 = vmatprep.subr.bf16.mxu0 0
    %1628 = vmatpush1.bf16.msra.mxu0 0
    %1629 = vmatprep.subr.bf16.mxu0 0
    %1630 = vmatpush1.bf16.msra.mxu0 0
    %1631 = vmatprep.subr.bf16.mxu0 0
    %1632 = vmatpush1.bf16.msra.mxu0 0
    %1633 = vmatprep.subr.bf16.mxu0 0
    %1634 = vmatpush1.bf16.msra.mxu0 0
    %1635 = vmatprep.mubr.bf16.mxu0 0
    %1636 = vmatmul.mubr.bf16.gmra.mrb[0].mxu0 %v1355
    %v1637 = vpop.f32.mrb[0].mxu0
    %v1638 = vadd.f32 %v1394, %v1637
    %v1639 = vpop.f32.mrb[0].mxu0
    %v1640 = vadd.f32 %v1395, %v1639
    %v1641 = vpop.f32.mrb[0].mxu0
    %v1642 = vadd.f32 %v1398, %v1641
    %v1643 = vpop.f32.mrb[0].mxu0
    %v1644 = vadd.f32 %v1399, %v1643
    %1645 = vdwg.mxu0
    %v1646 = vmul.f32 %v1595, 0.5
    %v1647 = vmul.f32 %v1599, 0.5
    %v1648 = vtanh.pop %v1646
    %v1649 = vtanh.pop %v1647
    %v1650 = vmul.f32 %v1648, 0.5
    %v1651 = vmul.f32 %v1649, 0.5
    %v1652 = vadd.f32 %v1650, 0.5
    %v1653 = vadd.f32 %v1651, 0.5
    %v1654 = vmul.f32 %v1597, 0.5
    %v1655 = vmul.f32 %v1601, 0.5
    %v1656 = vtanh.pop %v1654
    %v1657 = vtanh.pop %v1655
    %v1658 = vmul.f32 %v1656, 0.5
    %v1659 = vmul.f32 %v1657, 0.5
    %v1660 = vadd.f32 %v1658, 0.5
    %v1661 = vadd.f32 %v1659, 0.5
    %v1662 = vtanh.pop %v1638
    %v1663 = vtanh.pop %v1642
    %v1664 = vmul.f32 %v1640, 0.5
    %v1665 = vmul.f32 %v1644, 0.5
    %v1666 = vtanh.pop %v1664
    %v1667 = vtanh.pop %v1665
    %v1668 = vmul.f32 %v1666, 0.5
    %v1669 = vmul.f32 %v1667, 0.5
    %v1670 = vadd.f32 %v1668, 0.5
    %v1671 = vadd.f32 %v1669, 0.5
    %v1672 = vld [vmem:[#allocation5] sm:$0xff]
    %v1673 = vld [vmem:[#allocation5 + $0x8] sm:$0xff]
    %v1674 = vmul.f32 %v1660, %v1672
    %v1675 = vmul.f32 %v1661, %v1673
    %v1676 = vmul.f32 %v1652, %v1662
    %v1677 = vmul.f32 %v1653, %v1663
    %v1678 = vadd.f32 %v1674, %v1676
    %v1679 = vadd.f32 %v1675, %v1677
    %v1680 = vtanh.pop %v1678
    %v1681 = vtanh.pop %v1679
    %v1682 = vmul.f32 %v1670, %v1680
    %v1683 = vmul.f32 %v1671, %v1681
    %v1684 = vpack.c.bf16 %v1683, %v1682
    %1685 = vst [vmem:[#allocation5] sm:$0xff] %v1678
    %1686 = vst [vmem:[#allocation5 + $0x8] sm:$0xff] %v1679
    %1687 = vst [vmem:[#allocation4] sm:$0xff] %v1684
    %1688 = vst [vmem:[#allocation2 + $0x10] sm:$0xff] %v1684
    %v1689 = vld [vmem:[#allocation4] sm:$0xff]
    %v1690 = vld [vmem:[#allocation11] sm:$0xff]
    %v1691 = vld [vmem:[#allocation11 + $0x8] sm:$0xff]
    %v1692 = vld [vmem:[#allocation11 + $0x10] sm:$0xff]
    %v1693 = vld [vmem:[#allocation11 + $0x18] sm:$0xff]
    %v1694 = vld [vmem:[#allocation11 + $0x20] sm:$0xff]
    %v1695 = vld [vmem:[#allocation11 + $0x28] sm:$0xff]
    %v1696 = vld [vmem:[#allocation11 + $0x30] sm:$0xff]
    %v1697 = vld [vmem:[#allocation11 + $0x38] sm:$0xff]
    %v1698 = vld [vmem:[#allocation11 + $0x40] sm:$0xff]
    %v1699 = vld [vmem:[#allocation11 + $0x48] sm:$0xff]
    %v1700 = vld [vmem:[#allocation11 + $0x50] sm:$0xff]
    %v1701 = vld [vmem:[#allocation11 + $0x58] sm:$0xff]
    %v1702 = vld [vmem:[#allocation11 + $0x60] sm:$0xff]
    %v1703 = vld [vmem:[#allocation11 + $0x68] sm:$0xff]
    %v1704 = vld [vmem:[#allocation11 + $0x70] sm:$0xff]
    %v1705 = vld [vmem:[#allocation11 + $0x78] sm:$0xff]
    %v1706 = vld [vmem:[#allocation11 + $0x80] sm:$0xff]
    %v1707 = vld [vmem:[#allocation11 + $0x88] sm:$0xff]
    %v1708 = vld [vmem:[#allocation11 + $0x90] sm:$0xff]
    %v1709 = vld [vmem:[#allocation11 + $0x98] sm:$0xff]
    %v1710 = vld [vmem:[#allocation11 + $0xa0] sm:$0xff]
    %v1711 = vld [vmem:[#allocation11 + $0xa8] sm:$0xff]
    %v1712 = vld [vmem:[#allocation11 + $0xb0] sm:$0xff]
    %v1713 = vld [vmem:[#allocation11 + $0xb8] sm:$0xff]
    %v1714 = vld [vmem:[#allocation11 + $0xc0] sm:$0xff]
    %v1715 = vld [vmem:[#allocation11 + $0xc8] sm:$0xff]
    %v1716 = vld [vmem:[#allocation11 + $0xd0] sm:$0xff]
    %v1717 = vld [vmem:[#allocation11 + $0xd8] sm:$0xff]
    %v1718 = vld [vmem:[#allocation11 + $0xe0] sm:$0xff]
    %v1719 = vld [vmem:[#allocation11 + $0xe8] sm:$0xff]
    %v1720 = vld [vmem:[#allocation11 + $0xf0] sm:$0xff]
    %v1721 = vld [vmem:[#allocation11 + $0xf8] sm:$0xff]
    %v1722 = vld [vmem:[#allocation3 + $0x60] sm:$0xff]
    %v1723 = vld [vmem:[#allocation3 + $0x68] sm:$0xff]
    %v1724 = vld [vmem:[#allocation3 + $0x70] sm:$0xff]
    %v1725 = vld [vmem:[#allocation3 + $0x78] sm:$0xff]
    %v1726 = vunpack.c.l.bf16 %v1722
    %v1727 = vunpack.c.l.bf16 %v1723
    %v1728 = vunpack.c.l.bf16 %v1724
    %v1729 = vunpack.c.l.bf16 %v1725
    %v1730 = vunpack.c.h.bf16 %v1722
    %v1731 = vunpack.c.h.bf16 %v1723
    %v1732 = vunpack.c.h.bf16 %v1724
    %v1733 = vunpack.c.h.bf16 %v1725
    %v1766 = vunpack.c.l.b16 %v1690
    %v1767 = vunpack.c.h.b16 %v1690
    %v1768 = vunpack.c.l.b16 %v1691
    %v1769 = vunpack.c.h.b16 %v1691
    %v1770 = vunpack.c.l.b16 %v1692
    %v1771 = vunpack.c.h.b16 %v1692
    %v1772 = vunpack.c.l.b16 %v1693
    %v1773 = vunpack.c.h.b16 %v1693
    %v1774 = vunpack.c.l.b16 %v1694
    %v1775 = vunpack.c.h.b16 %v1694
    %v1776 = vunpack.c.l.b16 %v1695
    %v1777 = vunpack.c.h.b16 %v1695
    %v1778 = vunpack.c.l.b16 %v1696
    %v1779 = vunpack.c.h.b16 %v1696
    %v1780 = vunpack.c.l.b16 %v1697
    %v1781 = vunpack.c.h.b16 %v1697
    %v1782 = vunpack.c.l.b16 %v1698
    %v1783 = vunpack.c.h.b16 %v1698
    %v1784 = vunpack.c.l.b16 %v1699
    %v1785 = vunpack.c.h.b16 %v1699
    %v1786 = vunpack.c.l.b16 %v1700
    %v1787 = vunpack.c.h.b16 %v1700
    %v1788 = vunpack.c.l.b16 %v1701
    %v1789 = vunpack.c.h.b16 %v1701
    %v1790 = vunpack.c.l.b16 %v1702
    %v1791 = vunpack.c.h.b16 %v1702
    %v1792 = vunpack.c.l.b16 %v1703
    %v1793 = vunpack.c.h.b16 %v1703
    %v1794 = vunpack.c.l.b16 %v1704
    %v1795 = vunpack.c.h.b16 %v1704
    %v1796 = vunpack.c.l.b16 %v1705
    %v1797 = vunpack.c.h.b16 %v1705
    %v1798 = vunpack.c.l.b16 %v1706
    %v1799 = vunpack.c.h.b16 %v1706
    %v1800 = vunpack.c.l.b16 %v1707
    %v1801 = vunpack.c.h.b16 %v1707
    %v1802 = vunpack.c.l.b16 %v1708
    %v1803 = vunpack.c.h.b16 %v1708
    %v1804 = vunpack.c.l.b16 %v1709
    %v1805 = vunpack.c.h.b16 %v1709
    %v1806 = vunpack.c.l.b16 %v1710
    %v1807 = vunpack.c.h.b16 %v1710
    %v1808 = vunpack.c.l.b16 %v1711
    %v1809 = vunpack.c.h.b16 %v1711
    %v1810 = vunpack.c.l.b16 %v1712
    %v1811 = vunpack.c.h.b16 %v1712
    %v1812 = vunpack.c.l.b16 %v1713
    %v1813 = vunpack.c.h.b16 %v1713
    %v1814 = vunpack.c.l.b16 %v1714
    %v1815 = vunpack.c.h.b16 %v1714
    %v1816 = vunpack.c.l.b16 %v1715
    %v1817 = vunpack.c.h.b16 %v1715
    %v1818 = vunpack.c.l.b16 %v1716
    %v1819 = vunpack.c.h.b16 %v1716
    %v1820 = vunpack.c.l.b16 %v1717
    %v1821 = vunpack.c.h.b16 %v1717
    %v1822 = vunpack.c.l.b16 %v1718
    %v1823 = vunpack.c.h.b16 %v1718
    %v1824 = vunpack.c.l.b16 %v1719
    %v1825 = vunpack.c.h.b16 %v1719
    %v1826 = vunpack.c.l.b16 %v1720
    %v1827 = vunpack.c.h.b16 %v1720
    %v1828 = vunpack.c.l.b16 %v1721
    %v1829 = vunpack.c.h.b16 %v1721
    %v1830 = vpack.c.b16 %v1770, %v1766
    %v1831 = vpack.c.b16 %v1771, %v1767
    %v1832 = vpack.c.b16 %v1772, %v1768
    %v1833 = vpack.c.b16 %v1773, %v1769
    %v1834 = vpack.c.b16 %v1778, %v1774
    %v1835 = vpack.c.b16 %v1779, %v1775
    %v1836 = vpack.c.b16 %v1780, %v1776
    %v1837 = vpack.c.b16 %v1781, %v1777
    %v1838 = vpack.c.b16 %v1786, %v1782
    %v1839 = vpack.c.b16 %v1787, %v1783
    %v1840 = vpack.c.b16 %v1788, %v1784
    %v1841 = vpack.c.b16 %v1789, %v1785
    %v1842 = vpack.c.b16 %v1794, %v1790
    %v1843 = vpack.c.b16 %v1795, %v1791
    %v1844 = vpack.c.b16 %v1796, %v1792
    %v1845 = vpack.c.b16 %v1797, %v1793
    %v1846 = vpack.c.b16 %v1802, %v1798
    %v1847 = vpack.c.b16 %v1803, %v1799
    %v1848 = vpack.c.b16 %v1804, %v1800
    %v1849 = vpack.c.b16 %v1805, %v1801
    %v1850 = vpack.c.b16 %v1810, %v1806
    %v1851 = vpack.c.b16 %v1811, %v1807
    %v1852 = vpack.c.b16 %v1812, %v1808
    %v1853 = vpack.c.b16 %v1813, %v1809
    %v1854 = vpack.c.b16 %v1818, %v1814
    %v1855 = vpack.c.b16 %v1819, %v1815
    %v1856 = vpack.c.b16 %v1820, %v1816
    %v1857 = vpack.c.b16 %v1821, %v1817
    %v1858 = vpack.c.b16 %v1826, %v1822
    %v1859 = vpack.c.b16 %v1827, %v1823
    %v1860 = vpack.c.b16 %v1828, %v1824
    %v1861 = vpack.c.b16 %v1829, %v1825
    %1894 = vmatprep.subr.bf16.mxu0 %v1831
    %1895 = vmatpush1.bf16.msra.mxu0 %v1830
    %1896 = vmatprep.subr.bf16.mxu0 %v1835
    %1897 = vmatpush1.bf16.msra.mxu0 %v1834
    %1898 = vmatprep.subr.bf16.mxu0 %v1839
    %1899 = vmatpush1.bf16.msra.mxu0 %v1838
    %1900 = vmatprep.subr.bf16.mxu0 %v1843
    %1901 = vmatpush1.bf16.msra.mxu0 %v1842
    %1902 = vmatprep.subr.bf16.mxu0 %v1847
    %1903 = vmatpush1.bf16.msra.mxu0 %v1846
    %1904 = vmatprep.subr.bf16.mxu0 %v1851
    %1905 = vmatpush1.bf16.msra.mxu0 %v1850
    %1906 = vmatprep.subr.bf16.mxu0 %v1855
    %1907 = vmatpush1.bf16.msra.mxu0 %v1854
    %1908 = vmatprep.subr.bf16.mxu0 %v1859
    %1909 = vmatpush1.bf16.msra.mxu0 %v1858
    %1910 = vmatprep.subr.bf16.mxu0 0
    %1911 = vmatpush1.bf16.msra.mxu0 0
    %1912 = vmatprep.subr.bf16.mxu0 0
    %1913 = vmatpush1.bf16.msra.mxu0 0
    %1914 = vmatprep.subr.bf16.mxu0 0
    %1915 = vmatpush1.bf16.msra.mxu0 0
    %1916 = vmatprep.subr.bf16.mxu0 0
    %1917 = vmatpush1.bf16.msra.mxu0 0
    %1918 = vmatprep.subr.bf16.mxu0 0
    %1919 = vmatpush1.bf16.msra.mxu0 0
    %1920 = vmatprep.subr.bf16.mxu0 0
    %1921 = vmatpush1.bf16.msra.mxu0 0
    %1922 = vmatprep.subr.bf16.mxu0 0
    %1923 = vmatpush1.bf16.msra.mxu0 0
    %1924 = vmatprep.subr.bf16.mxu0 0
    %1925 = vmatpush1.bf16.msra.mxu0 0
    %1926 = vmatprep.mubr.bf16.mxu0 0
    %1927 = vmatmul.mubr.bf16.gmra.mrb[0].mxu0 %v1689
    %v1928 = vpop.f32.mrb[0].mxu0
    %v1929 = vadd.f32 %v1726, %v1928
    %v1930 = vpop.f32.mrb[0].mxu0
    %v1931 = vadd.f32 %v1727, %v1930
    %v1932 = vpop.f32.mrb[0].mxu0
    %v1933 = vadd.f32 %v1730, %v1932
    %v1934 = vpop.f32.mrb[0].mxu0
    %v1935 = vadd.f32 %v1731, %v1934
    %1936 = vdwg.mxu0
    %1937 = vmatprep.subr.bf16.mxu0 %v1833
    %1938 = vmatpush1.bf16.msra.mxu0 %v1832
    %1939 = vmatprep.subr.bf16.mxu0 %v1837
    %1940 = vmatpush1.bf16.msra.mxu0 %v1836
    %1941 = vmatprep.subr.bf16.mxu0 %v1841
    %1942 = vmatpush1.bf16.msra.mxu0 %v1840
    %1943 = vmatprep.subr.bf16.mxu0 %v1845
    %1944 = vmatpush1.bf16.msra.mxu0 %v1844
    %1945 = vmatprep.subr.bf16.mxu0 %v1849
    %1946 = vmatpush1.bf16.msra.mxu0 %v1848
    %1947 = vmatprep.subr.bf16.mxu0 %v1853
    %1948 = vmatpush1.bf16.msra.mxu0 %v1852
    %1949 = vmatprep.subr.bf16.mxu0 %v1857
    %1950 = vmatpush1.bf16.msra.mxu0 %v1856
    %1951 = vmatprep.subr.bf16.mxu0 %v1861
    %1952 = vmatpush1.bf16.msra.mxu0 %v1860
    %1953 = vmatprep.subr.bf16.mxu0 0
    %1954 = vmatpush1.bf16.msra.mxu0 0
    %1955 = vmatprep.subr.bf16.mxu0 0
    %1956 = vmatpush1.bf16.msra.mxu0 0
    %1957 = vmatprep.subr.bf16.mxu0 0
    %1958 = vmatpush1.bf16.msra.mxu0 0
    %1959 = vmatprep.subr.bf16.mxu0 0
    %1960 = vmatpush1.bf16.msra.mxu0 0
    %1961 = vmatprep.subr.bf16.mxu0 0
    %1962 = vmatpush1.bf16.msra.mxu0 0
    %1963 = vmatprep.subr.bf16.mxu0 0
    %1964 = vmatpush1.bf16.msra.mxu0 0
    %1965 = vmatprep.subr.bf16.mxu0 0
    %1966 = vmatpush1.bf16.msra.mxu0 0
    %1967 = vmatprep.subr.bf16.mxu0 0
    %1968 = vmatpush1.bf16.msra.mxu0 0
    %1969 = vmatprep.mubr.bf16.mxu0 0
    %1970 = vmatmul.mubr.bf16.gmra.mrb[0].mxu0 %v1689
    %v1971 = vpop.f32.mrb[0].mxu0
    %v1972 = vadd.f32 %v1728, %v1971
    %v1973 = vpop.f32.mrb[0].mxu0
    %v1974 = vadd.f32 %v1729, %v1973
    %v1975 = vpop.f32.mrb[0].mxu0
    %v1976 = vadd.f32 %v1732, %v1975
    %v1977 = vpop.f32.mrb[0].mxu0
    %v1978 = vadd.f32 %v1733, %v1977
    %1979 = vdwg.mxu0
    %v1980 = vmul.f32 %v1929, 0.5
    %v1981 = vmul.f32 %v1933, 0.5
    %v1982 = vtanh.pop %v1980
    %v1983 = vtanh.pop %v1981
    %v1984 = vmul.f32 %v1982, 0.5
    %v1985 = vmul.f32 %v1983, 0.5
    %v1986 = vadd.f32 %v1984, 0.5
    %v1987 = vadd.f32 %v1985, 0.5
    %v1988 = vmul.f32 %v1931, 0.5
    %v1989 = vmul.f32 %v1935, 0.5
    %v1990 = vtanh.pop %v1988
    %v1991 = vtanh.pop %v1989
    %v1992 = vmul.f32 %v1990, 0.5
    %v1993 = vmul.f32 %v1991, 0.5
    %v1994 = vadd.f32 %v1992, 0.5
    %v1995 = vadd.f32 %v1993, 0.5
    %v1996 = vtanh.pop %v1972
    %v1997 = vtanh.pop %v1976
    %v1998 = vmul.f32 %v1974, 0.5
    %v1999 = vmul.f32 %v1978, 0.5
    %v2000 = vtanh.pop %v1998
    %v2001 = vtanh.pop %v1999
    %v2002 = vmul.f32 %v2000, 0.5
    %v2003 = vmul.f32 %v2001, 0.5
    %v2004 = vadd.f32 %v2002, 0.5
    %v2005 = vadd.f32 %v2003, 0.5
    %v2006 = vld [vmem:[#allocation5] sm:$0xff]
    %v2007 = vld [vmem:[#allocation5 + $0x8] sm:$0xff]
    %v2008 = vmul.f32 %v1994, %v2006
    %v2009 = vmul.f32 %v1995, %v2007
    %v2010 = vmul.f32 %v1986, %v1996
    %v2011 = vmul.f32 %v1987, %v1997
    %v2012 = vadd.f32 %v2008, %v2010
    %v2013 = vadd.f32 %v2009, %v2011
    %v2014 = vtanh.pop %v2012
    %v2015 = vtanh.pop %v2013
    %v2016 = vmul.f32 %v2004, %v2014
    %v2017 = vmul.f32 %v2005, %v2015
    %v2018 = vpack.c.bf16 %v2017, %v2016
    %2019 = vst [vmem:[#allocation5] sm:$0xff] %v2012
    %2020 = vst [vmem:[#allocation5 + $0x8] sm:$0xff] %v2013
    %2021 = vst [vmem:[#allocation4] sm:$0xff] %v2018
    %2022 = vst [vmem:[#allocation2 + $0x18] sm:$0xff] %v2018
    %v2023 = vld [vmem:[#allocation4] sm:$0xff]
    %v2024 = vld [vmem:[#allocation11] sm:$0xff]
    %v2025 = vld [vmem:[#allocation11 + $0x8] sm:$0xff]
    %v2026 = vld [vmem:[#allocation11 + $0x10] sm:$0xff]
    %v2027 = vld [vmem:[#allocation11 + $0x18] sm:$0xff]
    %v2028 = vld [vmem:[#allocation11 + $0x20] sm:$0xff]
    %v2029 = vld [vmem:[#allocation11 + $0x28] sm:$0xff]
    %v2030 = vld [vmem:[#allocation11 + $0x30] sm:$0xff]
    %v2031 = vld [vmem:[#allocation11 + $0x38] sm:$0xff]
    %v2032 = vld [vmem:[#allocation11 + $0x40] sm:$0xff]
    %v2033 = vld [vmem:[#allocation11 + $0x48] sm:$0xff]
    %v2034 = vld [vmem:[#allocation11 + $0x50] sm:$0xff]
    %v2035 = vld [vmem:[#allocation11 + $0x58] sm:$0xff]
    %v2036 = vld [vmem:[#allocation11 + $0x60] sm:$0xff]
    %v2037 = vld [vmem:[#allocation11 + $0x68] sm:$0xff]
    %v2038 = vld [vmem:[#allocation11 + $0x70] sm:$0xff]
    %v2039 = vld [vmem:[#allocation11 + $0x78] sm:$0xff]
    %v2040 = vld [vmem:[#allocation11 + $0x80] sm:$0xff]
    %v2041 = vld [vmem:[#allocation11 + $0x88] sm:$0xff]
    %v2042 = vld [vmem:[#allocation11 + $0x90] sm:$0xff]
    %v2043 = vld [vmem:[#allocation11 + $0x98] sm:$0xff]
    %v2044 = vld [vmem:[#allocation11 + $0xa0] sm:$0xff]
    %v2045 = vld [vmem:[#allocation11 + $0xa8] sm:$0xff]
    %v2046 = vld [vmem:[#allocation11 + $0xb0] sm:$0xff]
    %v2047 = vld [vmem:[#allocation11 + $0xb8] sm:$0xff]
    %v2048 = vld [vmem:[#allocation11 + $0xc0] sm:$0xff]
    %v2049 = vld [vmem:[#allocation11 + $0xc8] sm:$0xff]
    %v2050 = vld [vmem:[#allocation11 + $0xd0] sm:$0xff]
    %v2051 = vld [vmem:[#allocation11 + $0xd8] sm:$0xff]
    %v2052 = vld [vmem:[#allocation11 + $0xe0] sm:$0xff]
    %v2053 = vld [vmem:[#allocation11 + $0xe8] sm:$0xff]
    %v2054 = vld [vmem:[#allocation11 + $0xf0] sm:$0xff]
    %v2055 = vld [vmem:[#allocation11 + $0xf8] sm:$0xff]
    %v2056 = vld [vmem:[#allocation3 + $0x80] sm:$0xff]
    %v2057 = vld [vmem:[#allocation3 + $0x88] sm:$0xff]
    %v2058 = vld [vmem:[#allocation3 + $0x90] sm:$0xff]
    %v2059 = vld [vmem:[#allocation3 + $0x98] sm:$0xff]
    %v2060 = vunpack.c.l.bf16 %v2056
    %v2061 = vunpack.c.l.bf16 %v2057
    %v2062 = vunpack.c.l.bf16 %v2058
    %v2063 = vunpack.c.l.bf16 %v2059
    %v2064 = vunpack.c.h.bf16 %v2056
    %v2065 = vunpack.c.h.bf16 %v2057
    %v2066 = vunpack.c.h.bf16 %v2058
    %v2067 = vunpack.c.h.bf16 %v2059
    %v2100 = vunpack.c.l.b16 %v2024
    %v2101 = vunpack.c.h.b16 %v2024
    %v2102 = vunpack.c.l.b16 %v2025
    %v2103 = vunpack.c.h.b16 %v2025
    %v2104 = vunpack.c.l.b16 %v2026
    %v2105 = vunpack.c.h.b16 %v2026
    %v2106 = vunpack.c.l.b16 %v2027
    %v2107 = vunpack.c.h.b16 %v2027
    %v2108 = vunpack.c.l.b16 %v2028
    %v2109 = vunpack.c.h.b16 %v2028
    %v2110 = vunpack.c.l.b16 %v2029
    %v2111 = vunpack.c.h.b16 %v2029
    %v2112 = vunpack.c.l.b16 %v2030
    %v2113 = vunpack.c.h.b16 %v2030
    %v2114 = vunpack.c.l.b16 %v2031
    %v2115 = vunpack.c.h.b16 %v2031
    %v2116 = vunpack.c.l.b16 %v2032
    %v2117 = vunpack.c.h.b16 %v2032
    %v2118 = vunpack.c.l.b16 %v2033
    %v2119 = vunpack.c.h.b16 %v2033
    %v2120 = vunpack.c.l.b16 %v2034
    %v2121 = vunpack.c.h.b16 %v2034
    %v2122 = vunpack.c.l.b16 %v2035
    %v2123 = vunpack.c.h.b16 %v2035
    %v2124 = vunpack.c.l.b16 %v2036
    %v2125 = vunpack.c.h.b16 %v2036
    %v2126 = vunpack.c.l.b16 %v2037
    %v2127 = vunpack.c.h.b16 %v2037
    %v2128 = vunpack.c.l.b16 %v2038
    %v2129 = vunpack.c.h.b16 %v2038
    %v2130 = vunpack.c.l.b16 %v2039
    %v2131 = vunpack.c.h.b16 %v2039
    %v2132 = vunpack.c.l.b16 %v2040
    %v2133 = vunpack.c.h.b16 %v2040
    %v2134 = vunpack.c.l.b16 %v2041
    %v2135 = vunpack.c.h.b16 %v2041
    %v2136 = vunpack.c.l.b16 %v2042
    %v2137 = vunpack.c.h.b16 %v2042
    %v2138 = vunpack.c.l.b16 %v2043
    %v2139 = vunpack.c.h.b16 %v2043
    %v2140 = vunpack.c.l.b16 %v2044
    %v2141 = vunpack.c.h.b16 %v2044
    %v2142 = vunpack.c.l.b16 %v2045
    %v2143 = vunpack.c.h.b16 %v2045
    %v2144 = vunpack.c.l.b16 %v2046
    %v2145 = vunpack.c.h.b16 %v2046
    %v2146 = vunpack.c.l.b16 %v2047
    %v2147 = vunpack.c.h.b16 %v2047
    %v2148 = vunpack.c.l.b16 %v2048
    %v2149 = vunpack.c.h.b16 %v2048
    %v2150 = vunpack.c.l.b16 %v2049
    %v2151 = vunpack.c.h.b16 %v2049
    %v2152 = vunpack.c.l.b16 %v2050
    %v2153 = vunpack.c.h.b16 %v2050
    %v2154 = vunpack.c.l.b16 %v2051
    %v2155 = vunpack.c.h.b16 %v2051
    %v2156 = vunpack.c.l.b16 %v2052
    %v2157 = vunpack.c.h.b16 %v2052
    %v2158 = vunpack.c.l.b16 %v2053
    %v2159 = vunpack.c.h.b16 %v2053
    %v2160 = vunpack.c.l.b16 %v2054
    %v2161 = vunpack.c.h.b16 %v2054
    %v2162 = vunpack.c.l.b16 %v2055
    %v2163 = vunpack.c.h.b16 %v2055
    %v2164 = vpack.c.b16 %v2104, %v2100
    %v2165 = vpack.c.b16 %v2105, %v2101
    %v2166 = vpack.c.b16 %v2106, %v2102
    %v2167 = vpack.c.b16 %v2107, %v2103
    %v2168 = vpack.c.b16 %v2112, %v2108
    %v2169 = vpack.c.b16 %v2113, %v2109
    %v2170 = vpack.c.b16 %v2114, %v2110
    %v2171 = vpack.c.b16 %v2115, %v2111
    %v2172 = vpack.c.b16 %v2120, %v2116
    %v2173 = vpack.c.b16 %v2121, %v2117
    %v2174 = vpack.c.b16 %v2122, %v2118
    %v2175 = vpack.c.b16 %v2123, %v2119
    %v2176 = vpack.c.b16 %v2128, %v2124
    %v2177 = vpack.c.b16 %v2129, %v2125
    %v2178 = vpack.c.b16 %v2130, %v2126
    %v2179 = vpack.c.b16 %v2131, %v2127
    %v2180 = vpack.c.b16 %v2136, %v2132
    %v2181 = vpack.c.b16 %v2137, %v2133
    %v2182 = vpack.c.b16 %v2138, %v2134
    %v2183 = vpack.c.b16 %v2139, %v2135
    %v2184 = vpack.c.b16 %v2144, %v2140
    %v2185 = vpack.c.b16 %v2145, %v2141
    %v2186 = vpack.c.b16 %v2146, %v2142
    %v2187 = vpack.c.b16 %v2147, %v2143
    %v2188 = vpack.c.b16 %v2152, %v2148
    %v2189 = vpack.c.b16 %v2153, %v2149
    %v2190 = vpack.c.b16 %v2154, %v2150
    %v2191 = vpack.c.b16 %v2155, %v2151
    %v2192 = vpack.c.b16 %v2160, %v2156
    %v2193 = vpack.c.b16 %v2161, %v2157
    %v2194 = vpack.c.b16 %v2162, %v2158
    %v2195 = vpack.c.b16 %v2163, %v2159
    %2228 = vmatprep.subr.bf16.mxu0 %v2165
    %2229 = vmatpush1.bf16.msra.mxu0 %v2164
    %2230 = vmatprep.subr.bf16.mxu0 %v2169
    %2231 = vmatpush1.bf16.msra.mxu0 %v2168
    %2232 = vmatprep.subr.bf16.mxu0 %v2173
    %2233 = vmatpush1.bf16.msra.mxu0 %v2172
    %2234 = vmatprep.subr.bf16.mxu0 %v2177
    %2235 = vmatpush1.bf16.msra.mxu0 %v2176
    %2236 = vmatprep.subr.bf16.mxu0 %v2181
    %2237 = vmatpush1.bf16.msra.mxu0 %v2180
    %2238 = vmatprep.subr.bf16.mxu0 %v2185
    %2239 = vmatpush1.bf16.msra.mxu0 %v2184
    %2240 = vmatprep.subr.bf16.mxu0 %v2189
    %2241 = vmatpush1.bf16.msra.mxu0 %v2188
    %2242 = vmatprep.subr.bf16.mxu0 %v2193
    %2243 = vmatpush1.bf16.msra.mxu0 %v2192
    %2244 = vmatprep.subr.bf16.mxu0 0
    %2245 = vmatpush1.bf16.msra.mxu0 0
    %2246 = vmatprep.subr.bf16.mxu0 0
    %2247 = vmatpush1.bf16.msra.mxu0 0
    %2248 = vmatprep.subr.bf16.mxu0 0
    %2249 = vmatpush1.bf16.msra.mxu0 0
    %2250 = vmatprep.subr.bf16.mxu0 0
    %2251 = vmatpush1.bf16.msra.mxu0 0
    %2252 = vmatprep.subr.bf16.mxu0 0
    %2253 = vmatpush1.bf16.msra.mxu0 0
    %2254 = vmatprep.subr.bf16.mxu0 0
    %2255 = vmatpush1.bf16.msra.mxu0 0
    %2256 = vmatprep.subr.bf16.mxu0 0
    %2257 = vmatpush1.bf16.msra.mxu0 0
    %2258 = vmatprep.subr.bf16.mxu0 0
    %2259 = vmatpush1.bf16.msra.mxu0 0
    %2260 = vmatprep.mubr.bf16.mxu0 0
    %2261 = vmatmul.mubr.bf16.gmra.mrb[0].mxu0 %v2023
    %v2262 = vpop.f32.mrb[0].mxu0
    %v2263 = vadd.f32 %v2060, %v2262
    %v2264 = vpop.f32.mrb[0].mxu0
    %v2265 = vadd.f32 %v2061, %v2264
    %v2266 = vpop.f32.mrb[0].mxu0
    %v2267 = vadd.f32 %v2064, %v2266
    %v2268 = vpop.f32.mrb[0].mxu0
    %v2269 = vadd.f32 %v2065, %v2268
    %2270 = vdwg.mxu0
    %2271 = vmatprep.subr.bf16.mxu0 %v2167
    %2272 = vmatpush1.bf16.msra.mxu0 %v2166
    %2273 = vmatprep.subr.bf16.mxu0 %v2171
    %2274 = vmatpush1.bf16.msra.mxu0 %v2170
    %2275 = vmatprep.subr.bf16.mxu0 %v2175
    %2276 = vmatpush1.bf16.msra.mxu0 %v2174
    %2277 = vmatprep.subr.bf16.mxu0 %v2179
    %2278 = vmatpush1.bf16.msra.mxu0 %v2178
    %2279 = vmatprep.subr.bf16.mxu0 %v2183
    %2280 = vmatpush1.bf16.msra.mxu0 %v2182
    %2281 = vmatprep.subr.bf16.mxu0 %v2187
    %2282 = vmatpush1.bf16.msra.mxu0 %v2186
    %2283 = vmatprep.subr.bf16.mxu0 %v2191
    %2284 = vmatpush1.bf16.msra.mxu0 %v2190
    %2285 = vmatprep.subr.bf16.mxu0 %v2195
    %2286 = vmatpush1.bf16.msra.mxu0 %v2194
    %2287 = vmatprep.subr.bf16.mxu0 0
    %2288 = vmatpush1.bf16.msra.mxu0 0
    %2289 = vmatprep.subr.bf16.mxu0 0
    %2290 = vmatpush1.bf16.msra.mxu0 0
    %2291 = vmatprep.subr.bf16.mxu0 0
    %2292 = vmatpush1.bf16.msra.mxu0 0
    %2293 = vmatprep.subr.bf16.mxu0 0
    %2294 = vmatpush1.bf16.msra.mxu0 0
    %2295 = vmatprep.subr.bf16.mxu0 0
    %2296 = vmatpush1.bf16.msra.mxu0 0
    %2297 = vmatprep.subr.bf16.mxu0 0
    %2298 = vmatpush1.bf16.msra.mxu0 0
    %2299 = vmatprep.subr.bf16.mxu0 0
    %2300 = vmatpush1.bf16.msra.mxu0 0
    %2301 = vmatprep.subr.bf16.mxu0 0
    %2302 = vmatpush1.bf16.msra.mxu0 0
    %2303 = vmatprep.mubr.bf16.mxu0 0
    %2304 = vmatmul.mubr.bf16.gmra.mrb[0].mxu0 %v2023
    %v2305 = vpop.f32.mrb[0].mxu0
    %v2306 = vadd.f32 %v2062, %v2305
    %v2307 = vpop.f32.mrb[0].mxu0
    %v2308 = vadd.f32 %v2063, %v2307
    %v2309 = vpop.f32.mrb[0].mxu0
    %v2310 = vadd.f32 %v2066, %v2309
    %v2311 = vpop.f32.mrb[0].mxu0
    %v2312 = vadd.f32 %v2067, %v2311
    %2313 = vdwg.mxu0
    %v2314 = vmul.f32 %v2263, 0.5
    %v2315 = vmul.f32 %v2267, 0.5
    %v2316 = vtanh.pop %v2314
    %v2317 = vtanh.pop %v2315
    %v2318 = vmul.f32 %v2316, 0.5
    %v2319 = vmul.f32 %v2317, 0.5
    %v2320 = vadd.f32 %v2318, 0.5
    %v2321 = vadd.f32 %v2319, 0.5
    %v2322 = vmul.f32 %v2265, 0.5
    %v2323 = vmul.f32 %v2269, 0.5
    %v2324 = vtanh.pop %v2322
    %v2325 = vtanh.pop %v2323
    %v2326 = vmul.f32 %v2324, 0.5
    %v2327 = vmul.f32 %v2325, 0.5
    %v2328 = vadd.f32 %v2326, 0.5
    %v2329 = vadd.f32 %v2327, 0.5
    %v2330 = vtanh.pop %v2306
    %v2331 = vtanh.pop %v2310
    %v2332 = vmul.f32 %v2308, 0.5
    %v2333 = vmul.f32 %v2312, 0.5
    %v2334 = vtanh.pop %v2332
    %v2335 = vtanh.pop %v2333
    %v2336 = vmul.f32 %v2334, 0.5
    %v2337 = vmul.f32 %v2335, 0.5
    %v2338 = vadd.f32 %v2336, 0.5
    %v2339 = vadd.f32 %v2337, 0.5
    %v2340 = vld [vmem:[#allocation5] sm:$0xff]
    %v2341 = vld [vmem:[#allocation5 + $0x8] sm:$0xff]
    %v2342 = vmul.f32 %v2328, %v2340
    %v2343 = vmul.f32 %v2329, %v2341
    %v2344 = vmul.f32 %v2320, %v2330
    %v2345 = vmul.f32 %v2321, %v2331
    %v2346 = vadd.f32 %v2342, %v2344
    %v2347 = vadd.f32 %v2343, %v2345
    %v2348 = vtanh.pop %v2346
    %v2349 = vtanh.pop %v2347
    %v2350 = vmul.f32 %v2338, %v2348
    %v2351 = vmul.f32 %v2339, %v2349
    %v2352 = vpack.c.bf16 %v2351, %v2350
    %2353 = vst [vmem:[#allocation5] sm:$0xff] %v2346
    %2354 = vst [vmem:[#allocation5 + $0x8] sm:$0xff] %v2347
    %2355 = vst [vmem:[#allocation4] sm:$0xff] %v2352
    %2356 = vst [vmem:[#allocation2 + $0x20] sm:$0xff] %v2352
    %v2357 = vld [vmem:[#allocation4] sm:$0xff]
    %v2358 = vld [vmem:[#allocation11] sm:$0xff]
    %v2359 = vld [vmem:[#allocation11 + $0x8] sm:$0xff]
    %v2360 = vld [vmem:[#allocation11 + $0x10] sm:$0xff]
    %v2361 = vld [vmem:[#allocation11 + $0x18] sm:$0xff]
    %v2362 = vld [vmem:[#allocation11 + $0x20] sm:$0xff]
    %v2363 = vld [vmem:[#allocation11 + $0x28] sm:$0xff]
    %v2364 = vld [vmem:[#allocation11 + $0x30] sm:$0xff]
    %v2365 = vld [vmem:[#allocation11 + $0x38] sm:$0xff]
    %v2366 = vld [vmem:[#allocation11 + $0x40] sm:$0xff]
    %v2367 = vld [vmem:[#allocation11 + $0x48] sm:$0xff]
    %v2368 = vld [vmem:[#allocation11 + $0x50] sm:$0xff]
    %v2369 = vld [vmem:[#allocation11 + $0x58] sm:$0xff]
    %v2370 = vld [vmem:[#allocation11 + $0x60] sm:$0xff]
    %v2371 = vld [vmem:[#allocation11 + $0x68] sm:$0xff]
    %v2372 = vld [vmem:[#allocation11 + $0x70] sm:$0xff]
    %v2373 = vld [vmem:[#allocation11 + $0x78] sm:$0xff]
    %v2374 = vld [vmem:[#allocation11 + $0x80] sm:$0xff]
    %v2375 = vld [vmem:[#allocation11 + $0x88] sm:$0xff]
    %v2376 = vld [vmem:[#allocation11 + $0x90] sm:$0xff]
    %v2377 = vld [vmem:[#allocation11 + $0x98] sm:$0xff]
    %v2378 = vld [vmem:[#allocation11 + $0xa0] sm:$0xff]
    %v2379 = vld [vmem:[#allocation11 + $0xa8] sm:$0xff]
    %v2380 = vld [vmem:[#allocation11 + $0xb0] sm:$0xff]
    %v2381 = vld [vmem:[#allocation11 + $0xb8] sm:$0xff]
    %v2382 = vld [vmem:[#allocation11 + $0xc0] sm:$0xff]
    %v2383 = vld [vmem:[#allocation11 + $0xc8] sm:$0xff]
    %v2384 = vld [vmem:[#allocation11 + $0xd0] sm:$0xff]
    %v2385 = vld [vmem:[#allocation11 + $0xd8] sm:$0xff]
    %v2386 = vld [vmem:[#allocation11 + $0xe0] sm:$0xff]
    %v2387 = vld [vmem:[#allocation11 + $0xe8] sm:$0xff]
    %v2388 = vld [vmem:[#allocation11 + $0xf0] sm:$0xff]
    %v2389 = vld [vmem:[#allocation11 + $0xf8] sm:$0xff]
    %v2390 = vld [vmem:[#allocation3 + $0xa0] sm:$0xff]
    %v2391 = vld [vmem:[#allocation3 + $0xa8] sm:$0xff]
    %v2392 = vld [vmem:[#allocation3 + $0xb0] sm:$0xff]
    %v2393 = vld [vmem:[#allocation3 + $0xb8] sm:$0xff]
    %v2394 = vunpack.c.l.bf16 %v2390
    %v2395 = vunpack.c.l.bf16 %v2391
    %v2396 = vunpack.c.l.bf16 %v2392
    %v2397 = vunpack.c.l.bf16 %v2393
    %v2398 = vunpack.c.h.bf16 %v2390
    %v2399 = vunpack.c.h.bf16 %v2391
    %v2400 = vunpack.c.h.bf16 %v2392
    %v2401 = vunpack.c.h.bf16 %v2393
    %v2434 = vunpack.c.l.b16 %v2358
    %v2435 = vunpack.c.h.b16 %v2358
    %v2436 = vunpack.c.l.b16 %v2359
    %v2437 = vunpack.c.h.b16 %v2359
    %v2438 = vunpack.c.l.b16 %v2360
    %v2439 = vunpack.c.h.b16 %v2360
    %v2440 = vunpack.c.l.b16 %v2361
    %v2441 = vunpack.c.h.b16 %v2361
    %v2442 = vunpack.c.l.b16 %v2362
    %v2443 = vunpack.c.h.b16 %v2362
    %v2444 = vunpack.c.l.b16 %v2363
    %v2445 = vunpack.c.h.b16 %v2363
    %v2446 = vunpack.c.l.b16 %v2364
    %v2447 = vunpack.c.h.b16 %v2364
    %v2448 = vunpack.c.l.b16 %v2365
    %v2449 = vunpack.c.h.b16 %v2365
    %v2450 = vunpack.c.l.b16 %v2366
    %v2451 = vunpack.c.h.b16 %v2366
    %v2452 = vunpack.c.l.b16 %v2367
    %v2453 = vunpack.c.h.b16 %v2367
    %v2454 = vunpack.c.l.b16 %v2368
    %v2455 = vunpack.c.h.b16 %v2368
    %v2456 = vunpack.c.l.b16 %v2369
    %v2457 = vunpack.c.h.b16 %v2369
    %v2458 = vunpack.c.l.b16 %v2370
    %v2459 = vunpack.c.h.b16 %v2370
    %v2460 = vunpack.c.l.b16 %v2371
    %v2461 = vunpack.c.h.b16 %v2371
    %v2462 = vunpack.c.l.b16 %v2372
    %v2463 = vunpack.c.h.b16 %v2372
    %v2464 = vunpack.c.l.b16 %v2373
    %v2465 = vunpack.c.h.b16 %v2373
    %v2466 = vunpack.c.l.b16 %v2374
    %v2467 = vunpack.c.h.b16 %v2374
    %v2468 = vunpack.c.l.b16 %v2375
    %v2469 = vunpack.c.h.b16 %v2375
    %v2470 = vunpack.c.l.b16 %v2376
    %v2471 = vunpack.c.h.b16 %v2376
    %v2472 = vunpack.c.l.b16 %v2377
    %v2473 = vunpack.c.h.b16 %v2377
    %v2474 = vunpack.c.l.b16 %v2378
    %v2475 = vunpack.c.h.b16 %v2378
    %v2476 = vunpack.c.l.b16 %v2379
    %v2477 = vunpack.c.h.b16 %v2379
    %v2478 = vunpack.c.l.b16 %v2380
    %v2479 = vunpack.c.h.b16 %v2380
    %v2480 = vunpack.c.l.b16 %v2381
    %v2481 = vunpack.c.h.b16 %v2381
    %v2482 = vunpack.c.l.b16 %v2382
    %v2483 = vunpack.c.h.b16 %v2382
    %v2484 = vunpack.c.l.b16 %v2383
    %v2485 = vunpack.c.h.b16 %v2383
    %v2486 = vunpack.c.l.b16 %v2384
    %v2487 = vunpack.c.h.b16 %v2384
    %v2488 = vunpack.c.l.b16 %v2385
    %v2489 = vunpack.c.h.b16 %v2385
    %v2490 = vunpack.c.l.b16 %v2386
    %v2491 = vunpack.c.h.b16 %v2386
    %v2492 = vunpack.c.l.b16 %v2387
    %v2493 = vunpack.c.h.b16 %v2387
    %v2494 = vunpack.c.l.b16 %v2388
    %v2495 = vunpack.c.h.b16 %v2388
    %v2496 = vunpack.c.l.b16 %v2389
    %v2497 = vunpack.c.h.b16 %v2389
    %v2498 = vpack.c.b16 %v2438, %v2434
    %v2499 = vpack.c.b16 %v2439, %v2435
    %v2500 = vpack.c.b16 %v2440, %v2436
    %v2501 = vpack.c.b16 %v2441, %v2437
    %v2502 = vpack.c.b16 %v2446, %v2442
    %v2503 = vpack.c.b16 %v2447, %v2443
    %v2504 = vpack.c.b16 %v2448, %v2444
    %v2505 = vpack.c.b16 %v2449, %v2445
    %v2506 = vpack.c.b16 %v2454, %v2450
    %v2507 = vpack.c.b16 %v2455, %v2451
    %v2508 = vpack.c.b16 %v2456, %v2452
    %v2509 = vpack.c.b16 %v2457, %v2453
    %v2510 = vpack.c.b16 %v2462, %v2458
    %v2511 = vpack.c.b16 %v2463, %v2459
    %v2512 = vpack.c.b16 %v2464, %v2460
    %v2513 = vpack.c.b16 %v2465, %v2461
    %v2514 = vpack.c.b16 %v2470, %v2466
    %v2515 = vpack.c.b16 %v2471, %v2467
    %v2516 = vpack.c.b16 %v2472, %v2468
    %v2517 = vpack.c.b16 %v2473, %v2469
    %v2518 = vpack.c.b16 %v2478, %v2474
    %v2519 = vpack.c.b16 %v2479, %v2475
    %v2520 = vpack.c.b16 %v2480, %v2476
    %v2521 = vpack.c.b16 %v2481, %v2477
    %v2522 = vpack.c.b16 %v2486, %v2482
    %v2523 = vpack.c.b16 %v2487, %v2483
    %v2524 = vpack.c.b16 %v2488, %v2484
    %v2525 = vpack.c.b16 %v2489, %v2485
    %v2526 = vpack.c.b16 %v2494, %v2490
    %v2527 = vpack.c.b16 %v2495, %v2491
    %v2528 = vpack.c.b16 %v2496, %v2492
    %v2529 = vpack.c.b16 %v2497, %v2493
    %2562 = vmatprep.subr.bf16.mxu0 %v2499
    %2563 = vmatpush1.bf16.msra.mxu0 %v2498
    %2564 = vmatprep.subr.bf16.mxu0 %v2503
    %2565 = vmatpush1.bf16.msra.mxu0 %v2502
    %2566 = vmatprep.subr.bf16.mxu0 %v2507
    %2567 = vmatpush1.bf16.msra.mxu0 %v2506
    %2568 = vmatprep.subr.bf16.mxu0 %v2511
    %2569 = vmatpush1.bf16.msra.mxu0 %v2510
    %2570 = vmatprep.subr.bf16.mxu0 %v2515
    %2571 = vmatpush1.bf16.msra.mxu0 %v2514
    %2572 = vmatprep.subr.bf16.mxu0 %v2519
    %2573 = vmatpush1.bf16.msra.mxu0 %v2518
    %2574 = vmatprep.subr.bf16.mxu0 %v2523
    %2575 = vmatpush1.bf16.msra.mxu0 %v2522
    %2576 = vmatprep.subr.bf16.mxu0 %v2527
    %2577 = vmatpush1.bf16.msra.mxu0 %v2526
    %2578 = vmatprep.subr.bf16.mxu0 0
    %2579 = vmatpush1.bf16.msra.mxu0 0
    %2580 = vmatprep.subr.bf16.mxu0 0
    %2581 = vmatpush1.bf16.msra.mxu0 0
    %2582 = vmatprep.subr.bf16.mxu0 0
    %2583 = vmatpush1.bf16.msra.mxu0 0
    %2584 = vmatprep.subr.bf16.mxu0 0
    %2585 = vmatpush1.bf16.msra.mxu0 0
    %2586 = vmatprep.subr.bf16.mxu0 0
    %2587 = vmatpush1.bf16.msra.mxu0 0
    %2588 = vmatprep.subr.bf16.mxu0 0
    %2589 = vmatpush1.bf16.msra.mxu0 0
    %2590 = vmatprep.subr.bf16.mxu0 0
    %2591 = vmatpush1.bf16.msra.mxu0 0
    %2592 = vmatprep.subr.bf16.mxu0 0
    %2593 = vmatpush1.bf16.msra.mxu0 0
    %2594 = vmatprep.mubr.bf16.mxu0 0
    %2595 = vmatmul.mubr.bf16.gmra.mrb[0].mxu0 %v2357
    %v2596 = vpop.f32.mrb[0].mxu0
    %v2597 = vadd.f32 %v2394, %v2596
    %v2598 = vpop.f32.mrb[0].mxu0
    %v2599 = vadd.f32 %v2395, %v2598
    %v2600 = vpop.f32.mrb[0].mxu0
    %v2601 = vadd.f32 %v2398, %v2600
    %v2602 = vpop.f32.mrb[0].mxu0
    %v2603 = vadd.f32 %v2399, %v2602
    %2604 = vdwg.mxu0
    %2605 = vmatprep.subr.bf16.mxu0 %v2501
    %2606 = vmatpush1.bf16.msra.mxu0 %v2500
    %2607 = vmatprep.subr.bf16.mxu0 %v2505
    %2608 = vmatpush1.bf16.msra.mxu0 %v2504
    %2609 = vmatprep.subr.bf16.mxu0 %v2509
    %2610 = vmatpush1.bf16.msra.mxu0 %v2508
    %2611 = vmatprep.subr.bf16.mxu0 %v2513
    %2612 = vmatpush1.bf16.msra.mxu0 %v2512
    %2613 = vmatprep.subr.bf16.mxu0 %v2517
    %2614 = vmatpush1.bf16.msra.mxu0 %v2516
    %2615 = vmatprep.subr.bf16.mxu0 %v2521
    %2616 = vmatpush1.bf16.msra.mxu0 %v2520
    %2617 = vmatprep.subr.bf16.mxu0 %v2525
    %2618 = vmatpush1.bf16.msra.mxu0 %v2524
    %2619 = vmatprep.subr.bf16.mxu0 %v2529
    %2620 = vmatpush1.bf16.msra.mxu0 %v2528
    %2621 = vmatprep.subr.bf16.mxu0 0
    %2622 = vmatpush1.bf16.msra.mxu0 0
    %2623 = vmatprep.subr.bf16.mxu0 0
    %2624 = vmatpush1.bf16.msra.mxu0 0
    %2625 = vmatprep.subr.bf16.mxu0 0
    %2626 = vmatpush1.bf16.msra.mxu0 0
    %2627 = vmatprep.subr.bf16.mxu0 0
    %2628 = vmatpush1.bf16.msra.mxu0 0
    %2629 = vmatprep.subr.bf16.mxu0 0
    %2630 = vmatpush1.bf16.msra.mxu0 0
    %2631 = vmatprep.subr.bf16.mxu0 0
    %2632 = vmatpush1.bf16.msra.mxu0 0
    %2633 = vmatprep.subr.bf16.mxu0 0
    %2634 = vmatpush1.bf16.msra.mxu0 0
    %2635 = vmatprep.subr.bf16.mxu0 0
    %2636 = vmatpush1.bf16.msra.mxu0 0
    %2637 = vmatprep.mubr.bf16.mxu0 0
    %2638 = vmatmul.mubr.bf16.gmra.mrb[0].mxu0 %v2357
    %v2639 = vpop.f32.mrb[0].mxu0
    %v2640 = vadd.f32 %v2396, %v2639
    %v2641 = vpop.f32.mrb[0].mxu0
    %v2642 = vadd.f32 %v2397, %v2641
    %v2643 = vpop.f32.mrb[0].mxu0
    %v2644 = vadd.f32 %v2400, %v2643
    %v2645 = vpop.f32.mrb[0].mxu0
    %v2646 = vadd.f32 %v2401, %v2645
    %2647 = vdwg.mxu0
    %v2648 = vmul.f32 %v2597, 0.5
    %v2649 = vmul.f32 %v2601, 0.5
    %v2650 = vtanh.pop %v2648
    %v2651 = vtanh.pop %v2649
    %v2652 = vmul.f32 %v2650, 0.5
    %v2653 = vmul.f32 %v2651, 0.5
    %v2654 = vadd.f32 %v2652, 0.5
    %v2655 = vadd.f32 %v2653, 0.5
    %v2656 = vmul.f32 %v2599, 0.5
    %v2657 = vmul.f32 %v2603, 0.5
    %v2658 = vtanh.pop %v2656
    %v2659 = vtanh.pop %v2657
    %v2660 = vmul.f32 %v2658, 0.5
    %v2661 = vmul.f32 %v2659, 0.5
    %v2662 = vadd.f32 %v2660, 0.5
    %v2663 = vadd.f32 %v2661, 0.5
    %v2664 = vtanh.pop %v2640
    %v2665 = vtanh.pop %v2644
    %v2666 = vmul.f32 %v2642, 0.5
    %v2667 = vmul.f32 %v2646, 0.5
    %v2668 = vtanh.pop %v2666
    %v2669 = vtanh.pop %v2667
    %v2670 = vmul.f32 %v2668, 0.5
    %v2671 = vmul.f32 %v2669, 0.5
    %v2672 = vadd.f32 %v2670, 0.5
    %v2673 = vadd.f32 %v2671, 0.5
    %v2674 = vld [vmem:[#allocation5] sm:$0xff]
    %v2675 = vld [vmem:[#allocation5 + $0x8] sm:$0xff]
    %v2676 = vmul.f32 %v2662, %v2674
    %v2677 = vmul.f32 %v2663, %v2675
    %v2678 = vmul.f32 %v2654, %v2664
    %v2679 = vmul.f32 %v2655, %v2665
    %v2680 = vadd.f32 %v2676, %v2678
    %v2681 = vadd.f32 %v2677, %v2679
    %v2682 = vtanh.pop %v2680
    %v2683 = vtanh.pop %v2681
    %v2684 = vmul.f32 %v2672, %v2682
    %v2685 = vmul.f32 %v2673, %v2683
    %v2686 = vpack.c.bf16 %v2685, %v2684
    %2687 = vst [vmem:[#allocation5] sm:$0xff] %v2680
    %2688 = vst [vmem:[#allocation5 + $0x8] sm:$0xff] %v2681
    %2689 = vst [vmem:[#allocation4] sm:$0xff] %v2686
    %2690 = vst [vmem:[#allocation2 + $0x28] sm:$0xff] %v2686
    %v2691 = vld [vmem:[#allocation4] sm:$0xff]
    %v2692 = vld [vmem:[#allocation11] sm:$0xff]
    %v2693 = vld [vmem:[#allocation11 + $0x8] sm:$0xff]
    %v2694 = vld [vmem:[#allocation11 + $0x10] sm:$0xff]
    %v2695 = vld [vmem:[#allocation11 + $0x18] sm:$0xff]
    %v2696 = vld [vmem:[#allocation11 + $0x20] sm:$0xff]
    %v2697 = vld [vmem:[#allocation11 + $0x28] sm:$0xff]
    %v2698 = vld [vmem:[#allocation11 + $0x30] sm:$0xff]
    %v2699 = vld [vmem:[#allocation11 + $0x38] sm:$0xff]
    %v2700 = vld [vmem:[#allocation11 + $0x40] sm:$0xff]
    %v2701 = vld [vmem:[#allocation11 + $0x48] sm:$0xff]
    %v2702 = vld [vmem:[#allocation11 + $0x50] sm:$0xff]
    %v2703 = vld [vmem:[#allocation11 + $0x58] sm:$0xff]
    %v2704 = vld [vmem:[#allocation11 + $0x60] sm:$0xff]
    %v2705 = vld [vmem:[#allocation11 + $0x68] sm:$0xff]
    %v2706 = vld [vmem:[#allocation11 + $0x70] sm:$0xff]
    %v2707 = vld [vmem:[#allocation11 + $0x78] sm:$0xff]
    %v2708 = vld [vmem:[#allocation11 + $0x80] sm:$0xff]
    %v2709 = vld [vmem:[#allocation11 + $0x88] sm:$0xff]
    %v2710 = vld [vmem:[#allocation11 + $0x90] sm:$0xff]
    %v2711 = vld [vmem:[#allocation11 + $0x98] sm:$0xff]
    %v2712 = vld [vmem:[#allocation11 + $0xa0] sm:$0xff]
    %v2713 = vld [vmem:[#allocation11 + $0xa8] sm:$0xff]
    %v2714 = vld [vmem:[#allocation11 + $0xb0] sm:$0xff]
    %v2715 = vld [vmem:[#allocation11 + $0xb8] sm:$0xff]
    %v2716 = vld [vmem:[#allocation11 + $0xc0] sm:$0xff]
    %v2717 = vld [vmem:[#allocation11 + $0xc8] sm:$0xff]
    %v2718 = vld [vmem:[#allocation11 + $0xd0] sm:$0xff]
    %v2719 = vld [vmem:[#allocation11 + $0xd8] sm:$0xff]
    %v2720 = vld [vmem:[#allocation11 + $0xe0] sm:$0xff]
    %v2721 = vld [vmem:[#allocation11 + $0xe8] sm:$0xff]
    %v2722 = vld [vmem:[#allocation11 + $0xf0] sm:$0xff]
    %v2723 = vld [vmem:[#allocation11 + $0xf8] sm:$0xff]
    %v2724 = vld [vmem:[#allocation3 + $0xc0] sm:$0xff]
    %v2725 = vld [vmem:[#allocation3 + $0xc8] sm:$0xff]
    %v2726 = vld [vmem:[#allocation3 + $0xd0] sm:$0xff]
    %v2727 = vld [vmem:[#allocation3 + $0xd8] sm:$0xff]
    %v2728 = vunpack.c.l.bf16 %v2724
    %v2729 = vunpack.c.l.bf16 %v2725
    %v2730 = vunpack.c.l.bf16 %v2726
    %v2731 = vunpack.c.l.bf16 %v2727
    %v2732 = vunpack.c.h.bf16 %v2724
    %v2733 = vunpack.c.h.bf16 %v2725
    %v2734 = vunpack.c.h.bf16 %v2726
    %v2735 = vunpack.c.h.bf16 %v2727
    %v2768 = vunpack.c.l.b16 %v2692
    %v2769 = vunpack.c.h.b16 %v2692
    %v2770 = vunpack.c.l.b16 %v2693
    %v2771 = vunpack.c.h.b16 %v2693
    %v2772 = vunpack.c.l.b16 %v2694
    %v2773 = vunpack.c.h.b16 %v2694
    %v2774 = vunpack.c.l.b16 %v2695
    %v2775 = vunpack.c.h.b16 %v2695
    %v2776 = vunpack.c.l.b16 %v2696
    %v2777 = vunpack.c.h.b16 %v2696
    %v2778 = vunpack.c.l.b16 %v2697
    %v2779 = vunpack.c.h.b16 %v2697
    %v2780 = vunpack.c.l.b16 %v2698
    %v2781 = vunpack.c.h.b16 %v2698
    %v2782 = vunpack.c.l.b16 %v2699
    %v2783 = vunpack.c.h.b16 %v2699
    %v2784 = vunpack.c.l.b16 %v2700
    %v2785 = vunpack.c.h.b16 %v2700
    %v2786 = vunpack.c.l.b16 %v2701
    %v2787 = vunpack.c.h.b16 %v2701
    %v2788 = vunpack.c.l.b16 %v2702
    %v2789 = vunpack.c.h.b16 %v2702
    %v2790 = vunpack.c.l.b16 %v2703
    %v2791 = vunpack.c.h.b16 %v2703
    %v2792 = vunpack.c.l.b16 %v2704
    %v2793 = vunpack.c.h.b16 %v2704
    %v2794 = vunpack.c.l.b16 %v2705
    %v2795 = vunpack.c.h.b16 %v2705
    %v2796 = vunpack.c.l.b16 %v2706
    %v2797 = vunpack.c.h.b16 %v2706
    %v2798 = vunpack.c.l.b16 %v2707
    %v2799 = vunpack.c.h.b16 %v2707
    %v2800 = vunpack.c.l.b16 %v2708
    %v2801 = vunpack.c.h.b16 %v2708
    %v2802 = vunpack.c.l.b16 %v2709
    %v2803 = vunpack.c.h.b16 %v2709
    %v2804 = vunpack.c.l.b16 %v2710
    %v2805 = vunpack.c.h.b16 %v2710
    %v2806 = vunpack.c.l.b16 %v2711
    %v2807 = vunpack.c.h.b16 %v2711
    %v2808 = vunpack.c.l.b16 %v2712
    %v2809 = vunpack.c.h.b16 %v2712
    %v2810 = vunpack.c.l.b16 %v2713
    %v2811 = vunpack.c.h.b16 %v2713
    %v2812 = vunpack.c.l.b16 %v2714
    %v2813 = vunpack.c.h.b16 %v2714
    %v2814 = vunpack.c.l.b16 %v2715
    %v2815 = vunpack.c.h.b16 %v2715
    %v2816 = vunpack.c.l.b16 %v2716
    %v2817 = vunpack.c.h.b16 %v2716
    %v2818 = vunpack.c.l.b16 %v2717
    %v2819 = vunpack.c.h.b16 %v2717
    %v2820 = vunpack.c.l.b16 %v2718
    %v2821 = vunpack.c.h.b16 %v2718
    %v2822 = vunpack.c.l.b16 %v2719
    %v2823 = vunpack.c.h.b16 %v2719
    %v2824 = vunpack.c.l.b16 %v2720
    %v2825 = vunpack.c.h.b16 %v2720
    %v2826 = vunpack.c.l.b16 %v2721
    %v2827 = vunpack.c.h.b16 %v2721
    %v2828 = vunpack.c.l.b16 %v2722
    %v2829 = vunpack.c.h.b16 %v2722
    %v2830 = vunpack.c.l.b16 %v2723
    %v2831 = vunpack.c.h.b16 %v2723
    %v2832 = vpack.c.b16 %v2772, %v2768
    %v2833 = vpack.c.b16 %v2773, %v2769
    %v2834 = vpack.c.b16 %v2774, %v2770
    %v2835 = vpack.c.b16 %v2775, %v2771
    %v2836 = vpack.c.b16 %v2780, %v2776
    %v2837 = vpack.c.b16 %v2781, %v2777
    %v2838 = vpack.c.b16 %v2782, %v2778
    %v2839 = vpack.c.b16 %v2783, %v2779
    %v2840 = vpack.c.b16 %v2788, %v2784
    %v2841 = vpack.c.b16 %v2789, %v2785
    %v2842 = vpack.c.b16 %v2790, %v2786
    %v2843 = vpack.c.b16 %v2791, %v2787
    %v2844 = vpack.c.b16 %v2796, %v2792
    %v2845 = vpack.c.b16 %v2797, %v2793
    %v2846 = vpack.c.b16 %v2798, %v2794
    %v2847 = vpack.c.b16 %v2799, %v2795
    %v2848 = vpack.c.b16 %v2804, %v2800
    %v2849 = vpack.c.b16 %v2805, %v2801
    %v2850 = vpack.c.b16 %v2806, %v2802
    %v2851 = vpack.c.b16 %v2807, %v2803
    %v2852 = vpack.c.b16 %v2812, %v2808
    %v2853 = vpack.c.b16 %v2813, %v2809
    %v2854 = vpack.c.b16 %v2814, %v2810
    %v2855 = vpack.c.b16 %v2815, %v2811
    %v2856 = vpack.c.b16 %v2820, %v2816
    %v2857 = vpack.c.b16 %v2821, %v2817
    %v2858 = vpack.c.b16 %v2822, %v2818
    %v2859 = vpack.c.b16 %v2823, %v2819
    %v2860 = vpack.c.b16 %v2828, %v2824
    %v2861 = vpack.c.b16 %v2829, %v2825
    %v2862 = vpack.c.b16 %v2830, %v2826
    %v2863 = vpack.c.b16 %v2831, %v2827
    %2896 = vmatprep.subr.bf16.mxu0 %v2833
    %2897 = vmatpush1.bf16.msra.mxu0 %v2832
    %2898 = vmatprep.subr.bf16.mxu0 %v2837
    %2899 = vmatpush1.bf16.msra.mxu0 %v2836
    %2900 = vmatprep.subr.bf16.mxu0 %v2841
    %2901 = vmatpush1.bf16.msra.mxu0 %v2840
    %2902 = vmatprep.subr.bf16.mxu0 %v2845
    %2903 = vmatpush1.bf16.msra.mxu0 %v2844
    %2904 = vmatprep.subr.bf16.mxu0 %v2849
    %2905 = vmatpush1.bf16.msra.mxu0 %v2848
    %2906 = vmatprep.subr.bf16.mxu0 %v2853
    %2907 = vmatpush1.bf16.msra.mxu0 %v2852
    %2908 = vmatprep.subr.bf16.mxu0 %v2857
    %2909 = vmatpush1.bf16.msra.mxu0 %v2856
    %2910 = vmatprep.subr.bf16.mxu0 %v2861
    %2911 = vmatpush1.bf16.msra.mxu0 %v2860
    %2912 = vmatprep.subr.bf16.mxu0 0
    %2913 = vmatpush1.bf16.msra.mxu0 0
    %2914 = vmatprep.subr.bf16.mxu0 0
    %2915 = vmatpush1.bf16.msra.mxu0 0
    %2916 = vmatprep.subr.bf16.mxu0 0
    %2917 = vmatpush1.bf16.msra.mxu0 0
    %2918 = vmatprep.subr.bf16.mxu0 0
    %2919 = vmatpush1.bf16.msra.mxu0 0
    %2920 = vmatprep.subr.bf16.mxu0 0
    %2921 = vmatpush1.bf16.msra.mxu0 0
    %2922 = vmatprep.subr.bf16.mxu0 0
    %2923 = vmatpush1.bf16.msra.mxu0 0
    %2924 = vmatprep.subr.bf16.mxu0 0
    %2925 = vmatpush1.bf16.msra.mxu0 0
    %2926 = vmatprep.subr.bf16.mxu0 0
    %2927 = vmatpush1.bf16.msra.mxu0 0
    %2928 = vmatprep.mubr.bf16.mxu0 0
    %2929 = vmatmul.mubr.bf16.gmra.mrb[0].mxu0 %v2691
    %v2930 = vpop.f32.mrb[0].mxu0
    %v2931 = vadd.f32 %v2728, %v2930
    %v2932 = vpop.f32.mrb[0].mxu0
    %v2933 = vadd.f32 %v2729, %v2932
    %v2934 = vpop.f32.mrb[0].mxu0
    %v2935 = vadd.f32 %v2732, %v2934
    %v2936 = vpop.f32.mrb[0].mxu0
    %v2937 = vadd.f32 %v2733, %v2936
    %2938 = vdwg.mxu0
    %2939 = vmatprep.subr.bf16.mxu0 %v2835
    %2940 = vmatpush1.bf16.msra.mxu0 %v2834
    %2941 = vmatprep.subr.bf16.mxu0 %v2839
    %2942 = vmatpush1.bf16.msra.mxu0 %v2838
    %2943 = vmatprep.subr.bf16.mxu0 %v2843
    %2944 = vmatpush1.bf16.msra.mxu0 %v2842
    %2945 = vmatprep.subr.bf16.mxu0 %v2847
    %2946 = vmatpush1.bf16.msra.mxu0 %v2846
    %2947 = vmatprep.subr.bf16.mxu0 %v2851
    %2948 = vmatpush1.bf16.msra.mxu0 %v2850
    %2949 = vmatprep.subr.bf16.mxu0 %v2855
    %2950 = vmatpush1.bf16.msra.mxu0 %v2854
    %2951 = vmatprep.subr.bf16.mxu0 %v2859
    %2952 = vmatpush1.bf16.msra.mxu0 %v2858
    %2953 = vmatprep.subr.bf16.mxu0 %v2863
    %2954 = vmatpush1.bf16.msra.mxu0 %v2862
    %2955 = vmatprep.subr.bf16.mxu0 0
    %2956 = vmatpush1.bf16.msra.mxu0 0
    %2957 = vmatprep.subr.bf16.mxu0 0
    %2958 = vmatpush1.bf16.msra.mxu0 0
    %2959 = vmatprep.subr.bf16.mxu0 0
    %2960 = vmatpush1.bf16.msra.mxu0 0
    %2961 = vmatprep.subr.bf16.mxu0 0
    %2962 = vmatpush1.bf16.msra.mxu0 0
    %2963 = vmatprep.subr.bf16.mxu0 0
    %2964 = vmatpush1.bf16.msra.mxu0 0
    %2965 = vmatprep.subr.bf16.mxu0 0
    %2966 = vmatpush1.bf16.msra.mxu0 0
    %2967 = vmatprep.subr.bf16.mxu0 0
    %2968 = vmatpush1.bf16.msra.mxu0 0
    %2969 = vmatprep.subr.bf16.mxu0 0
    %2970 = vmatpush1.bf16.msra.mxu0 0
    %2971 = vmatprep.mubr.bf16.mxu0 0
    %2972 = vmatmul.mubr.bf16.gmra.mrb[0].mxu0 %v2691
    %v2973 = vpop.f32.mrb[0].mxu0
    %v2974 = vadd.f32 %v2730, %v2973
    %v2975 = vpop.f32.mrb[0].mxu0
    %v2976 = vadd.f32 %v2731, %v2975
    %v2977 = vpop.f32.mrb[0].mxu0
    %v2978 = vadd.f32 %v2734, %v2977
    %v2979 = vpop.f32.mrb[0].mxu0
    %v2980 = vadd.f32 %v2735, %v2979
    %2981 = vdwg.mxu0
    %v2982 = vmul.f32 %v2931, 0.5
    %v2983 = vmul.f32 %v2935, 0.5
    %v2984 = vtanh.pop %v2982
    %v2985 = vtanh.pop %v2983
    %v2986 = vmul.f32 %v2984, 0.5
    %v2987 = vmul.f32 %v2985, 0.5
    %v2988 = vadd.f32 %v2986, 0.5
    %v2989 = vadd.f32 %v2987, 0.5
    %v2990 = vmul.f32 %v2933, 0.5
    %v2991 = vmul.f32 %v2937, 0.5
    %v2992 = vtanh.pop %v2990
    %v2993 = vtanh.pop %v2991
    %v2994 = vmul.f32 %v2992, 0.5
    %v2995 = vmul.f32 %v2993, 0.5
    %v2996 = vadd.f32 %v2994, 0.5
    %v2997 = vadd.f32 %v2995, 0.5
    %v2998 = vtanh.pop %v2974
    %v2999 = vtanh.pop %v2978
    %v3000 = vmul.f32 %v2976, 0.5
    %v3001 = vmul.f32 %v2980, 0.5
    %v3002 = vtanh.pop %v3000
    %v3003 = vtanh.pop %v3001
    %v3004 = vmul.f32 %v3002, 0.5
    %v3005 = vmul.f32 %v3003, 0.5
    %v3006 = vadd.f32 %v3004, 0.5
    %v3007 = vadd.f32 %v3005, 0.5
    %v3008 = vld [vmem:[#allocation5] sm:$0xff]
    %v3009 = vld [vmem:[#allocation5 + $0x8] sm:$0xff]
    %v3010 = vmul.f32 %v2996, %v3008
    %v3011 = vmul.f32 %v2997, %v3009
    %v3012 = vmul.f32 %v2988, %v2998
    %v3013 = vmul.f32 %v2989, %v2999
    %v3014 = vadd.f32 %v3010, %v3012
    %v3015 = vadd.f32 %v3011, %v3013
    %v3016 = vtanh.pop %v3014
    %v3017 = vtanh.pop %v3015
    %v3018 = vmul.f32 %v3006, %v3016
    %v3019 = vmul.f32 %v3007, %v3017
    %v3020 = vpack.c.bf16 %v3019, %v3018
    %3021 = vst [vmem:[#allocation5] sm:$0xff] %v3014
    %3022 = vst [vmem:[#allocation5 + $0x8] sm:$0xff] %v3015
    %3023 = vst [vmem:[#allocation4] sm:$0xff] %v3020
    %3024 = vst [vmem:[#allocation2 + $0x30] sm:$0xff] %v3020
    %v3025 = vld [vmem:[#allocation4] sm:$0xff]
    %v3026 = vld [vmem:[#allocation11] sm:$0xff]
    %v3027 = vld [vmem:[#allocation11 + $0x8] sm:$0xff]
    %v3028 = vld [vmem:[#allocation11 + $0x10] sm:$0xff]
    %v3029 = vld [vmem:[#allocation11 + $0x18] sm:$0xff]
    %v3030 = vld [vmem:[#allocation11 + $0x20] sm:$0xff]
    %v3031 = vld [vmem:[#allocation11 + $0x28] sm:$0xff]
    %v3032 = vld [vmem:[#allocation11 + $0x30] sm:$0xff]
    %v3033 = vld [vmem:[#allocation11 + $0x38] sm:$0xff]
    %v3034 = vld [vmem:[#allocation11 + $0x40] sm:$0xff]
    %v3035 = vld [vmem:[#allocation11 + $0x48] sm:$0xff]
    %v3036 = vld [vmem:[#allocation11 + $0x50] sm:$0xff]
    %v3037 = vld [vmem:[#allocation11 + $0x58] sm:$0xff]
    %v3038 = vld [vmem:[#allocation11 + $0x60] sm:$0xff]
    %v3039 = vld [vmem:[#allocation11 + $0x68] sm:$0xff]
    %v3040 = vld [vmem:[#allocation11 + $0x70] sm:$0xff]
    %v3041 = vld [vmem:[#allocation11 + $0x78] sm:$0xff]
    %v3042 = vld [vmem:[#allocation11 + $0x80] sm:$0xff]
    %v3043 = vld [vmem:[#allocation11 + $0x88] sm:$0xff]
    %v3044 = vld [vmem:[#allocation11 + $0x90] sm:$0xff]
    %v3045 = vld [vmem:[#allocation11 + $0x98] sm:$0xff]
    %v3046 = vld [vmem:[#allocation11 + $0xa0] sm:$0xff]
    %v3047 = vld [vmem:[#allocation11 + $0xa8] sm:$0xff]
    %v3048 = vld [vmem:[#allocation11 + $0xb0] sm:$0xff]
    %v3049 = vld [vmem:[#allocation11 + $0xb8] sm:$0xff]
    %v3050 = vld [vmem:[#allocation11 + $0xc0] sm:$0xff]
    %v3051 = vld [vmem:[#allocation11 + $0xc8] sm:$0xff]
    %v3052 = vld [vmem:[#allocation11 + $0xd0] sm:$0xff]
    %v3053 = vld [vmem:[#allocation11 + $0xd8] sm:$0xff]
    %v3054 = vld [vmem:[#allocation11 + $0xe0] sm:$0xff]
    %v3055 = vld [vmem:[#allocation11 + $0xe8] sm:$0xff]
    %v3056 = vld [vmem:[#allocation11 + $0xf0] sm:$0xff]
    %v3057 = vld [vmem:[#allocation11 + $0xf8] sm:$0xff]
    %v3058 = vld [vmem:[#allocation3 + $0xe0] sm:$0xff]
    %v3059 = vld [vmem:[#allocation3 + $0xe8] sm:$0xff]
    %v3060 = vld [vmem:[#allocation3 + $0xf0] sm:$0xff]
    %v3061 = vld [vmem:[#allocation3 + $0xf8] sm:$0xff]
    %v3062 = vunpack.c.l.bf16 %v3058
    %v3063 = vunpack.c.l.bf16 %v3059
    %v3064 = vunpack.c.l.bf16 %v3060
    %v3065 = vunpack.c.l.bf16 %v3061
    %v3066 = vunpack.c.h.bf16 %v3058
    %v3067 = vunpack.c.h.bf16 %v3059
    %v3068 = vunpack.c.h.bf16 %v3060
    %v3069 = vunpack.c.h.bf16 %v3061
    %v3102 = vunpack.c.l.b16 %v3026
    %v3103 = vunpack.c.h.b16 %v3026
    %v3104 = vunpack.c.l.b16 %v3027
    %v3105 = vunpack.c.h.b16 %v3027
    %v3106 = vunpack.c.l.b16 %v3028
    %v3107 = vunpack.c.h.b16 %v3028
    %v3108 = vunpack.c.l.b16 %v3029
    %v3109 = vunpack.c.h.b16 %v3029
    %v3110 = vunpack.c.l.b16 %v3030
    %v3111 = vunpack.c.h.b16 %v3030
    %v3112 = vunpack.c.l.b16 %v3031
    %v3113 = vunpack.c.h.b16 %v3031
    %v3114 = vunpack.c.l.b16 %v3032
    %v3115 = vunpack.c.h.b16 %v3032
    %v3116 = vunpack.c.l.b16 %v3033
    %v3117 = vunpack.c.h.b16 %v3033
    %v3118 = vunpack.c.l.b16 %v3034
    %v3119 = vunpack.c.h.b16 %v3034
    %v3120 = vunpack.c.l.b16 %v3035
    %v3121 = vunpack.c.h.b16 %v3035
    %v3122 = vunpack.c.l.b16 %v3036
    %v3123 = vunpack.c.h.b16 %v3036
    %v3124 = vunpack.c.l.b16 %v3037
    %v3125 = vunpack.c.h.b16 %v3037
    %v3126 = vunpack.c.l.b16 %v3038
    %v3127 = vunpack.c.h.b16 %v3038
    %v3128 = vunpack.c.l.b16 %v3039
    %v3129 = vunpack.c.h.b16 %v3039
    %v3130 = vunpack.c.l.b16 %v3040
    %v3131 = vunpack.c.h.b16 %v3040
    %v3132 = vunpack.c.l.b16 %v3041
    %v3133 = vunpack.c.h.b16 %v3041
    %v3134 = vunpack.c.l.b16 %v3042
    %v3135 = vunpack.c.h.b16 %v3042
    %v3136 = vunpack.c.l.b16 %v3043
    %v3137 = vunpack.c.h.b16 %v3043
    %v3138 = vunpack.c.l.b16 %v3044
    %v3139 = vunpack.c.h.b16 %v3044
    %v3140 = vunpack.c.l.b16 %v3045
    %v3141 = vunpack.c.h.b16 %v3045
    %v3142 = vunpack.c.l.b16 %v3046
    %v3143 = vunpack.c.h.b16 %v3046
    %v3144 = vunpack.c.l.b16 %v3047
    %v3145 = vunpack.c.h.b16 %v3047
    %v3146 = vunpack.c.l.b16 %v3048
    %v3147 = vunpack.c.h.b16 %v3048
    %v3148 = vunpack.c.l.b16 %v3049
    %v3149 = vunpack.c.h.b16 %v3049
    %v3150 = vunpack.c.l.b16 %v3050
    %v3151 = vunpack.c.h.b16 %v3050
    %v3152 = vunpack.c.l.b16 %v3051
    %v3153 = vunpack.c.h.b16 %v3051
    %v3154 = vunpack.c.l.b16 %v3052
    %v3155 = vunpack.c.h.b16 %v3052
    %v3156 = vunpack.c.l.b16 %v3053
    %v3157 = vunpack.c.h.b16 %v3053
    %v3158 = vunpack.c.l.b16 %v3054
    %v3159 = vunpack.c.h.b16 %v3054
    %v3160 = vunpack.c.l.b16 %v3055
    %v3161 = vunpack.c.h.b16 %v3055
    %v3162 = vunpack.c.l.b16 %v3056
    %v3163 = vunpack.c.h.b16 %v3056
    %v3164 = vunpack.c.l.b16 %v3057
    %v3165 = vunpack.c.h.b16 %v3057
    %v3166 = vpack.c.b16 %v3106, %v3102
    %v3167 = vpack.c.b16 %v3107, %v3103
    %v3168 = vpack.c.b16 %v3108, %v3104
    %v3169 = vpack.c.b16 %v3109, %v3105
    %v3170 = vpack.c.b16 %v3114, %v3110
    %v3171 = vpack.c.b16 %v3115, %v3111
    %v3172 = vpack.c.b16 %v3116, %v3112
    %v3173 = vpack.c.b16 %v3117, %v3113
    %v3174 = vpack.c.b16 %v3122, %v3118
    %v3175 = vpack.c.b16 %v3123, %v3119
    %v3176 = vpack.c.b16 %v3124, %v3120
    %v3177 = vpack.c.b16 %v3125, %v3121
    %v3178 = vpack.c.b16 %v3130, %v3126
    %v3179 = vpack.c.b16 %v3131, %v3127
    %v3180 = vpack.c.b16 %v3132, %v3128
    %v3181 = vpack.c.b16 %v3133, %v3129
    %v3182 = vpack.c.b16 %v3138, %v3134
    %v3183 = vpack.c.b16 %v3139, %v3135
    %v3184 = vpack.c.b16 %v3140, %v3136
    %v3185 = vpack.c.b16 %v3141, %v3137
    %v3186 = vpack.c.b16 %v3146, %v3142
    %v3187 = vpack.c.b16 %v3147, %v3143
    %v3188 = vpack.c.b16 %v3148, %v3144
    %v3189 = vpack.c.b16 %v3149, %v3145
    %v3190 = vpack.c.b16 %v3154, %v3150
    %v3191 = vpack.c.b16 %v3155, %v3151
    %v3192 = vpack.c.b16 %v3156, %v3152
    %v3193 = vpack.c.b16 %v3157, %v3153
    %v3194 = vpack.c.b16 %v3162, %v3158
    %v3195 = vpack.c.b16 %v3163, %v3159
    %v3196 = vpack.c.b16 %v3164, %v3160
    %v3197 = vpack.c.b16 %v3165, %v3161
    %3230 = vmatprep.subr.bf16.mxu0 %v3167
    %3231 = vmatpush1.bf16.msra.mxu0 %v3166
    %3232 = vmatprep.subr.bf16.mxu0 %v3171
    %3233 = vmatpush1.bf16.msra.mxu0 %v3170
    %3234 = vmatprep.subr.bf16.mxu0 %v3175
    %3235 = vmatpush1.bf16.msra.mxu0 %v3174
    %3236 = vmatprep.subr.bf16.mxu0 %v3179
    %3237 = vmatpush1.bf16.msra.mxu0 %v3178
    %3238 = vmatprep.subr.bf16.mxu0 %v3183
    %3239 = vmatpush1.bf16.msra.mxu0 %v3182
    %3240 = vmatprep.subr.bf16.mxu0 %v3187
    %3241 = vmatpush1.bf16.msra.mxu0 %v3186
    %3242 = vmatprep.subr.bf16.mxu0 %v3191
    %3243 = vmatpush1.bf16.msra.mxu0 %v3190
    %3244 = vmatprep.subr.bf16.mxu0 %v3195
    %3245 = vmatpush1.bf16.msra.mxu0 %v3194
    %3246 = vmatprep.subr.bf16.mxu0 0
    %3247 = vmatpush1.bf16.msra.mxu0 0
    %3248 = vmatprep.subr.bf16.mxu0 0
    %3249 = vmatpush1.bf16.msra.mxu0 0
    %3250 = vmatprep.subr.bf16.mxu0 0
    %3251 = vmatpush1.bf16.msra.mxu0 0
    %3252 = vmatprep.subr.bf16.mxu0 0
    %3253 = vmatpush1.bf16.msra.mxu0 0
    %3254 = vmatprep.subr.bf16.mxu0 0
    %3255 = vmatpush1.bf16.msra.mxu0 0
    %3256 = vmatprep.subr.bf16.mxu0 0
    %3257 = vmatpush1.bf16.msra.mxu0 0
    %3258 = vmatprep.subr.bf16.mxu0 0
    %3259 = vmatpush1.bf16.msra.mxu0 0
    %3260 = vmatprep.subr.bf16.mxu0 0
    %3261 = vmatpush1.bf16.msra.mxu0 0
    %3262 = vmatprep.mubr.bf16.mxu0 0
    %3263 = vmatmul.mubr.bf16.gmra.mrb[0].mxu0 %v3025
    %v3264 = vpop.f32.mrb[0].mxu0
    %v3265 = vadd.f32 %v3062, %v3264
    %v3266 = vpop.f32.mrb[0].mxu0
    %v3267 = vadd.f32 %v3063, %v3266
    %v3268 = vpop.f32.mrb[0].mxu0
    %v3269 = vadd.f32 %v3066, %v3268
    %v3270 = vpop.f32.mrb[0].mxu0
    %v3271 = vadd.f32 %v3067, %v3270
    %3272 = vdwg.mxu0
    %3273 = vmatprep.subr.bf16.mxu0 %v3169
    %3274 = vmatpush1.bf16.msra.mxu0 %v3168
    %3275 = vmatprep.subr.bf16.mxu0 %v3173
    %3276 = vmatpush1.bf16.msra.mxu0 %v3172
    %3277 = vmatprep.subr.bf16.mxu0 %v3177
    %3278 = vmatpush1.bf16.msra.mxu0 %v3176
    %3279 = vmatprep.subr.bf16.mxu0 %v3181
    %3280 = vmatpush1.bf16.msra.mxu0 %v3180
    %3281 = vmatprep.subr.bf16.mxu0 %v3185
    %3282 = vmatpush1.bf16.msra.mxu0 %v3184
    %3283 = vmatprep.subr.bf16.mxu0 %v3189
    %3284 = vmatpush1.bf16.msra.mxu0 %v3188
    %3285 = vmatprep.subr.bf16.mxu0 %v3193
    %3286 = vmatpush1.bf16.msra.mxu0 %v3192
    %3287 = vmatprep.subr.bf16.mxu0 %v3197
    %3288 = vmatpush1.bf16.msra.mxu0 %v3196
    %3289 = vmatprep.subr.bf16.mxu0 0
    %3290 = vmatpush1.bf16.msra.mxu0 0
    %3291 = vmatprep.subr.bf16.mxu0 0
    %3292 = vmatpush1.bf16.msra.mxu0 0
    %3293 = vmatprep.subr.bf16.mxu0 0
    %3294 = vmatpush1.bf16.msra.mxu0 0
    %3295 = vmatprep.subr.bf16.mxu0 0
    %3296 = vmatpush1.bf16.msra.mxu0 0
    %3297 = vmatprep.subr.bf16.mxu0 0
    %3298 = vmatpush1.bf16.msra.mxu0 0
    %3299 = vmatprep.subr.bf16.mxu0 0
    %3300 = vmatpush1.bf16.msra.mxu0 0
    %3301 = vmatprep.subr.bf16.mxu0 0
    %3302 = vmatpush1.bf16.msra.mxu0 0
    %3303 = vmatprep.subr.bf16.mxu0 0
    %3304 = vmatpush1.bf16.msra.mxu0 0
    %3305 = vmatprep.mubr.bf16.mxu0 0
    %3306 = vmatmul.mubr.bf16.gmra.mrb[0].mxu0 %v3025
    %v3307 = vpop.f32.mrb[0].mxu0
    %v3308 = vadd.f32 %v3064, %v3307
    %v3309 = vpop.f32.mrb[0].mxu0
    %v3310 = vadd.f32 %v3065, %v3309
    %v3311 = vpop.f32.mrb[0].mxu0
    %v3312 = vadd.f32 %v3068, %v3311
    %v3313 = vpop.f32.mrb[0].mxu0
    %v3314 = vadd.f32 %v3069, %v3313
    %3315 = vdwg.mxu0
    %v3316 = vmul.f32 %v3265, 0.5
    %v3317 = vmul.f32 %v3269, 0.5
    %v3318 = vtanh.pop %v3316
    %v3319 = vtanh.pop %v3317
    %v3320 = vmul.f32 %v3318, 0.5
    %v3321 = vmul.f32 %v3319, 0.5
    %v3322 = vadd.f32 %v3320, 0.5
    %v3323 = vadd.f32 %v3321, 0.5
    %v3324 = vmul.f32 %v3267, 0.5
    %v3325 = vmul.f32 %v3271, 0.5
    %v3326 = vtanh.pop %v3324
    %v3327 = vtanh.pop %v3325
    %v3328 = vmul.f32 %v3326, 0.5
    %v3329 = vmul.f32 %v3327, 0.5
    %v3330 = vadd.f32 %v3328, 0.5
    %v3331 = vadd.f32 %v3329, 0.5
    %v3332 = vtanh.pop %v3308
    %v3333 = vtanh.pop %v3312
    %v3334 = vmul.f32 %v3310, 0.5
    %v3335 = vmul.f32 %v3314, 0.5
    %v3336 = vtanh.pop %v3334
    %v3337 = vtanh.pop %v3335
    %v3338 = vmul.f32 %v3336, 0.5
    %v3339 = vmul.f32 %v3337, 0.5
    %v3340 = vadd.f32 %v3338, 0.5
    %v3341 = vadd.f32 %v3339, 0.5
    %v3342 = vld [vmem:[#allocation5] sm:$0xff]
    %v3343 = vld [vmem:[#allocation5 + $0x8] sm:$0xff]
    %v3344 = vmul.f32 %v3330, %v3342
    %v3345 = vmul.f32 %v3331, %v3343
    %v3346 = vmul.f32 %v3322, %v3332
    %v3347 = vmul.f32 %v3323, %v3333
    %v3348 = vadd.f32 %v3344, %v3346
    %v3349 = vadd.f32 %v3345, %v3347
    %v3350 = vtanh.pop %v3348
    %v3351 = vtanh.pop %v3349
    %v3352 = vmul.f32 %v3340, %v3350
    %v3353 = vmul.f32 %v3341, %v3351
    %v3354 = vpack.c.bf16 %v3353, %v3352
    %3355 = vst [vmem:[#allocation5] sm:$0xff] %v3348
    %3356 = vst [vmem:[#allocation5 + $0x8] sm:$0xff] %v3349
    %3357 = vst [vmem:[#allocation4] sm:$0xff] %v3354
    %3358 = vst [vmem:[#allocation2 + $0x38] sm:$0xff] %v3354
    %v3359 = vld [vmem:[#allocation2] sm:$0xff]
    %v3360 = vld [vmem:[#allocation2 + $0x8] sm:$0xff]
    %v3361 = vld [vmem:[#allocation2 + $0x10] sm:$0xff]
    %v3362 = vld [vmem:[#allocation2 + $0x18] sm:$0xff]
    %v3363 = vld [vmem:[#allocation2 + $0x20] sm:$0xff]
    %v3364 = vld [vmem:[#allocation2 + $0x28] sm:$0xff]
    %v3365 = vld [vmem:[#allocation2 + $0x30] sm:$0xff]
    %v3366 = vld [vmem:[#allocation2 + $0x38] sm:$0xff]
    %v3367 = vld [vmem:[#allocation12] sm:$0xff]
    %v3368 = vld [vmem:[#allocation12 + $0x8] sm:$0xff]
    %v3369 = vld [vmem:[#allocation12 + $0x10] sm:$0xff]
    %v3370 = vld [vmem:[#allocation12 + $0x18] sm:$0xff]
    %v3371 = vld [vmem:[#allocation12 + $0x20] sm:$0xff]
    %v3372 = vld [vmem:[#allocation12 + $0x28] sm:$0xff]
    %v3373 = vld [vmem:[#allocation12 + $0x30] sm:$0xff]
    %v3374 = vld [vmem:[#allocation12 + $0x38] sm:$0xff]
    %v3375 = vld [vmem:[#allocation12 + $0x40] sm:$0xff]
    %v3376 = vld [vmem:[#allocation12 + $0x48] sm:$0xff]
    %v3377 = vld [vmem:[#allocation12 + $0x50] sm:$0xff]
    %v3378 = vld [vmem:[#allocation12 + $0x58] sm:$0xff]
    %v3379 = vld [vmem:[#allocation12 + $0x60] sm:$0xff]
    %v3380 = vld [vmem:[#allocation12 + $0x68] sm:$0xff]
    %v3381 = vld [vmem:[#allocation12 + $0x70] sm:$0xff]
    %v3382 = vld [vmem:[#allocation12 + $0x78] sm:$0xff]
    %v3383 = vld [vmem:[#allocation12 + $0x80] sm:$0xff]
    %v3384 = vld [vmem:[#allocation12 + $0x88] sm:$0xff]
    %v3385 = vld [vmem:[#allocation12 + $0x90] sm:$0xff]
    %v3386 = vld [vmem:[#allocation12 + $0x98] sm:$0xff]
    %v3387 = vld [vmem:[#allocation12 + $0xa0] sm:$0xff]
    %v3388 = vld [vmem:[#allocation12 + $0xa8] sm:$0xff]
    %v3389 = vld [vmem:[#allocation12 + $0xb0] sm:$0xff]
    %v3390 = vld [vmem:[#allocation12 + $0xb8] sm:$0xff]
    %v3391 = vld [vmem:[#allocation12 + $0xc0] sm:$0xff]
    %v3392 = vld [vmem:[#allocation12 + $0xc8] sm:$0xff]
    %v3393 = vld [vmem:[#allocation12 + $0xd0] sm:$0xff]
    %v3394 = vld [vmem:[#allocation12 + $0xd8] sm:$0xff]
    %v3395 = vld [vmem:[#allocation12 + $0xe0] sm:$0xff]
    %v3396 = vld [vmem:[#allocation12 + $0xe8] sm:$0xff]
    %v3397 = vld [vmem:[#allocation12 + $0xf0] sm:$0xff]
    %v3398 = vld [vmem:[#allocation12 + $0xf8] sm:$0xff]
    %v3399 = vld [vmem:[%s6] sm:$0xf]
    %v3401 = vlaneseq
    %v3402 = vshrl.u32 %v3401, 7
    %v3403 = vsub.s32 0, %v3402
    %v3404 = vrot.slane %v3399, %v3403
    %v3405 = vlaneseq
    %v3406 = vshrl.u32 %v3405, 7
    %v3407 = vsub.s32 1, %v3406
    %v3408 = vrot.slane %v3399, %v3407
    %v3409 = vlaneseq
    %v3410 = vshrl.u32 %v3409, 7
    %v3411 = vsub.s32 2, %v3410
    %v3412 = vrot.slane %v3399, %v3411
    %v3413 = vlaneseq
    %v3414 = vshrl.u32 %v3413, 7
    %v3415 = vsub.s32 3, %v3414
    %v3416 = vrot.slane %v3399, %v3415
    %v3453 = vunpack.c.l.b16 %v3367
    %v3454 = vunpack.c.h.b16 %v3367
    %v3455 = vunpack.c.l.b16 %v3368
    %v3456 = vunpack.c.h.b16 %v3368
    %v3457 = vunpack.c.l.b16 %v3369
    %v3458 = vunpack.c.h.b16 %v3369
    %v3459 = vunpack.c.l.b16 %v3370
    %v3460 = vunpack.c.h.b16 %v3370
    %v3461 = vunpack.c.l.b16 %v3371
    %v3462 = vunpack.c.h.b16 %v3371
    %v3463 = vunpack.c.l.b16 %v3372
    %v3464 = vunpack.c.h.b16 %v3372
    %v3465 = vunpack.c.l.b16 %v3373
    %v3466 = vunpack.c.h.b16 %v3373
    %v3467 = vunpack.c.l.b16 %v3374
    %v3468 = vunpack.c.h.b16 %v3374
    %v3469 = vunpack.c.l.b16 %v3375
    %v3470 = vunpack.c.h.b16 %v3375
    %v3471 = vunpack.c.l.b16 %v3376
    %v3472 = vunpack.c.h.b16 %v3376
    %v3473 = vunpack.c.l.b16 %v3377
    %v3474 = vunpack.c.h.b16 %v3377
    %v3475 = vunpack.c.l.b16 %v3378
    %v3476 = vunpack.c.h.b16 %v3378
    %v3477 = vunpack.c.l.b16 %v3379
    %v3478 = vunpack.c.h.b16 %v3379
    %v3479 = vunpack.c.l.b16 %v3380
    %v3480 = vunpack.c.h.b16 %v3380
    %v3481 = vunpack.c.l.b16 %v3381
    %v3482 = vunpack.c.h.b16 %v3381
    %v3483 = vunpack.c.l.b16 %v3382
    %v3484 = vunpack.c.h.b16 %v3382
    %v3485 = vunpack.c.l.b16 %v3383
    %v3486 = vunpack.c.h.b16 %v3383
    %v3487 = vunpack.c.l.b16 %v3384
    %v3488 = vunpack.c.h.b16 %v3384
    %v3489 = vunpack.c.l.b16 %v3385
    %v3490 = vunpack.c.h.b16 %v3385
    %v3491 = vunpack.c.l.b16 %v3386
    %v3492 = vunpack.c.h.b16 %v3386
    %v3493 = vunpack.c.l.b16 %v3387
    %v3494 = vunpack.c.h.b16 %v3387
    %v3495 = vunpack.c.l.b16 %v3388
    %v3496 = vunpack.c.h.b16 %v3388
    %v3497 = vunpack.c.l.b16 %v3389
    %v3498 = vunpack.c.h.b16 %v3389
    %v3499 = vunpack.c.l.b16 %v3390
    %v3500 = vunpack.c.h.b16 %v3390
    %v3501 = vunpack.c.l.b16 %v3391
    %v3502 = vunpack.c.h.b16 %v3391
    %v3503 = vunpack.c.l.b16 %v3392
    %v3504 = vunpack.c.h.b16 %v3392
    %v3505 = vunpack.c.l.b16 %v3393
    %v3506 = vunpack.c.h.b16 %v3393
    %v3507 = vunpack.c.l.b16 %v3394
    %v3508 = vunpack.c.h.b16 %v3394
    %v3509 = vunpack.c.l.b16 %v3395
    %v3510 = vunpack.c.h.b16 %v3395
    %v3511 = vunpack.c.l.b16 %v3396
    %v3512 = vunpack.c.h.b16 %v3396
    %v3513 = vunpack.c.l.b16 %v3397
    %v3514 = vunpack.c.h.b16 %v3397
    %v3515 = vunpack.c.l.b16 %v3398
    %v3516 = vunpack.c.h.b16 %v3398
    %v3517 = vpack.c.b16 %v3457, %v3453
    %v3518 = vpack.c.b16 %v3458, %v3454
    %v3519 = vpack.c.b16 %v3459, %v3455
    %v3520 = vpack.c.b16 %v3460, %v3456
    %v3521 = vpack.c.b16 %v3465, %v3461
    %v3522 = vpack.c.b16 %v3466, %v3462
    %v3523 = vpack.c.b16 %v3467, %v3463
    %v3524 = vpack.c.b16 %v3468, %v3464
    %v3525 = vpack.c.b16 %v3473, %v3469
    %v3526 = vpack.c.b16 %v3474, %v3470
    %v3527 = vpack.c.b16 %v3475, %v3471
    %v3528 = vpack.c.b16 %v3476, %v3472
    %v3529 = vpack.c.b16 %v3481, %v3477
    %v3530 = vpack.c.b16 %v3482, %v3478
    %v3531 = vpack.c.b16 %v3483, %v3479
    %v3532 = vpack.c.b16 %v3484, %v3480
    %v3533 = vpack.c.b16 %v3489, %v3485
    %v3534 = vpack.c.b16 %v3490, %v3486
    %v3535 = vpack.c.b16 %v3491, %v3487
    %v3536 = vpack.c.b16 %v3492, %v3488
    %v3537 = vpack.c.b16 %v3497, %v3493
    %v3538 = vpack.c.b16 %v3498, %v3494
    %v3539 = vpack.c.b16 %v3499, %v3495
    %v3540 = vpack.c.b16 %v3500, %v3496
    %v3541 = vpack.c.b16 %v3505, %v3501
    %v3542 = vpack.c.b16 %v3506, %v3502
    %v3543 = vpack.c.b16 %v3507, %v3503
    %v3544 = vpack.c.b16 %v3508, %v3504
    %v3545 = vpack.c.b16 %v3513, %v3509
    %v3546 = vpack.c.b16 %v3514, %v3510
    %v3547 = vpack.c.b16 %v3515, %v3511
    %v3548 = vpack.c.b16 %v3516, %v3512
    %3581 = vmatprep.subr.bf16.mxu0 %v3518
    %3582 = vmatpush1.bf16.msra.mxu0 %v3517
    %3583 = vmatprep.subr.bf16.mxu0 %v3522
    %3584 = vmatpush1.bf16.msra.mxu0 %v3521
    %3585 = vmatprep.subr.bf16.mxu0 %v3526
    %3586 = vmatpush1.bf16.msra.mxu0 %v3525
    %3587 = vmatprep.subr.bf16.mxu0 %v3530
    %3588 = vmatpush1.bf16.msra.mxu0 %v3529
    %3589 = vmatprep.subr.bf16.mxu0 %v3534
    %3590 = vmatpush1.bf16.msra.mxu0 %v3533
    %3591 = vmatprep.subr.bf16.mxu0 %v3538
    %3592 = vmatpush1.bf16.msra.mxu0 %v3537
    %3593 = vmatprep.subr.bf16.mxu0 %v3542
    %3594 = vmatpush1.bf16.msra.mxu0 %v3541
    %3595 = vmatprep.subr.bf16.mxu0 %v3546
    %3596 = vmatpush1.bf16.msra.mxu0 %v3545
    %3597 = vmatprep.subr.bf16.mxu0 0
    %3598 = vmatpush1.bf16.msra.mxu0 0
    %3599 = vmatprep.subr.bf16.mxu0 0
    %3600 = vmatpush1.bf16.msra.mxu0 0
    %3601 = vmatprep.subr.bf16.mxu0 0
    %3602 = vmatpush1.bf16.msra.mxu0 0
    %3603 = vmatprep.subr.bf16.mxu0 0
    %3604 = vmatpush1.bf16.msra.mxu0 0
    %3605 = vmatprep.subr.bf16.mxu0 0
    %3606 = vmatpush1.bf16.msra.mxu0 0
    %3607 = vmatprep.subr.bf16.mxu0 0
    %3608 = vmatpush1.bf16.msra.mxu0 0
    %3609 = vmatprep.subr.bf16.mxu0 0
    %3610 = vmatpush1.bf16.msra.mxu0 0
    %3611 = vmatprep.subr.bf16.mxu0 0
    %3612 = vmatpush1.bf16.msra.mxu0 0
    %3613 = vmatprep.mubr.bf16.mxu0 0
    %3614 = vmatmul.mubr.bf16.gmra.mrb[0].mxu0 %v3359
    %v3615 = vpop.f32.mrb[0].mxu0
    %v3616 = vadd.f32 %v3404, %v3615
    %v3617 = vpop.f32.mrb[0].mxu0
    %v3618 = vadd.f32 %v3408, %v3617
    %v3619 = vpop.f32.mrb[0].mxu0
    %v3620 = vadd.f32 %v3404, %v3619
    %v3621 = vpop.f32.mrb[0].mxu0
    %v3622 = vadd.f32 %v3408, %v3621
    %3623 = vmatprep.mubr.bf16.mxu0 0
    %3624 = vmatmul.mubr.bf16.gmra.mrb[0].mxu0 %v3360
    %v3625 = vpop.f32.mrb[0].mxu0
    %v3626 = vadd.f32 %v3404, %v3625
    %v3627 = vpop.f32.mrb[0].mxu0
    %v3628 = vadd.f32 %v3408, %v3627
    %v3629 = vpop.f32.mrb[0].mxu0
    %v3630 = vadd.f32 %v3404, %v3629
    %v3631 = vpop.f32.mrb[0].mxu0
    %v3632 = vadd.f32 %v3408, %v3631
    %3633 = vmatprep.mubr.bf16.mxu0 0
    %3634 = vmatmul.mubr.bf16.gmra.mrb[0].mxu0 %v3361
    %v3635 = vpop.f32.mrb[0].mxu0
    %v3636 = vadd.f32 %v3404, %v3635
    %v3637 = vpop.f32.mrb[0].mxu0
    %v3638 = vadd.f32 %v3408, %v3637
    %v3639 = vpop.f32.mrb[0].mxu0
    %v3640 = vadd.f32 %v3404, %v3639
    %v3641 = vpop.f32.mrb[0].mxu0
    %v3642 = vadd.f32 %v3408, %v3641
    %3643 = vmatprep.mubr.bf16.mxu0 0
    %3644 = vmatmul.mubr.bf16.gmra.mrb[0].mxu0 %v3362
    %v3645 = vpop.f32.mrb[0].mxu0
    %v3646 = vadd.f32 %v3404, %v3645
    %v3647 = vpop.f32.mrb[0].mxu0
    %v3648 = vadd.f32 %v3408, %v3647
    %v3649 = vpop.f32.mrb[0].mxu0
    %v3650 = vadd.f32 %v3404, %v3649
    %v3651 = vpop.f32.mrb[0].mxu0
    %v3652 = vadd.f32 %v3408, %v3651
    %3653 = vmatprep.mubr.bf16.mxu0 0
    %3654 = vmatmul.mubr.bf16.gmra.mrb[0].mxu0 %v3363
    %v3655 = vpop.f32.mrb[0].mxu0
    %v3656 = vadd.f32 %v3404, %v3655
    %v3657 = vpop.f32.mrb[0].mxu0
    %v3658 = vadd.f32 %v3408, %v3657
    %v3659 = vpop.f32.mrb[0].mxu0
    %v3660 = vadd.f32 %v3404, %v3659
    %v3661 = vpop.f32.mrb[0].mxu0
    %v3662 = vadd.f32 %v3408, %v3661
    %3663 = vmatprep.mubr.bf16.mxu0 0
    %3664 = vmatmul.mubr.bf16.gmra.mrb[0].mxu0 %v3364
    %v3665 = vpop.f32.mrb[0].mxu0
    %v3666 = vadd.f32 %v3404, %v3665
    %v3667 = vpop.f32.mrb[0].mxu0
    %v3668 = vadd.f32 %v3408, %v3667
    %v3669 = vpop.f32.mrb[0].mxu0
    %v3670 = vadd.f32 %v3404, %v3669
    %v3671 = vpop.f32.mrb[0].mxu0
    %v3672 = vadd.f32 %v3408, %v3671
    %3673 = vmatprep.mubr.bf16.mxu0 0
    %3674 = vmatmul.mubr.bf16.gmra.mrb[0].mxu0 %v3365
    %v3675 = vpop.f32.mrb[0].mxu0
    %v3676 = vadd.f32 %v3404, %v3675
    %v3677 = vpop.f32.mrb[0].mxu0
    %v3678 = vadd.f32 %v3408, %v3677
    %v3679 = vpop.f32.mrb[0].mxu0
    %v3680 = vadd.f32 %v3404, %v3679
    %v3681 = vpop.f32.mrb[0].mxu0
    %v3682 = vadd.f32 %v3408, %v3681
    %3683 = vmatprep.mubr.bf16.mxu0 0
    %3684 = vmatmul.mubr.bf16.gmra.mrb[0].mxu0 %v3366
    %v3685 = vpop.f32.mrb[0].mxu0
    %v3686 = vadd.f32 %v3404, %v3685
    %v3687 = vpop.f32.mrb[0].mxu0
    %v3688 = vadd.f32 %v3408, %v3687
    %v3689 = vpop.f32.mrb[0].mxu0
    %v3690 = vadd.f32 %v3404, %v3689
    %v3691 = vpop.f32.mrb[0].mxu0
    %v3692 = vadd.f32 %v3408, %v3691
    %3693 = vdwg.mxu0
    %3694 = vmatprep.subr.bf16.mxu0 %v3520
    %3695 = vmatpush1.bf16.msra.mxu0 %v3519
    %3696 = vmatprep.subr.bf16.mxu0 %v3524
    %3697 = vmatpush1.bf16.msra.mxu0 %v3523
    %3698 = vmatprep.subr.bf16.mxu0 %v3528
    %3699 = vmatpush1.bf16.msra.mxu0 %v3527
    %3700 = vmatprep.subr.bf16.mxu0 %v3532
    %3701 = vmatpush1.bf16.msra.mxu0 %v3531
    %3702 = vmatprep.subr.bf16.mxu0 %v3536
    %3703 = vmatpush1.bf16.msra.mxu0 %v3535
    %3704 = vmatprep.subr.bf16.mxu0 %v3540
    %3705 = vmatpush1.bf16.msra.mxu0 %v3539
    %3706 = vmatprep.subr.bf16.mxu0 %v3544
    %3707 = vmatpush1.bf16.msra.mxu0 %v3543
    %3708 = vmatprep.subr.bf16.mxu0 %v3548
    %3709 = vmatpush1.bf16.msra.mxu0 %v3547
    %3710 = vmatprep.subr.bf16.mxu0 0
    %3711 = vmatpush1.bf16.msra.mxu0 0
    %3712 = vmatprep.subr.bf16.mxu0 0
    %3713 = vmatpush1.bf16.msra.mxu0 0
    %3714 = vmatprep.subr.bf16.mxu0 0
    %3715 = vmatpush1.bf16.msra.mxu0 0
    %3716 = vmatprep.subr.bf16.mxu0 0
    %3717 = vmatpush1.bf16.msra.mxu0 0
    %3718 = vmatprep.subr.bf16.mxu0 0
    %3719 = vmatpush1.bf16.msra.mxu0 0
    %3720 = vmatprep.subr.bf16.mxu0 0
    %3721 = vmatpush1.bf16.msra.mxu0 0
    %3722 = vmatprep.subr.bf16.mxu0 0
    %3723 = vmatpush1.bf16.msra.mxu0 0
    %3724 = vmatprep.subr.bf16.mxu0 0
    %3725 = vmatpush1.bf16.msra.mxu0 0
    %3726 = vmatprep.mubr.bf16.mxu0 0
    %3727 = vmatmul.mubr.bf16.gmra.mrb[0].mxu0 %v3359
    %v3728 = vpop.f32.mrb[0].mxu0
    %v3729 = vadd.f32 %v3412, %v3728
    %v3730 = vpop.f32.mrb[0].mxu0
    %v3731 = vadd.f32 %v3416, %v3730
    %v3732 = vpop.f32.mrb[0].mxu0
    %v3733 = vadd.f32 %v3412, %v3732
    %v3734 = vpop.f32.mrb[0].mxu0
    %v3735 = vadd.f32 %v3416, %v3734
    %3736 = vmatprep.mubr.bf16.mxu0 0
    %3737 = vmatmul.mubr.bf16.gmra.mrb[0].mxu0 %v3360
    %v3738 = vpop.f32.mrb[0].mxu0
    %v3739 = vadd.f32 %v3412, %v3738
    %v3740 = vpop.f32.mrb[0].mxu0
    %v3741 = vadd.f32 %v3416, %v3740
    %v3742 = vpop.f32.mrb[0].mxu0
    %v3743 = vadd.f32 %v3412, %v3742
    %v3744 = vpop.f32.mrb[0].mxu0
    %v3745 = vadd.f32 %v3416, %v3744
    %3746 = vmatprep.mubr.bf16.mxu0 0
    %3747 = vmatmul.mubr.bf16.gmra.mrb[0].mxu0 %v3361
    %v3748 = vpop.f32.mrb[0].mxu0
    %v3749 = vadd.f32 %v3412, %v3748
    %v3750 = vpop.f32.mrb[0].mxu0
    %v3751 = vadd.f32 %v3416, %v3750
    %v3752 = vpop.f32.mrb[0].mxu0
    %v3753 = vadd.f32 %v3412, %v3752
    %v3754 = vpop.f32.mrb[0].mxu0
    %v3755 = vadd.f32 %v3416, %v3754
    %3756 = vmatprep.mubr.bf16.mxu0 0
    %3757 = vmatmul.mubr.bf16.gmra.mrb[0].mxu0 %v3362
    %v3758 = vpop.f32.mrb[0].mxu0
    %v3759 = vadd.f32 %v3412, %v3758
    %v3760 = vpop.f32.mrb[0].mxu0
    %v3761 = vadd.f32 %v3416, %v3760
    %v3762 = vpop.f32.mrb[0].mxu0
    %v3763 = vadd.f32 %v3412, %v3762
    %v3764 = vpop.f32.mrb[0].mxu0
    %v3765 = vadd.f32 %v3416, %v3764
    %3766 = vmatprep.mubr.bf16.mxu0 0
    %3767 = vmatmul.mubr.bf16.gmra.mrb[0].mxu0 %v3363
    %v3768 = vpop.f32.mrb[0].mxu0
    %v3769 = vadd.f32 %v3412, %v3768
    %v3770 = vpop.f32.mrb[0].mxu0
    %v3771 = vadd.f32 %v3416, %v3770
    %v3772 = vpop.f32.mrb[0].mxu0
    %v3773 = vadd.f32 %v3412, %v3772
    %v3774 = vpop.f32.mrb[0].mxu0
    %v3775 = vadd.f32 %v3416, %v3774
    %3776 = vmatprep.mubr.bf16.mxu0 0
    %3777 = vmatmul.mubr.bf16.gmra.mrb[0].mxu0 %v3364
    %v3778 = vpop.f32.mrb[0].mxu0
    %v3779 = vadd.f32 %v3412, %v3778
    %v3780 = vpop.f32.mrb[0].mxu0
    %v3781 = vadd.f32 %v3416, %v3780
    %v3782 = vpop.f32.mrb[0].mxu0
    %v3783 = vadd.f32 %v3412, %v3782
    %v3784 = vpop.f32.mrb[0].mxu0
    %v3785 = vadd.f32 %v3416, %v3784
    %3786 = vmatprep.mubr.bf16.mxu0 0
    %3787 = vmatmul.mubr.bf16.gmra.mrb[0].mxu0 %v3365
    %v3788 = vpop.f32.mrb[0].mxu0
    %v3789 = vadd.f32 %v3412, %v3788
    %v3790 = vpop.f32.mrb[0].mxu0
    %v3791 = vadd.f32 %v3416, %v3790
    %v3792 = vpop.f32.mrb[0].mxu0
    %v3793 = vadd.f32 %v3412, %v3792
    %v3794 = vpop.f32.mrb[0].mxu0
    %v3795 = vadd.f32 %v3416, %v3794
    %3796 = vmatprep.mubr.bf16.mxu0 0
    %3797 = vmatmul.mubr.bf16.gmra.mrb[0].mxu0 %v3366
    %v3798 = vpop.f32.mrb[0].mxu0
    %v3799 = vadd.f32 %v3412, %v3798
    %v3800 = vpop.f32.mrb[0].mxu0
    %v3801 = vadd.f32 %v3416, %v3800
    %v3802 = vpop.f32.mrb[0].mxu0
    %v3803 = vadd.f32 %v3412, %v3802
    %v3804 = vpop.f32.mrb[0].mxu0
    %v3805 = vadd.f32 %v3416, %v3804
    %3806 = vdwg.mxu0
    %v3807 = vpack.c.bf16 %v3620, %v3616
    %v3808 = vpack.c.bf16 %v3622, %v3618
    %v3809 = vpack.c.bf16 %v3733, %v3729
    %v3810 = vpack.c.bf16 %v3735, %v3731
    %v3811 = vpack.c.bf16 %v3630, %v3626
    %v3812 = vpack.c.bf16 %v3632, %v3628
    %v3813 = vpack.c.bf16 %v3743, %v3739
    %v3814 = vpack.c.bf16 %v3745, %v3741
    %v3815 = vpack.c.bf16 %v3640, %v3636
    %v3816 = vpack.c.bf16 %v3642, %v3638
    %v3817 = vpack.c.bf16 %v3753, %v3749
    %v3818 = vpack.c.bf16 %v3755, %v3751
    %v3819 = vpack.c.bf16 %v3650, %v3646
    %v3820 = vpack.c.bf16 %v3652, %v3648
    %v3821 = vpack.c.bf16 %v3763, %v3759
    %v3822 = vpack.c.bf16 %v3765, %v3761
    %v3823 = vpack.c.bf16 %v3660, %v3656
    %v3824 = vpack.c.bf16 %v3662, %v3658
    %v3825 = vpack.c.bf16 %v3773, %v3769
    %v3826 = vpack.c.bf16 %v3775, %v3771
    %v3827 = vpack.c.bf16 %v3670, %v3666
    %v3828 = vpack.c.bf16 %v3672, %v3668
    %v3829 = vpack.c.bf16 %v3783, %v3779
    %v3830 = vpack.c.bf16 %v3785, %v3781
    %v3831 = vpack.c.bf16 %v3680, %v3676
    %v3832 = vpack.c.bf16 %v3682, %v3678
    %v3833 = vpack.c.bf16 %v3793, %v3789
    %v3834 = vpack.c.bf16 %v3795, %v3791
    %v3835 = vpack.c.bf16 %v3690, %v3686
    %v3836 = vpack.c.bf16 %v3692, %v3688
    %v3837 = vpack.c.bf16 %v3803, %v3799
    %v3838 = vpack.c.bf16 %v3805, %v3801
    %3839 = vst [vmem:[#allocation3] sm:$0xff] %v3807
    %3840 = vst [vmem:[#allocation3 + $0x8] sm:$0xff] %v3808
    %3841 = vst [vmem:[#allocation3 + $0x10] sm:$0xff] %v3809
    %3842 = vst [vmem:[#allocation3 + $0x18] sm:$0xff] %v3810
    %3843 = vst [vmem:[#allocation3 + $0x20] sm:$0xff] %v3811
    %3844 = vst [vmem:[#allocation3 + $0x28] sm:$0xff] %v3812
    %3845 = vst [vmem:[#allocation3 + $0x30] sm:$0xff] %v3813
    %3846 = vst [vmem:[#allocation3 + $0x38] sm:$0xff] %v3814
    %3847 = vst [vmem:[#allocation3 + $0x40] sm:$0xff] %v3815
    %3848 = vst [vmem:[#allocation3 + $0x48] sm:$0xff] %v3816
    %3849 = vst [vmem:[#allocation3 + $0x50] sm:$0xff] %v3817
    %3850 = vst [vmem:[#allocation3 + $0x58] sm:$0xff] %v3818
    %3851 = vst [vmem:[#allocation3 + $0x60] sm:$0xff] %v3819
    %3852 = vst [vmem:[#allocation3 + $0x68] sm:$0xff] %v3820
    %3853 = vst [vmem:[#allocation3 + $0x70] sm:$0xff] %v3821
    %3854 = vst [vmem:[#allocation3 + $0x78] sm:$0xff] %v3822
    %3855 = vst [vmem:[#allocation3 + $0x80] sm:$0xff] %v3823
    %3856 = vst [vmem:[#allocation3 + $0x88] sm:$0xff] %v3824
    %3857 = vst [vmem:[#allocation3 + $0x90] sm:$0xff] %v3825
    %3858 = vst [vmem:[#allocation3 + $0x98] sm:$0xff] %v3826
    %3859 = vst [vmem:[#allocation3 + $0xa0] sm:$0xff] %v3827
    %3860 = vst [vmem:[#allocation3 + $0xa8] sm:$0xff] %v3828
    %3861 = vst [vmem:[#allocation3 + $0xb0] sm:$0xff] %v3829
    %3862 = vst [vmem:[#allocation3 + $0xb8] sm:$0xff] %v3830
    %3863 = vst [vmem:[#allocation3 + $0xc0] sm:$0xff] %v3831
    %3864 = vst [vmem:[#allocation3 + $0xc8] sm:$0xff] %v3832
    %3865 = vst [vmem:[#allocation3 + $0xd0] sm:$0xff] %v3833
    %3866 = vst [vmem:[#allocation3 + $0xd8] sm:$0xff] %v3834
    %3867 = vst [vmem:[#allocation3 + $0xe0] sm:$0xff] %v3835
    %3868 = vst [vmem:[#allocation3 + $0xe8] sm:$0xff] %v3836
    %3869 = vst [vmem:[#allocation3 + $0xf0] sm:$0xff] %v3837
    %3870 = vst [vmem:[#allocation3 + $0xf8] sm:$0xff] %v3838
    %3871 = vst [vmem:[#allocation4] sm:$0xff] 0
    %3872 = vst [vmem:[#allocation5] sm:$0xff] 0.0
    %3873 = vst [vmem:[#allocation5 + $0x8] sm:$0xff] 0.0
    %v3874 = vld [vmem:[#allocation4] sm:$0xff]
    %v3875 = vld [vmem:[#allocation14] sm:$0xff]
    %v3876 = vld [vmem:[#allocation14 + $0x8] sm:$0xff]
    %v3877 = vld [vmem:[#allocation14 + $0x10] sm:$0xff]
    %v3878 = vld [vmem:[#allocation14 + $0x18] sm:$0xff]
    %v3879 = vld [vmem:[#allocation14 + $0x20] sm:$0xff]
    %v3880 = vld [vmem:[#allocation14 + $0x28] sm:$0xff]
    %v3881 = vld [vmem:[#allocation14 + $0x30] sm:$0xff]
    %v3882 = vld [vmem:[#allocation14 + $0x38] sm:$0xff]
    %v3883 = vld [vmem:[#allocation14 + $0x40] sm:$0xff]
    %v3884 = vld [vmem:[#allocation14 + $0x48] sm:$0xff]
    %v3885 = vld [vmem:[#allocation14 + $0x50] sm:$0xff]
    %v3886 = vld [vmem:[#allocation14 + $0x58] sm:$0xff]
    %v3887 = vld [vmem:[#allocation14 + $0x60] sm:$0xff]
    %v3888 = vld [vmem:[#allocation14 + $0x68] sm:$0xff]
    %v3889 = vld [vmem:[#allocation14 + $0x70] sm:$0xff]
    %v3890 = vld [vmem:[#allocation14 + $0x78] sm:$0xff]
    %v3891 = vld [vmem:[#allocation14 + $0x80] sm:$0xff]
    %v3892 = vld [vmem:[#allocation14 + $0x88] sm:$0xff]
    %v3893 = vld [vmem:[#allocation14 + $0x90] sm:$0xff]
    %v3894 = vld [vmem:[#allocation14 + $0x98] sm:$0xff]
    %v3895 = vld [vmem:[#allocation14 + $0xa0] sm:$0xff]
    %v3896 = vld [vmem:[#allocation14 + $0xa8] sm:$0xff]
    %v3897 = vld [vmem:[#allocation14 + $0xb0] sm:$0xff]
    %v3898 = vld [vmem:[#allocation14 + $0xb8] sm:$0xff]
    %v3899 = vld [vmem:[#allocation14 + $0xc0] sm:$0xff]
    %v3900 = vld [vmem:[#allocation14 + $0xc8] sm:$0xff]
    %v3901 = vld [vmem:[#allocation14 + $0xd0] sm:$0xff]
    %v3902 = vld [vmem:[#allocation14 + $0xd8] sm:$0xff]
    %v3903 = vld [vmem:[#allocation14 + $0xe0] sm:$0xff]
    %v3904 = vld [vmem:[#allocation14 + $0xe8] sm:$0xff]
    %v3905 = vld [vmem:[#allocation14 + $0xf0] sm:$0xff]
    %v3906 = vld [vmem:[#allocation14 + $0xf8] sm:$0xff]
    %v3907 = vld [vmem:[#allocation3] sm:$0xff]
    %v3908 = vld [vmem:[#allocation3 + $0x8] sm:$0xff]
    %v3909 = vld [vmem:[#allocation3 + $0x10] sm:$0xff]
    %v3910 = vld [vmem:[#allocation3 + $0x18] sm:$0xff]
    %v3911 = vunpack.c.l.bf16 %v3907
    %v3912 = vunpack.c.l.bf16 %v3908
    %v3913 = vunpack.c.l.bf16 %v3909
    %v3914 = vunpack.c.l.bf16 %v3910
    %v3915 = vunpack.c.h.bf16 %v3907
    %v3916 = vunpack.c.h.bf16 %v3908
    %v3917 = vunpack.c.h.bf16 %v3909
    %v3918 = vunpack.c.h.bf16 %v3910
    %v3951 = vunpack.c.l.b16 %v3875
    %v3952 = vunpack.c.h.b16 %v3875
    %v3953 = vunpack.c.l.b16 %v3876
    %v3954 = vunpack.c.h.b16 %v3876
    %v3955 = vunpack.c.l.b16 %v3877
    %v3956 = vunpack.c.h.b16 %v3877
    %v3957 = vunpack.c.l.b16 %v3878
    %v3958 = vunpack.c.h.b16 %v3878
    %v3959 = vunpack.c.l.b16 %v3879
    %v3960 = vunpack.c.h.b16 %v3879
    %v3961 = vunpack.c.l.b16 %v3880
    %v3962 = vunpack.c.h.b16 %v3880
    %v3963 = vunpack.c.l.b16 %v3881
    %v3964 = vunpack.c.h.b16 %v3881
    %v3965 = vunpack.c.l.b16 %v3882
    %v3966 = vunpack.c.h.b16 %v3882
    %v3967 = vunpack.c.l.b16 %v3883
    %v3968 = vunpack.c.h.b16 %v3883
    %v3969 = vunpack.c.l.b16 %v3884
    %v3970 = vunpack.c.h.b16 %v3884
    %v3971 = vunpack.c.l.b16 %v3885
    %v3972 = vunpack.c.h.b16 %v3885
    %v3973 = vunpack.c.l.b16 %v3886
    %v3974 = vunpack.c.h.b16 %v3886
    %v3975 = vunpack.c.l.b16 %v3887
    %v3976 = vunpack.c.h.b16 %v3887
    %v3977 = vunpack.c.l.b16 %v3888
    %v3978 = vunpack.c.h.b16 %v3888
    %v3979 = vunpack.c.l.b16 %v3889
    %v3980 = vunpack.c.h.b16 %v3889
    %v3981 = vunpack.c.l.b16 %v3890
    %v3982 = vunpack.c.h.b16 %v3890
    %v3983 = vunpack.c.l.b16 %v3891
    %v3984 = vunpack.c.h.b16 %v3891
    %v3985 = vunpack.c.l.b16 %v3892
    %v3986 = vunpack.c.h.b16 %v3892
    %v3987 = vunpack.c.l.b16 %v3893
    %v3988 = vunpack.c.h.b16 %v3893
    %v3989 = vunpack.c.l.b16 %v3894
    %v3990 = vunpack.c.h.b16 %v3894
    %v3991 = vunpack.c.l.b16 %v3895
    %v3992 = vunpack.c.h.b16 %v3895
    %v3993 = vunpack.c.l.b16 %v3896
    %v3994 = vunpack.c.h.b16 %v3896
    %v3995 = vunpack.c.l.b16 %v3897
    %v3996 = vunpack.c.h.b16 %v3897
    %v3997 = vunpack.c.l.b16 %v3898
    %v3998 = vunpack.c.h.b16 %v3898
    %v3999 = vunpack.c.l.b16 %v3899
    %v4000 = vunpack.c.h.b16 %v3899
    %v4001 = vunpack.c.l.b16 %v3900
    %v4002 = vunpack.c.h.b16 %v3900
    %v4003 = vunpack.c.l.b16 %v3901
    %v4004 = vunpack.c.h.b16 %v3901
    %v4005 = vunpack.c.l.b16 %v3902
    %v4006 = vunpack.c.h.b16 %v3902
    %v4007 = vunpack.c.l.b16 %v3903
    %v4008 = vunpack.c.h.b16 %v3903
    %v4009 = vunpack.c.l.b16 %v3904
    %v4010 = vunpack.c.h.b16 %v3904
    %v4011 = vunpack.c.l.b16 %v3905
    %v4012 = vunpack.c.h.b16 %v3905
    %v4013 = vunpack.c.l.b16 %v3906
    %v4014 = vunpack.c.h.b16 %v3906
    %v4015 = vpack.c.b16 %v3955, %v3951
    %v4016 = vpack.c.b16 %v3956, %v3952
    %v4017 = vpack.c.b16 %v3957, %v3953
    %v4018 = vpack.c.b16 %v3958, %v3954
    %v4019 = vpack.c.b16 %v3963, %v3959
    %v4020 = vpack.c.b16 %v3964, %v3960
    %v4021 = vpack.c.b16 %v3965, %v3961
    %v4022 = vpack.c.b16 %v3966, %v3962
    %v4023 = vpack.c.b16 %v3971, %v3967
    %v4024 = vpack.c.b16 %v3972, %v3968
    %v4025 = vpack.c.b16 %v3973, %v3969
    %v4026 = vpack.c.b16 %v3974, %v3970
    %v4027 = vpack.c.b16 %v3979, %v3975
    %v4028 = vpack.c.b16 %v3980, %v3976
    %v4029 = vpack.c.b16 %v3981, %v3977
    %v4030 = vpack.c.b16 %v3982, %v3978
    %v4031 = vpack.c.b16 %v3987, %v3983
    %v4032 = vpack.c.b16 %v3988, %v3984
    %v4033 = vpack.c.b16 %v3989, %v3985
    %v4034 = vpack.c.b16 %v3990, %v3986
    %v4035 = vpack.c.b16 %v3995, %v3991
    %v4036 = vpack.c.b16 %v3996, %v3992
    %v4037 = vpack.c.b16 %v3997, %v3993
    %v4038 = vpack.c.b16 %v3998, %v3994
    %v4039 = vpack.c.b16 %v4003, %v3999
    %v4040 = vpack.c.b16 %v4004, %v4000
    %v4041 = vpack.c.b16 %v4005, %v4001
    %v4042 = vpack.c.b16 %v4006, %v4002
    %v4043 = vpack.c.b16 %v4011, %v4007
    %v4044 = vpack.c.b16 %v4012, %v4008
    %v4045 = vpack.c.b16 %v4013, %v4009
    %v4046 = vpack.c.b16 %v4014, %v4010
    %4079 = vmatprep.subr.bf16.mxu0 %v4016
    %4080 = vmatpush1.bf16.msra.mxu0 %v4015
    %4081 = vmatprep.subr.bf16.mxu0 %v4020
    %4082 = vmatpush1.bf16.msra.mxu0 %v4019
    %4083 = vmatprep.subr.bf16.mxu0 %v4024
    %4084 = vmatpush1.bf16.msra.mxu0 %v4023
    %4085 = vmatprep.subr.bf16.mxu0 %v4028
    %4086 = vmatpush1.bf16.msra.mxu0 %v4027
    %4087 = vmatprep.subr.bf16.mxu0 %v4032
    %4088 = vmatpush1.bf16.msra.mxu0 %v4031
    %4089 = vmatprep.subr.bf16.mxu0 %v4036
    %4090 = vmatpush1.bf16.msra.mxu0 %v4035
    %4091 = vmatprep.subr.bf16.mxu0 %v4040
    %4092 = vmatpush1.bf16.msra.mxu0 %v4039
    %4093 = vmatprep.subr.bf16.mxu0 %v4044
    %4094 = vmatpush1.bf16.msra.mxu0 %v4043
    %4095 = vmatprep.subr.bf16.mxu0 0
    %4096 = vmatpush1.bf16.msra.mxu0 0
    %4097 = vmatprep.subr.bf16.mxu0 0
    %4098 = vmatpush1.bf16.msra.mxu0 0
    %4099 = vmatprep.subr.bf16.mxu0 0
    %4100 = vmatpush1.bf16.msra.mxu0 0
    %4101 = vmatprep.subr.bf16.mxu0 0
    %4102 = vmatpush1.bf16.msra.mxu0 0
    %4103 = vmatprep.subr.bf16.mxu0 0
    %4104 = vmatpush1.bf16.msra.mxu0 0
    %4105 = vmatprep.subr.bf16.mxu0 0
    %4106 = vmatpush1.bf16.msra.mxu0 0
    %4107 = vmatprep.subr.bf16.mxu0 0
    %4108 = vmatpush1.bf16.msra.mxu0 0
    %4109 = vmatprep.subr.bf16.mxu0 0
    %4110 = vmatpush1.bf16.msra.mxu0 0
    %4111 = vmatprep.mubr.bf16.mxu0 0
    %4112 = vmatmul.mubr.bf16.gmra.mrb[0].mxu0 %v3874
    %v4113 = vpop.f32.mrb[0].mxu0
    %v4114 = vadd.f32 %v3911, %v4113
    %v4115 = vpop.f32.mrb[0].mxu0
    %v4116 = vadd.f32 %v3912, %v4115
    %v4117 = vpop.f32.mrb[0].mxu0
    %v4118 = vadd.f32 %v3915, %v4117
    %v4119 = vpop.f32.mrb[0].mxu0
    %v4120 = vadd.f32 %v3916, %v4119
    %4121 = vdwg.mxu0
    %4122 = vmatprep.subr.bf16.mxu0 %v4018
    %4123 = vmatpush1.bf16.msra.mxu0 %v4017
    %4124 = vmatprep.subr.bf16.mxu0 %v4022
    %4125 = vmatpush1.bf16.msra.mxu0 %v4021
    %4126 = vmatprep.subr.bf16.mxu0 %v4026
    %4127 = vmatpush1.bf16.msra.mxu0 %v4025
    %4128 = vmatprep.subr.bf16.mxu0 %v4030
    %4129 = vmatpush1.bf16.msra.mxu0 %v4029
    %4130 = vmatprep.subr.bf16.mxu0 %v4034
    %4131 = vmatpush1.bf16.msra.mxu0 %v4033
    %4132 = vmatprep.subr.bf16.mxu0 %v4038
    %4133 = vmatpush1.bf16.msra.mxu0 %v4037
    %4134 = vmatprep.subr.bf16.mxu0 %v4042
    %4135 = vmatpush1.bf16.msra.mxu0 %v4041
    %4136 = vmatprep.subr.bf16.mxu0 %v4046
    %4137 = vmatpush1.bf16.msra.mxu0 %v4045
    %4138 = vmatprep.subr.bf16.mxu0 0
    %4139 = vmatpush1.bf16.msra.mxu0 0
    %4140 = vmatprep.subr.bf16.mxu0 0
    %4141 = vmatpush1.bf16.msra.mxu0 0
    %4142 = vmatprep.subr.bf16.mxu0 0
    %4143 = vmatpush1.bf16.msra.mxu0 0
    %4144 = vmatprep.subr.bf16.mxu0 0
    %4145 = vmatpush1.bf16.msra.mxu0 0
    %4146 = vmatprep.subr.bf16.mxu0 0
    %4147 = vmatpush1.bf16.msra.mxu0 0
    %4148 = vmatprep.subr.bf16.mxu0 0
    %4149 = vmatpush1.bf16.msra.mxu0 0
    %4150 = vmatprep.subr.bf16.mxu0 0
    %4151 = vmatpush1.bf16.msra.mxu0 0
    %4152 = vmatprep.subr.bf16.mxu0 0
    %4153 = vmatpush1.bf16.msra.mxu0 0
    %4154 = vmatprep.mubr.bf16.mxu0 0
    %4155 = vmatmul.mubr.bf16.gmra.mrb[0].mxu0 %v3874
    %v4156 = vpop.f32.mrb[0].mxu0
    %v4157 = vadd.f32 %v3913, %v4156
    %v4158 = vpop.f32.mrb[0].mxu0
    %v4159 = vadd.f32 %v3914, %v4158
    %v4160 = vpop.f32.mrb[0].mxu0
    %v4161 = vadd.f32 %v3917, %v4160
    %v4162 = vpop.f32.mrb[0].mxu0
    %v4163 = vadd.f32 %v3918, %v4162
    %4164 = vdwg.mxu0
    %v4165 = vmul.f32 %v4114, 0.5
    %v4166 = vmul.f32 %v4118, 0.5
    %v4167 = vtanh.pop %v4165
    %v4168 = vtanh.pop %v4166
    %v4169 = vmul.f32 %v4167, 0.5
    %v4170 = vmul.f32 %v4168, 0.5
    %v4171 = vadd.f32 %v4169, 0.5
    %v4172 = vadd.f32 %v4170, 0.5
    %v4173 = vmul.f32 %v4116, 0.5
    %v4174 = vmul.f32 %v4120, 0.5
    %v4175 = vtanh.pop %v4173
    %v4176 = vtanh.pop %v4174
    %v4177 = vmul.f32 %v4175, 0.5
    %v4178 = vmul.f32 %v4176, 0.5
    %v4179 = vadd.f32 %v4177, 0.5
    %v4180 = vadd.f32 %v4178, 0.5
    %v4181 = vtanh.pop %v4157
    %v4182 = vtanh.pop %v4161
    %v4183 = vmul.f32 %v4159, 0.5
    %v4184 = vmul.f32 %v4163, 0.5
    %v4185 = vtanh.pop %v4183
    %v4186 = vtanh.pop %v4184
    %v4187 = vmul.f32 %v4185, 0.5
    %v4188 = vmul.f32 %v4186, 0.5
    %v4189 = vadd.f32 %v4187, 0.5
    %v4190 = vadd.f32 %v4188, 0.5
    %v4191 = vld [vmem:[#allocation5] sm:$0xff]
    %v4192 = vld [vmem:[#allocation5 + $0x8] sm:$0xff]
    %v4193 = vmul.f32 %v4179, %v4191
    %v4194 = vmul.f32 %v4180, %v4192
    %v4195 = vmul.f32 %v4171, %v4181
    %v4196 = vmul.f32 %v4172, %v4182
    %v4197 = vadd.f32 %v4193, %v4195
    %v4198 = vadd.f32 %v4194, %v4196
    %v4199 = vtanh.pop %v4197
    %v4200 = vtanh.pop %v4198
    %v4201 = vmul.f32 %v4189, %v4199
    %v4202 = vmul.f32 %v4190, %v4200
    %v4203 = vpack.c.bf16 %v4202, %v4201
    %4204 = vst [vmem:[#allocation5] sm:$0xff] %v4197
    %4205 = vst [vmem:[#allocation5 + $0x8] sm:$0xff] %v4198
    %4206 = vst [vmem:[#allocation4] sm:$0xff] %v4203
    %v4207 = vld [vmem:[#allocation4] sm:$0xff]
    %v4208 = vld [vmem:[#allocation14] sm:$0xff]
    %v4209 = vld [vmem:[#allocation14 + $0x8] sm:$0xff]
    %v4210 = vld [vmem:[#allocation14 + $0x10] sm:$0xff]
    %v4211 = vld [vmem:[#allocation14 + $0x18] sm:$0xff]
    %v4212 = vld [vmem:[#allocation14 + $0x20] sm:$0xff]
    %v4213 = vld [vmem:[#allocation14 + $0x28] sm:$0xff]
    %v4214 = vld [vmem:[#allocation14 + $0x30] sm:$0xff]
    %v4215 = vld [vmem:[#allocation14 + $0x38] sm:$0xff]
    %v4216 = vld [vmem:[#allocation14 + $0x40] sm:$0xff]
    %v4217 = vld [vmem:[#allocation14 + $0x48] sm:$0xff]
    %v4218 = vld [vmem:[#allocation14 + $0x50] sm:$0xff]
    %v4219 = vld [vmem:[#allocation14 + $0x58] sm:$0xff]
    %v4220 = vld [vmem:[#allocation14 + $0x60] sm:$0xff]
    %v4221 = vld [vmem:[#allocation14 + $0x68] sm:$0xff]
    %v4222 = vld [vmem:[#allocation14 + $0x70] sm:$0xff]
    %v4223 = vld [vmem:[#allocation14 + $0x78] sm:$0xff]
    %v4224 = vld [vmem:[#allocation14 + $0x80] sm:$0xff]
    %v4225 = vld [vmem:[#allocation14 + $0x88] sm:$0xff]
    %v4226 = vld [vmem:[#allocation14 + $0x90] sm:$0xff]
    %v4227 = vld [vmem:[#allocation14 + $0x98] sm:$0xff]
    %v4228 = vld [vmem:[#allocation14 + $0xa0] sm:$0xff]
    %v4229 = vld [vmem:[#allocation14 + $0xa8] sm:$0xff]
    %v4230 = vld [vmem:[#allocation14 + $0xb0] sm:$0xff]
    %v4231 = vld [vmem:[#allocation14 + $0xb8] sm:$0xff]
    %v4232 = vld [vmem:[#allocation14 + $0xc0] sm:$0xff]
    %v4233 = vld [vmem:[#allocation14 + $0xc8] sm:$0xff]
    %v4234 = vld [vmem:[#allocation14 + $0xd0] sm:$0xff]
    %v4235 = vld [vmem:[#allocation14 + $0xd8] sm:$0xff]
    %v4236 = vld [vmem:[#allocation14 + $0xe0] sm:$0xff]
    %v4237 = vld [vmem:[#allocation14 + $0xe8] sm:$0xff]
    %v4238 = vld [vmem:[#allocation14 + $0xf0] sm:$0xff]
    %v4239 = vld [vmem:[#allocation14 + $0xf8] sm:$0xff]
    %v4240 = vld [vmem:[#allocation3 + $0x20] sm:$0xff]
    %v4241 = vld [vmem:[#allocation3 + $0x28] sm:$0xff]
    %v4242 = vld [vmem:[#allocation3 + $0x30] sm:$0xff]
    %v4243 = vld [vmem:[#allocation3 + $0x38] sm:$0xff]
    %v4244 = vunpack.c.l.bf16 %v4240
    %v4245 = vunpack.c.l.bf16 %v4241
    %v4246 = vunpack.c.l.bf16 %v4242
    %v4247 = vunpack.c.l.bf16 %v4243
    %v4248 = vunpack.c.h.bf16 %v4240
    %v4249 = vunpack.c.h.bf16 %v4241
    %v4250 = vunpack.c.h.bf16 %v4242
    %v4251 = vunpack.c.h.bf16 %v4243
    %v4284 = vunpack.c.l.b16 %v4208
    %v4285 = vunpack.c.h.b16 %v4208
    %v4286 = vunpack.c.l.b16 %v4209
    %v4287 = vunpack.c.h.b16 %v4209
    %v4288 = vunpack.c.l.b16 %v4210
    %v4289 = vunpack.c.h.b16 %v4210
    %v4290 = vunpack.c.l.b16 %v4211
    %v4291 = vunpack.c.h.b16 %v4211
    %v4292 = vunpack.c.l.b16 %v4212
    %v4293 = vunpack.c.h.b16 %v4212
    %v4294 = vunpack.c.l.b16 %v4213
    %v4295 = vunpack.c.h.b16 %v4213
    %v4296 = vunpack.c.l.b16 %v4214
    %v4297 = vunpack.c.h.b16 %v4214
    %v4298 = vunpack.c.l.b16 %v4215
    %v4299 = vunpack.c.h.b16 %v4215
    %v4300 = vunpack.c.l.b16 %v4216
    %v4301 = vunpack.c.h.b16 %v4216
    %v4302 = vunpack.c.l.b16 %v4217
    %v4303 = vunpack.c.h.b16 %v4217
    %v4304 = vunpack.c.l.b16 %v4218
    %v4305 = vunpack.c.h.b16 %v4218
    %v4306 = vunpack.c.l.b16 %v4219
    %v4307 = vunpack.c.h.b16 %v4219
    %v4308 = vunpack.c.l.b16 %v4220
    %v4309 = vunpack.c.h.b16 %v4220
    %v4310 = vunpack.c.l.b16 %v4221
    %v4311 = vunpack.c.h.b16 %v4221
    %v4312 = vunpack.c.l.b16 %v4222
    %v4313 = vunpack.c.h.b16 %v4222
    %v4314 = vunpack.c.l.b16 %v4223
    %v4315 = vunpack.c.h.b16 %v4223
    %v4316 = vunpack.c.l.b16 %v4224
    %v4317 = vunpack.c.h.b16 %v4224
    %v4318 = vunpack.c.l.b16 %v4225
    %v4319 = vunpack.c.h.b16 %v4225
    %v4320 = vunpack.c.l.b16 %v4226
    %v4321 = vunpack.c.h.b16 %v4226
    %v4322 = vunpack.c.l.b16 %v4227
    %v4323 = vunpack.c.h.b16 %v4227
    %v4324 = vunpack.c.l.b16 %v4228
    %v4325 = vunpack.c.h.b16 %v4228
    %v4326 = vunpack.c.l.b16 %v4229
    %v4327 = vunpack.c.h.b16 %v4229
    %v4328 = vunpack.c.l.b16 %v4230
    %v4329 = vunpack.c.h.b16 %v4230
    %v4330 = vunpack.c.l.b16 %v4231
    %v4331 = vunpack.c.h.b16 %v4231
    %v4332 = vunpack.c.l.b16 %v4232
    %v4333 = vunpack.c.h.b16 %v4232
    %v4334 = vunpack.c.l.b16 %v4233
    %v4335 = vunpack.c.h.b16 %v4233
    %v4336 = vunpack.c.l.b16 %v4234
    %v4337 = vunpack.c.h.b16 %v4234
    %v4338 = vunpack.c.l.b16 %v4235
    %v4339 = vunpack.c.h.b16 %v4235
    %v4340 = vunpack.c.l.b16 %v4236
    %v4341 = vunpack.c.h.b16 %v4236
    %v4342 = vunpack.c.l.b16 %v4237
    %v4343 = vunpack.c.h.b16 %v4237
    %v4344 = vunpack.c.l.b16 %v4238
    %v4345 = vunpack.c.h.b16 %v4238
    %v4346 = vunpack.c.l.b16 %v4239
    %v4347 = vunpack.c.h.b16 %v4239
    %v4348 = vpack.c.b16 %v4288, %v4284
    %v4349 = vpack.c.b16 %v4289, %v4285
    %v4350 = vpack.c.b16 %v4290, %v4286
    %v4351 = vpack.c.b16 %v4291, %v4287
    %v4352 = vpack.c.b16 %v4296, %v4292
    %v4353 = vpack.c.b16 %v4297, %v4293
    %v4354 = vpack.c.b16 %v4298, %v4294
    %v4355 = vpack.c.b16 %v4299, %v4295
    %v4356 = vpack.c.b16 %v4304, %v4300
    %v4357 = vpack.c.b16 %v4305, %v4301
    %v4358 = vpack.c.b16 %v4306, %v4302
    %v4359 = vpack.c.b16 %v4307, %v4303
    %v4360 = vpack.c.b16 %v4312, %v4308
    %v4361 = vpack.c.b16 %v4313, %v4309
    %v4362 = vpack.c.b16 %v4314, %v4310
    %v4363 = vpack.c.b16 %v4315, %v4311
    %v4364 = vpack.c.b16 %v4320, %v4316
    %v4365 = vpack.c.b16 %v4321, %v4317
    %v4366 = vpack.c.b16 %v4322, %v4318
    %v4367 = vpack.c.b16 %v4323, %v4319
    %v4368 = vpack.c.b16 %v4328, %v4324
    %v4369 = vpack.c.b16 %v4329, %v4325
    %v4370 = vpack.c.b16 %v4330, %v4326
    %v4371 = vpack.c.b16 %v4331, %v4327
    %v4372 = vpack.c.b16 %v4336, %v4332
    %v4373 = vpack.c.b16 %v4337, %v4333
    %v4374 = vpack.c.b16 %v4338, %v4334
    %v4375 = vpack.c.b16 %v4339, %v4335
    %v4376 = vpack.c.b16 %v4344, %v4340
    %v4377 = vpack.c.b16 %v4345, %v4341
    %v4378 = vpack.c.b16 %v4346, %v4342
    %v4379 = vpack.c.b16 %v4347, %v4343
    %4412 = vmatprep.subr.bf16.mxu0 %v4349
    %4413 = vmatpush1.bf16.msra.mxu0 %v4348
    %4414 = vmatprep.subr.bf16.mxu0 %v4353
    %4415 = vmatpush1.bf16.msra.mxu0 %v4352
    %4416 = vmatprep.subr.bf16.mxu0 %v4357
    %4417 = vmatpush1.bf16.msra.mxu0 %v4356
    %4418 = vmatprep.subr.bf16.mxu0 %v4361
    %4419 = vmatpush1.bf16.msra.mxu0 %v4360
    %4420 = vmatprep.subr.bf16.mxu0 %v4365
    %4421 = vmatpush1.bf16.msra.mxu0 %v4364
    %4422 = vmatprep.subr.bf16.mxu0 %v4369
    %4423 = vmatpush1.bf16.msra.mxu0 %v4368
    %4424 = vmatprep.subr.bf16.mxu0 %v4373
    %4425 = vmatpush1.bf16.msra.mxu0 %v4372
    %4426 = vmatprep.subr.bf16.mxu0 %v4377
    %4427 = vmatpush1.bf16.msra.mxu0 %v4376
    %4428 = vmatprep.subr.bf16.mxu0 0
    %4429 = vmatpush1.bf16.msra.mxu0 0
    %4430 = vmatprep.subr.bf16.mxu0 0
    %4431 = vmatpush1.bf16.msra.mxu0 0
    %4432 = vmatprep.subr.bf16.mxu0 0
    %4433 = vmatpush1.bf16.msra.mxu0 0
    %4434 = vmatprep.subr.bf16.mxu0 0
    %4435 = vmatpush1.bf16.msra.mxu0 0
    %4436 = vmatprep.subr.bf16.mxu0 0
    %4437 = vmatpush1.bf16.msra.mxu0 0
    %4438 = vmatprep.subr.bf16.mxu0 0
    %4439 = vmatpush1.bf16.msra.mxu0 0
    %4440 = vmatprep.subr.bf16.mxu0 0
    %4441 = vmatpush1.bf16.msra.mxu0 0
    %4442 = vmatprep.subr.bf16.mxu0 0
    %4443 = vmatpush1.bf16.msra.mxu0 0
    %4444 = vmatprep.mubr.bf16.mxu0 0
    %4445 = vmatmul.mubr.bf16.gmra.mrb[0].mxu0 %v4207
    %v4446 = vpop.f32.mrb[0].mxu0
    %v4447 = vadd.f32 %v4244, %v4446
    %v4448 = vpop.f32.mrb[0].mxu0
    %v4449 = vadd.f32 %v4245, %v4448
    %v4450 = vpop.f32.mrb[0].mxu0
    %v4451 = vadd.f32 %v4248, %v4450
    %v4452 = vpop.f32.mrb[0].mxu0
    %v4453 = vadd.f32 %v4249, %v4452
    %4454 = vdwg.mxu0
    %4455 = vmatprep.subr.bf16.mxu0 %v4351
    %4456 = vmatpush1.bf16.msra.mxu0 %v4350
    %4457 = vmatprep.subr.bf16.mxu0 %v4355
    %4458 = vmatpush1.bf16.msra.mxu0 %v4354
    %4459 = vmatprep.subr.bf16.mxu0 %v4359
    %4460 = vmatpush1.bf16.msra.mxu0 %v4358
    %4461 = vmatprep.subr.bf16.mxu0 %v4363
    %4462 = vmatpush1.bf16.msra.mxu0 %v4362
    %4463 = vmatprep.subr.bf16.mxu0 %v4367
    %4464 = vmatpush1.bf16.msra.mxu0 %v4366
    %4465 = vmatprep.subr.bf16.mxu0 %v4371
    %4466 = vmatpush1.bf16.msra.mxu0 %v4370
    %4467 = vmatprep.subr.bf16.mxu0 %v4375
    %4468 = vmatpush1.bf16.msra.mxu0 %v4374
    %4469 = vmatprep.subr.bf16.mxu0 %v4379
    %4470 = vmatpush1.bf16.msra.mxu0 %v4378
    %4471 = vmatprep.subr.bf16.mxu0 0
    %4472 = vmatpush1.bf16.msra.mxu0 0
    %4473 = vmatprep.subr.bf16.mxu0 0
    %4474 = vmatpush1.bf16.msra.mxu0 0
    %4475 = vmatprep.subr.bf16.mxu0 0
    %4476 = vmatpush1.bf16.msra.mxu0 0
    %4477 = vmatprep.subr.bf16.mxu0 0
    %4478 = vmatpush1.bf16.msra.mxu0 0
    %4479 = vmatprep.subr.bf16.mxu0 0
    %4480 = vmatpush1.bf16.msra.mxu0 0
    %4481 = vmatprep.subr.bf16.mxu0 0
    %4482 = vmatpush1.bf16.msra.mxu0 0
    %4483 = vmatprep.subr.bf16.mxu0 0
    %4484 = vmatpush1.bf16.msra.mxu0 0
    %4485 = vmatprep.subr.bf16.mxu0 0
    %4486 = vmatpush1.bf16.msra.mxu0 0
    %4487 = vmatprep.mubr.bf16.mxu0 0
    %4488 = vmatmul.mubr.bf16.gmra.mrb[0].mxu0 %v4207
    %v4489 = vpop.f32.mrb[0].mxu0
    %v4490 = vadd.f32 %v4246, %v4489
    %v4491 = vpop.f32.mrb[0].mxu0
    %v4492 = vadd.f32 %v4247, %v4491
    %v4493 = vpop.f32.mrb[0].mxu0
    %v4494 = vadd.f32 %v4250, %v4493
    %v4495 = vpop.f32.mrb[0].mxu0
    %v4496 = vadd.f32 %v4251, %v4495
    %4497 = vdwg.mxu0
    %v4498 = vmul.f32 %v4447, 0.5
    %v4499 = vmul.f32 %v4451, 0.5
    %v4500 = vtanh.pop %v4498
    %v4501 = vtanh.pop %v4499
    %v4502 = vmul.f32 %v4500, 0.5
    %v4503 = vmul.f32 %v4501, 0.5
    %v4504 = vadd.f32 %v4502, 0.5
    %v4505 = vadd.f32 %v4503, 0.5
    %v4506 = vmul.f32 %v4449, 0.5
    %v4507 = vmul.f32 %v4453, 0.5
    %v4508 = vtanh.pop %v4506
    %v4509 = vtanh.pop %v4507
    %v4510 = vmul.f32 %v4508, 0.5
    %v4511 = vmul.f32 %v4509, 0.5
    %v4512 = vadd.f32 %v4510, 0.5
    %v4513 = vadd.f32 %v4511, 0.5
    %v4514 = vtanh.pop %v4490
    %v4515 = vtanh.pop %v4494
    %v4516 = vmul.f32 %v4492, 0.5
    %v4517 = vmul.f32 %v4496, 0.5
    %v4518 = vtanh.pop %v4516
    %v4519 = vtanh.pop %v4517
    %v4520 = vmul.f32 %v4518, 0.5
    %v4521 = vmul.f32 %v4519, 0.5
    %v4522 = vadd.f32 %v4520, 0.5
    %v4523 = vadd.f32 %v4521, 0.5
    %v4524 = vld [vmem:[#allocation5] sm:$0xff]
    %v4525 = vld [vmem:[#allocation5 + $0x8] sm:$0xff]
    %v4526 = vmul.f32 %v4512, %v4524
    %v4527 = vmul.f32 %v4513, %v4525
    %v4528 = vmul.f32 %v4504, %v4514
    %v4529 = vmul.f32 %v4505, %v4515
    %v4530 = vadd.f32 %v4526, %v4528
    %v4531 = vadd.f32 %v4527, %v4529
    %v4532 = vtanh.pop %v4530
    %v4533 = vtanh.pop %v4531
    %v4534 = vmul.f32 %v4522, %v4532
    %v4535 = vmul.f32 %v4523, %v4533
    %v4536 = vpack.c.bf16 %v4535, %v4534
    %4537 = vst [vmem:[#allocation5] sm:$0xff] %v4530
    %4538 = vst [vmem:[#allocation5 + $0x8] sm:$0xff] %v4531
    %4539 = vst [vmem:[#allocation4] sm:$0xff] %v4536
    %v4540 = vld [vmem:[#allocation4] sm:$0xff]
    %v4541 = vld [vmem:[#allocation14] sm:$0xff]
    %v4542 = vld [vmem:[#allocation14 + $0x8] sm:$0xff]
    %v4543 = vld [vmem:[#allocation14 + $0x10] sm:$0xff]
    %v4544 = vld [vmem:[#allocation14 + $0x18] sm:$0xff]
    %v4545 = vld [vmem:[#allocation14 + $0x20] sm:$0xff]
    %v4546 = vld [vmem:[#allocation14 + $0x28] sm:$0xff]
    %v4547 = vld [vmem:[#allocation14 + $0x30] sm:$0xff]
    %v4548 = vld [vmem:[#allocation14 + $0x38] sm:$0xff]
    %v4549 = vld [vmem:[#allocation14 + $0x40] sm:$0xff]
    %v4550 = vld [vmem:[#allocation14 + $0x48] sm:$0xff]
    %v4551 = vld [vmem:[#allocation14 + $0x50] sm:$0xff]
    %v4552 = vld [vmem:[#allocation14 + $0x58] sm:$0xff]
    %v4553 = vld [vmem:[#allocation14 + $0x60] sm:$0xff]
    %v4554 = vld [vmem:[#allocation14 + $0x68] sm:$0xff]
    %v4555 = vld [vmem:[#allocation14 + $0x70] sm:$0xff]
    %v4556 = vld [vmem:[#allocation14 + $0x78] sm:$0xff]
    %v4557 = vld [vmem:[#allocation14 + $0x80] sm:$0xff]
    %v4558 = vld [vmem:[#allocation14 + $0x88] sm:$0xff]
    %v4559 = vld [vmem:[#allocation14 + $0x90] sm:$0xff]
    %v4560 = vld [vmem:[#allocation14 + $0x98] sm:$0xff]
    %v4561 = vld [vmem:[#allocation14 + $0xa0] sm:$0xff]
    %v4562 = vld [vmem:[#allocation14 + $0xa8] sm:$0xff]
    %v4563 = vld [vmem:[#allocation14 + $0xb0] sm:$0xff]
    %v4564 = vld [vmem:[#allocation14 + $0xb8] sm:$0xff]
    %v4565 = vld [vmem:[#allocation14 + $0xc0] sm:$0xff]
    %v4566 = vld [vmem:[#allocation14 + $0xc8] sm:$0xff]
    %v4567 = vld [vmem:[#allocation14 + $0xd0] sm:$0xff]
    %v4568 = vld [vmem:[#allocation14 + $0xd8] sm:$0xff]
    %v4569 = vld [vmem:[#allocation14 + $0xe0] sm:$0xff]
    %v4570 = vld [vmem:[#allocation14 + $0xe8] sm:$0xff]
    %v4571 = vld [vmem:[#allocation14 + $0xf0] sm:$0xff]
    %v4572 = vld [vmem:[#allocation14 + $0xf8] sm:$0xff]
    %v4573 = vld [vmem:[#allocation3 + $0x40] sm:$0xff]
    %v4574 = vld [vmem:[#allocation3 + $0x48] sm:$0xff]
    %v4575 = vld [vmem:[#allocation3 + $0x50] sm:$0xff]
    %v4576 = vld [vmem:[#allocation3 + $0x58] sm:$0xff]
    %v4577 = vunpack.c.l.bf16 %v4573
    %v4578 = vunpack.c.l.bf16 %v4574
    %v4579 = vunpack.c.l.bf16 %v4575
    %v4580 = vunpack.c.l.bf16 %v4576
    %v4581 = vunpack.c.h.bf16 %v4573
    %v4582 = vunpack.c.h.bf16 %v4574
    %v4583 = vunpack.c.h.bf16 %v4575
    %v4584 = vunpack.c.h.bf16 %v4576
    %v4617 = vunpack.c.l.b16 %v4541
    %v4618 = vunpack.c.h.b16 %v4541
    %v4619 = vunpack.c.l.b16 %v4542
    %v4620 = vunpack.c.h.b16 %v4542
    %v4621 = vunpack.c.l.b16 %v4543
    %v4622 = vunpack.c.h.b16 %v4543
    %v4623 = vunpack.c.l.b16 %v4544
    %v4624 = vunpack.c.h.b16 %v4544
    %v4625 = vunpack.c.l.b16 %v4545
    %v4626 = vunpack.c.h.b16 %v4545
    %v4627 = vunpack.c.l.b16 %v4546
    %v4628 = vunpack.c.h.b16 %v4546
    %v4629 = vunpack.c.l.b16 %v4547
    %v4630 = vunpack.c.h.b16 %v4547
    %v4631 = vunpack.c.l.b16 %v4548
    %v4632 = vunpack.c.h.b16 %v4548
    %v4633 = vunpack.c.l.b16 %v4549
    %v4634 = vunpack.c.h.b16 %v4549
    %v4635 = vunpack.c.l.b16 %v4550
    %v4636 = vunpack.c.h.b16 %v4550
    %v4637 = vunpack.c.l.b16 %v4551
    %v4638 = vunpack.c.h.b16 %v4551
    %v4639 = vunpack.c.l.b16 %v4552
    %v4640 = vunpack.c.h.b16 %v4552
    %v4641 = vunpack.c.l.b16 %v4553
    %v4642 = vunpack.c.h.b16 %v4553
    %v4643 = vunpack.c.l.b16 %v4554
    %v4644 = vunpack.c.h.b16 %v4554
    %v4645 = vunpack.c.l.b16 %v4555
    %v4646 = vunpack.c.h.b16 %v4555
    %v4647 = vunpack.c.l.b16 %v4556
    %v4648 = vunpack.c.h.b16 %v4556
    %v4649 = vunpack.c.l.b16 %v4557
    %v4650 = vunpack.c.h.b16 %v4557
    %v4651 = vunpack.c.l.b16 %v4558
    %v4652 = vunpack.c.h.b16 %v4558
    %v4653 = vunpack.c.l.b16 %v4559
    %v4654 = vunpack.c.h.b16 %v4559
    %v4655 = vunpack.c.l.b16 %v4560
    %v4656 = vunpack.c.h.b16 %v4560
    %v4657 = vunpack.c.l.b16 %v4561
    %v4658 = vunpack.c.h.b16 %v4561
    %v4659 = vunpack.c.l.b16 %v4562
    %v4660 = vunpack.c.h.b16 %v4562
    %v4661 = vunpack.c.l.b16 %v4563
    %v4662 = vunpack.c.h.b16 %v4563
    %v4663 = vunpack.c.l.b16 %v4564
    %v4664 = vunpack.c.h.b16 %v4564
    %v4665 = vunpack.c.l.b16 %v4565
    %v4666 = vunpack.c.h.b16 %v4565
    %v4667 = vunpack.c.l.b16 %v4566
    %v4668 = vunpack.c.h.b16 %v4566
    %v4669 = vunpack.c.l.b16 %v4567
    %v4670 = vunpack.c.h.b16 %v4567
    %v4671 = vunpack.c.l.b16 %v4568
    %v4672 = vunpack.c.h.b16 %v4568
    %v4673 = vunpack.c.l.b16 %v4569
    %v4674 = vunpack.c.h.b16 %v4569
    %v4675 = vunpack.c.l.b16 %v4570
    %v4676 = vunpack.c.h.b16 %v4570
    %v4677 = vunpack.c.l.b16 %v4571
    %v4678 = vunpack.c.h.b16 %v4571
    %v4679 = vunpack.c.l.b16 %v4572
    %v4680 = vunpack.c.h.b16 %v4572
    %v4681 = vpack.c.b16 %v4621, %v4617
    %v4682 = vpack.c.b16 %v4622, %v4618
    %v4683 = vpack.c.b16 %v4623, %v4619
    %v4684 = vpack.c.b16 %v4624, %v4620
    %v4685 = vpack.c.b16 %v4629, %v4625
    %v4686 = vpack.c.b16 %v4630, %v4626
    %v4687 = vpack.c.b16 %v4631, %v4627
    %v4688 = vpack.c.b16 %v4632, %v4628
    %v4689 = vpack.c.b16 %v4637, %v4633
    %v4690 = vpack.c.b16 %v4638, %v4634
    %v4691 = vpack.c.b16 %v4639, %v4635
    %v4692 = vpack.c.b16 %v4640, %v4636
    %v4693 = vpack.c.b16 %v4645, %v4641
    %v4694 = vpack.c.b16 %v4646, %v4642
    %v4695 = vpack.c.b16 %v4647, %v4643
    %v4696 = vpack.c.b16 %v4648, %v4644
    %v4697 = vpack.c.b16 %v4653, %v4649
    %v4698 = vpack.c.b16 %v4654, %v4650
    %v4699 = vpack.c.b16 %v4655, %v4651
    %v4700 = vpack.c.b16 %v4656, %v4652
    %v4701 = vpack.c.b16 %v4661, %v4657
    %v4702 = vpack.c.b16 %v4662, %v4658
    %v4703 = vpack.c.b16 %v4663, %v4659
    %v4704 = vpack.c.b16 %v4664, %v4660
    %v4705 = vpack.c.b16 %v4669, %v4665
    %v4706 = vpack.c.b16 %v4670, %v4666
    %v4707 = vpack.c.b16 %v4671, %v4667
    %v4708 = vpack.c.b16 %v4672, %v4668
    %v4709 = vpack.c.b16 %v4677, %v4673
    %v4710 = vpack.c.b16 %v4678, %v4674
    %v4711 = vpack.c.b16 %v4679, %v4675
    %v4712 = vpack.c.b16 %v4680, %v4676
    %4745 = vmatprep.subr.bf16.mxu0 %v4682
    %4746 = vmatpush1.bf16.msra.mxu0 %v4681
    %4747 = vmatprep.subr.bf16.mxu0 %v4686
    %4748 = vmatpush1.bf16.msra.mxu0 %v4685
    %4749 = vmatprep.subr.bf16.mxu0 %v4690
    %4750 = vmatpush1.bf16.msra.mxu0 %v4689
    %4751 = vmatprep.subr.bf16.mxu0 %v4694
    %4752 = vmatpush1.bf16.msra.mxu0 %v4693
    %4753 = vmatprep.subr.bf16.mxu0 %v4698
    %4754 = vmatpush1.bf16.msra.mxu0 %v4697
    %4755 = vmatprep.subr.bf16.mxu0 %v4702
    %4756 = vmatpush1.bf16.msra.mxu0 %v4701
    %4757 = vmatprep.subr.bf16.mxu0 %v4706
    %4758 = vmatpush1.bf16.msra.mxu0 %v4705
    %4759 = vmatprep.subr.bf16.mxu0 %v4710
    %4760 = vmatpush1.bf16.msra.mxu0 %v4709
    %4761 = vmatprep.subr.bf16.mxu0 0
    %4762 = vmatpush1.bf16.msra.mxu0 0
    %4763 = vmatprep.subr.bf16.mxu0 0
    %4764 = vmatpush1.bf16.msra.mxu0 0
    %4765 = vmatprep.subr.bf16.mxu0 0
    %4766 = vmatpush1.bf16.msra.mxu0 0
    %4767 = vmatprep.subr.bf16.mxu0 0
    %4768 = vmatpush1.bf16.msra.mxu0 0
    %4769 = vmatprep.subr.bf16.mxu0 0
    %4770 = vmatpush1.bf16.msra.mxu0 0
    %4771 = vmatprep.subr.bf16.mxu0 0
    %4772 = vmatpush1.bf16.msra.mxu0 0
    %4773 = vmatprep.subr.bf16.mxu0 0
    %4774 = vmatpush1.bf16.msra.mxu0 0
    %4775 = vmatprep.subr.bf16.mxu0 0
    %4776 = vmatpush1.bf16.msra.mxu0 0
    %4777 = vmatprep.mubr.bf16.mxu0 0
    %4778 = vmatmul.mubr.bf16.gmra.mrb[0].mxu0 %v4540
    %v4779 = vpop.f32.mrb[0].mxu0
    %v4780 = vadd.f32 %v4577, %v4779
    %v4781 = vpop.f32.mrb[0].mxu0
    %v4782 = vadd.f32 %v4578, %v4781
    %v4783 = vpop.f32.mrb[0].mxu0
    %v4784 = vadd.f32 %v4581, %v4783
    %v4785 = vpop.f32.mrb[0].mxu0
    %v4786 = vadd.f32 %v4582, %v4785
    %4787 = vdwg.mxu0
    %4788 = vmatprep.subr.bf16.mxu0 %v4684
    %4789 = vmatpush1.bf16.msra.mxu0 %v4683
    %4790 = vmatprep.subr.bf16.mxu0 %v4688
    %4791 = vmatpush1.bf16.msra.mxu0 %v4687
    %4792 = vmatprep.subr.bf16.mxu0 %v4692
    %4793 = vmatpush1.bf16.msra.mxu0 %v4691
    %4794 = vmatprep.subr.bf16.mxu0 %v4696
    %4795 = vmatpush1.bf16.msra.mxu0 %v4695
    %4796 = vmatprep.subr.bf16.mxu0 %v4700
    %4797 = vmatpush1.bf16.msra.mxu0 %v4699
    %4798 = vmatprep.subr.bf16.mxu0 %v4704
    %4799 = vmatpush1.bf16.msra.mxu0 %v4703
    %4800 = vmatprep.subr.bf16.mxu0 %v4708
    %4801 = vmatpush1.bf16.msra.mxu0 %v4707
    %4802 = vmatprep.subr.bf16.mxu0 %v4712
    %4803 = vmatpush1.bf16.msra.mxu0 %v4711
    %4804 = vmatprep.subr.bf16.mxu0 0
    %4805 = vmatpush1.bf16.msra.mxu0 0
    %4806 = vmatprep.subr.bf16.mxu0 0
    %4807 = vmatpush1.bf16.msra.mxu0 0
    %4808 = vmatprep.subr.bf16.mxu0 0
    %4809 = vmatpush1.bf16.msra.mxu0 0
    %4810 = vmatprep.subr.bf16.mxu0 0
    %4811 = vmatpush1.bf16.msra.mxu0 0
    %4812 = vmatprep.subr.bf16.mxu0 0
    %4813 = vmatpush1.bf16.msra.mxu0 0
    %4814 = vmatprep.subr.bf16.mxu0 0
    %4815 = vmatpush1.bf16.msra.mxu0 0
    %4816 = vmatprep.subr.bf16.mxu0 0
    %4817 = vmatpush1.bf16.msra.mxu0 0
    %4818 = vmatprep.subr.bf16.mxu0 0
    %4819 = vmatpush1.bf16.msra.mxu0 0
    %4820 = vmatprep.mubr.bf16.mxu0 0
    %4821 = vmatmul.mubr.bf16.gmra.mrb[0].mxu0 %v4540
    %v4822 = vpop.f32.mrb[0].mxu0
    %v4823 = vadd.f32 %v4579, %v4822
    %v4824 = vpop.f32.mrb[0].mxu0
    %v4825 = vadd.f32 %v4580, %v4824
    %v4826 = vpop.f32.mrb[0].mxu0
    %v4827 = vadd.f32 %v4583, %v4826
    %v4828 = vpop.f32.mrb[0].mxu0
    %v4829 = vadd.f32 %v4584, %v4828
    %4830 = vdwg.mxu0
    %v4831 = vmul.f32 %v4780, 0.5
    %v4832 = vmul.f32 %v4784, 0.5
    %v4833 = vtanh.pop %v4831
    %v4834 = vtanh.pop %v4832
    %v4835 = vmul.f32 %v4833, 0.5
    %v4836 = vmul.f32 %v4834, 0.5
    %v4837 = vadd.f32 %v4835, 0.5
    %v4838 = vadd.f32 %v4836, 0.5
    %v4839 = vmul.f32 %v4782, 0.5
    %v4840 = vmul.f32 %v4786, 0.5
    %v4841 = vtanh.pop %v4839
    %v4842 = vtanh.pop %v4840
    %v4843 = vmul.f32 %v4841, 0.5
    %v4844 = vmul.f32 %v4842, 0.5
    %v4845 = vadd.f32 %v4843, 0.5
    %v4846 = vadd.f32 %v4844, 0.5
    %v4847 = vtanh.pop %v4823
    %v4848 = vtanh.pop %v4827
    %v4849 = vmul.f32 %v4825, 0.5
    %v4850 = vmul.f32 %v4829, 0.5
    %v4851 = vtanh.pop %v4849
    %v4852 = vtanh.pop %v4850
    %v4853 = vmul.f32 %v4851, 0.5
    %v4854 = vmul.f32 %v4852, 0.5
    %v4855 = vadd.f32 %v4853, 0.5
    %v4856 = vadd.f32 %v4854, 0.5
    %v4857 = vld [vmem:[#allocation5] sm:$0xff]
    %v4858 = vld [vmem:[#allocation5 + $0x8] sm:$0xff]
    %v4859 = vmul.f32 %v4845, %v4857
    %v4860 = vmul.f32 %v4846, %v4858
    %v4861 = vmul.f32 %v4837, %v4847
    %v4862 = vmul.f32 %v4838, %v4848
    %v4863 = vadd.f32 %v4859, %v4861
    %v4864 = vadd.f32 %v4860, %v4862
    %v4865 = vtanh.pop %v4863
    %v4866 = vtanh.pop %v4864
    %v4867 = vmul.f32 %v4855, %v4865
    %v4868 = vmul.f32 %v4856, %v4866
    %v4869 = vpack.c.bf16 %v4868, %v4867
    %4870 = vst [vmem:[#allocation5] sm:$0xff] %v4863
    %4871 = vst [vmem:[#allocation5 + $0x8] sm:$0xff] %v4864
    %4872 = vst [vmem:[#allocation4] sm:$0xff] %v4869
    %v4873 = vld [vmem:[#allocation4] sm:$0xff]
    %v4874 = vld [vmem:[#allocation14] sm:$0xff]
    %v4875 = vld [vmem:[#allocation14 + $0x8] sm:$0xff]
    %v4876 = vld [vmem:[#allocation14 + $0x10] sm:$0xff]
    %v4877 = vld [vmem:[#allocation14 + $0x18] sm:$0xff]
    %v4878 = vld [vmem:[#allocation14 + $0x20] sm:$0xff]
    %v4879 = vld [vmem:[#allocation14 + $0x28] sm:$0xff]
    %v4880 = vld [vmem:[#allocation14 + $0x30] sm:$0xff]
    %v4881 = vld [vmem:[#allocation14 + $0x38] sm:$0xff]
    %v4882 = vld [vmem:[#allocation14 + $0x40] sm:$0xff]
    %v4883 = vld [vmem:[#allocation14 + $0x48] sm:$0xff]
    %v4884 = vld [vmem:[#allocation14 + $0x50] sm:$0xff]
    %v4885 = vld [vmem:[#allocation14 + $0x58] sm:$0xff]
    %v4886 = vld [vmem:[#allocation14 + $0x60] sm:$0xff]
    %v4887 = vld [vmem:[#allocation14 + $0x68] sm:$0xff]
    %v4888 = vld [vmem:[#allocation14 + $0x70] sm:$0xff]
    %v4889 = vld [vmem:[#allocation14 + $0x78] sm:$0xff]
    %v4890 = vld [vmem:[#allocation14 + $0x80] sm:$0xff]
    %v4891 = vld [vmem:[#allocation14 + $0x88] sm:$0xff]
    %v4892 = vld [vmem:[#allocation14 + $0x90] sm:$0xff]
    %v4893 = vld [vmem:[#allocation14 + $0x98] sm:$0xff]
    %v4894 = vld [vmem:[#allocation14 + $0xa0] sm:$0xff]
    %v4895 = vld [vmem:[#allocation14 + $0xa8] sm:$0xff]
    %v4896 = vld [vmem:[#allocation14 + $0xb0] sm:$0xff]
    %v4897 = vld [vmem:[#allocation14 + $0xb8] sm:$0xff]
    %v4898 = vld [vmem:[#allocation14 + $0xc0] sm:$0xff]
    %v4899 = vld [vmem:[#allocation14 + $0xc8] sm:$0xff]
    %v4900 = vld [vmem:[#allocation14 + $0xd0] sm:$0xff]
    %v4901 = vld [vmem:[#allocation14 + $0xd8] sm:$0xff]
    %v4902 = vld [vmem:[#allocation14 + $0xe0] sm:$0xff]
    %v4903 = vld [vmem:[#allocation14 + $0xe8] sm:$0xff]
    %v4904 = vld [vmem:[#allocation14 + $0xf0] sm:$0xff]
    %v4905 = vld [vmem:[#allocation14 + $0xf8] sm:$0xff]
    %v4906 = vld [vmem:[#allocation3 + $0x60] sm:$0xff]
    %v4907 = vld [vmem:[#allocation3 + $0x68] sm:$0xff]
    %v4908 = vld [vmem:[#allocation3 + $0x70] sm:$0xff]
    %v4909 = vld [vmem:[#allocation3 + $0x78] sm:$0xff]
    %v4910 = vunpack.c.l.bf16 %v4906
    %v4911 = vunpack.c.l.bf16 %v4907
    %v4912 = vunpack.c.l.bf16 %v4908
    %v4913 = vunpack.c.l.bf16 %v4909
    %v4914 = vunpack.c.h.bf16 %v4906
    %v4915 = vunpack.c.h.bf16 %v4907
    %v4916 = vunpack.c.h.bf16 %v4908
    %v4917 = vunpack.c.h.bf16 %v4909
    %v4950 = vunpack.c.l.b16 %v4874
    %v4951 = vunpack.c.h.b16 %v4874
    %v4952 = vunpack.c.l.b16 %v4875
    %v4953 = vunpack.c.h.b16 %v4875
    %v4954 = vunpack.c.l.b16 %v4876
    %v4955 = vunpack.c.h.b16 %v4876
    %v4956 = vunpack.c.l.b16 %v4877
    %v4957 = vunpack.c.h.b16 %v4877
    %v4958 = vunpack.c.l.b16 %v4878
    %v4959 = vunpack.c.h.b16 %v4878
    %v4960 = vunpack.c.l.b16 %v4879
    %v4961 = vunpack.c.h.b16 %v4879
    %v4962 = vunpack.c.l.b16 %v4880
    %v4963 = vunpack.c.h.b16 %v4880
    %v4964 = vunpack.c.l.b16 %v4881
    %v4965 = vunpack.c.h.b16 %v4881
    %v4966 = vunpack.c.l.b16 %v4882
    %v4967 = vunpack.c.h.b16 %v4882
    %v4968 = vunpack.c.l.b16 %v4883
    %v4969 = vunpack.c.h.b16 %v4883
    %v4970 = vunpack.c.l.b16 %v4884
    %v4971 = vunpack.c.h.b16 %v4884
    %v4972 = vunpack.c.l.b16 %v4885
    %v4973 = vunpack.c.h.b16 %v4885
    %v4974 = vunpack.c.l.b16 %v4886
    %v4975 = vunpack.c.h.b16 %v4886
    %v4976 = vunpack.c.l.b16 %v4887
    %v4977 = vunpack.c.h.b16 %v4887
    %v4978 = vunpack.c.l.b16 %v4888
    %v4979 = vunpack.c.h.b16 %v4888
    %v4980 = vunpack.c.l.b16 %v4889
    %v4981 = vunpack.c.h.b16 %v4889
    %v4982 = vunpack.c.l.b16 %v4890
    %v4983 = vunpack.c.h.b16 %v4890
    %v4984 = vunpack.c.l.b16 %v4891
    %v4985 = vunpack.c.h.b16 %v4891
    %v4986 = vunpack.c.l.b16 %v4892
    %v4987 = vunpack.c.h.b16 %v4892
    %v4988 = vunpack.c.l.b16 %v4893
    %v4989 = vunpack.c.h.b16 %v4893
    %v4990 = vunpack.c.l.b16 %v4894
    %v4991 = vunpack.c.h.b16 %v4894
    %v4992 = vunpack.c.l.b16 %v4895
    %v4993 = vunpack.c.h.b16 %v4895
    %v4994 = vunpack.c.l.b16 %v4896
    %v4995 = vunpack.c.h.b16 %v4896
    %v4996 = vunpack.c.l.b16 %v4897
    %v4997 = vunpack.c.h.b16 %v4897
    %v4998 = vunpack.c.l.b16 %v4898
    %v4999 = vunpack.c.h.b16 %v4898
    %v5000 = vunpack.c.l.b16 %v4899
    %v5001 = vunpack.c.h.b16 %v4899
    %v5002 = vunpack.c.l.b16 %v4900
    %v5003 = vunpack.c.h.b16 %v4900
    %v5004 = vunpack.c.l.b16 %v4901
    %v5005 = vunpack.c.h.b16 %v4901
    %v5006 = vunpack.c.l.b16 %v4902
    %v5007 = vunpack.c.h.b16 %v4902
    %v5008 = vunpack.c.l.b16 %v4903
    %v5009 = vunpack.c.h.b16 %v4903
    %v5010 = vunpack.c.l.b16 %v4904
    %v5011 = vunpack.c.h.b16 %v4904
    %v5012 = vunpack.c.l.b16 %v4905
    %v5013 = vunpack.c.h.b16 %v4905
    %v5014 = vpack.c.b16 %v4954, %v4950
    %v5015 = vpack.c.b16 %v4955, %v4951
    %v5016 = vpack.c.b16 %v4956, %v4952
    %v5017 = vpack.c.b16 %v4957, %v4953
    %v5018 = vpack.c.b16 %v4962, %v4958
    %v5019 = vpack.c.b16 %v4963, %v4959
    %v5020 = vpack.c.b16 %v4964, %v4960
    %v5021 = vpack.c.b16 %v4965, %v4961
    %v5022 = vpack.c.b16 %v4970, %v4966
    %v5023 = vpack.c.b16 %v4971, %v4967
    %v5024 = vpack.c.b16 %v4972, %v4968
    %v5025 = vpack.c.b16 %v4973, %v4969
    %v5026 = vpack.c.b16 %v4978, %v4974
    %v5027 = vpack.c.b16 %v4979, %v4975
    %v5028 = vpack.c.b16 %v4980, %v4976
    %v5029 = vpack.c.b16 %v4981, %v4977
    %v5030 = vpack.c.b16 %v4986, %v4982
    %v5031 = vpack.c.b16 %v4987, %v4983
    %v5032 = vpack.c.b16 %v4988, %v4984
    %v5033 = vpack.c.b16 %v4989, %v4985
    %v5034 = vpack.c.b16 %v4994, %v4990
    %v5035 = vpack.c.b16 %v4995, %v4991
    %v5036 = vpack.c.b16 %v4996, %v4992
    %v5037 = vpack.c.b16 %v4997, %v4993
    %v5038 = vpack.c.b16 %v5002, %v4998
    %v5039 = vpack.c.b16 %v5003, %v4999
    %v5040 = vpack.c.b16 %v5004, %v5000
    %v5041 = vpack.c.b16 %v5005, %v5001
    %v5042 = vpack.c.b16 %v5010, %v5006
    %v5043 = vpack.c.b16 %v5011, %v5007
    %v5044 = vpack.c.b16 %v5012, %v5008
    %v5045 = vpack.c.b16 %v5013, %v5009
    %5078 = vmatprep.subr.bf16.mxu0 %v5015
    %5079 = vmatpush1.bf16.msra.mxu0 %v5014
    %5080 = vmatprep.subr.bf16.mxu0 %v5019
    %5081 = vmatpush1.bf16.msra.mxu0 %v5018
    %5082 = vmatprep.subr.bf16.mxu0 %v5023
    %5083 = vmatpush1.bf16.msra.mxu0 %v5022
    %5084 = vmatprep.subr.bf16.mxu0 %v5027
    %5085 = vmatpush1.bf16.msra.mxu0 %v5026
    %5086 = vmatprep.subr.bf16.mxu0 %v5031
    %5087 = vmatpush1.bf16.msra.mxu0 %v5030
    %5088 = vmatprep.subr.bf16.mxu0 %v5035
    %5089 = vmatpush1.bf16.msra.mxu0 %v5034
    %5090 = vmatprep.subr.bf16.mxu0 %v5039
    %5091 = vmatpush1.bf16.msra.mxu0 %v5038
    %5092 = vmatprep.subr.bf16.mxu0 %v5043
    %5093 = vmatpush1.bf16.msra.mxu0 %v5042
    %5094 = vmatprep.subr.bf16.mxu0 0
    %5095 = vmatpush1.bf16.msra.mxu0 0
    %5096 = vmatprep.subr.bf16.mxu0 0
    %5097 = vmatpush1.bf16.msra.mxu0 0
    %5098 = vmatprep.subr.bf16.mxu0 0
    %5099 = vmatpush1.bf16.msra.mxu0 0
    %5100 = vmatprep.subr.bf16.mxu0 0
    %5101 = vmatpush1.bf16.msra.mxu0 0
    %5102 = vmatprep.subr.bf16.mxu0 0
    %5103 = vmatpush1.bf16.msra.mxu0 0
    %5104 = vmatprep.subr.bf16.mxu0 0
    %5105 = vmatpush1.bf16.msra.mxu0 0
    %5106 = vmatprep.subr.bf16.mxu0 0
    %5107 = vmatpush1.bf16.msra.mxu0 0
    %5108 = vmatprep.subr.bf16.mxu0 0
    %5109 = vmatpush1.bf16.msra.mxu0 0
    %5110 = vmatprep.mubr.bf16.mxu0 0
    %5111 = vmatmul.mubr.bf16.gmra.mrb[0].mxu0 %v4873
    %v5112 = vpop.f32.mrb[0].mxu0
    %v5113 = vadd.f32 %v4910, %v5112
    %v5114 = vpop.f32.mrb[0].mxu0
    %v5115 = vadd.f32 %v4911, %v5114
    %v5116 = vpop.f32.mrb[0].mxu0
    %v5117 = vadd.f32 %v4914, %v5116
    %v5118 = vpop.f32.mrb[0].mxu0
    %v5119 = vadd.f32 %v4915, %v5118
    %5120 = vdwg.mxu0
    %5121 = vmatprep.subr.bf16.mxu0 %v5017
    %5122 = vmatpush1.bf16.msra.mxu0 %v5016
    %5123 = vmatprep.subr.bf16.mxu0 %v5021
    %5124 = vmatpush1.bf16.msra.mxu0 %v5020
    %5125 = vmatprep.subr.bf16.mxu0 %v5025
    %5126 = vmatpush1.bf16.msra.mxu0 %v5024
    %5127 = vmatprep.subr.bf16.mxu0 %v5029
    %5128 = vmatpush1.bf16.msra.mxu0 %v5028
    %5129 = vmatprep.subr.bf16.mxu0 %v5033
    %5130 = vmatpush1.bf16.msra.mxu0 %v5032
    %5131 = vmatprep.subr.bf16.mxu0 %v5037
    %5132 = vmatpush1.bf16.msra.mxu0 %v5036
    %5133 = vmatprep.subr.bf16.mxu0 %v5041
    %5134 = vmatpush1.bf16.msra.mxu0 %v5040
    %5135 = vmatprep.subr.bf16.mxu0 %v5045
    %5136 = vmatpush1.bf16.msra.mxu0 %v5044
    %5137 = vmatprep.subr.bf16.mxu0 0
    %5138 = vmatpush1.bf16.msra.mxu0 0
    %5139 = vmatprep.subr.bf16.mxu0 0
    %5140 = vmatpush1.bf16.msra.mxu0 0
    %5141 = vmatprep.subr.bf16.mxu0 0
    %5142 = vmatpush1.bf16.msra.mxu0 0
    %5143 = vmatprep.subr.bf16.mxu0 0
    %5144 = vmatpush1.bf16.msra.mxu0 0
    %5145 = vmatprep.subr.bf16.mxu0 0
    %5146 = vmatpush1.bf16.msra.mxu0 0
    %5147 = vmatprep.subr.bf16.mxu0 0
    %5148 = vmatpush1.bf16.msra.mxu0 0
    %5149 = vmatprep.subr.bf16.mxu0 0
    %5150 = vmatpush1.bf16.msra.mxu0 0
    %5151 = vmatprep.subr.bf16.mxu0 0
    %5152 = vmatpush1.bf16.msra.mxu0 0
    %5153 = vmatprep.mubr.bf16.mxu0 0
    %5154 = vmatmul.mubr.bf16.gmra.mrb[0].mxu0 %v4873
    %v5155 = vpop.f32.mrb[0].mxu0
    %v5156 = vadd.f32 %v4912, %v5155
    %v5157 = vpop.f32.mrb[0].mxu0
    %v5158 = vadd.f32 %v4913, %v5157
    %v5159 = vpop.f32.mrb[0].mxu0
    %v5160 = vadd.f32 %v4916, %v5159
    %v5161 = vpop.f32.mrb[0].mxu0
    %v5162 = vadd.f32 %v4917, %v5161
    %5163 = vdwg.mxu0
    %v5164 = vmul.f32 %v5113, 0.5
    %v5165 = vmul.f32 %v5117, 0.5
    %v5166 = vtanh.pop %v5164
    %v5167 = vtanh.pop %v5165
    %v5168 = vmul.f32 %v5166, 0.5
    %v5169 = vmul.f32 %v5167, 0.5
    %v5170 = vadd.f32 %v5168, 0.5
    %v5171 = vadd.f32 %v5169, 0.5
    %v5172 = vmul.f32 %v5115, 0.5
    %v5173 = vmul.f32 %v5119, 0.5
    %v5174 = vtanh.pop %v5172
    %v5175 = vtanh.pop %v5173
    %v5176 = vmul.f32 %v5174, 0.5
    %v5177 = vmul.f32 %v5175, 0.5
    %v5178 = vadd.f32 %v5176, 0.5
    %v5179 = vadd.f32 %v5177, 0.5
    %v5180 = vtanh.pop %v5156
    %v5181 = vtanh.pop %v5160
    %v5182 = vmul.f32 %v5158, 0.5
    %v5183 = vmul.f32 %v5162, 0.5
    %v5184 = vtanh.pop %v5182
    %v5185 = vtanh.pop %v5183
    %v5186 = vmul.f32 %v5184, 0.5
    %v5187 = vmul.f32 %v5185, 0.5
    %v5188 = vadd.f32 %v5186, 0.5
    %v5189 = vadd.f32 %v5187, 0.5
    %v5190 = vld [vmem:[#allocation5] sm:$0xff]
    %v5191 = vld [vmem:[#allocation5 + $0x8] sm:$0xff]
    %v5192 = vmul.f32 %v5178, %v5190
    %v5193 = vmul.f32 %v5179, %v5191
    %v5194 = vmul.f32 %v5170, %v5180
    %v5195 = vmul.f32 %v5171, %v5181
    %v5196 = vadd.f32 %v5192, %v5194
    %v5197 = vadd.f32 %v5193, %v5195
    %v5198 = vtanh.pop %v5196
    %v5199 = vtanh.pop %v5197
    %v5200 = vmul.f32 %v5188, %v5198
    %v5201 = vmul.f32 %v5189, %v5199
    %v5202 = vpack.c.bf16 %v5201, %v5200
    %5203 = vst [vmem:[#allocation5] sm:$0xff] %v5196
    %5204 = vst [vmem:[#allocation5 + $0x8] sm:$0xff] %v5197
    %5205 = vst [vmem:[#allocation4] sm:$0xff] %v5202
    %v5206 = vld [vmem:[#allocation4] sm:$0xff]
    %v5207 = vld [vmem:[#allocation14] sm:$0xff]
    %v5208 = vld [vmem:[#allocation14 + $0x8] sm:$0xff]
    %v5209 = vld [vmem:[#allocation14 + $0x10] sm:$0xff]
    %v5210 = vld [vmem:[#allocation14 + $0x18] sm:$0xff]
    %v5211 = vld [vmem:[#allocation14 + $0x20] sm:$0xff]
    %v5212 = vld [vmem:[#allocation14 + $0x28] sm:$0xff]
    %v5213 = vld [vmem:[#allocation14 + $0x30] sm:$0xff]
    %v5214 = vld [vmem:[#allocation14 + $0x38] sm:$0xff]
    %v5215 = vld [vmem:[#allocation14 + $0x40] sm:$0xff]
    %v5216 = vld [vmem:[#allocation14 + $0x48] sm:$0xff]
    %v5217 = vld [vmem:[#allocation14 + $0x50] sm:$0xff]
    %v5218 = vld [vmem:[#allocation14 + $0x58] sm:$0xff]
    %v5219 = vld [vmem:[#allocation14 + $0x60] sm:$0xff]
    %v5220 = vld [vmem:[#allocation14 + $0x68] sm:$0xff]
    %v5221 = vld [vmem:[#allocation14 + $0x70] sm:$0xff]
    %v5222 = vld [vmem:[#allocation14 + $0x78] sm:$0xff]
    %v5223 = vld [vmem:[#allocation14 + $0x80] sm:$0xff]
    %v5224 = vld [vmem:[#allocation14 + $0x88] sm:$0xff]
    %v5225 = vld [vmem:[#allocation14 + $0x90] sm:$0xff]
    %v5226 = vld [vmem:[#allocation14 + $0x98] sm:$0xff]
    %v5227 = vld [vmem:[#allocation14 + $0xa0] sm:$0xff]
    %v5228 = vld [vmem:[#allocation14 + $0xa8] sm:$0xff]
    %v5229 = vld [vmem:[#allocation14 + $0xb0] sm:$0xff]
    %v5230 = vld [vmem:[#allocation14 + $0xb8] sm:$0xff]
    %v5231 = vld [vmem:[#allocation14 + $0xc0] sm:$0xff]
    %v5232 = vld [vmem:[#allocation14 + $0xc8] sm:$0xff]
    %v5233 = vld [vmem:[#allocation14 + $0xd0] sm:$0xff]
    %v5234 = vld [vmem:[#allocation14 + $0xd8] sm:$0xff]
    %v5235 = vld [vmem:[#allocation14 + $0xe0] sm:$0xff]
    %v5236 = vld [vmem:[#allocation14 + $0xe8] sm:$0xff]
    %v5237 = vld [vmem:[#allocation14 + $0xf0] sm:$0xff]
    %v5238 = vld [vmem:[#allocation14 + $0xf8] sm:$0xff]
    %v5239 = vld [vmem:[#allocation3 + $0x80] sm:$0xff]
    %v5240 = vld [vmem:[#allocation3 + $0x88] sm:$0xff]
    %v5241 = vld [vmem:[#allocation3 + $0x90] sm:$0xff]
    %v5242 = vld [vmem:[#allocation3 + $0x98] sm:$0xff]
    %v5243 = vunpack.c.l.bf16 %v5239
    %v5244 = vunpack.c.l.bf16 %v5240
    %v5245 = vunpack.c.l.bf16 %v5241
    %v5246 = vunpack.c.l.bf16 %v5242
    %v5247 = vunpack.c.h.bf16 %v5239
    %v5248 = vunpack.c.h.bf16 %v5240
    %v5249 = vunpack.c.h.bf16 %v5241
    %v5250 = vunpack.c.h.bf16 %v5242
    %v5283 = vunpack.c.l.b16 %v5207
    %v5284 = vunpack.c.h.b16 %v5207
    %v5285 = vunpack.c.l.b16 %v5208
    %v5286 = vunpack.c.h.b16 %v5208
    %v5287 = vunpack.c.l.b16 %v5209
    %v5288 = vunpack.c.h.b16 %v5209
    %v5289 = vunpack.c.l.b16 %v5210
    %v5290 = vunpack.c.h.b16 %v5210
    %v5291 = vunpack.c.l.b16 %v5211
    %v5292 = vunpack.c.h.b16 %v5211
    %v5293 = vunpack.c.l.b16 %v5212
    %v5294 = vunpack.c.h.b16 %v5212
    %v5295 = vunpack.c.l.b16 %v5213
    %v5296 = vunpack.c.h.b16 %v5213
    %v5297 = vunpack.c.l.b16 %v5214
    %v5298 = vunpack.c.h.b16 %v5214
    %v5299 = vunpack.c.l.b16 %v5215
    %v5300 = vunpack.c.h.b16 %v5215
    %v5301 = vunpack.c.l.b16 %v5216
    %v5302 = vunpack.c.h.b16 %v5216
    %v5303 = vunpack.c.l.b16 %v5217
    %v5304 = vunpack.c.h.b16 %v5217
    %v5305 = vunpack.c.l.b16 %v5218
    %v5306 = vunpack.c.h.b16 %v5218
    %v5307 = vunpack.c.l.b16 %v5219
    %v5308 = vunpack.c.h.b16 %v5219
    %v5309 = vunpack.c.l.b16 %v5220
    %v5310 = vunpack.c.h.b16 %v5220
    %v5311 = vunpack.c.l.b16 %v5221
    %v5312 = vunpack.c.h.b16 %v5221
    %v5313 = vunpack.c.l.b16 %v5222
    %v5314 = vunpack.c.h.b16 %v5222
    %v5315 = vunpack.c.l.b16 %v5223
    %v5316 = vunpack.c.h.b16 %v5223
    %v5317 = vunpack.c.l.b16 %v5224
    %v5318 = vunpack.c.h.b16 %v5224
    %v5319 = vunpack.c.l.b16 %v5225
    %v5320 = vunpack.c.h.b16 %v5225
    %v5321 = vunpack.c.l.b16 %v5226
    %v5322 = vunpack.c.h.b16 %v5226
    %v5323 = vunpack.c.l.b16 %v5227
    %v5324 = vunpack.c.h.b16 %v5227
    %v5325 = vunpack.c.l.b16 %v5228
    %v5326 = vunpack.c.h.b16 %v5228
    %v5327 = vunpack.c.l.b16 %v5229
    %v5328 = vunpack.c.h.b16 %v5229
    %v5329 = vunpack.c.l.b16 %v5230
    %v5330 = vunpack.c.h.b16 %v5230
    %v5331 = vunpack.c.l.b16 %v5231
    %v5332 = vunpack.c.h.b16 %v5231
    %v5333 = vunpack.c.l.b16 %v5232
    %v5334 = vunpack.c.h.b16 %v5232
    %v5335 = vunpack.c.l.b16 %v5233
    %v5336 = vunpack.c.h.b16 %v5233
    %v5337 = vunpack.c.l.b16 %v5234
    %v5338 = vunpack.c.h.b16 %v5234
    %v5339 = vunpack.c.l.b16 %v5235
    %v5340 = vunpack.c.h.b16 %v5235
    %v5341 = vunpack.c.l.b16 %v5236
    %v5342 = vunpack.c.h.b16 %v5236
    %v5343 = vunpack.c.l.b16 %v5237
    %v5344 = vunpack.c.h.b16 %v5237
    %v5345 = vunpack.c.l.b16 %v5238
    %v5346 = vunpack.c.h.b16 %v5238
    %v5347 = vpack.c.b16 %v5287, %v5283
    %v5348 = vpack.c.b16 %v5288, %v5284
    %v5349 = vpack.c.b16 %v5289, %v5285
    %v5350 = vpack.c.b16 %v5290, %v5286
    %v5351 = vpack.c.b16 %v5295, %v5291
    %v5352 = vpack.c.b16 %v5296, %v5292
    %v5353 = vpack.c.b16 %v5297, %v5293
    %v5354 = vpack.c.b16 %v5298, %v5294
    %v5355 = vpack.c.b16 %v5303, %v5299
    %v5356 = vpack.c.b16 %v5304, %v5300
    %v5357 = vpack.c.b16 %v5305, %v5301
    %v5358 = vpack.c.b16 %v5306, %v5302
    %v5359 = vpack.c.b16 %v5311, %v5307
    %v5360 = vpack.c.b16 %v5312, %v5308
    %v5361 = vpack.c.b16 %v5313, %v5309
    %v5362 = vpack.c.b16 %v5314, %v5310
    %v5363 = vpack.c.b16 %v5319, %v5315
    %v5364 = vpack.c.b16 %v5320, %v5316
    %v5365 = vpack.c.b16 %v5321, %v5317
    %v5366 = vpack.c.b16 %v5322, %v5318
    %v5367 = vpack.c.b16 %v5327, %v5323
    %v5368 = vpack.c.b16 %v5328, %v5324
    %v5369 = vpack.c.b16 %v5329, %v5325
    %v5370 = vpack.c.b16 %v5330, %v5326
    %v5371 = vpack.c.b16 %v5335, %v5331
    %v5372 = vpack.c.b16 %v5336, %v5332
    %v5373 = vpack.c.b16 %v5337, %v5333
    %v5374 = vpack.c.b16 %v5338, %v5334
    %v5375 = vpack.c.b16 %v5343, %v5339
    %v5376 = vpack.c.b16 %v5344, %v5340
    %v5377 = vpack.c.b16 %v5345, %v5341
    %v5378 = vpack.c.b16 %v5346, %v5342
    %5411 = vmatprep.subr.bf16.mxu0 %v5348
    %5412 = vmatpush1.bf16.msra.mxu0 %v5347
    %5413 = vmatprep.subr.bf16.mxu0 %v5352
    %5414 = vmatpush1.bf16.msra.mxu0 %v5351
    %5415 = vmatprep.subr.bf16.mxu0 %v5356
    %5416 = vmatpush1.bf16.msra.mxu0 %v5355
    %5417 = vmatprep.subr.bf16.mxu0 %v5360
    %5418 = vmatpush1.bf16.msra.mxu0 %v5359
    %5419 = vmatprep.subr.bf16.mxu0 %v5364
    %5420 = vmatpush1.bf16.msra.mxu0 %v5363
    %5421 = vmatprep.subr.bf16.mxu0 %v5368
    %5422 = vmatpush1.bf16.msra.mxu0 %v5367
    %5423 = vmatprep.subr.bf16.mxu0 %v5372
    %5424 = vmatpush1.bf16.msra.mxu0 %v5371
    %5425 = vmatprep.subr.bf16.mxu0 %v5376
    %5426 = vmatpush1.bf16.msra.mxu0 %v5375
    %5427 = vmatprep.subr.bf16.mxu0 0
    %5428 = vmatpush1.bf16.msra.mxu0 0
    %5429 = vmatprep.subr.bf16.mxu0 0
    %5430 = vmatpush1.bf16.msra.mxu0 0
    %5431 = vmatprep.subr.bf16.mxu0 0
    %5432 = vmatpush1.bf16.msra.mxu0 0
    %5433 = vmatprep.subr.bf16.mxu0 0
    %5434 = vmatpush1.bf16.msra.mxu0 0
    %5435 = vmatprep.subr.bf16.mxu0 0
    %5436 = vmatpush1.bf16.msra.mxu0 0
    %5437 = vmatprep.subr.bf16.mxu0 0
    %5438 = vmatpush1.bf16.msra.mxu0 0
    %5439 = vmatprep.subr.bf16.mxu0 0
    %5440 = vmatpush1.bf16.msra.mxu0 0
    %5441 = vmatprep.subr.bf16.mxu0 0
    %5442 = vmatpush1.bf16.msra.mxu0 0
    %5443 = vmatprep.mubr.bf16.mxu0 0
    %5444 = vmatmul.mubr.bf16.gmra.mrb[0].mxu0 %v5206
    %v5445 = vpop.f32.mrb[0].mxu0
    %v5446 = vadd.f32 %v5243, %v5445
    %v5447 = vpop.f32.mrb[0].mxu0
    %v5448 = vadd.f32 %v5244, %v5447
    %v5449 = vpop.f32.mrb[0].mxu0
    %v5450 = vadd.f32 %v5247, %v5449
    %v5451 = vpop.f32.mrb[0].mxu0
    %v5452 = vadd.f32 %v5248, %v5451
    %5453 = vdwg.mxu0
    %5454 = vmatprep.subr.bf16.mxu0 %v5350
    %5455 = vmatpush1.bf16.msra.mxu0 %v5349
    %5456 = vmatprep.subr.bf16.mxu0 %v5354
    %5457 = vmatpush1.bf16.msra.mxu0 %v5353
    %5458 = vmatprep.subr.bf16.mxu0 %v5358
    %5459 = vmatpush1.bf16.msra.mxu0 %v5357
    %5460 = vmatprep.subr.bf16.mxu0 %v5362
    %5461 = vmatpush1.bf16.msra.mxu0 %v5361
    %5462 = vmatprep.subr.bf16.mxu0 %v5366
    %5463 = vmatpush1.bf16.msra.mxu0 %v5365
    %5464 = vmatprep.subr.bf16.mxu0 %v5370
    %5465 = vmatpush1.bf16.msra.mxu0 %v5369
    %5466 = vmatprep.subr.bf16.mxu0 %v5374
    %5467 = vmatpush1.bf16.msra.mxu0 %v5373
    %5468 = vmatprep.subr.bf16.mxu0 %v5378
    %5469 = vmatpush1.bf16.msra.mxu0 %v5377
    %5470 = vmatprep.subr.bf16.mxu0 0
    %5471 = vmatpush1.bf16.msra.mxu0 0
    %5472 = vmatprep.subr.bf16.mxu0 0
    %5473 = vmatpush1.bf16.msra.mxu0 0
    %5474 = vmatprep.subr.bf16.mxu0 0
    %5475 = vmatpush1.bf16.msra.mxu0 0
    %5476 = vmatprep.subr.bf16.mxu0 0
    %5477 = vmatpush1.bf16.msra.mxu0 0
    %5478 = vmatprep.subr.bf16.mxu0 0
    %5479 = vmatpush1.bf16.msra.mxu0 0
    %5480 = vmatprep.subr.bf16.mxu0 0
    %5481 = vmatpush1.bf16.msra.mxu0 0
    %5482 = vmatprep.subr.bf16.mxu0 0
    %5483 = vmatpush1.bf16.msra.mxu0 0
    %5484 = vmatprep.subr.bf16.mxu0 0
    %5485 = vmatpush1.bf16.msra.mxu0 0
    %5486 = vmatprep.mubr.bf16.mxu0 0
    %5487 = vmatmul.mubr.bf16.gmra.mrb[0].mxu0 %v5206
    %v5488 = vpop.f32.mrb[0].mxu0
    %v5489 = vadd.f32 %v5245, %v5488
    %v5490 = vpop.f32.mrb[0].mxu0
    %v5491 = vadd.f32 %v5246, %v5490
    %v5492 = vpop.f32.mrb[0].mxu0
    %v5493 = vadd.f32 %v5249, %v5492
    %v5494 = vpop.f32.mrb[0].mxu0
    %v5495 = vadd.f32 %v5250, %v5494
    %5496 = vdwg.mxu0
    %v5497 = vmul.f32 %v5446, 0.5
    %v5498 = vmul.f32 %v5450, 0.5
    %v5499 = vtanh.pop %v5497
    %v5500 = vtanh.pop %v5498
    %v5501 = vmul.f32 %v5499, 0.5
    %v5502 = vmul.f32 %v5500, 0.5
    %v5503 = vadd.f32 %v5501, 0.5
    %v5504 = vadd.f32 %v5502, 0.5
    %v5505 = vmul.f32 %v5448, 0.5
    %v5506 = vmul.f32 %v5452, 0.5
    %v5507 = vtanh.pop %v5505
    %v5508 = vtanh.pop %v5506
    %v5509 = vmul.f32 %v5507, 0.5
    %v5510 = vmul.f32 %v5508, 0.5
    %v5511 = vadd.f32 %v5509, 0.5
    %v5512 = vadd.f32 %v5510, 0.5
    %v5513 = vtanh.pop %v5489
    %v5514 = vtanh.pop %v5493
    %v5515 = vmul.f32 %v5491, 0.5
    %v5516 = vmul.f32 %v5495, 0.5
    %v5517 = vtanh.pop %v5515
    %v5518 = vtanh.pop %v5516
    %v5519 = vmul.f32 %v5517, 0.5
    %v5520 = vmul.f32 %v5518, 0.5
    %v5521 = vadd.f32 %v5519, 0.5
    %v5522 = vadd.f32 %v5520, 0.5
    %v5523 = vld [vmem:[#allocation5] sm:$0xff]
    %v5524 = vld [vmem:[#allocation5 + $0x8] sm:$0xff]
    %v5525 = vmul.f32 %v5511, %v5523
    %v5526 = vmul.f32 %v5512, %v5524
    %v5527 = vmul.f32 %v5503, %v5513
    %v5528 = vmul.f32 %v5504, %v5514
    %v5529 = vadd.f32 %v5525, %v5527
    %v5530 = vadd.f32 %v5526, %v5528
    %v5531 = vtanh.pop %v5529
    %v5532 = vtanh.pop %v5530
    %v5533 = vmul.f32 %v5521, %v5531
    %v5534 = vmul.f32 %v5522, %v5532
    %v5535 = vpack.c.bf16 %v5534, %v5533
    %5536 = vst [vmem:[#allocation5] sm:$0xff] %v5529
    %5537 = vst [vmem:[#allocation5 + $0x8] sm:$0xff] %v5530
    %5538 = vst [vmem:[#allocation4] sm:$0xff] %v5535
    %v5539 = vld [vmem:[#allocation4] sm:$0xff]
    %v5540 = vld [vmem:[#allocation14] sm:$0xff]
    %v5541 = vld [vmem:[#allocation14 + $0x8] sm:$0xff]
    %v5542 = vld [vmem:[#allocation14 + $0x10] sm:$0xff]
    %v5543 = vld [vmem:[#allocation14 + $0x18] sm:$0xff]
    %v5544 = vld [vmem:[#allocation14 + $0x20] sm:$0xff]
    %v5545 = vld [vmem:[#allocation14 + $0x28] sm:$0xff]
    %v5546 = vld [vmem:[#allocation14 + $0x30] sm:$0xff]
    %v5547 = vld [vmem:[#allocation14 + $0x38] sm:$0xff]
    %v5548 = vld [vmem:[#allocation14 + $0x40] sm:$0xff]
    %v5549 = vld [vmem:[#allocation14 + $0x48] sm:$0xff]
    %v5550 = vld [vmem:[#allocation14 + $0x50] sm:$0xff]
    %v5551 = vld [vmem:[#allocation14 + $0x58] sm:$0xff]
    %v5552 = vld [vmem:[#allocation14 + $0x60] sm:$0xff]
    %v5553 = vld [vmem:[#allocation14 + $0x68] sm:$0xff]
    %v5554 = vld [vmem:[#allocation14 + $0x70] sm:$0xff]
    %v5555 = vld [vmem:[#allocation14 + $0x78] sm:$0xff]
    %v5556 = vld [vmem:[#allocation14 + $0x80] sm:$0xff]
    %v5557 = vld [vmem:[#allocation14 + $0x88] sm:$0xff]
    %v5558 = vld [vmem:[#allocation14 + $0x90] sm:$0xff]
    %v5559 = vld [vmem:[#allocation14 + $0x98] sm:$0xff]
    %v5560 = vld [vmem:[#allocation14 + $0xa0] sm:$0xff]
    %v5561 = vld [vmem:[#allocation14 + $0xa8] sm:$0xff]
    %v5562 = vld [vmem:[#allocation14 + $0xb0] sm:$0xff]
    %v5563 = vld [vmem:[#allocation14 + $0xb8] sm:$0xff]
    %v5564 = vld [vmem:[#allocation14 + $0xc0] sm:$0xff]
    %v5565 = vld [vmem:[#allocation14 + $0xc8] sm:$0xff]
    %v5566 = vld [vmem:[#allocation14 + $0xd0] sm:$0xff]
    %v5567 = vld [vmem:[#allocation14 + $0xd8] sm:$0xff]
    %v5568 = vld [vmem:[#allocation14 + $0xe0] sm:$0xff]
    %v5569 = vld [vmem:[#allocation14 + $0xe8] sm:$0xff]
    %v5570 = vld [vmem:[#allocation14 + $0xf0] sm:$0xff]
    %v5571 = vld [vmem:[#allocation14 + $0xf8] sm:$0xff]
    %v5572 = vld [vmem:[#allocation3 + $0xa0] sm:$0xff]
    %v5573 = vld [vmem:[#allocation3 + $0xa8] sm:$0xff]
    %v5574 = vld [vmem:[#allocation3 + $0xb0] sm:$0xff]
    %v5575 = vld [vmem:[#allocation3 + $0xb8] sm:$0xff]
    %v5576 = vunpack.c.l.bf16 %v5572
    %v5577 = vunpack.c.l.bf16 %v5573
    %v5578 = vunpack.c.l.bf16 %v5574
    %v5579 = vunpack.c.l.bf16 %v5575
    %v5580 = vunpack.c.h.bf16 %v5572
    %v5581 = vunpack.c.h.bf16 %v5573
    %v5582 = vunpack.c.h.bf16 %v5574
    %v5583 = vunpack.c.h.bf16 %v5575
    %v5616 = vunpack.c.l.b16 %v5540
    %v5617 = vunpack.c.h.b16 %v5540
    %v5618 = vunpack.c.l.b16 %v5541
    %v5619 = vunpack.c.h.b16 %v5541
    %v5620 = vunpack.c.l.b16 %v5542
    %v5621 = vunpack.c.h.b16 %v5542
    %v5622 = vunpack.c.l.b16 %v5543
    %v5623 = vunpack.c.h.b16 %v5543
    %v5624 = vunpack.c.l.b16 %v5544
    %v5625 = vunpack.c.h.b16 %v5544
    %v5626 = vunpack.c.l.b16 %v5545
    %v5627 = vunpack.c.h.b16 %v5545
    %v5628 = vunpack.c.l.b16 %v5546
    %v5629 = vunpack.c.h.b16 %v5546
    %v5630 = vunpack.c.l.b16 %v5547
    %v5631 = vunpack.c.h.b16 %v5547
    %v5632 = vunpack.c.l.b16 %v5548
    %v5633 = vunpack.c.h.b16 %v5548
    %v5634 = vunpack.c.l.b16 %v5549
    %v5635 = vunpack.c.h.b16 %v5549
    %v5636 = vunpack.c.l.b16 %v5550
    %v5637 = vunpack.c.h.b16 %v5550
    %v5638 = vunpack.c.l.b16 %v5551
    %v5639 = vunpack.c.h.b16 %v5551
    %v5640 = vunpack.c.l.b16 %v5552
    %v5641 = vunpack.c.h.b16 %v5552
    %v5642 = vunpack.c.l.b16 %v5553
    %v5643 = vunpack.c.h.b16 %v5553
    %v5644 = vunpack.c.l.b16 %v5554
    %v5645 = vunpack.c.h.b16 %v5554
    %v5646 = vunpack.c.l.b16 %v5555
    %v5647 = vunpack.c.h.b16 %v5555
    %v5648 = vunpack.c.l.b16 %v5556
    %v5649 = vunpack.c.h.b16 %v5556
    %v5650 = vunpack.c.l.b16 %v5557
    %v5651 = vunpack.c.h.b16 %v5557
    %v5652 = vunpack.c.l.b16 %v5558
    %v5653 = vunpack.c.h.b16 %v5558
    %v5654 = vunpack.c.l.b16 %v5559
    %v5655 = vunpack.c.h.b16 %v5559
    %v5656 = vunpack.c.l.b16 %v5560
    %v5657 = vunpack.c.h.b16 %v5560
    %v5658 = vunpack.c.l.b16 %v5561
    %v5659 = vunpack.c.h.b16 %v5561
    %v5660 = vunpack.c.l.b16 %v5562
    %v5661 = vunpack.c.h.b16 %v5562
    %v5662 = vunpack.c.l.b16 %v5563
    %v5663 = vunpack.c.h.b16 %v5563
    %v5664 = vunpack.c.l.b16 %v5564
    %v5665 = vunpack.c.h.b16 %v5564
    %v5666 = vunpack.c.l.b16 %v5565
    %v5667 = vunpack.c.h.b16 %v5565
    %v5668 = vunpack.c.l.b16 %v5566
    %v5669 = vunpack.c.h.b16 %v5566
    %v5670 = vunpack.c.l.b16 %v5567
    %v5671 = vunpack.c.h.b16 %v5567
    %v5672 = vunpack.c.l.b16 %v5568
    %v5673 = vunpack.c.h.b16 %v5568
    %v5674 = vunpack.c.l.b16 %v5569
    %v5675 = vunpack.c.h.b16 %v5569
    %v5676 = vunpack.c.l.b16 %v5570
    %v5677 = vunpack.c.h.b16 %v5570
    %v5678 = vunpack.c.l.b16 %v5571
    %v5679 = vunpack.c.h.b16 %v5571
    %v5680 = vpack.c.b16 %v5620, %v5616
    %v5681 = vpack.c.b16 %v5621, %v5617
    %v5682 = vpack.c.b16 %v5622, %v5618
    %v5683 = vpack.c.b16 %v5623, %v5619
    %v5684 = vpack.c.b16 %v5628, %v5624
    %v5685 = vpack.c.b16 %v5629, %v5625
    %v5686 = vpack.c.b16 %v5630, %v5626
    %v5687 = vpack.c.b16 %v5631, %v5627
    %v5688 = vpack.c.b16 %v5636, %v5632
    %v5689 = vpack.c.b16 %v5637, %v5633
    %v5690 = vpack.c.b16 %v5638, %v5634
    %v5691 = vpack.c.b16 %v5639, %v5635
    %v5692 = vpack.c.b16 %v5644, %v5640
    %v5693 = vpack.c.b16 %v5645, %v5641
    %v5694 = vpack.c.b16 %v5646, %v5642
    %v5695 = vpack.c.b16 %v5647, %v5643
    %v5696 = vpack.c.b16 %v5652, %v5648
    %v5697 = vpack.c.b16 %v5653, %v5649
    %v5698 = vpack.c.b16 %v5654, %v5650
    %v5699 = vpack.c.b16 %v5655, %v5651
    %v5700 = vpack.c.b16 %v5660, %v5656
    %v5701 = vpack.c.b16 %v5661, %v5657
    %v5702 = vpack.c.b16 %v5662, %v5658
    %v5703 = vpack.c.b16 %v5663, %v5659
    %v5704 = vpack.c.b16 %v5668, %v5664
    %v5705 = vpack.c.b16 %v5669, %v5665
    %v5706 = vpack.c.b16 %v5670, %v5666
    %v5707 = vpack.c.b16 %v5671, %v5667
    %v5708 = vpack.c.b16 %v5676, %v5672
    %v5709 = vpack.c.b16 %v5677, %v5673
    %v5710 = vpack.c.b16 %v5678, %v5674
    %v5711 = vpack.c.b16 %v5679, %v5675
    %5744 = vmatprep.subr.bf16.mxu0 %v5681
    %5745 = vmatpush1.bf16.msra.mxu0 %v5680
    %5746 = vmatprep.subr.bf16.mxu0 %v5685
    %5747 = vmatpush1.bf16.msra.mxu0 %v5684
    %5748 = vmatprep.subr.bf16.mxu0 %v5689
    %5749 = vmatpush1.bf16.msra.mxu0 %v5688
    %5750 = vmatprep.subr.bf16.mxu0 %v5693
    %5751 = vmatpush1.bf16.msra.mxu0 %v5692
    %5752 = vmatprep.subr.bf16.mxu0 %v5697
    %5753 = vmatpush1.bf16.msra.mxu0 %v5696
    %5754 = vmatprep.subr.bf16.mxu0 %v5701
    %5755 = vmatpush1.bf16.msra.mxu0 %v5700
    %5756 = vmatprep.subr.bf16.mxu0 %v5705
    %5757 = vmatpush1.bf16.msra.mxu0 %v5704
    %5758 = vmatprep.subr.bf16.mxu0 %v5709
    %5759 = vmatpush1.bf16.msra.mxu0 %v5708
    %5760 = vmatprep.subr.bf16.mxu0 0
    %5761 = vmatpush1.bf16.msra.mxu0 0
    %5762 = vmatprep.subr.bf16.mxu0 0
    %5763 = vmatpush1.bf16.msra.mxu0 0
    %5764 = vmatprep.subr.bf16.mxu0 0
    %5765 = vmatpush1.bf16.msra.mxu0 0
    %5766 = vmatprep.subr.bf16.mxu0 0
    %5767 = vmatpush1.bf16.msra.mxu0 0
    %5768 = vmatprep.subr.bf16.mxu0 0
    %5769 = vmatpush1.bf16.msra.mxu0 0
    %5770 = vmatprep.subr.bf16.mxu0 0
    %5771 = vmatpush1.bf16.msra.mxu0 0
    %5772 = vmatprep.subr.bf16.mxu0 0
    %5773 = vmatpush1.bf16.msra.mxu0 0
    %5774 = vmatprep.subr.bf16.mxu0 0
    %5775 = vmatpush1.bf16.msra.mxu0 0
    %5776 = vmatprep.mubr.bf16.mxu0 0
    %5777 = vmatmul.mubr.bf16.gmra.mrb[0].mxu0 %v5539
    %v5778 = vpop.f32.mrb[0].mxu0
    %v5779 = vadd.f32 %v5576, %v5778
    %v5780 = vpop.f32.mrb[0].mxu0
    %v5781 = vadd.f32 %v5577, %v5780
    %v5782 = vpop.f32.mrb[0].mxu0
    %v5783 = vadd.f32 %v5580, %v5782
    %v5784 = vpop.f32.mrb[0].mxu0
    %v5785 = vadd.f32 %v5581, %v5784
    %5786 = vdwg.mxu0
    %5787 = vmatprep.subr.bf16.mxu0 %v5683
    %5788 = vmatpush1.bf16.msra.mxu0 %v5682
    %5789 = vmatprep.subr.bf16.mxu0 %v5687
    %5790 = vmatpush1.bf16.msra.mxu0 %v5686
    %5791 = vmatprep.subr.bf16.mxu0 %v5691
    %5792 = vmatpush1.bf16.msra.mxu0 %v5690
    %5793 = vmatprep.subr.bf16.mxu0 %v5695
    %5794 = vmatpush1.bf16.msra.mxu0 %v5694
    %5795 = vmatprep.subr.bf16.mxu0 %v5699
    %5796 = vmatpush1.bf16.msra.mxu0 %v5698
    %5797 = vmatprep.subr.bf16.mxu0 %v5703
    %5798 = vmatpush1.bf16.msra.mxu0 %v5702
    %5799 = vmatprep.subr.bf16.mxu0 %v5707
    %5800 = vmatpush1.bf16.msra.mxu0 %v5706
    %5801 = vmatprep.subr.bf16.mxu0 %v5711
    %5802 = vmatpush1.bf16.msra.mxu0 %v5710
    %5803 = vmatprep.subr.bf16.mxu0 0
    %5804 = vmatpush1.bf16.msra.mxu0 0
    %5805 = vmatprep.subr.bf16.mxu0 0
    %5806 = vmatpush1.bf16.msra.mxu0 0
    %5807 = vmatprep.subr.bf16.mxu0 0
    %5808 = vmatpush1.bf16.msra.mxu0 0
    %5809 = vmatprep.subr.bf16.mxu0 0
    %5810 = vmatpush1.bf16.msra.mxu0 0
    %5811 = vmatprep.subr.bf16.mxu0 0
    %5812 = vmatpush1.bf16.msra.mxu0 0
    %5813 = vmatprep.subr.bf16.mxu0 0
    %5814 = vmatpush1.bf16.msra.mxu0 0
    %5815 = vmatprep.subr.bf16.mxu0 0
    %5816 = vmatpush1.bf16.msra.mxu0 0
    %5817 = vmatprep.subr.bf16.mxu0 0
    %5818 = vmatpush1.bf16.msra.mxu0 0
    %5819 = vmatprep.mubr.bf16.mxu0 0
    %5820 = vmatmul.mubr.bf16.gmra.mrb[0].mxu0 %v5539
    %v5821 = vpop.f32.mrb[0].mxu0
    %v5822 = vadd.f32 %v5578, %v5821
    %v5823 = vpop.f32.mrb[0].mxu0
    %v5824 = vadd.f32 %v5579, %v5823
    %v5825 = vpop.f32.mrb[0].mxu0
    %v5826 = vadd.f32 %v5582, %v5825
    %v5827 = vpop.f32.mrb[0].mxu0
    %v5828 = vadd.f32 %v5583, %v5827
    %5829 = vdwg.mxu0
    %v5830 = vmul.f32 %v5779, 0.5
    %v5831 = vmul.f32 %v5783, 0.5
    %v5832 = vtanh.pop %v5830
    %v5833 = vtanh.pop %v5831
    %v5834 = vmul.f32 %v5832, 0.5
    %v5835 = vmul.f32 %v5833, 0.5
    %v5836 = vadd.f32 %v5834, 0.5
    %v5837 = vadd.f32 %v5835, 0.5
    %v5838 = vmul.f32 %v5781, 0.5
    %v5839 = vmul.f32 %v5785, 0.5
    %v5840 = vtanh.pop %v5838
    %v5841 = vtanh.pop %v5839
    %v5842 = vmul.f32 %v5840, 0.5
    %v5843 = vmul.f32 %v5841, 0.5
    %v5844 = vadd.f32 %v5842, 0.5
    %v5845 = vadd.f32 %v5843, 0.5
    %v5846 = vtanh.pop %v5822
    %v5847 = vtanh.pop %v5826
    %v5848 = vmul.f32 %v5824, 0.5
    %v5849 = vmul.f32 %v5828, 0.5
    %v5850 = vtanh.pop %v5848
    %v5851 = vtanh.pop %v5849
    %v5852 = vmul.f32 %v5850, 0.5
    %v5853 = vmul.f32 %v5851, 0.5
    %v5854 = vadd.f32 %v5852, 0.5
    %v5855 = vadd.f32 %v5853, 0.5
    %v5856 = vld [vmem:[#allocation5] sm:$0xff]
    %v5857 = vld [vmem:[#allocation5 + $0x8] sm:$0xff]
    %v5858 = vmul.f32 %v5844, %v5856
    %v5859 = vmul.f32 %v5845, %v5857
    %v5860 = vmul.f32 %v5836, %v5846
    %v5861 = vmul.f32 %v5837, %v5847
    %v5862 = vadd.f32 %v5858, %v5860
    %v5863 = vadd.f32 %v5859, %v5861
    %v5864 = vtanh.pop %v5862
    %v5865 = vtanh.pop %v5863
    %v5866 = vmul.f32 %v5854, %v5864
    %v5867 = vmul.f32 %v5855, %v5865
    %v5868 = vpack.c.bf16 %v5867, %v5866
    %5869 = vst [vmem:[#allocation5] sm:$0xff] %v5862
    %5870 = vst [vmem:[#allocation5 + $0x8] sm:$0xff] %v5863
    %5871 = vst [vmem:[#allocation4] sm:$0xff] %v5868
    %v5872 = vld [vmem:[#allocation4] sm:$0xff]
    %v5873 = vld [vmem:[#allocation14] sm:$0xff]
    %v5874 = vld [vmem:[#allocation14 + $0x8] sm:$0xff]
    %v5875 = vld [vmem:[#allocation14 + $0x10] sm:$0xff]
    %v5876 = vld [vmem:[#allocation14 + $0x18] sm:$0xff]
    %v5877 = vld [vmem:[#allocation14 + $0x20] sm:$0xff]
    %v5878 = vld [vmem:[#allocation14 + $0x28] sm:$0xff]
    %v5879 = vld [vmem:[#allocation14 + $0x30] sm:$0xff]
    %v5880 = vld [vmem:[#allocation14 + $0x38] sm:$0xff]
    %v5881 = vld [vmem:[#allocation14 + $0x40] sm:$0xff]
    %v5882 = vld [vmem:[#allocation14 + $0x48] sm:$0xff]
    %v5883 = vld [vmem:[#allocation14 + $0x50] sm:$0xff]
    %v5884 = vld [vmem:[#allocation14 + $0x58] sm:$0xff]
    %v5885 = vld [vmem:[#allocation14 + $0x60] sm:$0xff]
    %v5886 = vld [vmem:[#allocation14 + $0x68] sm:$0xff]
    %v5887 = vld [vmem:[#allocation14 + $0x70] sm:$0xff]
    %v5888 = vld [vmem:[#allocation14 + $0x78] sm:$0xff]
    %v5889 = vld [vmem:[#allocation14 + $0x80] sm:$0xff]
    %v5890 = vld [vmem:[#allocation14 + $0x88] sm:$0xff]
    %v5891 = vld [vmem:[#allocation14 + $0x90] sm:$0xff]
    %v5892 = vld [vmem:[#allocation14 + $0x98] sm:$0xff]
    %v5893 = vld [vmem:[#allocation14 + $0xa0] sm:$0xff]
    %v5894 = vld [vmem:[#allocation14 + $0xa8] sm:$0xff]
    %v5895 = vld [vmem:[#allocation14 + $0xb0] sm:$0xff]
    %v5896 = vld [vmem:[#allocation14 + $0xb8] sm:$0xff]
    %v5897 = vld [vmem:[#allocation14 + $0xc0] sm:$0xff]
    %v5898 = vld [vmem:[#allocation14 + $0xc8] sm:$0xff]
    %v5899 = vld [vmem:[#allocation14 + $0xd0] sm:$0xff]
    %v5900 = vld [vmem:[#allocation14 + $0xd8] sm:$0xff]
    %v5901 = vld [vmem:[#allocation14 + $0xe0] sm:$0xff]
    %v5902 = vld [vmem:[#allocation14 + $0xe8] sm:$0xff]
    %v5903 = vld [vmem:[#allocation14 + $0xf0] sm:$0xff]
    %v5904 = vld [vmem:[#allocation14 + $0xf8] sm:$0xff]
    %v5905 = vld [vmem:[#allocation3 + $0xc0] sm:$0xff]
    %v5906 = vld [vmem:[#allocation3 + $0xc8] sm:$0xff]
    %v5907 = vld [vmem:[#allocation3 + $0xd0] sm:$0xff]
    %v5908 = vld [vmem:[#allocation3 + $0xd8] sm:$0xff]
    %v5909 = vunpack.c.l.bf16 %v5905
    %v5910 = vunpack.c.l.bf16 %v5906
    %v5911 = vunpack.c.l.bf16 %v5907
    %v5912 = vunpack.c.l.bf16 %v5908
    %v5913 = vunpack.c.h.bf16 %v5905
    %v5914 = vunpack.c.h.bf16 %v5906
    %v5915 = vunpack.c.h.bf16 %v5907
    %v5916 = vunpack.c.h.bf16 %v5908
    %v5949 = vunpack.c.l.b16 %v5873
    %v5950 = vunpack.c.h.b16 %v5873
    %v5951 = vunpack.c.l.b16 %v5874
    %v5952 = vunpack.c.h.b16 %v5874
    %v5953 = vunpack.c.l.b16 %v5875
    %v5954 = vunpack.c.h.b16 %v5875
    %v5955 = vunpack.c.l.b16 %v5876
    %v5956 = vunpack.c.h.b16 %v5876
    %v5957 = vunpack.c.l.b16 %v5877
    %v5958 = vunpack.c.h.b16 %v5877
    %v5959 = vunpack.c.l.b16 %v5878
    %v5960 = vunpack.c.h.b16 %v5878
    %v5961 = vunpack.c.l.b16 %v5879
    %v5962 = vunpack.c.h.b16 %v5879
    %v5963 = vunpack.c.l.b16 %v5880
    %v5964 = vunpack.c.h.b16 %v5880
    %v5965 = vunpack.c.l.b16 %v5881
    %v5966 = vunpack.c.h.b16 %v5881
    %v5967 = vunpack.c.l.b16 %v5882
    %v5968 = vunpack.c.h.b16 %v5882
    %v5969 = vunpack.c.l.b16 %v5883
    %v5970 = vunpack.c.h.b16 %v5883
    %v5971 = vunpack.c.l.b16 %v5884
    %v5972 = vunpack.c.h.b16 %v5884
    %v5973 = vunpack.c.l.b16 %v5885
    %v5974 = vunpack.c.h.b16 %v5885
    %v5975 = vunpack.c.l.b16 %v5886
    %v5976 = vunpack.c.h.b16 %v5886
    %v5977 = vunpack.c.l.b16 %v5887
    %v5978 = vunpack.c.h.b16 %v5887
    %v5979 = vunpack.c.l.b16 %v5888
    %v5980 = vunpack.c.h.b16 %v5888
    %v5981 = vunpack.c.l.b16 %v5889
    %v5982 = vunpack.c.h.b16 %v5889
    %v5983 = vunpack.c.l.b16 %v5890
    %v5984 = vunpack.c.h.b16 %v5890
    %v5985 = vunpack.c.l.b16 %v5891
    %v5986 = vunpack.c.h.b16 %v5891
    %v5987 = vunpack.c.l.b16 %v5892
    %v5988 = vunpack.c.h.b16 %v5892
    %v5989 = vunpack.c.l.b16 %v5893
    %v5990 = vunpack.c.h.b16 %v5893
    %v5991 = vunpack.c.l.b16 %v5894
    %v5992 = vunpack.c.h.b16 %v5894
    %v5993 = vunpack.c.l.b16 %v5895
    %v5994 = vunpack.c.h.b16 %v5895
    %v5995 = vunpack.c.l.b16 %v5896
    %v5996 = vunpack.c.h.b16 %v5896
    %v5997 = vunpack.c.l.b16 %v5897
    %v5998 = vunpack.c.h.b16 %v5897
    %v5999 = vunpack.c.l.b16 %v5898
    %v6000 = vunpack.c.h.b16 %v5898
    %v6001 = vunpack.c.l.b16 %v5899
    %v6002 = vunpack.c.h.b16 %v5899
    %v6003 = vunpack.c.l.b16 %v5900
    %v6004 = vunpack.c.h.b16 %v5900
    %v6005 = vunpack.c.l.b16 %v5901
    %v6006 = vunpack.c.h.b16 %v5901
    %v6007 = vunpack.c.l.b16 %v5902
    %v6008 = vunpack.c.h.b16 %v5902
    %v6009 = vunpack.c.l.b16 %v5903
    %v6010 = vunpack.c.h.b16 %v5903
    %v6011 = vunpack.c.l.b16 %v5904
    %v6012 = vunpack.c.h.b16 %v5904
    %v6013 = vpack.c.b16 %v5953, %v5949
    %v6014 = vpack.c.b16 %v5954, %v5950
    %v6015 = vpack.c.b16 %v5955, %v5951
    %v6016 = vpack.c.b16 %v5956, %v5952
    %v6017 = vpack.c.b16 %v5961, %v5957
    %v6018 = vpack.c.b16 %v5962, %v5958
    %v6019 = vpack.c.b16 %v5963, %v5959
    %v6020 = vpack.c.b16 %v5964, %v5960
    %v6021 = vpack.c.b16 %v5969, %v5965
    %v6022 = vpack.c.b16 %v5970, %v5966
    %v6023 = vpack.c.b16 %v5971, %v5967
    %v6024 = vpack.c.b16 %v5972, %v5968
    %v6025 = vpack.c.b16 %v5977, %v5973
    %v6026 = vpack.c.b16 %v5978, %v5974
    %v6027 = vpack.c.b16 %v5979, %v5975
    %v6028 = vpack.c.b16 %v5980, %v5976
    %v6029 = vpack.c.b16 %v5985, %v5981
    %v6030 = vpack.c.b16 %v5986, %v5982
    %v6031 = vpack.c.b16 %v5987, %v5983
    %v6032 = vpack.c.b16 %v5988, %v5984
    %v6033 = vpack.c.b16 %v5993, %v5989
    %v6034 = vpack.c.b16 %v5994, %v5990
    %v6035 = vpack.c.b16 %v5995, %v5991
    %v6036 = vpack.c.b16 %v5996, %v5992
    %v6037 = vpack.c.b16 %v6001, %v5997
    %v6038 = vpack.c.b16 %v6002, %v5998
    %v6039 = vpack.c.b16 %v6003, %v5999
    %v6040 = vpack.c.b16 %v6004, %v6000
    %v6041 = vpack.c.b16 %v6009, %v6005
    %v6042 = vpack.c.b16 %v6010, %v6006
    %v6043 = vpack.c.b16 %v6011, %v6007
    %v6044 = vpack.c.b16 %v6012, %v6008
    %6077 = vmatprep.subr.bf16.mxu0 %v6014
    %6078 = vmatpush1.bf16.msra.mxu0 %v6013
    %6079 = vmatprep.subr.bf16.mxu0 %v6018
    %6080 = vmatpush1.bf16.msra.mxu0 %v6017
    %6081 = vmatprep.subr.bf16.mxu0 %v6022
    %6082 = vmatpush1.bf16.msra.mxu0 %v6021
    %6083 = vmatprep.subr.bf16.mxu0 %v6026
    %6084 = vmatpush1.bf16.msra.mxu0 %v6025
    %6085 = vmatprep.subr.bf16.mxu0 %v6030
    %6086 = vmatpush1.bf16.msra.mxu0 %v6029
    %6087 = vmatprep.subr.bf16.mxu0 %v6034
    %6088 = vmatpush1.bf16.msra.mxu0 %v6033
    %6089 = vmatprep.subr.bf16.mxu0 %v6038
    %6090 = vmatpush1.bf16.msra.mxu0 %v6037
    %6091 = vmatprep.subr.bf16.mxu0 %v6042
    %6092 = vmatpush1.bf16.msra.mxu0 %v6041
    %6093 = vmatprep.subr.bf16.mxu0 0
    %6094 = vmatpush1.bf16.msra.mxu0 0
    %6095 = vmatprep.subr.bf16.mxu0 0
    %6096 = vmatpush1.bf16.msra.mxu0 0
    %6097 = vmatprep.subr.bf16.mxu0 0
    %6098 = vmatpush1.bf16.msra.mxu0 0
    %6099 = vmatprep.subr.bf16.mxu0 0
    %6100 = vmatpush1.bf16.msra.mxu0 0
    %6101 = vmatprep.subr.bf16.mxu0 0
    %6102 = vmatpush1.bf16.msra.mxu0 0
    %6103 = vmatprep.subr.bf16.mxu0 0
    %6104 = vmatpush1.bf16.msra.mxu0 0
    %6105 = vmatprep.subr.bf16.mxu0 0
    %6106 = vmatpush1.bf16.msra.mxu0 0
    %6107 = vmatprep.subr.bf16.mxu0 0
    %6108 = vmatpush1.bf16.msra.mxu0 0
    %6109 = vmatprep.mubr.bf16.mxu0 0
    %6110 = vmatmul.mubr.bf16.gmra.mrb[0].mxu0 %v5872
    %v6111 = vpop.f32.mrb[0].mxu0
    %v6112 = vadd.f32 %v5909, %v6111
    %v6113 = vpop.f32.mrb[0].mxu0
    %v6114 = vadd.f32 %v5910, %v6113
    %v6115 = vpop.f32.mrb[0].mxu0
    %v6116 = vadd.f32 %v5913, %v6115
    %v6117 = vpop.f32.mrb[0].mxu0
    %v6118 = vadd.f32 %v5914, %v6117
    %6119 = vdwg.mxu0
    %6120 = vmatprep.subr.bf16.mxu0 %v6016
    %6121 = vmatpush1.bf16.msra.mxu0 %v6015
    %6122 = vmatprep.subr.bf16.mxu0 %v6020
    %6123 = vmatpush1.bf16.msra.mxu0 %v6019
    %6124 = vmatprep.subr.bf16.mxu0 %v6024
    %6125 = vmatpush1.bf16.msra.mxu0 %v6023
    %6126 = vmatprep.subr.bf16.mxu0 %v6028
    %6127 = vmatpush1.bf16.msra.mxu0 %v6027
    %6128 = vmatprep.subr.bf16.mxu0 %v6032
    %6129 = vmatpush1.bf16.msra.mxu0 %v6031
    %6130 = vmatprep.subr.bf16.mxu0 %v6036
    %6131 = vmatpush1.bf16.msra.mxu0 %v6035
    %6132 = vmatprep.subr.bf16.mxu0 %v6040
    %6133 = vmatpush1.bf16.msra.mxu0 %v6039
    %6134 = vmatprep.subr.bf16.mxu0 %v6044
    %6135 = vmatpush1.bf16.msra.mxu0 %v6043
    %6136 = vmatprep.subr.bf16.mxu0 0
    %6137 = vmatpush1.bf16.msra.mxu0 0
    %6138 = vmatprep.subr.bf16.mxu0 0
    %6139 = vmatpush1.bf16.msra.mxu0 0
    %6140 = vmatprep.subr.bf16.mxu0 0
    %6141 = vmatpush1.bf16.msra.mxu0 0
    %6142 = vmatprep.subr.bf16.mxu0 0
    %6143 = vmatpush1.bf16.msra.mxu0 0
    %6144 = vmatprep.subr.bf16.mxu0 0
    %6145 = vmatpush1.bf16.msra.mxu0 0
    %6146 = vmatprep.subr.bf16.mxu0 0
    %6147 = vmatpush1.bf16.msra.mxu0 0
    %6148 = vmatprep.subr.bf16.mxu0 0
    %6149 = vmatpush1.bf16.msra.mxu0 0
    %6150 = vmatprep.subr.bf16.mxu0 0
    %6151 = vmatpush1.bf16.msra.mxu0 0
    %6152 = vmatprep.mubr.bf16.mxu0 0
    %6153 = vmatmul.mubr.bf16.gmra.mrb[0].mxu0 %v5872
    %v6154 = vpop.f32.mrb[0].mxu0
    %v6155 = vadd.f32 %v5911, %v6154
    %v6156 = vpop.f32.mrb[0].mxu0
    %v6157 = vadd.f32 %v5912, %v6156
    %v6158 = vpop.f32.mrb[0].mxu0
    %v6159 = vadd.f32 %v5915, %v6158
    %v6160 = vpop.f32.mrb[0].mxu0
    %v6161 = vadd.f32 %v5916, %v6160
    %6162 = vdwg.mxu0
    %v6163 = vmul.f32 %v6112, 0.5
    %v6164 = vmul.f32 %v6116, 0.5
    %v6165 = vtanh.pop %v6163
    %v6166 = vtanh.pop %v6164
    %v6167 = vmul.f32 %v6165, 0.5
    %v6168 = vmul.f32 %v6166, 0.5
    %v6169 = vadd.f32 %v6167, 0.5
    %v6170 = vadd.f32 %v6168, 0.5
    %v6171 = vmul.f32 %v6114, 0.5
    %v6172 = vmul.f32 %v6118, 0.5
    %v6173 = vtanh.pop %v6171
    %v6174 = vtanh.pop %v6172
    %v6175 = vmul.f32 %v6173, 0.5
    %v6176 = vmul.f32 %v6174, 0.5
    %v6177 = vadd.f32 %v6175, 0.5
    %v6178 = vadd.f32 %v6176, 0.5
    %v6179 = vtanh.pop %v6155
    %v6180 = vtanh.pop %v6159
    %v6181 = vmul.f32 %v6157, 0.5
    %v6182 = vmul.f32 %v6161, 0.5
    %v6183 = vtanh.pop %v6181
    %v6184 = vtanh.pop %v6182
    %v6185 = vmul.f32 %v6183, 0.5
    %v6186 = vmul.f32 %v6184, 0.5
    %v6187 = vadd.f32 %v6185, 0.5
    %v6188 = vadd.f32 %v6186, 0.5
    %v6189 = vld [vmem:[#allocation5] sm:$0xff]
    %v6190 = vld [vmem:[#allocation5 + $0x8] sm:$0xff]
    %v6191 = vmul.f32 %v6177, %v6189
    %v6192 = vmul.f32 %v6178, %v6190
    %v6193 = vmul.f32 %v6169, %v6179
    %v6194 = vmul.f32 %v6170, %v6180
    %v6195 = vadd.f32 %v6191, %v6193
    %v6196 = vadd.f32 %v6192, %v6194
    %v6197 = vtanh.pop %v6195
    %v6198 = vtanh.pop %v6196
    %v6199 = vmul.f32 %v6187, %v6197
    %v6200 = vmul.f32 %v6188, %v6198
    %v6201 = vpack.c.bf16 %v6200, %v6199
    %6202 = vst [vmem:[#allocation5] sm:$0xff] %v6195
    %6203 = vst [vmem:[#allocation5 + $0x8] sm:$0xff] %v6196
    %6204 = vst [vmem:[#allocation4] sm:$0xff] %v6201
    %v6205 = vld [vmem:[#allocation4] sm:$0xff]
    %v6206 = vld [vmem:[#allocation14] sm:$0xff]
    %v6207 = vld [vmem:[#allocation14 + $0x8] sm:$0xff]
    %v6208 = vld [vmem:[#allocation14 + $0x10] sm:$0xff]
    %v6209 = vld [vmem:[#allocation14 + $0x18] sm:$0xff]
    %v6210 = vld [vmem:[#allocation14 + $0x20] sm:$0xff]
    %v6211 = vld [vmem:[#allocation14 + $0x28] sm:$0xff]
    %v6212 = vld [vmem:[#allocation14 + $0x30] sm:$0xff]
    %v6213 = vld [vmem:[#allocation14 + $0x38] sm:$0xff]
    %v6214 = vld [vmem:[#allocation14 + $0x40] sm:$0xff]
    %v6215 = vld [vmem:[#allocation14 + $0x48] sm:$0xff]
    %v6216 = vld [vmem:[#allocation14 + $0x50] sm:$0xff]
    %v6217 = vld [vmem:[#allocation14 + $0x58] sm:$0xff]
    %v6218 = vld [vmem:[#allocation14 + $0x60] sm:$0xff]
    %v6219 = vld [vmem:[#allocation14 + $0x68] sm:$0xff]
    %v6220 = vld [vmem:[#allocation14 + $0x70] sm:$0xff]
    %v6221 = vld [vmem:[#allocation14 + $0x78] sm:$0xff]
    %v6222 = vld [vmem:[#allocation14 + $0x80] sm:$0xff]
    %v6223 = vld [vmem:[#allocation14 + $0x88] sm:$0xff]
    %v6224 = vld [vmem:[#allocation14 + $0x90] sm:$0xff]
    %v6225 = vld [vmem:[#allocation14 + $0x98] sm:$0xff]
    %v6226 = vld [vmem:[#allocation14 + $0xa0] sm:$0xff]
    %v6227 = vld [vmem:[#allocation14 + $0xa8] sm:$0xff]
    %v6228 = vld [vmem:[#allocation14 + $0xb0] sm:$0xff]
    %v6229 = vld [vmem:[#allocation14 + $0xb8] sm:$0xff]
    %v6230 = vld [vmem:[#allocation14 + $0xc0] sm:$0xff]
    %v6231 = vld [vmem:[#allocation14 + $0xc8] sm:$0xff]
    %v6232 = vld [vmem:[#allocation14 + $0xd0] sm:$0xff]
    %v6233 = vld [vmem:[#allocation14 + $0xd8] sm:$0xff]
    %v6234 = vld [vmem:[#allocation14 + $0xe0] sm:$0xff]
    %v6235 = vld [vmem:[#allocation14 + $0xe8] sm:$0xff]
    %v6236 = vld [vmem:[#allocation14 + $0xf0] sm:$0xff]
    %v6237 = vld [vmem:[#allocation14 + $0xf8] sm:$0xff]
    %v6238 = vld [vmem:[#allocation3 + $0xe0] sm:$0xff]
    %v6239 = vld [vmem:[#allocation3 + $0xe8] sm:$0xff]
    %v6240 = vld [vmem:[#allocation3 + $0xf0] sm:$0xff]
    %v6241 = vld [vmem:[#allocation3 + $0xf8] sm:$0xff]
    %v6242 = vunpack.c.l.bf16 %v6238
    %v6243 = vunpack.c.l.bf16 %v6239
    %v6244 = vunpack.c.l.bf16 %v6240
    %v6245 = vunpack.c.l.bf16 %v6241
    %v6246 = vunpack.c.h.bf16 %v6238
    %v6247 = vunpack.c.h.bf16 %v6239
    %v6248 = vunpack.c.h.bf16 %v6240
    %v6249 = vunpack.c.h.bf16 %v6241
    %v6282 = vunpack.c.l.b16 %v6206
    %v6283 = vunpack.c.h.b16 %v6206
    %v6284 = vunpack.c.l.b16 %v6207
    %v6285 = vunpack.c.h.b16 %v6207
    %v6286 = vunpack.c.l.b16 %v6208
    %v6287 = vunpack.c.h.b16 %v6208
    %v6288 = vunpack.c.l.b16 %v6209
    %v6289 = vunpack.c.h.b16 %v6209
    %v6290 = vunpack.c.l.b16 %v6210
    %v6291 = vunpack.c.h.b16 %v6210
    %v6292 = vunpack.c.l.b16 %v6211
    %v6293 = vunpack.c.h.b16 %v6211
    %v6294 = vunpack.c.l.b16 %v6212
    %v6295 = vunpack.c.h.b16 %v6212
    %v6296 = vunpack.c.l.b16 %v6213
    %v6297 = vunpack.c.h.b16 %v6213
    %v6298 = vunpack.c.l.b16 %v6214
    %v6299 = vunpack.c.h.b16 %v6214
    %v6300 = vunpack.c.l.b16 %v6215
    %v6301 = vunpack.c.h.b16 %v6215
    %v6302 = vunpack.c.l.b16 %v6216
    %v6303 = vunpack.c.h.b16 %v6216
    %v6304 = vunpack.c.l.b16 %v6217
    %v6305 = vunpack.c.h.b16 %v6217
    %v6306 = vunpack.c.l.b16 %v6218
    %v6307 = vunpack.c.h.b16 %v6218
    %v6308 = vunpack.c.l.b16 %v6219
    %v6309 = vunpack.c.h.b16 %v6219
    %v6310 = vunpack.c.l.b16 %v6220
    %v6311 = vunpack.c.h.b16 %v6220
    %v6312 = vunpack.c.l.b16 %v6221
    %v6313 = vunpack.c.h.b16 %v6221
    %v6314 = vunpack.c.l.b16 %v6222
    %v6315 = vunpack.c.h.b16 %v6222
    %v6316 = vunpack.c.l.b16 %v6223
    %v6317 = vunpack.c.h.b16 %v6223
    %v6318 = vunpack.c.l.b16 %v6224
    %v6319 = vunpack.c.h.b16 %v6224
    %v6320 = vunpack.c.l.b16 %v6225
    %v6321 = vunpack.c.h.b16 %v6225
    %v6322 = vunpack.c.l.b16 %v6226
    %v6323 = vunpack.c.h.b16 %v6226
    %v6324 = vunpack.c.l.b16 %v6227
    %v6325 = vunpack.c.h.b16 %v6227
    %v6326 = vunpack.c.l.b16 %v6228
    %v6327 = vunpack.c.h.b16 %v6228
    %v6328 = vunpack.c.l.b16 %v6229
    %v6329 = vunpack.c.h.b16 %v6229
    %v6330 = vunpack.c.l.b16 %v6230
    %v6331 = vunpack.c.h.b16 %v6230
    %v6332 = vunpack.c.l.b16 %v6231
    %v6333 = vunpack.c.h.b16 %v6231
    %v6334 = vunpack.c.l.b16 %v6232
    %v6335 = vunpack.c.h.b16 %v6232
    %v6336 = vunpack.c.l.b16 %v6233
    %v6337 = vunpack.c.h.b16 %v6233
    %v6338 = vunpack.c.l.b16 %v6234
    %v6339 = vunpack.c.h.b16 %v6234
    %v6340 = vunpack.c.l.b16 %v6235
    %v6341 = vunpack.c.h.b16 %v6235
    %v6342 = vunpack.c.l.b16 %v6236
    %v6343 = vunpack.c.h.b16 %v6236
    %v6344 = vunpack.c.l.b16 %v6237
    %v6345 = vunpack.c.h.b16 %v6237
    %v6346 = vpack.c.b16 %v6286, %v6282
    %v6347 = vpack.c.b16 %v6287, %v6283
    %v6348 = vpack.c.b16 %v6288, %v6284
    %v6349 = vpack.c.b16 %v6289, %v6285
    %v6350 = vpack.c.b16 %v6294, %v6290
    %v6351 = vpack.c.b16 %v6295, %v6291
    %v6352 = vpack.c.b16 %v6296, %v6292
    %v6353 = vpack.c.b16 %v6297, %v6293
    %v6354 = vpack.c.b16 %v6302, %v6298
    %v6355 = vpack.c.b16 %v6303, %v6299
    %v6356 = vpack.c.b16 %v6304, %v6300
    %v6357 = vpack.c.b16 %v6305, %v6301
    %v6358 = vpack.c.b16 %v6310, %v6306
    %v6359 = vpack.c.b16 %v6311, %v6307
    %v6360 = vpack.c.b16 %v6312, %v6308
    %v6361 = vpack.c.b16 %v6313, %v6309
    %v6362 = vpack.c.b16 %v6318, %v6314
    %v6363 = vpack.c.b16 %v6319, %v6315
    %v6364 = vpack.c.b16 %v6320, %v6316
    %v6365 = vpack.c.b16 %v6321, %v6317
    %v6366 = vpack.c.b16 %v6326, %v6322
    %v6367 = vpack.c.b16 %v6327, %v6323
    %v6368 = vpack.c.b16 %v6328, %v6324
    %v6369 = vpack.c.b16 %v6329, %v6325
    %v6370 = vpack.c.b16 %v6334, %v6330
    %v6371 = vpack.c.b16 %v6335, %v6331
    %v6372 = vpack.c.b16 %v6336, %v6332
    %v6373 = vpack.c.b16 %v6337, %v6333
    %v6374 = vpack.c.b16 %v6342, %v6338
    %v6375 = vpack.c.b16 %v6343, %v6339
    %v6376 = vpack.c.b16 %v6344, %v6340
    %v6377 = vpack.c.b16 %v6345, %v6341
    %6410 = vmatprep.subr.bf16.mxu0 %v6347
    %6411 = vmatpush1.bf16.msra.mxu0 %v6346
    %6412 = vmatprep.subr.bf16.mxu0 %v6351
    %6413 = vmatpush1.bf16.msra.mxu0 %v6350
    %6414 = vmatprep.subr.bf16.mxu0 %v6355
    %6415 = vmatpush1.bf16.msra.mxu0 %v6354
    %6416 = vmatprep.subr.bf16.mxu0 %v6359
    %6417 = vmatpush1.bf16.msra.mxu0 %v6358
    %6418 = vmatprep.subr.bf16.mxu0 %v6363
    %6419 = vmatpush1.bf16.msra.mxu0 %v6362
    %6420 = vmatprep.subr.bf16.mxu0 %v6367
    %6421 = vmatpush1.bf16.msra.mxu0 %v6366
    %6422 = vmatprep.subr.bf16.mxu0 %v6371
    %6423 = vmatpush1.bf16.msra.mxu0 %v6370
    %6424 = vmatprep.subr.bf16.mxu0 %v6375
    %6425 = vmatpush1.bf16.msra.mxu0 %v6374
    %6426 = vmatprep.subr.bf16.mxu0 0
    %6427 = vmatpush1.bf16.msra.mxu0 0
    %6428 = vmatprep.subr.bf16.mxu0 0
    %6429 = vmatpush1.bf16.msra.mxu0 0
    %6430 = vmatprep.subr.bf16.mxu0 0
    %6431 = vmatpush1.bf16.msra.mxu0 0
    %6432 = vmatprep.subr.bf16.mxu0 0
    %6433 = vmatpush1.bf16.msra.mxu0 0
    %6434 = vmatprep.subr.bf16.mxu0 0
    %6435 = vmatpush1.bf16.msra.mxu0 0
    %6436 = vmatprep.subr.bf16.mxu0 0
    %6437 = vmatpush1.bf16.msra.mxu0 0
    %6438 = vmatprep.subr.bf16.mxu0 0
    %6439 = vmatpush1.bf16.msra.mxu0 0
    %6440 = vmatprep.subr.bf16.mxu0 0
    %6441 = vmatpush1.bf16.msra.mxu0 0
    %6442 = vmatprep.mubr.bf16.mxu0 0
    %6443 = vmatmul.mubr.bf16.gmra.mrb[0].mxu0 %v6205
    %v6444 = vpop.f32.mrb[0].mxu0
    %v6445 = vadd.f32 %v6242, %v6444
    %v6446 = vpop.f32.mrb[0].mxu0
    %v6447 = vadd.f32 %v6243, %v6446
    %v6448 = vpop.f32.mrb[0].mxu0
    %v6449 = vadd.f32 %v6246, %v6448
    %v6450 = vpop.f32.mrb[0].mxu0
    %v6451 = vadd.f32 %v6247, %v6450
    %6452 = vdwg.mxu0
    %6453 = vmatprep.subr.bf16.mxu0 %v6349
    %6454 = vmatpush1.bf16.msra.mxu0 %v6348
    %6455 = vmatprep.subr.bf16.mxu0 %v6353
    %6456 = vmatpush1.bf16.msra.mxu0 %v6352
    %6457 = vmatprep.subr.bf16.mxu0 %v6357
    %6458 = vmatpush1.bf16.msra.mxu0 %v6356
    %6459 = vmatprep.subr.bf16.mxu0 %v6361
    %6460 = vmatpush1.bf16.msra.mxu0 %v6360
    %6461 = vmatprep.subr.bf16.mxu0 %v6365
    %6462 = vmatpush1.bf16.msra.mxu0 %v6364
    %6463 = vmatprep.subr.bf16.mxu0 %v6369
    %6464 = vmatpush1.bf16.msra.mxu0 %v6368
    %6465 = vmatprep.subr.bf16.mxu0 %v6373
    %6466 = vmatpush1.bf16.msra.mxu0 %v6372
    %6467 = vmatprep.subr.bf16.mxu0 %v6377
    %6468 = vmatpush1.bf16.msra.mxu0 %v6376
    %6469 = vmatprep.subr.bf16.mxu0 0
    %6470 = vmatpush1.bf16.msra.mxu0 0
    %6471 = vmatprep.subr.bf16.mxu0 0
    %6472 = vmatpush1.bf16.msra.mxu0 0
    %6473 = vmatprep.subr.bf16.mxu0 0
    %6474 = vmatpush1.bf16.msra.mxu0 0
    %6475 = vmatprep.subr.bf16.mxu0 0
    %6476 = vmatpush1.bf16.msra.mxu0 0
    %6477 = vmatprep.subr.bf16.mxu0 0
    %6478 = vmatpush1.bf16.msra.mxu0 0
    %6479 = vmatprep.subr.bf16.mxu0 0
    %6480 = vmatpush1.bf16.msra.mxu0 0
    %6481 = vmatprep.subr.bf16.mxu0 0
    %6482 = vmatpush1.bf16.msra.mxu0 0
    %6483 = vmatprep.subr.bf16.mxu0 0
    %6484 = vmatpush1.bf16.msra.mxu0 0
    %6485 = vmatprep.mubr.bf16.mxu0 0
    %6486 = vmatmul.mubr.bf16.gmra.mrb[0].mxu0 %v6205
    %v6487 = vpop.f32.mrb[0].mxu0
    %v6488 = vadd.f32 %v6244, %v6487
    %v6489 = vpop.f32.mrb[0].mxu0
    %v6490 = vadd.f32 %v6245, %v6489
    %v6491 = vpop.f32.mrb[0].mxu0
    %v6492 = vadd.f32 %v6248, %v6491
    %v6493 = vpop.f32.mrb[0].mxu0
    %v6494 = vadd.f32 %v6249, %v6493
    %6495 = vdwg.mxu0
    %v6496 = vmul.f32 %v6445, 0.5
    %v6497 = vmul.f32 %v6449, 0.5
    %v6498 = vtanh.pop %v6496
    %v6499 = vtanh.pop %v6497
    %v6500 = vmul.f32 %v6498, 0.5
    %v6501 = vmul.f32 %v6499, 0.5
    %v6502 = vadd.f32 %v6500, 0.5
    %v6503 = vadd.f32 %v6501, 0.5
    %v6504 = vmul.f32 %v6447, 0.5
    %v6505 = vmul.f32 %v6451, 0.5
    %v6506 = vtanh.pop %v6504
    %v6507 = vtanh.pop %v6505
    %v6508 = vmul.f32 %v6506, 0.5
    %v6509 = vmul.f32 %v6507, 0.5
    %v6510 = vadd.f32 %v6508, 0.5
    %v6511 = vadd.f32 %v6509, 0.5
    %v6512 = vtanh.pop %v6488
    %v6513 = vtanh.pop %v6492
    %v6514 = vmul.f32 %v6490, 0.5
    %v6515 = vmul.f32 %v6494, 0.5
    %v6516 = vtanh.pop %v6514
    %v6517 = vtanh.pop %v6515
    %v6518 = vmul.f32 %v6516, 0.5
    %v6519 = vmul.f32 %v6517, 0.5
    %v6520 = vadd.f32 %v6518, 0.5
    %v6521 = vadd.f32 %v6519, 0.5
    %v6522 = vld [vmem:[#allocation5] sm:$0xff]
    %v6523 = vld [vmem:[#allocation5 + $0x8] sm:$0xff]
    %v6524 = vmul.f32 %v6510, %v6522
    %v6525 = vmul.f32 %v6511, %v6523
    %v6526 = vmul.f32 %v6502, %v6512
    %v6527 = vmul.f32 %v6503, %v6513
    %v6528 = vadd.f32 %v6524, %v6526
    %v6529 = vadd.f32 %v6525, %v6527
    %v6530 = vtanh.pop %v6528
    %v6531 = vtanh.pop %v6529
    %v6532 = vmul.f32 %v6520, %v6530
    %v6533 = vmul.f32 %v6521, %v6531
    %v6534 = vpack.c.bf16 %v6533, %v6532
    %6535 = vst [vmem:[#allocation5] sm:$0xff] %v6528
    %6536 = vst [vmem:[#allocation5 + $0x8] sm:$0xff] %v6529
    %6537 = vst [vmem:[#allocation4] sm:$0xff] %v6534
    %v6538 = vld [vmem:[#allocation4] sm:$0xff]
    %v6539 = vld [vmem:[#allocation15] sm:$0xf]
    %v6540 = vld [vmem:[#allocation15 + $0x4] sm:$0xf]
    %v6541 = vld [vmem:[#allocation15 + $0x8] sm:$0xf]
    %v6542 = vld [vmem:[#allocation15 + $0xc] sm:$0xf]
    %v6543 = vld [vmem:[#allocation15 + $0x10] sm:$0xf]
    %v6544 = vld [vmem:[#allocation15 + $0x14] sm:$0xf]
    %v6545 = vld [vmem:[#allocation15 + $0x18] sm:$0xf]
    %v6546 = vld [vmem:[#allocation15 + $0x1c] sm:$0xf]
    %v6547 = vld [vmem:[#allocation15 + $0x20] sm:$0xf]
    %v6548 = vld [vmem:[#allocation15 + $0x24] sm:$0xf]
    %v6549 = vld [vmem:[#allocation15 + $0x28] sm:$0xf]
    %v6550 = vld [vmem:[#allocation15 + $0x2c] sm:$0xf]
    %v6551 = vld [vmem:[#allocation15 + $0x30] sm:$0xf]
    %v6552 = vld [vmem:[#allocation15 + $0x34] sm:$0xf]
    %v6553 = vld [vmem:[#allocation15 + $0x38] sm:$0xf]
    %v6554 = vld [vmem:[#allocation15 + $0x3c] sm:$0xf]
    %v6555 = vld [vmem:[%s8] sm:$0x1]
    %v6557 = vlaneseq
    %v6558 = vshrl.u32 %v6557, 7
    %v6559 = vsub.s32 0, %v6558
    %v6560 = vrot.slane %v6555, %v6559
    %v6578 = vunpack.c.l.b16 %v6539
    %v6579 = vunpack.c.l.b16 %v6540
    %v6580 = vunpack.c.l.b16 %v6541
    %v6581 = vunpack.c.l.b16 %v6542
    %v6582 = vunpack.c.l.b16 %v6543
    %v6583 = vunpack.c.l.b16 %v6544
    %v6584 = vunpack.c.l.b16 %v6545
    %v6585 = vunpack.c.l.b16 %v6546
    %v6586 = vunpack.c.l.b16 %v6547
    %v6587 = vunpack.c.l.b16 %v6548
    %v6588 = vunpack.c.l.b16 %v6549
    %v6589 = vunpack.c.l.b16 %v6550
    %v6590 = vunpack.c.l.b16 %v6551
    %v6591 = vunpack.c.l.b16 %v6552
    %v6592 = vunpack.c.l.b16 %v6553
    %v6593 = vunpack.c.l.b16 %v6554
    %v6594 = vpack.c.b16 %v6579, %v6578
    %v6595 = vpack.c.b16 %v6581, %v6580
    %v6596 = vpack.c.b16 %v6583, %v6582
    %v6597 = vpack.c.b16 %v6585, %v6584
    %v6598 = vpack.c.b16 %v6587, %v6586
    %v6599 = vpack.c.b16 %v6589, %v6588
    %v6600 = vpack.c.b16 %v6591, %v6590
    %v6601 = vpack.c.b16 %v6593, %v6592
    %6610 = vmatprep.subr.bf16.mxu0 0
    %6611 = vmatpush1.bf16.msra.mxu0 %v6594
    %6612 = vmatprep.subr.bf16.mxu0 0
    %6613 = vmatpush1.bf16.msra.mxu0 %v6595
    %6614 = vmatprep.subr.bf16.mxu0 0
    %6615 = vmatpush1.bf16.msra.mxu0 %v6596
    %6616 = vmatprep.subr.bf16.mxu0 0
    %6617 = vmatpush1.bf16.msra.mxu0 %v6597
    %6618 = vmatprep.subr.bf16.mxu0 0
    %6619 = vmatpush1.bf16.msra.mxu0 %v6598
    %6620 = vmatprep.subr.bf16.mxu0 0
    %6621 = vmatpush1.bf16.msra.mxu0 %v6599
    %6622 = vmatprep.subr.bf16.mxu0 0
    %6623 = vmatpush1.bf16.msra.mxu0 %v6600
    %6624 = vmatprep.subr.bf16.mxu0 0
    %6625 = vmatpush1.bf16.msra.mxu0 %v6601
    %6626 = vmatprep.subr.bf16.mxu0 0
    %6627 = vmatpush1.bf16.msra.mxu0 0
    %6628 = vmatprep.subr.bf16.mxu0 0
    %6629 = vmatpush1.bf16.msra.mxu0 0
    %6630 = vmatprep.subr.bf16.mxu0 0
    %6631 = vmatpush1.bf16.msra.mxu0 0
    %6632 = vmatprep.subr.bf16.mxu0 0
    %6633 = vmatpush1.bf16.msra.mxu0 0
    %6634 = vmatprep.subr.bf16.mxu0 0
    %6635 = vmatpush1.bf16.msra.mxu0 0
    %6636 = vmatprep.subr.bf16.mxu0 0
    %6637 = vmatpush1.bf16.msra.mxu0 0
    %6638 = vmatprep.subr.bf16.mxu0 0
    %6639 = vmatpush1.bf16.msra.mxu0 0
    %6640 = vmatprep.subr.bf16.mxu0 0
    %6641 = vmatpush1.bf16.msra.mxu0 0
    %6642 = vmatprep.mubr.bf16.mxu0 0
    %6643 = vmatmul.mubr.bf16.gmra.mrb[0].mxu0 %v6538
    %v6644 = vpop.f32.mrb[0].mxu0
    %v6645 = vadd.f32 %v6560, %v6644
    %v6646 = vpop.f32.mrb[0].mxu0
    %v6647 = vpop.f32.mrb[0].mxu0
    %v6648 = vadd.f32 %v6560, %v6647
    %v6649 = vpop.f32.mrb[0].mxu0
    %6650 = vdwg.mxu0
    %6651 = vst [vmem:[#allocation17] sm:$0xff] %v6645
    %6652 = vst [vmem:[#allocation17 + $0x8] sm:$0xff] %v6648
    // Predicated region
    $region62: #{tpu_custom_call.1} parent=1 // pred_check
      _
    $region63: #{tpu_custom_call.1} parent=1 // pred_check_branch
      %6654 = sbr.rel (0) target = $region65
    $region64: #{tpu_custom_call.1} parent=1 // pred_region
      %s6656 = ssub.s32 256, 256
      %6657 = vsyncadd [#allocation8], %s6656
      %s6658 = sshll.u32 [#allocation17], 4
      %s6659 = int_to_ptr.vmem [resolvable:$true] %s6658
      %6664 = dma.vmem_to_hbm [thread:$0]  %s6659, 256, %s9, [#allocation8], 128, 128, 8
    $region65: #{tpu_custom_call.1} parent=1 // pred_fallthru
      _
    // Predicated region
    $region66: #{tpu_custom_call.1} parent=1 // pred_check
      _
    $region67: #{tpu_custom_call.1} parent=1 // pred_check_branch
      %6666 = sbr.rel (0) target = $region69
    $region68: #{tpu_custom_call.1} parent=1 // pred_region
      %6667 = dma.done [#allocation8], 256
    $region69: #{tpu_custom_call.1} parent=1 // pred_fallthru
      _
    %6668 = vsyncpa [#allocation7], 1
    %6669 = vsyncpa [#allocation10], 1
    %6670 = vsyncpa [#allocation13], 1
    %6671 = vsyncpa [#allocation16], 1
    %6672 = vsyncpa [#allocation8], 1

</llo_original>
